<compile_context>
chip_gen: v7x
topology: tpu7x:2x2x1
jax: 0.10.0
libtpu: 0.0.40
codegen_flags: <defaults>
</compile_context>

<pallas_src>
import math
import functools

import jax
import jax.numpy as jnp
from jax.experimental import pallas as pl
from jax.experimental.pallas import tpu as pltpu

LN_EPS = 1e-12


# ----------------------------------------------------------------------------
# In-kernel helpers
# ----------------------------------------------------------------------------
def _layernorm(x, w, b):
    """BERT-style LayerNorm over the last dim (eps=1e-12)."""
    u = jnp.mean(x, axis=-1, keepdims=True)
    s = jnp.mean((x - u) ** 2, axis=-1, keepdims=True)
    return (x - u) / jnp.sqrt(s + LN_EPS) * w + b


def _gelu(x):
    return 0.5 * x * (1.0 + jax.lax.erf(x * (1.0 / math.sqrt(2.0))))


# ----------------------------------------------------------------------------
# Fused ContrastVAE kernel: one grid step == one batch element, full forward.
# ----------------------------------------------------------------------------
def contrast_vae_kernel(num_heads, n_layers,
                        ids_ref, item_ref, pos_ref, embln_ref,
                        wq_ref, wk_ref, wv_ref, wo_ref, bqkv_ref,
                        w1_ref, w2_ref, b1_ref, vecs_ref,
                        rec_ref, mu_ref, lv_ref, z_ref):
    L, H = item_ref.shape[1], item_ref.shape[2]
    dh = H // num_heads
    scale = 1.0 / math.sqrt(dh)

    # ---- item embedding + position embedding, then LayerNorm (dropout=id) ----
    x0 = item_ref[0] + pos_ref[...]                                  # (L, H)
    x0 = _layernorm(x0, embln_ref[0:1, :], embln_ref[1:2, :])

    # ---- additive causal + padding mask, built in-kernel (no HBM mask) ----
    ids = ids_ref[0]                                                 # (1, L) i32
    key_valid = ids > 0                                              # (1, L)
    row = jax.lax.broadcasted_iota(jnp.int32, (L, L), 0)
    col = jax.lax.broadcasted_iota(jnp.int32, (L, L), 1)
    visible = jnp.logical_and(row >= col, key_valid)                 # (L, L)
    mask = jnp.where(visible, 0.0, -10000.0)                         # additive

    # ---- one transformer layer (self-attention + GELU FFN, post-LN) ----
    def layer(x, fl):
        vecs = vecs_ref[fl]                                          # (8, H)
        bo, b2 = vecs[0:1, :], vecs[1:2, :]
        ln1w, ln1b = vecs[2:3, :], vecs[3:4, :]
        ln2w, ln2b = vecs[4:5, :], vecs[5:6, :]

        attn = jnp.zeros((L, H), jnp.float32)
        for h in range(num_heads):                                   # static unroll
            hi = fl * num_heads + h
            q = jnp.dot(x, wq_ref[hi],
                        preferred_element_type=jnp.float32) + bqkv_ref[3 * hi + 0]
            k = jnp.dot(x, wk_ref[hi],
                        preferred_element_type=jnp.float32) + bqkv_ref[3 * hi + 1]
            v = jnp.dot(x, wv_ref[hi],
                        preferred_element_type=jnp.float32) + bqkv_ref[3 * hi + 2]
            s = jnp.dot(q, k.T, preferred_element_type=jnp.float32) * scale + mask
            s = s - jnp.max(s, axis=-1, keepdims=True)
            p = jnp.exp(s)
            p = p * pl.reciprocal(jnp.sum(p, axis=-1, keepdims=True), approx=True)
            ctx = jnp.dot(p, v, preferred_element_type=jnp.float32)  # (L, dh)
            # per-head output projection slice -> accumulate, no concatenate
            attn = attn + jnp.dot(ctx, wo_ref[hi],
                                  preferred_element_type=jnp.float32)
        attn = attn + bo

        h1 = _layernorm(attn + x, ln1w, ln1b)
        inter = jnp.dot(h1, w1_ref[fl],
                        preferred_element_type=jnp.float32) + b1_ref[fl]
        inter = _gelu(inter)
        ffn = jnp.dot(inter, w2_ref[fl],
                      preferred_element_type=jnp.float32) + b2
        return _layernorm(ffn + h1, ln2w, ln2b)

    # ---- encoder (mu), encoder (logvar), reparam, decoder ----
    mu = x0
    for l in range(n_layers):
        mu = layer(mu, 0 * n_layers + l)
    lv = x0
    for l in range(n_layers):
        lv = layer(lv, 1 * n_layers + l)

    # eval-mode reparameterization1/2: z = mu + exp(0.5 * logvar)
    z = mu + jnp.exp(0.5 * lv)

    rec = z
    for l in range(n_layers):
        rec = layer(rec, 2 * n_layers + l)

    rec_ref[0] = rec
    mu_ref[0] = mu
    lv_ref[0] = lv
    z_ref[0] = z


# ----------------------------------------------------------------------------
# Weight packing: stack all 3 stacks' layers, pre-split Q/K/V/O per head
# ----------------------------------------------------------------------------
def pack_stack_params(stacks, H, I, num_heads, dh):
    wq_l, wk_l, wv_l, wo_l, bqkv_l = [], [], [], [], []
    w1_l, w2_l, b1_l, vecs_l = [], [], [], []
    for stack in stacks:
        for p in stack:
            for h in range(num_heads):
                cs = slice(h * dh, (h + 1) * dh)
                wq_l.append(p["wq"][:, cs])                  # (H, dh)
                wk_l.append(p["wk"][:, cs])
                wv_l.append(p["wv"][:, cs])
                wo_l.append(p["wo"][cs, :])                  # (dh, H)
                bqkv_l.append(p["bq"][cs].reshape(1, dh))
                bqkv_l.append(p["bk"][cs].reshape(1, dh))
                bqkv_l.append(p["bv"][cs].reshape(1, dh))
            w1_l.append(p["w1"])
            w2_l.append(p["w2"])
            b1_l.append(p["b1"].reshape(1, I))
            zero_h = jnp.zeros((H,), jnp.float32)
            vecs_l.append(jnp.stack([p["bo"], p["b2"],
                                     p["ln1_w"], p["ln1_b"],
                                     p["ln2_w"], p["ln2_b"],
                                     zero_h, zero_h]))       # (8, H)
    return {
        "wq": jnp.stack(wq_l), "wk": jnp.stack(wk_l), "wv": jnp.stack(wv_l),
        "wo": jnp.stack(wo_l), "bqkv": jnp.stack(bqkv_l),
        "w1": jnp.stack(w1_l), "w2": jnp.stack(w2_l),
        "b1": jnp.stack(b1_l), "vecs": jnp.stack(vecs_l),
    }


# ----------------------------------------------------------------------------
# Forward wrapper: one pallas_call for the whole model
# ----------------------------------------------------------------------------
def contrast_vae_forward(params, input_ids, num_heads):
    B, L = input_ids.shape
    H = params["item_emb"].shape[1]
    n_layers = len(params["enc_mu"])
    I = params["enc_mu"][0]["w1"].shape[1]
    assert H % num_heads == 0
    dh = H // num_heads

    # embedding gather stays in plain XLA (single fused gather)
    item_emb = jnp.take(params["item_emb"], input_ids, axis=0)       # (B, L, H)
    pos_emb = params["pos_emb"][:L]                                  # (L, H)
    emb_ln = jnp.stack([params["ln_w"], params["ln_b"]])             # (2, H)

    packed = pack_stack_params(
        [params["enc_mu"], params["enc_lv"], params["dec"]], H, I, num_heads, dh)

    ids3 = input_ids.reshape(B, 1, L).astype(jnp.int32)              # (B, 1, L)

    SLH = 3 * n_layers * num_heads          # stacks * layers * heads
    SL = 3 * n_layers                       # stacks * layers

    const3 = lambda b: (0, 0, 0)
    const2 = lambda b: (0, 0)
    per_b3 = lambda b: (b, 0, 0)
    out_spec = pl.BlockSpec((1, L, H), per_b3)

    kernel = functools.partial(contrast_vae_kernel, num_heads, n_layers)

    rec1, mu1, lv1, z1 = pl.pallas_call(
        kernel,
        out_shape=tuple(jax.ShapeDtypeStruct((B, L, H), jnp.float32)
                        for _ in range(4)),
        grid=(B,),
        in_specs=[
            pl.BlockSpec((1, 1, L), per_b3),               # input ids (mask)
            pl.BlockSpec((1, L, H), per_b3),               # gathered item emb
            pl.BlockSpec((L, H), const2),                  # position emb
            pl.BlockSpec((2, H), const2),                  # embedding LN (w; b)
            pl.BlockSpec((SLH, H, dh), const3),            # Wq  per (stack,layer,head)
            pl.BlockSpec((SLH, H, dh), const3),            # Wk
            pl.BlockSpec((SLH, H, dh), const3),            # Wv
            pl.BlockSpec((SLH, dh, H), const3),            # Wo  per-head slice
            pl.BlockSpec((3 * SLH, 1, dh), const3),        # q/k/v biases
            pl.BlockSpec((SL, H, I), const3),              # FFN W1
            pl.BlockSpec((SL, I, H), const3),              # FFN W2
            pl.BlockSpec((SL, 1, I), const3),              # FFN b1
            pl.BlockSpec((SL, 8, H), const3),              # [bo,b2,ln1w,ln1b,ln2w,ln2b,0,0]
        ],
        out_specs=tuple(out_spec for _ in range(4)),
        compiler_params=pltpu.CompilerParams(
            dimension_semantics=("parallel",)),            # v7x: 2 TCs split batch
    )(ids3, item_emb, pos_emb, emb_ln,
      packed["wq"], packed["wk"], packed["wv"], packed["wo"], packed["bqkv"],
      packed["w1"], packed["w2"], packed["b1"], packed["vecs"])

    # Eval-mode dedup: the second encode/decode pass of the torch code uses the
    # same inputs and modules with dropout disabled -> bit-identical outputs.
    return (rec1, rec1, mu1, mu1, lv1, lv1, z1, z1)


# ----------------------------------------------------------------------------
# Parameter construction (deterministic; weights as (in, out) == torch W.T)
# ----------------------------------------------------------------------------
def make_layer_params(key, H, I, std=0.02):
    ks = jax.random.split(key, 6)
    return {
        "wq": std * jax.random.normal(ks[0], (H, H), jnp.float32),
        "bq": jnp.zeros((H,), jnp.float32),
        "wk": std * jax.random.normal(ks[1], (H, H), jnp.float32),
        "bk": jnp.zeros((H,), jnp.float32),
        "wv": std * jax.random.normal(ks[2], (H, H), jnp.float32),
        "bv": jnp.zeros((H,), jnp.float32),
        "wo": std * jax.random.normal(ks[3], (H, H), jnp.float32),
        "bo": jnp.zeros((H,), jnp.float32),
        "ln1_w": jnp.ones((H,), jnp.float32),
        "ln1_b": jnp.zeros((H,), jnp.float32),
        "w1": std * jax.random.normal(ks[4], (H, I), jnp.float32),
        "b1": jnp.zeros((I,), jnp.float32),
        "w2": std * jax.random.normal(ks[5], (I, H), jnp.float32),
        "b2": jnp.zeros((H,), jnp.float32),
        "ln2_w": jnp.ones((H,), jnp.float32),
        "ln2_b": jnp.zeros((H,), jnp.float32),
    }


def make_model_params(key, item_size, max_len, H, I, n_layers, std=0.02):
    k_item, k_pos, k_mu, k_lv, k_dec = jax.random.split(key, 5)
    return {
        "item_emb": std * jax.random.normal(k_item, (item_size, H), jnp.float32),
        "pos_emb": std * jax.random.normal(k_pos, (max_len, H), jnp.float32),
        "ln_w": jnp.ones((H,), jnp.float32),
        "ln_b": jnp.zeros((H,), jnp.float32),
        "enc_mu": [make_layer_params(k, H, I, std)
                   for k in jax.random.split(k_mu, n_layers)],
        "enc_lv": [make_layer_params(k, H, I, std)
                   for k in jax.random.split(k_lv, n_layers)],
        "dec": [make_layer_params(k, H, I, std)
                for k in jax.random.split(k_dec, n_layers)],
        "temperature": jnp.zeros((1,), jnp.float32),   # unused in forward
    }


# ----------------------------------------------------------------------------
# Main
# ----------------------------------------------------------------------------
if __name__ == "__main__":
    B, L, H = 2, 8, 32
    NUM_HEADS = 2
    INTERMEDIATE = 4 * H
    ITEM_SIZE = 50
    MAX_LEN = L
    N_LAYERS = 2

    key = jax.random.PRNGKey(0)
    k_params, k_ids, k_aug = jax.random.split(key, 3)

    params = make_model_params(k_params, ITEM_SIZE, MAX_LEN, H,
                               INTERMEDIATE, N_LAYERS)
    input_ids = jax.random.randint(k_ids, (B, L), 0, ITEM_SIZE, dtype=jnp.int32)
    aug_input_ids = jax.random.randint(k_aug, (B, L), 0, ITEM_SIZE,
                                       dtype=jnp.int32)  # unused in this branch

    outs = contrast_vae_forward(params, input_ids, NUM_HEADS)
    outs = jax.block_until_ready(outs)

    # light sanity checks
    assert all(o.shape == (B, L, H) for o in outs)
    assert all(bool(jnp.all(jnp.isfinite(o))) for o in outs)
    # eval-mode dedup invariants
    assert outs[0] is outs[1] and outs[2] is outs[3] and outs[6] is outs[7]

    print("KERNEL_OK")
</pallas_src>

<mosaic_0001>
module attributes {stable_mosaic.version = 11 : i64} {
  func.func @contrast_vae_kernel(%arg0: i32, %arg1: memref<1x1x8xi32, #tpu.memory_space<vmem>>, %arg2: memref<1x8x32xf32, #tpu.memory_space<vmem>>, %arg3: memref<8x32xf32, #tpu.memory_space<vmem>>, %arg4: memref<2x32xf32, #tpu.memory_space<vmem>>, %arg5: memref<12x32x16xf32, #tpu.memory_space<vmem>>, %arg6: memref<12x32x16xf32, #tpu.memory_space<vmem>>, %arg7: memref<12x32x16xf32, #tpu.memory_space<vmem>>, %arg8: memref<12x16x32xf32, #tpu.memory_space<vmem>>, %arg9: memref<36x1x16xf32, #tpu.memory_space<vmem>>, %arg10: memref<6x32x128xf32, #tpu.memory_space<vmem>>, %arg11: memref<6x128x32xf32, #tpu.memory_space<vmem>>, %arg12: memref<6x1x128xf32, #tpu.memory_space<vmem>>, %arg13: memref<6x8x32xf32, #tpu.memory_space<vmem>>, %arg14: memref<1x8x32xf32, #tpu.memory_space<vmem>>, %arg15: memref<1x8x32xf32, #tpu.memory_space<vmem>>, %arg16: memref<1x8x32xf32, #tpu.memory_space<vmem>>, %arg17: memref<1x8x32xf32, #tpu.memory_space<vmem>>) attributes {dimension_semantics = [#tpu.dimension_semantics<parallel>], iteration_bounds = array<i64: 2>, scalar_prefetch = 0 : i64, scratch_operands = 0 : i64, tpu.core_type = #tpu.core_type<tc>, window_params = [{transform_indices = @transform_0, window_bounds = array<i64: 1, 1, 8>}, {transform_indices = @transform_1, window_bounds = array<i64: 1, 8, 32>}, {pipeline_mode = #tpu.pipeline_mode<synchronous>, transform_indices = @transform_2, window_bounds = array<i64: 8, 32>}, {pipeline_mode = #tpu.pipeline_mode<synchronous>, transform_indices = @transform_3, window_bounds = array<i64: 2, 32>}, {pipeline_mode = #tpu.pipeline_mode<synchronous>, transform_indices = @transform_4, window_bounds = array<i64: 12, 32, 16>}, {pipeline_mode = #tpu.pipeline_mode<synchronous>, transform_indices = @transform_5, window_bounds = array<i64: 12, 32, 16>}, {pipeline_mode = #tpu.pipeline_mode<synchronous>, transform_indices = @transform_6, window_bounds = array<i64: 12, 32, 16>}, {pipeline_mode = #tpu.pipeline_mode<synchronous>, transform_indices = @transform_7, window_bounds = array<i64: 12, 16, 32>}, {pipeline_mode = #tpu.pipeline_mode<synchronous>, transform_indices = @transform_8, window_bounds = array<i64: 36, 1, 16>}, {pipeline_mode = #tpu.pipeline_mode<synchronous>, transform_indices = @transform_9, window_bounds = array<i64: 6, 32, 128>}, {pipeline_mode = #tpu.pipeline_mode<synchronous>, transform_indices = @transform_10, window_bounds = array<i64: 6, 128, 32>}, {pipeline_mode = #tpu.pipeline_mode<synchronous>, transform_indices = @transform_11, window_bounds = array<i64: 6, 1, 128>}, {pipeline_mode = #tpu.pipeline_mode<synchronous>, transform_indices = @transform_12, window_bounds = array<i64: 6, 8, 32>}, {transform_indices = @transform_13, window_bounds = array<i64: 1, 8, 32>}, {transform_indices = @transform_14, window_bounds = array<i64: 1, 8, 32>}, {transform_indices = @transform_15, window_bounds = array<i64: 1, 8, 32>}, {transform_indices = @transform_16, window_bounds = array<i64: 1, 8, 32>}]} {
    %c0 = arith.constant 0 : index
    %c0_0 = arith.constant 0 : index
    %c0_1 = arith.constant 0 : index
    %0 = vector.load %arg2[%c0, %c0_0, %c0_1] : memref<1x8x32xf32, #tpu.memory_space<vmem>>, vector<1x8x32xf32>
    %1 = vector.shape_cast %0 : vector<1x8x32xf32> to vector<8x32xf32>
    %c0_2 = arith.constant 0 : index
    %c0_3 = arith.constant 0 : index
    %2 = vector.load %arg3[%c0_2, %c0_3] : memref<8x32xf32, #tpu.memory_space<vmem>>, vector<8x32xf32>
    %3 = arith.addf %1, %2 : vector<8x32xf32>
    %c0_4 = arith.constant 0 : index
    %c0_5 = arith.constant 0 : index
    %4 = vector.load %arg4[%c0_4, %c0_5] : memref<2x32xf32, #tpu.memory_space<vmem>>, vector<1x32xf32>
    %c1 = arith.constant 1 : index
    %c0_6 = arith.constant 0 : index
    %5 = vector.load %arg4[%c1, %c0_6] : memref<2x32xf32, #tpu.memory_space<vmem>>, vector<1x32xf32>
    %cst = arith.constant dense<0.000000e+00> : vector<8xf32>
    %6 = vector.multi_reduction <add>, %3, %cst [1] : vector<8x32xf32> to vector<8xf32>
    %7 = vector.shape_cast %6 : vector<8xf32> to vector<8x1xf32>
    %cst_7 = arith.constant 3.200000e+01 : f32
    %8 = vector.broadcast %cst_7 : f32 to vector<8x1xf32>
    %9 = arith.divf %7, %8 : vector<8x1xf32>
    %10 = vector.broadcast %9 : vector<8x1xf32> to vector<8x32xf32>
    %11 = arith.subf %3, %10 : vector<8x32xf32>
    %12 = arith.mulf %11, %11 : vector<8x32xf32>
    %cst_8 = arith.constant dense<0.000000e+00> : vector<8xf32>
    %13 = vector.multi_reduction <add>, %12, %cst_8 [1] : vector<8x32xf32> to vector<8xf32>
    %14 = vector.shape_cast %13 : vector<8xf32> to vector<8x1xf32>
    %cst_9 = arith.constant 3.200000e+01 : f32
    %15 = vector.broadcast %cst_9 : f32 to vector<8x1xf32>
    %16 = arith.divf %14, %15 : vector<8x1xf32>
    %17 = vector.broadcast %9 : vector<8x1xf32> to vector<8x32xf32>
    %18 = arith.subf %3, %17 : vector<8x32xf32>
    %cst_10 = arith.constant 9.99999996E-13 : f32
    %19 = vector.broadcast %cst_10 : f32 to vector<8x1xf32>
    %20 = arith.addf %16, %19 : vector<8x1xf32>
    %21 = math.sqrt %20 : vector<8x1xf32>
    %22 = vector.broadcast %21 : vector<8x1xf32> to vector<8x32xf32>
    %23 = arith.divf %18, %22 : vector<8x32xf32>
    %24 = vector.broadcast %4 : vector<1x32xf32> to vector<8x32xf32>
    %25 = arith.mulf %23, %24 : vector<8x32xf32>
    %26 = vector.broadcast %5 : vector<1x32xf32> to vector<8x32xf32>
    %27 = arith.addf %25, %26 : vector<8x32xf32>
    %c0_11 = arith.constant 0 : index
    %c0_12 = arith.constant 0 : index
    %c0_13 = arith.constant 0 : index
    %28 = vector.load %arg1[%c0_11, %c0_12, %c0_13] : memref<1x1x8xi32, #tpu.memory_space<vmem>>, vector<1x1x8xi32>
    %29 = vector.shape_cast %28 : vector<1x1x8xi32> to vector<1x8xi32>
    %c0_i32 = arith.constant 0 : i32
    %30 = vector.broadcast %c0_i32 : i32 to vector<1x8xi32>
    %31 = arith.cmpi sgt, %29, %30 : vector<1x8xi32>
    %32 = tpu.iota {dimensions = array<i32: 0>} : vector<8x8xi32>
    %33 = tpu.iota {dimensions = array<i32: 1>} : vector<8x8xi32>
    %34 = arith.cmpi sge, %32, %33 : vector<8x8xi32>
    %35 = vector.broadcast %31 : vector<1x8xi1> to vector<8x8xi1>
    %36 = arith.andi %34, %35 : vector<8x8xi1>
    %cst_14 = arith.constant 0.000000e+00 : f32
    %cst_15 = arith.constant -1.000000e+04 : f32
    %37 = vector.broadcast %cst_14 : f32 to vector<8x8xf32>
    %38 = vector.broadcast %cst_15 : f32 to vector<8x8xf32>
    %39 = arith.select %36, %37, %38 : vector<8x8xi1>, vector<8x8xf32>
    %c0_16 = arith.constant 0 : index
    %c0_17 = arith.constant 0 : index
    %c0_18 = arith.constant 0 : index
    %40 = vector.load %arg13[%c0_16, %c0_17, %c0_18] : memref<6x8x32xf32, #tpu.memory_space<vmem>>, vector<1x8x32xf32>
    %41 = vector.shape_cast %40 : vector<1x8x32xf32> to vector<8x32xf32>
    %42 = vector.extract_strided_slice %41 {offsets = [0, 0], sizes = [1, 32], strides = [1, 1]} : vector<8x32xf32> to vector<1x32xf32>
    %43 = vector.extract_strided_slice %41 {offsets = [1, 0], sizes = [1, 32], strides = [1, 1]} : vector<8x32xf32> to vector<1x32xf32>
    %44 = vector.extract_strided_slice %41 {offsets = [2, 0], sizes = [1, 32], strides = [1, 1]} : vector<8x32xf32> to vector<1x32xf32>
    %45 = vector.extract_strided_slice %41 {offsets = [3, 0], sizes = [1, 32], strides = [1, 1]} : vector<8x32xf32> to vector<1x32xf32>
    %46 = vector.extract_strided_slice %41 {offsets = [4, 0], sizes = [1, 32], strides = [1, 1]} : vector<8x32xf32> to vector<1x32xf32>
    %47 = vector.extract_strided_slice %41 {offsets = [5, 0], sizes = [1, 32], strides = [1, 1]} : vector<8x32xf32> to vector<1x32xf32>
    %cst_19 = arith.constant 0.000000e+00 : f32
    %48 = vector.broadcast %cst_19 : f32 to vector<8x32xf32>
    %c0_20 = arith.constant 0 : index
    %c0_21 = arith.constant 0 : index
    %c0_22 = arith.constant 0 : index
    %49 = vector.load %arg5[%c0_20, %c0_21, %c0_22] : memref<12x32x16xf32, #tpu.memory_space<vmem>>, vector<1x32x16xf32>
    %50 = vector.shape_cast %49 : vector<1x32x16xf32> to vector<32x16xf32>
    %cst_23 = arith.constant dense<0.000000e+00> : vector<8x16xf32>
    %51 = tpu.matmul %27, %50, %cst_23 {dimension_numbers = #tpu.dot_dimension_numbers<[1], [0], [0], [1], [0, 0, 1, 1], [], []>} : vector<8x32xf32>, vector<32x16xf32>, vector<8x16xf32> -> vector<8x16xf32>
    %c0_24 = arith.constant 0 : index
    %c0_25 = arith.constant 0 : index
    %c0_26 = arith.constant 0 : index
    %52 = vector.load %arg9[%c0_24, %c0_25, %c0_26] : memref<36x1x16xf32, #tpu.memory_space<vmem>>, vector<1x1x16xf32>
    %53 = vector.shape_cast %52 : vector<1x1x16xf32> to vector<1x16xf32>
    %54 = vector.broadcast %53 : vector<1x16xf32> to vector<8x16xf32>
    %55 = arith.addf %51, %54 : vector<8x16xf32>
    %c0_27 = arith.constant 0 : index
    %c0_28 = arith.constant 0 : index
    %c0_29 = arith.constant 0 : index
    %56 = vector.load %arg6[%c0_27, %c0_28, %c0_29] : memref<12x32x16xf32, #tpu.memory_space<vmem>>, vector<1x32x16xf32>
    %57 = vector.shape_cast %56 : vector<1x32x16xf32> to vector<32x16xf32>
    %cst_30 = arith.constant dense<0.000000e+00> : vector<8x16xf32>
    %58 = tpu.matmul %27, %57, %cst_30 {dimension_numbers = #tpu.dot_dimension_numbers<[1], [0], [0], [1], [0, 0, 1, 1], [], []>} : vector<8x32xf32>, vector<32x16xf32>, vector<8x16xf32> -> vector<8x16xf32>
    %c1_31 = arith.constant 1 : index
    %c0_32 = arith.constant 0 : index
    %c0_33 = arith.constant 0 : index
    %59 = vector.load %arg9[%c1_31, %c0_32, %c0_33] : memref<36x1x16xf32, #tpu.memory_space<vmem>>, vector<1x1x16xf32>
    %60 = vector.shape_cast %59 : vector<1x1x16xf32> to vector<1x16xf32>
    %61 = vector.broadcast %60 : vector<1x16xf32> to vector<8x16xf32>
    %62 = arith.addf %58, %61 : vector<8x16xf32>
    %c0_34 = arith.constant 0 : index
    %c0_35 = arith.constant 0 : index
    %c0_36 = arith.constant 0 : index
    %63 = vector.load %arg7[%c0_34, %c0_35, %c0_36] : memref<12x32x16xf32, #tpu.memory_space<vmem>>, vector<1x32x16xf32>
    %64 = vector.shape_cast %63 : vector<1x32x16xf32> to vector<32x16xf32>
    %cst_37 = arith.constant dense<0.000000e+00> : vector<8x16xf32>
    %65 = tpu.matmul %27, %64, %cst_37 {dimension_numbers = #tpu.dot_dimension_numbers<[1], [0], [0], [1], [0, 0, 1, 1], [], []>} : vector<8x32xf32>, vector<32x16xf32>, vector<8x16xf32> -> vector<8x16xf32>
    %c2 = arith.constant 2 : index
    %c0_38 = arith.constant 0 : index
    %c0_39 = arith.constant 0 : index
    %66 = vector.load %arg9[%c2, %c0_38, %c0_39] : memref<36x1x16xf32, #tpu.memory_space<vmem>>, vector<1x1x16xf32>
    %67 = vector.shape_cast %66 : vector<1x1x16xf32> to vector<1x16xf32>
    %68 = vector.broadcast %67 : vector<1x16xf32> to vector<8x16xf32>
    %69 = arith.addf %65, %68 : vector<8x16xf32>
    %70 = tpu.transpose %62, [1, 0] : vector<8x16xf32> -> vector<16x8xf32>
    %cst_40 = arith.constant dense<0.000000e+00> : vector<8x8xf32>
    %71 = tpu.matmul %55, %70, %cst_40 {dimension_numbers = #tpu.dot_dimension_numbers<[1], [0], [0], [1], [0, 0, 1, 1], [], []>} : vector<8x16xf32>, vector<16x8xf32>, vector<8x8xf32> -> vector<8x8xf32>
    %cst_41 = arith.constant 2.500000e-01 : f32
    %72 = vector.broadcast %cst_41 : f32 to vector<8x8xf32>
    %73 = arith.mulf %71, %72 : vector<8x8xf32>
    %74 = arith.addf %73, %39 : vector<8x8xf32>
    %cst_42 = arith.constant dense<0xFF800000> : vector<8xf32>
    %75 = vector.multi_reduction <maximumf>, %74, %cst_42 [1] : vector<8x8xf32> to vector<8xf32>
    %76 = vector.shape_cast %75 : vector<8xf32> to vector<8x1xf32>
    %77 = vector.broadcast %76 : vector<8x1xf32> to vector<8x8xf32>
    %78 = arith.subf %74, %77 : vector<8x8xf32>
    %79 = math.exp %78 : vector<8x8xf32>
    %cst_43 = arith.constant dense<0.000000e+00> : vector<8xf32>
    %80 = vector.multi_reduction <add>, %79, %cst_43 [1] : vector<8x8xf32> to vector<8xf32>
    %81 = vector.shape_cast %80 : vector<8xf32> to vector<8x1xf32>
    %82 = tpu.reciprocal %81 {approx = true} : vector<8x1xf32> -> vector<8x1xf32>
    %83 = vector.broadcast %82 : vector<8x1xf32> to vector<8x8xf32>
    %84 = arith.mulf %79, %83 : vector<8x8xf32>
    %cst_44 = arith.constant dense<0.000000e+00> : vector<8x16xf32>
    %85 = tpu.matmul %84, %69, %cst_44 {dimension_numbers = #tpu.dot_dimension_numbers<[1], [0], [0], [1], [0, 0, 1, 1], [], []>} : vector<8x8xf32>, vector<8x16xf32>, vector<8x16xf32> -> vector<8x16xf32>
    %c0_45 = arith.constant 0 : index
    %c0_46 = arith.constant 0 : index
    %c0_47 = arith.constant 0 : index
    %86 = vector.load %arg8[%c0_45, %c0_46, %c0_47] : memref<12x16x32xf32, #tpu.memory_space<vmem>>, vector<1x16x32xf32>
    %87 = vector.shape_cast %86 : vector<1x16x32xf32> to vector<16x32xf32>
    %cst_48 = arith.constant dense<0.000000e+00> : vector<8x32xf32>
    %88 = tpu.matmul %85, %87, %cst_48 {dimension_numbers = #tpu.dot_dimension_numbers<[1], [0], [0], [1], [0, 0, 1, 1], [], []>} : vector<8x16xf32>, vector<16x32xf32>, vector<8x32xf32> -> vector<8x32xf32>
    %89 = arith.addf %48, %88 : vector<8x32xf32>
    %c1_49 = arith.constant 1 : index
    %c0_50 = arith.constant 0 : index
    %c0_51 = arith.constant 0 : index
    %90 = vector.load %arg5[%c1_49, %c0_50, %c0_51] : memref<12x32x16xf32, #tpu.memory_space<vmem>>, vector<1x32x16xf32>
    %91 = vector.shape_cast %90 : vector<1x32x16xf32> to vector<32x16xf32>
    %cst_52 = arith.constant dense<0.000000e+00> : vector<8x16xf32>
    %92 = tpu.matmul %27, %91, %cst_52 {dimension_numbers = #tpu.dot_dimension_numbers<[1], [0], [0], [1], [0, 0, 1, 1], [], []>} : vector<8x32xf32>, vector<32x16xf32>, vector<8x16xf32> -> vector<8x16xf32>
    %c3 = arith.constant 3 : index
    %c0_53 = arith.constant 0 : index
    %c0_54 = arith.constant 0 : index
    %93 = vector.load %arg9[%c3, %c0_53, %c0_54] : memref<36x1x16xf32, #tpu.memory_space<vmem>>, vector<1x1x16xf32>
    %94 = vector.shape_cast %93 : vector<1x1x16xf32> to vector<1x16xf32>
    %95 = vector.broadcast %94 : vector<1x16xf32> to vector<8x16xf32>
    %96 = arith.addf %92, %95 : vector<8x16xf32>
    %c1_55 = arith.constant 1 : index
    %c0_56 = arith.constant 0 : index
    %c0_57 = arith.constant 0 : index
    %97 = vector.load %arg6[%c1_55, %c0_56, %c0_57] : memref<12x32x16xf32, #tpu.memory_space<vmem>>, vector<1x32x16xf32>
    %98 = vector.shape_cast %97 : vector<1x32x16xf32> to vector<32x16xf32>
    %cst_58 = arith.constant dense<0.000000e+00> : vector<8x16xf32>
    %99 = tpu.matmul %27, %98, %cst_58 {dimension_numbers = #tpu.dot_dimension_numbers<[1], [0], [0], [1], [0, 0, 1, 1], [], []>} : vector<8x32xf32>, vector<32x16xf32>, vector<8x16xf32> -> vector<8x16xf32>
    %c4 = arith.constant 4 : index
    %c0_59 = arith.constant 0 : index
    %c0_60 = arith.constant 0 : index
    %100 = vector.load %arg9[%c4, %c0_59, %c0_60] : memref<36x1x16xf32, #tpu.memory_space<vmem>>, vector<1x1x16xf32>
    %101 = vector.shape_cast %100 : vector<1x1x16xf32> to vector<1x16xf32>
    %102 = vector.broadcast %101 : vector<1x16xf32> to vector<8x16xf32>
    %103 = arith.addf %99, %102 : vector<8x16xf32>
    %c1_61 = arith.constant 1 : index
    %c0_62 = arith.constant 0 : index
    %c0_63 = arith.constant 0 : index
    %104 = vector.load %arg7[%c1_61, %c0_62, %c0_63] : memref<12x32x16xf32, #tpu.memory_space<vmem>>, vector<1x32x16xf32>
    %105 = vector.shape_cast %104 : vector<1x32x16xf32> to vector<32x16xf32>
    %cst_64 = arith.constant dense<0.000000e+00> : vector<8x16xf32>
    %106 = tpu.matmul %27, %105, %cst_64 {dimension_numbers = #tpu.dot_dimension_numbers<[1], [0], [0], [1], [0, 0, 1, 1], [], []>} : vector<8x32xf32>, vector<32x16xf32>, vector<8x16xf32> -> vector<8x16xf32>
    %c5 = arith.constant 5 : index
    %c0_65 = arith.constant 0 : index
    %c0_66 = arith.constant 0 : index
    %107 = vector.load %arg9[%c5, %c0_65, %c0_66] : memref<36x1x16xf32, #tpu.memory_space<vmem>>, vector<1x1x16xf32>
    %108 = vector.shape_cast %107 : vector<1x1x16xf32> to vector<1x16xf32>
    %109 = vector.broadcast %108 : vector<1x16xf32> to vector<8x16xf32>
    %110 = arith.addf %106, %109 : vector<8x16xf32>
    %111 = tpu.transpose %103, [1, 0] : vector<8x16xf32> -> vector<16x8xf32>
    %cst_67 = arith.constant dense<0.000000e+00> : vector<8x8xf32>
    %112 = tpu.matmul %96, %111, %cst_67 {dimension_numbers = #tpu.dot_dimension_numbers<[1], [0], [0], [1], [0, 0, 1, 1], [], []>} : vector<8x16xf32>, vector<16x8xf32>, vector<8x8xf32> -> vector<8x8xf32>
    %cst_68 = arith.constant 2.500000e-01 : f32
    %113 = vector.broadcast %cst_68 : f32 to vector<8x8xf32>
    %114 = arith.mulf %112, %113 : vector<8x8xf32>
    %115 = arith.addf %114, %39 : vector<8x8xf32>
    %cst_69 = arith.constant dense<0xFF800000> : vector<8xf32>
    %116 = vector.multi_reduction <maximumf>, %115, %cst_69 [1] : vector<8x8xf32> to vector<8xf32>
    %117 = vector.shape_cast %116 : vector<8xf32> to vector<8x1xf32>
    %118 = vector.broadcast %117 : vector<8x1xf32> to vector<8x8xf32>
    %119 = arith.subf %115, %118 : vector<8x8xf32>
    %120 = math.exp %119 : vector<8x8xf32>
    %cst_70 = arith.constant dense<0.000000e+00> : vector<8xf32>
    %121 = vector.multi_reduction <add>, %120, %cst_70 [1] : vector<8x8xf32> to vector<8xf32>
    %122 = vector.shape_cast %121 : vector<8xf32> to vector<8x1xf32>
    %123 = tpu.reciprocal %122 {approx = true} : vector<8x1xf32> -> vector<8x1xf32>
    %124 = vector.broadcast %123 : vector<8x1xf32> to vector<8x8xf32>
    %125 = arith.mulf %120, %124 : vector<8x8xf32>
    %cst_71 = arith.constant dense<0.000000e+00> : vector<8x16xf32>
    %126 = tpu.matmul %125, %110, %cst_71 {dimension_numbers = #tpu.dot_dimension_numbers<[1], [0], [0], [1], [0, 0, 1, 1], [], []>} : vector<8x8xf32>, vector<8x16xf32>, vector<8x16xf32> -> vector<8x16xf32>
    %c1_72 = arith.constant 1 : index
    %c0_73 = arith.constant 0 : index
    %c0_74 = arith.constant 0 : index
    %127 = vector.load %arg8[%c1_72, %c0_73, %c0_74] : memref<12x16x32xf32, #tpu.memory_space<vmem>>, vector<1x16x32xf32>
    %128 = vector.shape_cast %127 : vector<1x16x32xf32> to vector<16x32xf32>
    %cst_75 = arith.constant dense<0.000000e+00> : vector<8x32xf32>
    %129 = tpu.matmul %126, %128, %cst_75 {dimension_numbers = #tpu.dot_dimension_numbers<[1], [0], [0], [1], [0, 0, 1, 1], [], []>} : vector<8x16xf32>, vector<16x32xf32>, vector<8x32xf32> -> vector<8x32xf32>
    %130 = arith.addf %89, %129 : vector<8x32xf32>
    %131 = vector.broadcast %42 : vector<1x32xf32> to vector<8x32xf32>
    %132 = arith.addf %130, %131 : vector<8x32xf32>
    %133 = arith.addf %132, %27 : vector<8x32xf32>
    %cst_76 = arith.constant dense<0.000000e+00> : vector<8xf32>
    %134 = vector.multi_reduction <add>, %133, %cst_76 [1] : vector<8x32xf32> to vector<8xf32>
    %135 = vector.shape_cast %134 : vector<8xf32> to vector<8x1xf32>
    %cst_77 = arith.constant 3.200000e+01 : f32
    %136 = vector.broadcast %cst_77 : f32 to vector<8x1xf32>
    %137 = arith.divf %135, %136 : vector<8x1xf32>
    %138 = vector.broadcast %137 : vector<8x1xf32> to vector<8x32xf32>
    %139 = arith.subf %133, %138 : vector<8x32xf32>
    %140 = arith.mulf %139, %139 : vector<8x32xf32>
    %cst_78 = arith.constant dense<0.000000e+00> : vector<8xf32>
    %141 = vector.multi_reduction <add>, %140, %cst_78 [1] : vector<8x32xf32> to vector<8xf32>
    %142 = vector.shape_cast %141 : vector<8xf32> to vector<8x1xf32>
    %cst_79 = arith.constant 3.200000e+01 : f32
    %143 = vector.broadcast %cst_79 : f32 to vector<8x1xf32>
    %144 = arith.divf %142, %143 : vector<8x1xf32>
    %145 = vector.broadcast %137 : vector<8x1xf32> to vector<8x32xf32>
    %146 = arith.subf %133, %145 : vector<8x32xf32>
    %cst_80 = arith.constant 9.99999996E-13 : f32
    %147 = vector.broadcast %cst_80 : f32 to vector<8x1xf32>
    %148 = arith.addf %144, %147 : vector<8x1xf32>
    %149 = math.sqrt %148 : vector<8x1xf32>
    %150 = vector.broadcast %149 : vector<8x1xf32> to vector<8x32xf32>
    %151 = arith.divf %146, %150 : vector<8x32xf32>
    %152 = vector.broadcast %44 : vector<1x32xf32> to vector<8x32xf32>
    %153 = arith.mulf %151, %152 : vector<8x32xf32>
    %154 = vector.broadcast %45 : vector<1x32xf32> to vector<8x32xf32>
    %155 = arith.addf %153, %154 : vector<8x32xf32>
    %c0_81 = arith.constant 0 : index
    %c0_82 = arith.constant 0 : index
    %c0_83 = arith.constant 0 : index
    %156 = vector.load %arg10[%c0_81, %c0_82, %c0_83] : memref<6x32x128xf32, #tpu.memory_space<vmem>>, vector<1x32x128xf32>
    %157 = vector.shape_cast %156 : vector<1x32x128xf32> to vector<32x128xf32>
    %cst_84 = arith.constant dense<0.000000e+00> : vector<8x128xf32>
    %158 = tpu.matmul %155, %157, %cst_84 {dimension_numbers = #tpu.dot_dimension_numbers<[1], [0], [0], [1], [0, 0, 1, 1], [], []>} : vector<8x32xf32>, vector<32x128xf32>, vector<8x128xf32> -> vector<8x128xf32>
    %c0_85 = arith.constant 0 : index
    %c0_86 = arith.constant 0 : index
    %c0_87 = arith.constant 0 : index
    %159 = vector.load %arg12[%c0_85, %c0_86, %c0_87] : memref<6x1x128xf32, #tpu.memory_space<vmem>>, vector<1x1x128xf32>
    %160 = vector.shape_cast %159 : vector<1x1x128xf32> to vector<1x128xf32>
    %161 = vector.broadcast %160 : vector<1x128xf32> to vector<8x128xf32>
    %162 = arith.addf %158, %161 : vector<8x128xf32>
    %cst_88 = arith.constant 5.000000e-01 : f32
    %163 = vector.broadcast %cst_88 : f32 to vector<8x128xf32>
    %164 = arith.mulf %163, %162 : vector<8x128xf32>
    %cst_89 = arith.constant 0.707106769 : f32
    %165 = vector.broadcast %cst_89 : f32 to vector<8x128xf32>
    %166 = arith.mulf %162, %165 : vector<8x128xf32>
    %167 = math.erf %166 : vector<8x128xf32>
    %cst_90 = arith.constant 1.000000e+00 : f32
    %168 = vector.broadcast %cst_90 : f32 to vector<8x128xf32>
    %169 = arith.addf %168, %167 : vector<8x128xf32>
    %170 = arith.mulf %164, %169 : vector<8x128xf32>
    %c0_91 = arith.constant 0 : index
    %c0_92 = arith.constant 0 : index
    %c0_93 = arith.constant 0 : index
    %171 = vector.load %arg11[%c0_91, %c0_92, %c0_93] : memref<6x128x32xf32, #tpu.memory_space<vmem>>, vector<1x128x32xf32>
    %172 = vector.shape_cast %171 : vector<1x128x32xf32> to vector<128x32xf32>
    %cst_94 = arith.constant dense<0.000000e+00> : vector<8x32xf32>
    %173 = tpu.matmul %170, %172, %cst_94 {dimension_numbers = #tpu.dot_dimension_numbers<[1], [0], [0], [1], [0, 0, 1, 1], [], []>} : vector<8x128xf32>, vector<128x32xf32>, vector<8x32xf32> -> vector<8x32xf32>
    %174 = vector.broadcast %43 : vector<1x32xf32> to vector<8x32xf32>
    %175 = arith.addf %173, %174 : vector<8x32xf32>
    %176 = arith.addf %175, %155 : vector<8x32xf32>
    %cst_95 = arith.constant dense<0.000000e+00> : vector<8xf32>
    %177 = vector.multi_reduction <add>, %176, %cst_95 [1] : vector<8x32xf32> to vector<8xf32>
    %178 = vector.shape_cast %177 : vector<8xf32> to vector<8x1xf32>
    %cst_96 = arith.constant 3.200000e+01 : f32
    %179 = vector.broadcast %cst_96 : f32 to vector<8x1xf32>
    %180 = arith.divf %178, %179 : vector<8x1xf32>
    %181 = vector.broadcast %180 : vector<8x1xf32> to vector<8x32xf32>
    %182 = arith.subf %176, %181 : vector<8x32xf32>
    %183 = arith.mulf %182, %182 : vector<8x32xf32>
    %cst_97 = arith.constant dense<0.000000e+00> : vector<8xf32>
    %184 = vector.multi_reduction <add>, %183, %cst_97 [1] : vector<8x32xf32> to vector<8xf32>
    %185 = vector.shape_cast %184 : vector<8xf32> to vector<8x1xf32>
    %cst_98 = arith.constant 3.200000e+01 : f32
    %186 = vector.broadcast %cst_98 : f32 to vector<8x1xf32>
    %187 = arith.divf %185, %186 : vector<8x1xf32>
    %188 = vector.broadcast %180 : vector<8x1xf32> to vector<8x32xf32>
    %189 = arith.subf %176, %188 : vector<8x32xf32>
    %cst_99 = arith.constant 9.99999996E-13 : f32
    %190 = vector.broadcast %cst_99 : f32 to vector<8x1xf32>
    %191 = arith.addf %187, %190 : vector<8x1xf32>
    %192 = math.sqrt %191 : vector<8x1xf32>
    %193 = vector.broadcast %192 : vector<8x1xf32> to vector<8x32xf32>
    %194 = arith.divf %189, %193 : vector<8x32xf32>
    %195 = vector.broadcast %46 : vector<1x32xf32> to vector<8x32xf32>
    %196 = arith.mulf %194, %195 : vector<8x32xf32>
    %197 = vector.broadcast %47 : vector<1x32xf32> to vector<8x32xf32>
    %198 = arith.addf %196, %197 : vector<8x32xf32>
    %c1_100 = arith.constant 1 : index
    %c0_101 = arith.constant 0 : index
    %c0_102 = arith.constant 0 : index
    %199 = vector.load %arg13[%c1_100, %c0_101, %c0_102] : memref<6x8x32xf32, #tpu.memory_space<vmem>>, vector<1x8x32xf32>
    %200 = vector.shape_cast %199 : vector<1x8x32xf32> to vector<8x32xf32>
    %201 = vector.extract_strided_slice %200 {offsets = [0, 0], sizes = [1, 32], strides = [1, 1]} : vector<8x32xf32> to vector<1x32xf32>
    %202 = vector.extract_strided_slice %200 {offsets = [1, 0], sizes = [1, 32], strides = [1, 1]} : vector<8x32xf32> to vector<1x32xf32>
    %203 = vector.extract_strided_slice %200 {offsets = [2, 0], sizes = [1, 32], strides = [1, 1]} : vector<8x32xf32> to vector<1x32xf32>
    %204 = vector.extract_strided_slice %200 {offsets = [3, 0], sizes = [1, 32], strides = [1, 1]} : vector<8x32xf32> to vector<1x32xf32>
    %205 = vector.extract_strided_slice %200 {offsets = [4, 0], sizes = [1, 32], strides = [1, 1]} : vector<8x32xf32> to vector<1x32xf32>
    %206 = vector.extract_strided_slice %200 {offsets = [5, 0], sizes = [1, 32], strides = [1, 1]} : vector<8x32xf32> to vector<1x32xf32>
    %cst_103 = arith.constant 0.000000e+00 : f32
    %207 = vector.broadcast %cst_103 : f32 to vector<8x32xf32>
    %c2_104 = arith.constant 2 : index
    %c0_105 = arith.constant 0 : index
    %c0_106 = arith.constant 0 : index
    %208 = vector.load %arg5[%c2_104, %c0_105, %c0_106] : memref<12x32x16xf32, #tpu.memory_space<vmem>>, vector<1x32x16xf32>
    %209 = vector.shape_cast %208 : vector<1x32x16xf32> to vector<32x16xf32>
    %cst_107 = arith.constant dense<0.000000e+00> : vector<8x16xf32>
    %210 = tpu.matmul %198, %209, %cst_107 {dimension_numbers = #tpu.dot_dimension_numbers<[1], [0], [0], [1], [0, 0, 1, 1], [], []>} : vector<8x32xf32>, vector<32x16xf32>, vector<8x16xf32> -> vector<8x16xf32>
    %c6 = arith.constant 6 : index
    %c0_108 = arith.constant 0 : index
    %c0_109 = arith.constant 0 : index
    %211 = vector.load %arg9[%c6, %c0_108, %c0_109] : memref<36x1x16xf32, #tpu.memory_space<vmem>>, vector<1x1x16xf32>
    %212 = vector.shape_cast %211 : vector<1x1x16xf32> to vector<1x16xf32>
    %213 = vector.broadcast %212 : vector<1x16xf32> to vector<8x16xf32>
    %214 = arith.addf %210, %213 : vector<8x16xf32>
    %c2_110 = arith.constant 2 : index
    %c0_111 = arith.constant 0 : index
    %c0_112 = arith.constant 0 : index
    %215 = vector.load %arg6[%c2_110, %c0_111, %c0_112] : memref<12x32x16xf32, #tpu.memory_space<vmem>>, vector<1x32x16xf32>
    %216 = vector.shape_cast %215 : vector<1x32x16xf32> to vector<32x16xf32>
    %cst_113 = arith.constant dense<0.000000e+00> : vector<8x16xf32>
    %217 = tpu.matmul %198, %216, %cst_113 {dimension_numbers = #tpu.dot_dimension_numbers<[1], [0], [0], [1], [0, 0, 1, 1], [], []>} : vector<8x32xf32>, vector<32x16xf32>, vector<8x16xf32> -> vector<8x16xf32>
    %c7 = arith.constant 7 : index
    %c0_114 = arith.constant 0 : index
    %c0_115 = arith.constant 0 : index
    %218 = vector.load %arg9[%c7, %c0_114, %c0_115] : memref<36x1x16xf32, #tpu.memory_space<vmem>>, vector<1x1x16xf32>
    %219 = vector.shape_cast %218 : vector<1x1x16xf32> to vector<1x16xf32>
    %220 = vector.broadcast %219 : vector<1x16xf32> to vector<8x16xf32>
    %221 = arith.addf %217, %220 : vector<8x16xf32>
    %c2_116 = arith.constant 2 : index
    %c0_117 = arith.constant 0 : index
    %c0_118 = arith.constant 0 : index
    %222 = vector.load %arg7[%c2_116, %c0_117, %c0_118] : memref<12x32x16xf32, #tpu.memory_space<vmem>>, vector<1x32x16xf32>
    %223 = vector.shape_cast %222 : vector<1x32x16xf32> to vector<32x16xf32>
    %cst_119 = arith.constant dense<0.000000e+00> : vector<8x16xf32>
    %224 = tpu.matmul %198, %223, %cst_119 {dimension_numbers = #tpu.dot_dimension_numbers<[1], [0], [0], [1], [0, 0, 1, 1], [], []>} : vector<8x32xf32>, vector<32x16xf32>, vector<8x16xf32> -> vector<8x16xf32>
    %c8 = arith.constant 8 : index
    %c0_120 = arith.constant 0 : index
    %c0_121 = arith.constant 0 : index
    %225 = vector.load %arg9[%c8, %c0_120, %c0_121] : memref<36x1x16xf32, #tpu.memory_space<vmem>>, vector<1x1x16xf32>
    %226 = vector.shape_cast %225 : vector<1x1x16xf32> to vector<1x16xf32>
    %227 = vector.broadcast %226 : vector<1x16xf32> to vector<8x16xf32>
    %228 = arith.addf %224, %227 : vector<8x16xf32>
    %229 = tpu.transpose %221, [1, 0] : vector<8x16xf32> -> vector<16x8xf32>
    %cst_122 = arith.constant dense<0.000000e+00> : vector<8x8xf32>
    %230 = tpu.matmul %214, %229, %cst_122 {dimension_numbers = #tpu.dot_dimension_numbers<[1], [0], [0], [1], [0, 0, 1, 1], [], []>} : vector<8x16xf32>, vector<16x8xf32>, vector<8x8xf32> -> vector<8x8xf32>
    %cst_123 = arith.constant 2.500000e-01 : f32
    %231 = vector.broadcast %cst_123 : f32 to vector<8x8xf32>
    %232 = arith.mulf %230, %231 : vector<8x8xf32>
    %233 = arith.addf %232, %39 : vector<8x8xf32>
    %cst_124 = arith.constant dense<0xFF800000> : vector<8xf32>
    %234 = vector.multi_reduction <maximumf>, %233, %cst_124 [1] : vector<8x8xf32> to vector<8xf32>
    %235 = vector.shape_cast %234 : vector<8xf32> to vector<8x1xf32>
    %236 = vector.broadcast %235 : vector<8x1xf32> to vector<8x8xf32>
    %237 = arith.subf %233, %236 : vector<8x8xf32>
    %238 = math.exp %237 : vector<8x8xf32>
    %cst_125 = arith.constant dense<0.000000e+00> : vector<8xf32>
    %239 = vector.multi_reduction <add>, %238, %cst_125 [1] : vector<8x8xf32> to vector<8xf32>
    %240 = vector.shape_cast %239 : vector<8xf32> to vector<8x1xf32>
    %241 = tpu.reciprocal %240 {approx = true} : vector<8x1xf32> -> vector<8x1xf32>
    %242 = vector.broadcast %241 : vector<8x1xf32> to vector<8x8xf32>
    %243 = arith.mulf %238, %242 : vector<8x8xf32>
    %cst_126 = arith.constant dense<0.000000e+00> : vector<8x16xf32>
    %244 = tpu.matmul %243, %228, %cst_126 {dimension_numbers = #tpu.dot_dimension_numbers<[1], [0], [0], [1], [0, 0, 1, 1], [], []>} : vector<8x8xf32>, vector<8x16xf32>, vector<8x16xf32> -> vector<8x16xf32>
    %c2_127 = arith.constant 2 : index
    %c0_128 = arith.constant 0 : index
    %c0_129 = arith.constant 0 : index
    %245 = vector.load %arg8[%c2_127, %c0_128, %c0_129] : memref<12x16x32xf32, #tpu.memory_space<vmem>>, vector<1x16x32xf32>
    %246 = vector.shape_cast %245 : vector<1x16x32xf32> to vector<16x32xf32>
    %cst_130 = arith.constant dense<0.000000e+00> : vector<8x32xf32>
    %247 = tpu.matmul %244, %246, %cst_130 {dimension_numbers = #tpu.dot_dimension_numbers<[1], [0], [0], [1], [0, 0, 1, 1], [], []>} : vector<8x16xf32>, vector<16x32xf32>, vector<8x32xf32> -> vector<8x32xf32>
    %248 = arith.addf %207, %247 : vector<8x32xf32>
    %c3_131 = arith.constant 3 : index
    %c0_132 = arith.constant 0 : index
    %c0_133 = arith.constant 0 : index
    %249 = vector.load %arg5[%c3_131, %c0_132, %c0_133] : memref<12x32x16xf32, #tpu.memory_space<vmem>>, vector<1x32x16xf32>
    %250 = vector.shape_cast %249 : vector<1x32x16xf32> to vector<32x16xf32>
    %cst_134 = arith.constant dense<0.000000e+00> : vector<8x16xf32>
    %251 = tpu.matmul %198, %250, %cst_134 {dimension_numbers = #tpu.dot_dimension_numbers<[1], [0], [0], [1], [0, 0, 1, 1], [], []>} : vector<8x32xf32>, vector<32x16xf32>, vector<8x16xf32> -> vector<8x16xf32>
    %c9 = arith.constant 9 : index
    %c0_135 = arith.constant 0 : index
    %c0_136 = arith.constant 0 : index
    %252 = vector.load %arg9[%c9, %c0_135, %c0_136] : memref<36x1x16xf32, #tpu.memory_space<vmem>>, vector<1x1x16xf32>
    %253 = vector.shape_cast %252 : vector<1x1x16xf32> to vector<1x16xf32>
    %254 = vector.broadcast %253 : vector<1x16xf32> to vector<8x16xf32>
    %255 = arith.addf %251, %254 : vector<8x16xf32>
    %c3_137 = arith.constant 3 : index
    %c0_138 = arith.constant 0 : index
    %c0_139 = arith.constant 0 : index
    %256 = vector.load %arg6[%c3_137, %c0_138, %c0_139] : memref<12x32x16xf32, #tpu.memory_space<vmem>>, vector<1x32x16xf32>
    %257 = vector.shape_cast %256 : vector<1x32x16xf32> to vector<32x16xf32>
    %cst_140 = arith.constant dense<0.000000e+00> : vector<8x16xf32>
    %258 = tpu.matmul %198, %257, %cst_140 {dimension_numbers = #tpu.dot_dimension_numbers<[1], [0], [0], [1], [0, 0, 1, 1], [], []>} : vector<8x32xf32>, vector<32x16xf32>, vector<8x16xf32> -> vector<8x16xf32>
    %c10 = arith.constant 10 : index
    %c0_141 = arith.constant 0 : index
    %c0_142 = arith.constant 0 : index
    %259 = vector.load %arg9[%c10, %c0_141, %c0_142] : memref<36x1x16xf32, #tpu.memory_space<vmem>>, vector<1x1x16xf32>
    %260 = vector.shape_cast %259 : vector<1x1x16xf32> to vector<1x16xf32>
    %261 = vector.broadcast %260 : vector<1x16xf32> to vector<8x16xf32>
    %262 = arith.addf %258, %261 : vector<8x16xf32>
    %c3_143 = arith.constant 3 : index
    %c0_144 = arith.constant 0 : index
    %c0_145 = arith.constant 0 : index
    %263 = vector.load %arg7[%c3_143, %c0_144, %c0_145] : memref<12x32x16xf32, #tpu.memory_space<vmem>>, vector<1x32x16xf32>
    %264 = vector.shape_cast %263 : vector<1x32x16xf32> to vector<32x16xf32>
    %cst_146 = arith.constant dense<0.000000e+00> : vector<8x16xf32>
    %265 = tpu.matmul %198, %264, %cst_146 {dimension_numbers = #tpu.dot_dimension_numbers<[1], [0], [0], [1], [0, 0, 1, 1], [], []>} : vector<8x32xf32>, vector<32x16xf32>, vector<8x16xf32> -> vector<8x16xf32>
    %c11 = arith.constant 11 : index
    %c0_147 = arith.constant 0 : index
    %c0_148 = arith.constant 0 : index
    %266 = vector.load %arg9[%c11, %c0_147, %c0_148] : memref<36x1x16xf32, #tpu.memory_space<vmem>>, vector<1x1x16xf32>
    %267 = vector.shape_cast %266 : vector<1x1x16xf32> to vector<1x16xf32>
    %268 = vector.broadcast %267 : vector<1x16xf32> to vector<8x16xf32>
    %269 = arith.addf %265, %268 : vector<8x16xf32>
    %270 = tpu.transpose %262, [1, 0] : vector<8x16xf32> -> vector<16x8xf32>
    %cst_149 = arith.constant dense<0.000000e+00> : vector<8x8xf32>
    %271 = tpu.matmul %255, %270, %cst_149 {dimension_numbers = #tpu.dot_dimension_numbers<[1], [0], [0], [1], [0, 0, 1, 1], [], []>} : vector<8x16xf32>, vector<16x8xf32>, vector<8x8xf32> -> vector<8x8xf32>
    %cst_150 = arith.constant 2.500000e-01 : f32
    %272 = vector.broadcast %cst_150 : f32 to vector<8x8xf32>
    %273 = arith.mulf %271, %272 : vector<8x8xf32>
    %274 = arith.addf %273, %39 : vector<8x8xf32>
    %cst_151 = arith.constant dense<0xFF800000> : vector<8xf32>
    %275 = vector.multi_reduction <maximumf>, %274, %cst_151 [1] : vector<8x8xf32> to vector<8xf32>
    %276 = vector.shape_cast %275 : vector<8xf32> to vector<8x1xf32>
    %277 = vector.broadcast %276 : vector<8x1xf32> to vector<8x8xf32>
    %278 = arith.subf %274, %277 : vector<8x8xf32>
    %279 = math.exp %278 : vector<8x8xf32>
    %cst_152 = arith.constant dense<0.000000e+00> : vector<8xf32>
    %280 = vector.multi_reduction <add>, %279, %cst_152 [1] : vector<8x8xf32> to vector<8xf32>
    %281 = vector.shape_cast %280 : vector<8xf32> to vector<8x1xf32>
    %282 = tpu.reciprocal %281 {approx = true} : vector<8x1xf32> -> vector<8x1xf32>
    %283 = vector.broadcast %282 : vector<8x1xf32> to vector<8x8xf32>
    %284 = arith.mulf %279, %283 : vector<8x8xf32>
    %cst_153 = arith.constant dense<0.000000e+00> : vector<8x16xf32>
    %285 = tpu.matmul %284, %269, %cst_153 {dimension_numbers = #tpu.dot_dimension_numbers<[1], [0], [0], [1], [0, 0, 1, 1], [], []>} : vector<8x8xf32>, vector<8x16xf32>, vector<8x16xf32> -> vector<8x16xf32>
    %c3_154 = arith.constant 3 : index
    %c0_155 = arith.constant 0 : index
    %c0_156 = arith.constant 0 : index
    %286 = vector.load %arg8[%c3_154, %c0_155, %c0_156] : memref<12x16x32xf32, #tpu.memory_space<vmem>>, vector<1x16x32xf32>
    %287 = vector.shape_cast %286 : vector<1x16x32xf32> to vector<16x32xf32>
    %cst_157 = arith.constant dense<0.000000e+00> : vector<8x32xf32>
    %288 = tpu.matmul %285, %287, %cst_157 {dimension_numbers = #tpu.dot_dimension_numbers<[1], [0], [0], [1], [0, 0, 1, 1], [], []>} : vector<8x16xf32>, vector<16x32xf32>, vector<8x32xf32> -> vector<8x32xf32>
    %289 = arith.addf %248, %288 : vector<8x32xf32>
    %290 = vector.broadcast %201 : vector<1x32xf32> to vector<8x32xf32>
    %291 = arith.addf %289, %290 : vector<8x32xf32>
    %292 = arith.addf %291, %198 : vector<8x32xf32>
    %cst_158 = arith.constant dense<0.000000e+00> : vector<8xf32>
    %293 = vector.multi_reduction <add>, %292, %cst_158 [1] : vector<8x32xf32> to vector<8xf32>
    %294 = vector.shape_cast %293 : vector<8xf32> to vector<8x1xf32>
    %cst_159 = arith.constant 3.200000e+01 : f32
    %295 = vector.broadcast %cst_159 : f32 to vector<8x1xf32>
    %296 = arith.divf %294, %295 : vector<8x1xf32>
    %297 = vector.broadcast %296 : vector<8x1xf32> to vector<8x32xf32>
    %298 = arith.subf %292, %297 : vector<8x32xf32>
    %299 = arith.mulf %298, %298 : vector<8x32xf32>
    %cst_160 = arith.constant dense<0.000000e+00> : vector<8xf32>
    %300 = vector.multi_reduction <add>, %299, %cst_160 [1] : vector<8x32xf32> to vector<8xf32>
    %301 = vector.shape_cast %300 : vector<8xf32> to vector<8x1xf32>
    %cst_161 = arith.constant 3.200000e+01 : f32
    %302 = vector.broadcast %cst_161 : f32 to vector<8x1xf32>
    %303 = arith.divf %301, %302 : vector<8x1xf32>
    %304 = vector.broadcast %296 : vector<8x1xf32> to vector<8x32xf32>
    %305 = arith.subf %292, %304 : vector<8x32xf32>
    %cst_162 = arith.constant 9.99999996E-13 : f32
    %306 = vector.broadcast %cst_162 : f32 to vector<8x1xf32>
    %307 = arith.addf %303, %306 : vector<8x1xf32>
    %308 = math.sqrt %307 : vector<8x1xf32>
    %309 = vector.broadcast %308 : vector<8x1xf32> to vector<8x32xf32>
    %310 = arith.divf %305, %309 : vector<8x32xf32>
    %311 = vector.broadcast %203 : vector<1x32xf32> to vector<8x32xf32>
    %312 = arith.mulf %310, %311 : vector<8x32xf32>
    %313 = vector.broadcast %204 : vector<1x32xf32> to vector<8x32xf32>
    %314 = arith.addf %312, %313 : vector<8x32xf32>
    %c1_163 = arith.constant 1 : index
    %c0_164 = arith.constant 0 : index
    %c0_165 = arith.constant 0 : index
    %315 = vector.load %arg10[%c1_163, %c0_164, %c0_165] : memref<6x32x128xf32, #tpu.memory_space<vmem>>, vector<1x32x128xf32>
    %316 = vector.shape_cast %315 : vector<1x32x128xf32> to vector<32x128xf32>
    %cst_166 = arith.constant dense<0.000000e+00> : vector<8x128xf32>
    %317 = tpu.matmul %314, %316, %cst_166 {dimension_numbers = #tpu.dot_dimension_numbers<[1], [0], [0], [1], [0, 0, 1, 1], [], []>} : vector<8x32xf32>, vector<32x128xf32>, vector<8x128xf32> -> vector<8x128xf32>
    %c1_167 = arith.constant 1 : index
    %c0_168 = arith.constant 0 : index
    %c0_169 = arith.constant 0 : index
    %318 = vector.load %arg12[%c1_167, %c0_168, %c0_169] : memref<6x1x128xf32, #tpu.memory_space<vmem>>, vector<1x1x128xf32>
    %319 = vector.shape_cast %318 : vector<1x1x128xf32> to vector<1x128xf32>
    %320 = vector.broadcast %319 : vector<1x128xf32> to vector<8x128xf32>
    %321 = arith.addf %317, %320 : vector<8x128xf32>
    %cst_170 = arith.constant 5.000000e-01 : f32
    %322 = vector.broadcast %cst_170 : f32 to vector<8x128xf32>
    %323 = arith.mulf %322, %321 : vector<8x128xf32>
    %cst_171 = arith.constant 0.707106769 : f32
    %324 = vector.broadcast %cst_171 : f32 to vector<8x128xf32>
    %325 = arith.mulf %321, %324 : vector<8x128xf32>
    %326 = math.erf %325 : vector<8x128xf32>
    %cst_172 = arith.constant 1.000000e+00 : f32
    %327 = vector.broadcast %cst_172 : f32 to vector<8x128xf32>
    %328 = arith.addf %327, %326 : vector<8x128xf32>
    %329 = arith.mulf %323, %328 : vector<8x128xf32>
    %c1_173 = arith.constant 1 : index
    %c0_174 = arith.constant 0 : index
    %c0_175 = arith.constant 0 : index
    %330 = vector.load %arg11[%c1_173, %c0_174, %c0_175] : memref<6x128x32xf32, #tpu.memory_space<vmem>>, vector<1x128x32xf32>
    %331 = vector.shape_cast %330 : vector<1x128x32xf32> to vector<128x32xf32>
    %cst_176 = arith.constant dense<0.000000e+00> : vector<8x32xf32>
    %332 = tpu.matmul %329, %331, %cst_176 {dimension_numbers = #tpu.dot_dimension_numbers<[1], [0], [0], [1], [0, 0, 1, 1], [], []>} : vector<8x128xf32>, vector<128x32xf32>, vector<8x32xf32> -> vector<8x32xf32>
    %333 = vector.broadcast %202 : vector<1x32xf32> to vector<8x32xf32>
    %334 = arith.addf %332, %333 : vector<8x32xf32>
    %335 = arith.addf %334, %314 : vector<8x32xf32>
    %cst_177 = arith.constant dense<0.000000e+00> : vector<8xf32>
    %336 = vector.multi_reduction <add>, %335, %cst_177 [1] : vector<8x32xf32> to vector<8xf32>
    %337 = vector.shape_cast %336 : vector<8xf32> to vector<8x1xf32>
    %cst_178 = arith.constant 3.200000e+01 : f32
    %338 = vector.broadcast %cst_178 : f32 to vector<8x1xf32>
    %339 = arith.divf %337, %338 : vector<8x1xf32>
    %340 = vector.broadcast %339 : vector<8x1xf32> to vector<8x32xf32>
    %341 = arith.subf %335, %340 : vector<8x32xf32>
    %342 = arith.mulf %341, %341 : vector<8x32xf32>
    %cst_179 = arith.constant dense<0.000000e+00> : vector<8xf32>
    %343 = vector.multi_reduction <add>, %342, %cst_179 [1] : vector<8x32xf32> to vector<8xf32>
    %344 = vector.shape_cast %343 : vector<8xf32> to vector<8x1xf32>
    %cst_180 = arith.constant 3.200000e+01 : f32
    %345 = vector.broadcast %cst_180 : f32 to vector<8x1xf32>
    %346 = arith.divf %344, %345 : vector<8x1xf32>
    %347 = vector.broadcast %339 : vector<8x1xf32> to vector<8x32xf32>
    %348 = arith.subf %335, %347 : vector<8x32xf32>
    %cst_181 = arith.constant 9.99999996E-13 : f32
    %349 = vector.broadcast %cst_181 : f32 to vector<8x1xf32>
    %350 = arith.addf %346, %349 : vector<8x1xf32>
    %351 = math.sqrt %350 : vector<8x1xf32>
    %352 = vector.broadcast %351 : vector<8x1xf32> to vector<8x32xf32>
    %353 = arith.divf %348, %352 : vector<8x32xf32>
    %354 = vector.broadcast %205 : vector<1x32xf32> to vector<8x32xf32>
    %355 = arith.mulf %353, %354 : vector<8x32xf32>
    %356 = vector.broadcast %206 : vector<1x32xf32> to vector<8x32xf32>
    %357 = arith.addf %355, %356 : vector<8x32xf32>
    %c2_182 = arith.constant 2 : index
    %c0_183 = arith.constant 0 : index
    %c0_184 = arith.constant 0 : index
    %358 = vector.load %arg13[%c2_182, %c0_183, %c0_184] : memref<6x8x32xf32, #tpu.memory_space<vmem>>, vector<1x8x32xf32>
    %359 = vector.shape_cast %358 : vector<1x8x32xf32> to vector<8x32xf32>
    %360 = vector.extract_strided_slice %359 {offsets = [0, 0], sizes = [1, 32], strides = [1, 1]} : vector<8x32xf32> to vector<1x32xf32>
    %361 = vector.extract_strided_slice %359 {offsets = [1, 0], sizes = [1, 32], strides = [1, 1]} : vector<8x32xf32> to vector<1x32xf32>
    %362 = vector.extract_strided_slice %359 {offsets = [2, 0], sizes = [1, 32], strides = [1, 1]} : vector<8x32xf32> to vector<1x32xf32>
    %363 = vector.extract_strided_slice %359 {offsets = [3, 0], sizes = [1, 32], strides = [1, 1]} : vector<8x32xf32> to vector<1x32xf32>
    %364 = vector.extract_strided_slice %359 {offsets = [4, 0], sizes = [1, 32], strides = [1, 1]} : vector<8x32xf32> to vector<1x32xf32>
    %365 = vector.extract_strided_slice %359 {offsets = [5, 0], sizes = [1, 32], strides = [1, 1]} : vector<8x32xf32> to vector<1x32xf32>
    %cst_185 = arith.constant 0.000000e+00 : f32
    %366 = vector.broadcast %cst_185 : f32 to vector<8x32xf32>
    %c4_186 = arith.constant 4 : index
    %c0_187 = arith.constant 0 : index
    %c0_188 = arith.constant 0 : index
    %367 = vector.load %arg5[%c4_186, %c0_187, %c0_188] : memref<12x32x16xf32, #tpu.memory_space<vmem>>, vector<1x32x16xf32>
    %368 = vector.shape_cast %367 : vector<1x32x16xf32> to vector<32x16xf32>
    %cst_189 = arith.constant dense<0.000000e+00> : vector<8x16xf32>
    %369 = tpu.matmul %27, %368, %cst_189 {dimension_numbers = #tpu.dot_dimension_numbers<[1], [0], [0], [1], [0, 0, 1, 1], [], []>} : vector<8x32xf32>, vector<32x16xf32>, vector<8x16xf32> -> vector<8x16xf32>
    %c12 = arith.constant 12 : index
    %c0_190 = arith.constant 0 : index
    %c0_191 = arith.constant 0 : index
    %370 = vector.load %arg9[%c12, %c0_190, %c0_191] : memref<36x1x16xf32, #tpu.memory_space<vmem>>, vector<1x1x16xf32>
    %371 = vector.shape_cast %370 : vector<1x1x16xf32> to vector<1x16xf32>
    %372 = vector.broadcast %371 : vector<1x16xf32> to vector<8x16xf32>
    %373 = arith.addf %369, %372 : vector<8x16xf32>
    %c4_192 = arith.constant 4 : index
    %c0_193 = arith.constant 0 : index
    %c0_194 = arith.constant 0 : index
    %374 = vector.load %arg6[%c4_192, %c0_193, %c0_194] : memref<12x32x16xf32, #tpu.memory_space<vmem>>, vector<1x32x16xf32>
    %375 = vector.shape_cast %374 : vector<1x32x16xf32> to vector<32x16xf32>
    %cst_195 = arith.constant dense<0.000000e+00> : vector<8x16xf32>
    %376 = tpu.matmul %27, %375, %cst_195 {dimension_numbers = #tpu.dot_dimension_numbers<[1], [0], [0], [1], [0, 0, 1, 1], [], []>} : vector<8x32xf32>, vector<32x16xf32>, vector<8x16xf32> -> vector<8x16xf32>
    %c13 = arith.constant 13 : index
    %c0_196 = arith.constant 0 : index
    %c0_197 = arith.constant 0 : index
    %377 = vector.load %arg9[%c13, %c0_196, %c0_197] : memref<36x1x16xf32, #tpu.memory_space<vmem>>, vector<1x1x16xf32>
    %378 = vector.shape_cast %377 : vector<1x1x16xf32> to vector<1x16xf32>
    %379 = vector.broadcast %378 : vector<1x16xf32> to vector<8x16xf32>
    %380 = arith.addf %376, %379 : vector<8x16xf32>
    %c4_198 = arith.constant 4 : index
    %c0_199 = arith.constant 0 : index
    %c0_200 = arith.constant 0 : index
    %381 = vector.load %arg7[%c4_198, %c0_199, %c0_200] : memref<12x32x16xf32, #tpu.memory_space<vmem>>, vector<1x32x16xf32>
    %382 = vector.shape_cast %381 : vector<1x32x16xf32> to vector<32x16xf32>
    %cst_201 = arith.constant dense<0.000000e+00> : vector<8x16xf32>
    %383 = tpu.matmul %27, %382, %cst_201 {dimension_numbers = #tpu.dot_dimension_numbers<[1], [0], [0], [1], [0, 0, 1, 1], [], []>} : vector<8x32xf32>, vector<32x16xf32>, vector<8x16xf32> -> vector<8x16xf32>
    %c14 = arith.constant 14 : index
    %c0_202 = arith.constant 0 : index
    %c0_203 = arith.constant 0 : index
    %384 = vector.load %arg9[%c14, %c0_202, %c0_203] : memref<36x1x16xf32, #tpu.memory_space<vmem>>, vector<1x1x16xf32>
    %385 = vector.shape_cast %384 : vector<1x1x16xf32> to vector<1x16xf32>
    %386 = vector.broadcast %385 : vector<1x16xf32> to vector<8x16xf32>
    %387 = arith.addf %383, %386 : vector<8x16xf32>
    %388 = tpu.transpose %380, [1, 0] : vector<8x16xf32> -> vector<16x8xf32>
    %cst_204 = arith.constant dense<0.000000e+00> : vector<8x8xf32>
    %389 = tpu.matmul %373, %388, %cst_204 {dimension_numbers = #tpu.dot_dimension_numbers<[1], [0], [0], [1], [0, 0, 1, 1], [], []>} : vector<8x16xf32>, vector<16x8xf32>, vector<8x8xf32> -> vector<8x8xf32>
    %cst_205 = arith.constant 2.500000e-01 : f32
    %390 = vector.broadcast %cst_205 : f32 to vector<8x8xf32>
    %391 = arith.mulf %389, %390 : vector<8x8xf32>
    %392 = arith.addf %391, %39 : vector<8x8xf32>
    %cst_206 = arith.constant dense<0xFF800000> : vector<8xf32>
    %393 = vector.multi_reduction <maximumf>, %392, %cst_206 [1] : vector<8x8xf32> to vector<8xf32>
    %394 = vector.shape_cast %393 : vector<8xf32> to vector<8x1xf32>
    %395 = vector.broadcast %394 : vector<8x1xf32> to vector<8x8xf32>
    %396 = arith.subf %392, %395 : vector<8x8xf32>
    %397 = math.exp %396 : vector<8x8xf32>
    %cst_207 = arith.constant dense<0.000000e+00> : vector<8xf32>
    %398 = vector.multi_reduction <add>, %397, %cst_207 [1] : vector<8x8xf32> to vector<8xf32>
    %399 = vector.shape_cast %398 : vector<8xf32> to vector<8x1xf32>
    %400 = tpu.reciprocal %399 {approx = true} : vector<8x1xf32> -> vector<8x1xf32>
    %401 = vector.broadcast %400 : vector<8x1xf32> to vector<8x8xf32>
    %402 = arith.mulf %397, %401 : vector<8x8xf32>
    %cst_208 = arith.constant dense<0.000000e+00> : vector<8x16xf32>
    %403 = tpu.matmul %402, %387, %cst_208 {dimension_numbers = #tpu.dot_dimension_numbers<[1], [0], [0], [1], [0, 0, 1, 1], [], []>} : vector<8x8xf32>, vector<8x16xf32>, vector<8x16xf32> -> vector<8x16xf32>
    %c4_209 = arith.constant 4 : index
    %c0_210 = arith.constant 0 : index
    %c0_211 = arith.constant 0 : index
    %404 = vector.load %arg8[%c4_209, %c0_210, %c0_211] : memref<12x16x32xf32, #tpu.memory_space<vmem>>, vector<1x16x32xf32>
    %405 = vector.shape_cast %404 : vector<1x16x32xf32> to vector<16x32xf32>
    %cst_212 = arith.constant dense<0.000000e+00> : vector<8x32xf32>
    %406 = tpu.matmul %403, %405, %cst_212 {dimension_numbers = #tpu.dot_dimension_numbers<[1], [0], [0], [1], [0, 0, 1, 1], [], []>} : vector<8x16xf32>, vector<16x32xf32>, vector<8x32xf32> -> vector<8x32xf32>
    %407 = arith.addf %366, %406 : vector<8x32xf32>
    %c5_213 = arith.constant 5 : index
    %c0_214 = arith.constant 0 : index
    %c0_215 = arith.constant 0 : index
    %408 = vector.load %arg5[%c5_213, %c0_214, %c0_215] : memref<12x32x16xf32, #tpu.memory_space<vmem>>, vector<1x32x16xf32>
    %409 = vector.shape_cast %408 : vector<1x32x16xf32> to vector<32x16xf32>
    %cst_216 = arith.constant dense<0.000000e+00> : vector<8x16xf32>
    %410 = tpu.matmul %27, %409, %cst_216 {dimension_numbers = #tpu.dot_dimension_numbers<[1], [0], [0], [1], [0, 0, 1, 1], [], []>} : vector<8x32xf32>, vector<32x16xf32>, vector<8x16xf32> -> vector<8x16xf32>
    %c15 = arith.constant 15 : index
    %c0_217 = arith.constant 0 : index
    %c0_218 = arith.constant 0 : index
    %411 = vector.load %arg9[%c15, %c0_217, %c0_218] : memref<36x1x16xf32, #tpu.memory_space<vmem>>, vector<1x1x16xf32>
    %412 = vector.shape_cast %411 : vector<1x1x16xf32> to vector<1x16xf32>
    %413 = vector.broadcast %412 : vector<1x16xf32> to vector<8x16xf32>
    %414 = arith.addf %410, %413 : vector<8x16xf32>
    %c5_219 = arith.constant 5 : index
    %c0_220 = arith.constant 0 : index
    %c0_221 = arith.constant 0 : index
    %415 = vector.load %arg6[%c5_219, %c0_220, %c0_221] : memref<12x32x16xf32, #tpu.memory_space<vmem>>, vector<1x32x16xf32>
    %416 = vector.shape_cast %415 : vector<1x32x16xf32> to vector<32x16xf32>
    %cst_222 = arith.constant dense<0.000000e+00> : vector<8x16xf32>
    %417 = tpu.matmul %27, %416, %cst_222 {dimension_numbers = #tpu.dot_dimension_numbers<[1], [0], [0], [1], [0, 0, 1, 1], [], []>} : vector<8x32xf32>, vector<32x16xf32>, vector<8x16xf32> -> vector<8x16xf32>
    %c16 = arith.constant 16 : index
    %c0_223 = arith.constant 0 : index
    %c0_224 = arith.constant 0 : index
    %418 = vector.load %arg9[%c16, %c0_223, %c0_224] : memref<36x1x16xf32, #tpu.memory_space<vmem>>, vector<1x1x16xf32>
    %419 = vector.shape_cast %418 : vector<1x1x16xf32> to vector<1x16xf32>
    %420 = vector.broadcast %419 : vector<1x16xf32> to vector<8x16xf32>
    %421 = arith.addf %417, %420 : vector<8x16xf32>
    %c5_225 = arith.constant 5 : index
    %c0_226 = arith.constant 0 : index
    %c0_227 = arith.constant 0 : index
    %422 = vector.load %arg7[%c5_225, %c0_226, %c0_227] : memref<12x32x16xf32, #tpu.memory_space<vmem>>, vector<1x32x16xf32>
    %423 = vector.shape_cast %422 : vector<1x32x16xf32> to vector<32x16xf32>
    %cst_228 = arith.constant dense<0.000000e+00> : vector<8x16xf32>
    %424 = tpu.matmul %27, %423, %cst_228 {dimension_numbers = #tpu.dot_dimension_numbers<[1], [0], [0], [1], [0, 0, 1, 1], [], []>} : vector<8x32xf32>, vector<32x16xf32>, vector<8x16xf32> -> vector<8x16xf32>
    %c17 = arith.constant 17 : index
    %c0_229 = arith.constant 0 : index
    %c0_230 = arith.constant 0 : index
    %425 = vector.load %arg9[%c17, %c0_229, %c0_230] : memref<36x1x16xf32, #tpu.memory_space<vmem>>, vector<1x1x16xf32>
    %426 = vector.shape_cast %425 : vector<1x1x16xf32> to vector<1x16xf32>
    %427 = vector.broadcast %426 : vector<1x16xf32> to vector<8x16xf32>
    %428 = arith.addf %424, %427 : vector<8x16xf32>
    %429 = tpu.transpose %421, [1, 0] : vector<8x16xf32> -> vector<16x8xf32>
    %cst_231 = arith.constant dense<0.000000e+00> : vector<8x8xf32>
    %430 = tpu.matmul %414, %429, %cst_231 {dimension_numbers = #tpu.dot_dimension_numbers<[1], [0], [0], [1], [0, 0, 1, 1], [], []>} : vector<8x16xf32>, vector<16x8xf32>, vector<8x8xf32> -> vector<8x8xf32>
    %cst_232 = arith.constant 2.500000e-01 : f32
    %431 = vector.broadcast %cst_232 : f32 to vector<8x8xf32>
    %432 = arith.mulf %430, %431 : vector<8x8xf32>
    %433 = arith.addf %432, %39 : vector<8x8xf32>
    %cst_233 = arith.constant dense<0xFF800000> : vector<8xf32>
    %434 = vector.multi_reduction <maximumf>, %433, %cst_233 [1] : vector<8x8xf32> to vector<8xf32>
    %435 = vector.shape_cast %434 : vector<8xf32> to vector<8x1xf32>
    %436 = vector.broadcast %435 : vector<8x1xf32> to vector<8x8xf32>
    %437 = arith.subf %433, %436 : vector<8x8xf32>
    %438 = math.exp %437 : vector<8x8xf32>
    %cst_234 = arith.constant dense<0.000000e+00> : vector<8xf32>
    %439 = vector.multi_reduction <add>, %438, %cst_234 [1] : vector<8x8xf32> to vector<8xf32>
    %440 = vector.shape_cast %439 : vector<8xf32> to vector<8x1xf32>
    %441 = tpu.reciprocal %440 {approx = true} : vector<8x1xf32> -> vector<8x1xf32>
    %442 = vector.broadcast %441 : vector<8x1xf32> to vector<8x8xf32>
    %443 = arith.mulf %438, %442 : vector<8x8xf32>
    %cst_235 = arith.constant dense<0.000000e+00> : vector<8x16xf32>
    %444 = tpu.matmul %443, %428, %cst_235 {dimension_numbers = #tpu.dot_dimension_numbers<[1], [0], [0], [1], [0, 0, 1, 1], [], []>} : vector<8x8xf32>, vector<8x16xf32>, vector<8x16xf32> -> vector<8x16xf32>
    %c5_236 = arith.constant 5 : index
    %c0_237 = arith.constant 0 : index
    %c0_238 = arith.constant 0 : index
    %445 = vector.load %arg8[%c5_236, %c0_237, %c0_238] : memref<12x16x32xf32, #tpu.memory_space<vmem>>, vector<1x16x32xf32>
    %446 = vector.shape_cast %445 : vector<1x16x32xf32> to vector<16x32xf32>
    %cst_239 = arith.constant dense<0.000000e+00> : vector<8x32xf32>
    %447 = tpu.matmul %444, %446, %cst_239 {dimension_numbers = #tpu.dot_dimension_numbers<[1], [0], [0], [1], [0, 0, 1, 1], [], []>} : vector<8x16xf32>, vector<16x32xf32>, vector<8x32xf32> -> vector<8x32xf32>
    %448 = arith.addf %407, %447 : vector<8x32xf32>
    %449 = vector.broadcast %360 : vector<1x32xf32> to vector<8x32xf32>
    %450 = arith.addf %448, %449 : vector<8x32xf32>
    %451 = arith.addf %450, %27 : vector<8x32xf32>
    %cst_240 = arith.constant dense<0.000000e+00> : vector<8xf32>
    %452 = vector.multi_reduction <add>, %451, %cst_240 [1] : vector<8x32xf32> to vector<8xf32>
    %453 = vector.shape_cast %452 : vector<8xf32> to vector<8x1xf32>
    %cst_241 = arith.constant 3.200000e+01 : f32
    %454 = vector.broadcast %cst_241 : f32 to vector<8x1xf32>
    %455 = arith.divf %453, %454 : vector<8x1xf32>
    %456 = vector.broadcast %455 : vector<8x1xf32> to vector<8x32xf32>
    %457 = arith.subf %451, %456 : vector<8x32xf32>
    %458 = arith.mulf %457, %457 : vector<8x32xf32>
    %cst_242 = arith.constant dense<0.000000e+00> : vector<8xf32>
    %459 = vector.multi_reduction <add>, %458, %cst_242 [1] : vector<8x32xf32> to vector<8xf32>
    %460 = vector.shape_cast %459 : vector<8xf32> to vector<8x1xf32>
    %cst_243 = arith.constant 3.200000e+01 : f32
    %461 = vector.broadcast %cst_243 : f32 to vector<8x1xf32>
    %462 = arith.divf %460, %461 : vector<8x1xf32>
    %463 = vector.broadcast %455 : vector<8x1xf32> to vector<8x32xf32>
    %464 = arith.subf %451, %463 : vector<8x32xf32>
    %cst_244 = arith.constant 9.99999996E-13 : f32
    %465 = vector.broadcast %cst_244 : f32 to vector<8x1xf32>
    %466 = arith.addf %462, %465 : vector<8x1xf32>
    %467 = math.sqrt %466 : vector<8x1xf32>
    %468 = vector.broadcast %467 : vector<8x1xf32> to vector<8x32xf32>
    %469 = arith.divf %464, %468 : vector<8x32xf32>
    %470 = vector.broadcast %362 : vector<1x32xf32> to vector<8x32xf32>
    %471 = arith.mulf %469, %470 : vector<8x32xf32>
    %472 = vector.broadcast %363 : vector<1x32xf32> to vector<8x32xf32>
    %473 = arith.addf %471, %472 : vector<8x32xf32>
    %c2_245 = arith.constant 2 : index
    %c0_246 = arith.constant 0 : index
    %c0_247 = arith.constant 0 : index
    %474 = vector.load %arg10[%c2_245, %c0_246, %c0_247] : memref<6x32x128xf32, #tpu.memory_space<vmem>>, vector<1x32x128xf32>
    %475 = vector.shape_cast %474 : vector<1x32x128xf32> to vector<32x128xf32>
    %cst_248 = arith.constant dense<0.000000e+00> : vector<8x128xf32>
    %476 = tpu.matmul %473, %475, %cst_248 {dimension_numbers = #tpu.dot_dimension_numbers<[1], [0], [0], [1], [0, 0, 1, 1], [], []>} : vector<8x32xf32>, vector<32x128xf32>, vector<8x128xf32> -> vector<8x128xf32>
    %c2_249 = arith.constant 2 : index
    %c0_250 = arith.constant 0 : index
    %c0_251 = arith.constant 0 : index
    %477 = vector.load %arg12[%c2_249, %c0_250, %c0_251] : memref<6x1x128xf32, #tpu.memory_space<vmem>>, vector<1x1x128xf32>
    %478 = vector.shape_cast %477 : vector<1x1x128xf32> to vector<1x128xf32>
    %479 = vector.broadcast %478 : vector<1x128xf32> to vector<8x128xf32>
    %480 = arith.addf %476, %479 : vector<8x128xf32>
    %cst_252 = arith.constant 5.000000e-01 : f32
    %481 = vector.broadcast %cst_252 : f32 to vector<8x128xf32>
    %482 = arith.mulf %481, %480 : vector<8x128xf32>
    %cst_253 = arith.constant 0.707106769 : f32
    %483 = vector.broadcast %cst_253 : f32 to vector<8x128xf32>
    %484 = arith.mulf %480, %483 : vector<8x128xf32>
    %485 = math.erf %484 : vector<8x128xf32>
    %cst_254 = arith.constant 1.000000e+00 : f32
    %486 = vector.broadcast %cst_254 : f32 to vector<8x128xf32>
    %487 = arith.addf %486, %485 : vector<8x128xf32>
    %488 = arith.mulf %482, %487 : vector<8x128xf32>
    %c2_255 = arith.constant 2 : index
    %c0_256 = arith.constant 0 : index
    %c0_257 = arith.constant 0 : index
    %489 = vector.load %arg11[%c2_255, %c0_256, %c0_257] : memref<6x128x32xf32, #tpu.memory_space<vmem>>, vector<1x128x32xf32>
    %490 = vector.shape_cast %489 : vector<1x128x32xf32> to vector<128x32xf32>
    %cst_258 = arith.constant dense<0.000000e+00> : vector<8x32xf32>
    %491 = tpu.matmul %488, %490, %cst_258 {dimension_numbers = #tpu.dot_dimension_numbers<[1], [0], [0], [1], [0, 0, 1, 1], [], []>} : vector<8x128xf32>, vector<128x32xf32>, vector<8x32xf32> -> vector<8x32xf32>
    %492 = vector.broadcast %361 : vector<1x32xf32> to vector<8x32xf32>
    %493 = arith.addf %491, %492 : vector<8x32xf32>
    %494 = arith.addf %493, %473 : vector<8x32xf32>
    %cst_259 = arith.constant dense<0.000000e+00> : vector<8xf32>
    %495 = vector.multi_reduction <add>, %494, %cst_259 [1] : vector<8x32xf32> to vector<8xf32>
    %496 = vector.shape_cast %495 : vector<8xf32> to vector<8x1xf32>
    %cst_260 = arith.constant 3.200000e+01 : f32
    %497 = vector.broadcast %cst_260 : f32 to vector<8x1xf32>
    %498 = arith.divf %496, %497 : vector<8x1xf32>
    %499 = vector.broadcast %498 : vector<8x1xf32> to vector<8x32xf32>
    %500 = arith.subf %494, %499 : vector<8x32xf32>
    %501 = arith.mulf %500, %500 : vector<8x32xf32>
    %cst_261 = arith.constant dense<0.000000e+00> : vector<8xf32>
    %502 = vector.multi_reduction <add>, %501, %cst_261 [1] : vector<8x32xf32> to vector<8xf32>
    %503 = vector.shape_cast %502 : vector<8xf32> to vector<8x1xf32>
    %cst_262 = arith.constant 3.200000e+01 : f32
    %504 = vector.broadcast %cst_262 : f32 to vector<8x1xf32>
    %505 = arith.divf %503, %504 : vector<8x1xf32>
    %506 = vector.broadcast %498 : vector<8x1xf32> to vector<8x32xf32>
    %507 = arith.subf %494, %506 : vector<8x32xf32>
    %cst_263 = arith.constant 9.99999996E-13 : f32
    %508 = vector.broadcast %cst_263 : f32 to vector<8x1xf32>
    %509 = arith.addf %505, %508 : vector<8x1xf32>
    %510 = math.sqrt %509 : vector<8x1xf32>
    %511 = vector.broadcast %510 : vector<8x1xf32> to vector<8x32xf32>
    %512 = arith.divf %507, %511 : vector<8x32xf32>
    %513 = vector.broadcast %364 : vector<1x32xf32> to vector<8x32xf32>
    %514 = arith.mulf %512, %513 : vector<8x32xf32>
    %515 = vector.broadcast %365 : vector<1x32xf32> to vector<8x32xf32>
    %516 = arith.addf %514, %515 : vector<8x32xf32>
    %c3_264 = arith.constant 3 : index
    %c0_265 = arith.constant 0 : index
    %c0_266 = arith.constant 0 : index
    %517 = vector.load %arg13[%c3_264, %c0_265, %c0_266] : memref<6x8x32xf32, #tpu.memory_space<vmem>>, vector<1x8x32xf32>
    %518 = vector.shape_cast %517 : vector<1x8x32xf32> to vector<8x32xf32>
    %519 = vector.extract_strided_slice %518 {offsets = [0, 0], sizes = [1, 32], strides = [1, 1]} : vector<8x32xf32> to vector<1x32xf32>
    %520 = vector.extract_strided_slice %518 {offsets = [1, 0], sizes = [1, 32], strides = [1, 1]} : vector<8x32xf32> to vector<1x32xf32>
    %521 = vector.extract_strided_slice %518 {offsets = [2, 0], sizes = [1, 32], strides = [1, 1]} : vector<8x32xf32> to vector<1x32xf32>
    %522 = vector.extract_strided_slice %518 {offsets = [3, 0], sizes = [1, 32], strides = [1, 1]} : vector<8x32xf32> to vector<1x32xf32>
    %523 = vector.extract_strided_slice %518 {offsets = [4, 0], sizes = [1, 32], strides = [1, 1]} : vector<8x32xf32> to vector<1x32xf32>
    %524 = vector.extract_strided_slice %518 {offsets = [5, 0], sizes = [1, 32], strides = [1, 1]} : vector<8x32xf32> to vector<1x32xf32>
    %cst_267 = arith.constant 0.000000e+00 : f32
    %525 = vector.broadcast %cst_267 : f32 to vector<8x32xf32>
    %c6_268 = arith.constant 6 : index
    %c0_269 = arith.constant 0 : index
    %c0_270 = arith.constant 0 : index
    %526 = vector.load %arg5[%c6_268, %c0_269, %c0_270] : memref<12x32x16xf32, #tpu.memory_space<vmem>>, vector<1x32x16xf32>
    %527 = vector.shape_cast %526 : vector<1x32x16xf32> to vector<32x16xf32>
    %cst_271 = arith.constant dense<0.000000e+00> : vector<8x16xf32>
    %528 = tpu.matmul %516, %527, %cst_271 {dimension_numbers = #tpu.dot_dimension_numbers<[1], [0], [0], [1], [0, 0, 1, 1], [], []>} : vector<8x32xf32>, vector<32x16xf32>, vector<8x16xf32> -> vector<8x16xf32>
    %c18 = arith.constant 18 : index
    %c0_272 = arith.constant 0 : index
    %c0_273 = arith.constant 0 : index
    %529 = vector.load %arg9[%c18, %c0_272, %c0_273] : memref<36x1x16xf32, #tpu.memory_space<vmem>>, vector<1x1x16xf32>
    %530 = vector.shape_cast %529 : vector<1x1x16xf32> to vector<1x16xf32>
    %531 = vector.broadcast %530 : vector<1x16xf32> to vector<8x16xf32>
    %532 = arith.addf %528, %531 : vector<8x16xf32>
    %c6_274 = arith.constant 6 : index
    %c0_275 = arith.constant 0 : index
    %c0_276 = arith.constant 0 : index
    %533 = vector.load %arg6[%c6_274, %c0_275, %c0_276] : memref<12x32x16xf32, #tpu.memory_space<vmem>>, vector<1x32x16xf32>
    %534 = vector.shape_cast %533 : vector<1x32x16xf32> to vector<32x16xf32>
    %cst_277 = arith.constant dense<0.000000e+00> : vector<8x16xf32>
    %535 = tpu.matmul %516, %534, %cst_277 {dimension_numbers = #tpu.dot_dimension_numbers<[1], [0], [0], [1], [0, 0, 1, 1], [], []>} : vector<8x32xf32>, vector<32x16xf32>, vector<8x16xf32> -> vector<8x16xf32>
    %c19 = arith.constant 19 : index
    %c0_278 = arith.constant 0 : index
    %c0_279 = arith.constant 0 : index
    %536 = vector.load %arg9[%c19, %c0_278, %c0_279] : memref<36x1x16xf32, #tpu.memory_space<vmem>>, vector<1x1x16xf32>
    %537 = vector.shape_cast %536 : vector<1x1x16xf32> to vector<1x16xf32>
    %538 = vector.broadcast %537 : vector<1x16xf32> to vector<8x16xf32>
    %539 = arith.addf %535, %538 : vector<8x16xf32>
    %c6_280 = arith.constant 6 : index
    %c0_281 = arith.constant 0 : index
    %c0_282 = arith.constant 0 : index
    %540 = vector.load %arg7[%c6_280, %c0_281, %c0_282] : memref<12x32x16xf32, #tpu.memory_space<vmem>>, vector<1x32x16xf32>
    %541 = vector.shape_cast %540 : vector<1x32x16xf32> to vector<32x16xf32>
    %cst_283 = arith.constant dense<0.000000e+00> : vector<8x16xf32>
    %542 = tpu.matmul %516, %541, %cst_283 {dimension_numbers = #tpu.dot_dimension_numbers<[1], [0], [0], [1], [0, 0, 1, 1], [], []>} : vector<8x32xf32>, vector<32x16xf32>, vector<8x16xf32> -> vector<8x16xf32>
    %c20 = arith.constant 20 : index
    %c0_284 = arith.constant 0 : index
    %c0_285 = arith.constant 0 : index
    %543 = vector.load %arg9[%c20, %c0_284, %c0_285] : memref<36x1x16xf32, #tpu.memory_space<vmem>>, vector<1x1x16xf32>
    %544 = vector.shape_cast %543 : vector<1x1x16xf32> to vector<1x16xf32>
    %545 = vector.broadcast %544 : vector<1x16xf32> to vector<8x16xf32>
    %546 = arith.addf %542, %545 : vector<8x16xf32>
    %547 = tpu.transpose %539, [1, 0] : vector<8x16xf32> -> vector<16x8xf32>
    %cst_286 = arith.constant dense<0.000000e+00> : vector<8x8xf32>
    %548 = tpu.matmul %532, %547, %cst_286 {dimension_numbers = #tpu.dot_dimension_numbers<[1], [0], [0], [1], [0, 0, 1, 1], [], []>} : vector<8x16xf32>, vector<16x8xf32>, vector<8x8xf32> -> vector<8x8xf32>
    %cst_287 = arith.constant 2.500000e-01 : f32
    %549 = vector.broadcast %cst_287 : f32 to vector<8x8xf32>
    %550 = arith.mulf %548, %549 : vector<8x8xf32>
    %551 = arith.addf %550, %39 : vector<8x8xf32>
    %cst_288 = arith.constant dense<0xFF800000> : vector<8xf32>
    %552 = vector.multi_reduction <maximumf>, %551, %cst_288 [1] : vector<8x8xf32> to vector<8xf32>
    %553 = vector.shape_cast %552 : vector<8xf32> to vector<8x1xf32>
    %554 = vector.broadcast %553 : vector<8x1xf32> to vector<8x8xf32>
    %555 = arith.subf %551, %554 : vector<8x8xf32>
    %556 = math.exp %555 : vector<8x8xf32>
    %cst_289 = arith.constant dense<0.000000e+00> : vector<8xf32>
    %557 = vector.multi_reduction <add>, %556, %cst_289 [1] : vector<8x8xf32> to vector<8xf32>
    %558 = vector.shape_cast %557 : vector<8xf32> to vector<8x1xf32>
    %559 = tpu.reciprocal %558 {approx = true} : vector<8x1xf32> -> vector<8x1xf32>
    %560 = vector.broadcast %559 : vector<8x1xf32> to vector<8x8xf32>
    %561 = arith.mulf %556, %560 : vector<8x8xf32>
    %cst_290 = arith.constant dense<0.000000e+00> : vector<8x16xf32>
    %562 = tpu.matmul %561, %546, %cst_290 {dimension_numbers = #tpu.dot_dimension_numbers<[1], [0], [0], [1], [0, 0, 1, 1], [], []>} : vector<8x8xf32>, vector<8x16xf32>, vector<8x16xf32> -> vector<8x16xf32>
    %c6_291 = arith.constant 6 : index
    %c0_292 = arith.constant 0 : index
    %c0_293 = arith.constant 0 : index
    %563 = vector.load %arg8[%c6_291, %c0_292, %c0_293] : memref<12x16x32xf32, #tpu.memory_space<vmem>>, vector<1x16x32xf32>
    %564 = vector.shape_cast %563 : vector<1x16x32xf32> to vector<16x32xf32>
    %cst_294 = arith.constant dense<0.000000e+00> : vector<8x32xf32>
    %565 = tpu.matmul %562, %564, %cst_294 {dimension_numbers = #tpu.dot_dimension_numbers<[1], [0], [0], [1], [0, 0, 1, 1], [], []>} : vector<8x16xf32>, vector<16x32xf32>, vector<8x32xf32> -> vector<8x32xf32>
    %566 = arith.addf %525, %565 : vector<8x32xf32>
    %c7_295 = arith.constant 7 : index
    %c0_296 = arith.constant 0 : index
    %c0_297 = arith.constant 0 : index
    %567 = vector.load %arg5[%c7_295, %c0_296, %c0_297] : memref<12x32x16xf32, #tpu.memory_space<vmem>>, vector<1x32x16xf32>
    %568 = vector.shape_cast %567 : vector<1x32x16xf32> to vector<32x16xf32>
    %cst_298 = arith.constant dense<0.000000e+00> : vector<8x16xf32>
    %569 = tpu.matmul %516, %568, %cst_298 {dimension_numbers = #tpu.dot_dimension_numbers<[1], [0], [0], [1], [0, 0, 1, 1], [], []>} : vector<8x32xf32>, vector<32x16xf32>, vector<8x16xf32> -> vector<8x16xf32>
    %c21 = arith.constant 21 : index
    %c0_299 = arith.constant 0 : index
    %c0_300 = arith.constant 0 : index
    %570 = vector.load %arg9[%c21, %c0_299, %c0_300] : memref<36x1x16xf32, #tpu.memory_space<vmem>>, vector<1x1x16xf32>
    %571 = vector.shape_cast %570 : vector<1x1x16xf32> to vector<1x16xf32>
    %572 = vector.broadcast %571 : vector<1x16xf32> to vector<8x16xf32>
    %573 = arith.addf %569, %572 : vector<8x16xf32>
    %c7_301 = arith.constant 7 : index
    %c0_302 = arith.constant 0 : index
    %c0_303 = arith.constant 0 : index
    %574 = vector.load %arg6[%c7_301, %c0_302, %c0_303] : memref<12x32x16xf32, #tpu.memory_space<vmem>>, vector<1x32x16xf32>
    %575 = vector.shape_cast %574 : vector<1x32x16xf32> to vector<32x16xf32>
    %cst_304 = arith.constant dense<0.000000e+00> : vector<8x16xf32>
    %576 = tpu.matmul %516, %575, %cst_304 {dimension_numbers = #tpu.dot_dimension_numbers<[1], [0], [0], [1], [0, 0, 1, 1], [], []>} : vector<8x32xf32>, vector<32x16xf32>, vector<8x16xf32> -> vector<8x16xf32>
    %c22 = arith.constant 22 : index
    %c0_305 = arith.constant 0 : index
    %c0_306 = arith.constant 0 : index
    %577 = vector.load %arg9[%c22, %c0_305, %c0_306] : memref<36x1x16xf32, #tpu.memory_space<vmem>>, vector<1x1x16xf32>
    %578 = vector.shape_cast %577 : vector<1x1x16xf32> to vector<1x16xf32>
    %579 = vector.broadcast %578 : vector<1x16xf32> to vector<8x16xf32>
    %580 = arith.addf %576, %579 : vector<8x16xf32>
    %c7_307 = arith.constant 7 : index
    %c0_308 = arith.constant 0 : index
    %c0_309 = arith.constant 0 : index
    %581 = vector.load %arg7[%c7_307, %c0_308, %c0_309] : memref<12x32x16xf32, #tpu.memory_space<vmem>>, vector<1x32x16xf32>
    %582 = vector.shape_cast %581 : vector<1x32x16xf32> to vector<32x16xf32>
    %cst_310 = arith.constant dense<0.000000e+00> : vector<8x16xf32>
    %583 = tpu.matmul %516, %582, %cst_310 {dimension_numbers = #tpu.dot_dimension_numbers<[1], [0], [0], [1], [0, 0, 1, 1], [], []>} : vector<8x32xf32>, vector<32x16xf32>, vector<8x16xf32> -> vector<8x16xf32>
    %c23 = arith.constant 23 : index
    %c0_311 = arith.constant 0 : index
    %c0_312 = arith.constant 0 : index
    %584 = vector.load %arg9[%c23, %c0_311, %c0_312] : memref<36x1x16xf32, #tpu.memory_space<vmem>>, vector<1x1x16xf32>
    %585 = vector.shape_cast %584 : vector<1x1x16xf32> to vector<1x16xf32>
    %586 = vector.broadcast %585 : vector<1x16xf32> to vector<8x16xf32>
    %587 = arith.addf %583, %586 : vector<8x16xf32>
    %588 = tpu.transpose %580, [1, 0] : vector<8x16xf32> -> vector<16x8xf32>
    %cst_313 = arith.constant dense<0.000000e+00> : vector<8x8xf32>
    %589 = tpu.matmul %573, %588, %cst_313 {dimension_numbers = #tpu.dot_dimension_numbers<[1], [0], [0], [1], [0, 0, 1, 1], [], []>} : vector<8x16xf32>, vector<16x8xf32>, vector<8x8xf32> -> vector<8x8xf32>
    %cst_314 = arith.constant 2.500000e-01 : f32
    %590 = vector.broadcast %cst_314 : f32 to vector<8x8xf32>
    %591 = arith.mulf %589, %590 : vector<8x8xf32>
    %592 = arith.addf %591, %39 : vector<8x8xf32>
    %cst_315 = arith.constant dense<0xFF800000> : vector<8xf32>
    %593 = vector.multi_reduction <maximumf>, %592, %cst_315 [1] : vector<8x8xf32> to vector<8xf32>
    %594 = vector.shape_cast %593 : vector<8xf32> to vector<8x1xf32>
    %595 = vector.broadcast %594 : vector<8x1xf32> to vector<8x8xf32>
    %596 = arith.subf %592, %595 : vector<8x8xf32>
    %597 = math.exp %596 : vector<8x8xf32>
    %cst_316 = arith.constant dense<0.000000e+00> : vector<8xf32>
    %598 = vector.multi_reduction <add>, %597, %cst_316 [1] : vector<8x8xf32> to vector<8xf32>
    %599 = vector.shape_cast %598 : vector<8xf32> to vector<8x1xf32>
    %600 = tpu.reciprocal %599 {approx = true} : vector<8x1xf32> -> vector<8x1xf32>
    %601 = vector.broadcast %600 : vector<8x1xf32> to vector<8x8xf32>
    %602 = arith.mulf %597, %601 : vector<8x8xf32>
    %cst_317 = arith.constant dense<0.000000e+00> : vector<8x16xf32>
    %603 = tpu.matmul %602, %587, %cst_317 {dimension_numbers = #tpu.dot_dimension_numbers<[1], [0], [0], [1], [0, 0, 1, 1], [], []>} : vector<8x8xf32>, vector<8x16xf32>, vector<8x16xf32> -> vector<8x16xf32>
    %c7_318 = arith.constant 7 : index
    %c0_319 = arith.constant 0 : index
    %c0_320 = arith.constant 0 : index
    %604 = vector.load %arg8[%c7_318, %c0_319, %c0_320] : memref<12x16x32xf32, #tpu.memory_space<vmem>>, vector<1x16x32xf32>
    %605 = vector.shape_cast %604 : vector<1x16x32xf32> to vector<16x32xf32>
    %cst_321 = arith.constant dense<0.000000e+00> : vector<8x32xf32>
    %606 = tpu.matmul %603, %605, %cst_321 {dimension_numbers = #tpu.dot_dimension_numbers<[1], [0], [0], [1], [0, 0, 1, 1], [], []>} : vector<8x16xf32>, vector<16x32xf32>, vector<8x32xf32> -> vector<8x32xf32>
    %607 = arith.addf %566, %606 : vector<8x32xf32>
    %608 = vector.broadcast %519 : vector<1x32xf32> to vector<8x32xf32>
    %609 = arith.addf %607, %608 : vector<8x32xf32>
    %610 = arith.addf %609, %516 : vector<8x32xf32>
    %cst_322 = arith.constant dense<0.000000e+00> : vector<8xf32>
    %611 = vector.multi_reduction <add>, %610, %cst_322 [1] : vector<8x32xf32> to vector<8xf32>
    %612 = vector.shape_cast %611 : vector<8xf32> to vector<8x1xf32>
    %cst_323 = arith.constant 3.200000e+01 : f32
    %613 = vector.broadcast %cst_323 : f32 to vector<8x1xf32>
    %614 = arith.divf %612, %613 : vector<8x1xf32>
    %615 = vector.broadcast %614 : vector<8x1xf32> to vector<8x32xf32>
    %616 = arith.subf %610, %615 : vector<8x32xf32>
    %617 = arith.mulf %616, %616 : vector<8x32xf32>
    %cst_324 = arith.constant dense<0.000000e+00> : vector<8xf32>
    %618 = vector.multi_reduction <add>, %617, %cst_324 [1] : vector<8x32xf32> to vector<8xf32>
    %619 = vector.shape_cast %618 : vector<8xf32> to vector<8x1xf32>
    %cst_325 = arith.constant 3.200000e+01 : f32
    %620 = vector.broadcast %cst_325 : f32 to vector<8x1xf32>
    %621 = arith.divf %619, %620 : vector<8x1xf32>
    %622 = vector.broadcast %614 : vector<8x1xf32> to vector<8x32xf32>
    %623 = arith.subf %610, %622 : vector<8x32xf32>
    %cst_326 = arith.constant 9.99999996E-13 : f32
    %624 = vector.broadcast %cst_326 : f32 to vector<8x1xf32>
    %625 = arith.addf %621, %624 : vector<8x1xf32>
    %626 = math.sqrt %625 : vector<8x1xf32>
    %627 = vector.broadcast %626 : vector<8x1xf32> to vector<8x32xf32>
    %628 = arith.divf %623, %627 : vector<8x32xf32>
    %629 = vector.broadcast %521 : vector<1x32xf32> to vector<8x32xf32>
    %630 = arith.mulf %628, %629 : vector<8x32xf32>
    %631 = vector.broadcast %522 : vector<1x32xf32> to vector<8x32xf32>
    %632 = arith.addf %630, %631 : vector<8x32xf32>
    %c3_327 = arith.constant 3 : index
    %c0_328 = arith.constant 0 : index
    %c0_329 = arith.constant 0 : index
    %633 = vector.load %arg10[%c3_327, %c0_328, %c0_329] : memref<6x32x128xf32, #tpu.memory_space<vmem>>, vector<1x32x128xf32>
    %634 = vector.shape_cast %633 : vector<1x32x128xf32> to vector<32x128xf32>
    %cst_330 = arith.constant dense<0.000000e+00> : vector<8x128xf32>
    %635 = tpu.matmul %632, %634, %cst_330 {dimension_numbers = #tpu.dot_dimension_numbers<[1], [0], [0], [1], [0, 0, 1, 1], [], []>} : vector<8x32xf32>, vector<32x128xf32>, vector<8x128xf32> -> vector<8x128xf32>
    %c3_331 = arith.constant 3 : index
    %c0_332 = arith.constant 0 : index
    %c0_333 = arith.constant 0 : index
    %636 = vector.load %arg12[%c3_331, %c0_332, %c0_333] : memref<6x1x128xf32, #tpu.memory_space<vmem>>, vector<1x1x128xf32>
    %637 = vector.shape_cast %636 : vector<1x1x128xf32> to vector<1x128xf32>
    %638 = vector.broadcast %637 : vector<1x128xf32> to vector<8x128xf32>
    %639 = arith.addf %635, %638 : vector<8x128xf32>
    %cst_334 = arith.constant 5.000000e-01 : f32
    %640 = vector.broadcast %cst_334 : f32 to vector<8x128xf32>
    %641 = arith.mulf %640, %639 : vector<8x128xf32>
    %cst_335 = arith.constant 0.707106769 : f32
    %642 = vector.broadcast %cst_335 : f32 to vector<8x128xf32>
    %643 = arith.mulf %639, %642 : vector<8x128xf32>
    %644 = math.erf %643 : vector<8x128xf32>
    %cst_336 = arith.constant 1.000000e+00 : f32
    %645 = vector.broadcast %cst_336 : f32 to vector<8x128xf32>
    %646 = arith.addf %645, %644 : vector<8x128xf32>
    %647 = arith.mulf %641, %646 : vector<8x128xf32>
    %c3_337 = arith.constant 3 : index
    %c0_338 = arith.constant 0 : index
    %c0_339 = arith.constant 0 : index
    %648 = vector.load %arg11[%c3_337, %c0_338, %c0_339] : memref<6x128x32xf32, #tpu.memory_space<vmem>>, vector<1x128x32xf32>
    %649 = vector.shape_cast %648 : vector<1x128x32xf32> to vector<128x32xf32>
    %cst_340 = arith.constant dense<0.000000e+00> : vector<8x32xf32>
    %650 = tpu.matmul %647, %649, %cst_340 {dimension_numbers = #tpu.dot_dimension_numbers<[1], [0], [0], [1], [0, 0, 1, 1], [], []>} : vector<8x128xf32>, vector<128x32xf32>, vector<8x32xf32> -> vector<8x32xf32>
    %651 = vector.broadcast %520 : vector<1x32xf32> to vector<8x32xf32>
    %652 = arith.addf %650, %651 : vector<8x32xf32>
    %653 = arith.addf %652, %632 : vector<8x32xf32>
    %cst_341 = arith.constant dense<0.000000e+00> : vector<8xf32>
    %654 = vector.multi_reduction <add>, %653, %cst_341 [1] : vector<8x32xf32> to vector<8xf32>
    %655 = vector.shape_cast %654 : vector<8xf32> to vector<8x1xf32>
    %cst_342 = arith.constant 3.200000e+01 : f32
    %656 = vector.broadcast %cst_342 : f32 to vector<8x1xf32>
    %657 = arith.divf %655, %656 : vector<8x1xf32>
    %658 = vector.broadcast %657 : vector<8x1xf32> to vector<8x32xf32>
    %659 = arith.subf %653, %658 : vector<8x32xf32>
    %660 = arith.mulf %659, %659 : vector<8x32xf32>
    %cst_343 = arith.constant dense<0.000000e+00> : vector<8xf32>
    %661 = vector.multi_reduction <add>, %660, %cst_343 [1] : vector<8x32xf32> to vector<8xf32>
    %662 = vector.shape_cast %661 : vector<8xf32> to vector<8x1xf32>
    %cst_344 = arith.constant 3.200000e+01 : f32
    %663 = vector.broadcast %cst_344 : f32 to vector<8x1xf32>
    %664 = arith.divf %662, %663 : vector<8x1xf32>
    %665 = vector.broadcast %657 : vector<8x1xf32> to vector<8x32xf32>
    %666 = arith.subf %653, %665 : vector<8x32xf32>
    %cst_345 = arith.constant 9.99999996E-13 : f32
    %667 = vector.broadcast %cst_345 : f32 to vector<8x1xf32>
    %668 = arith.addf %664, %667 : vector<8x1xf32>
    %669 = math.sqrt %668 : vector<8x1xf32>
    %670 = vector.broadcast %669 : vector<8x1xf32> to vector<8x32xf32>
    %671 = arith.divf %666, %670 : vector<8x32xf32>
    %672 = vector.broadcast %523 : vector<1x32xf32> to vector<8x32xf32>
    %673 = arith.mulf %671, %672 : vector<8x32xf32>
    %674 = vector.broadcast %524 : vector<1x32xf32> to vector<8x32xf32>
    %675 = arith.addf %673, %674 : vector<8x32xf32>
    %cst_346 = arith.constant 5.000000e-01 : f32
    %676 = vector.broadcast %cst_346 : f32 to vector<8x32xf32>
    %677 = arith.mulf %676, %675 : vector<8x32xf32>
    %678 = math.exp %677 : vector<8x32xf32>
    %679 = arith.addf %357, %678 : vector<8x32xf32>
    %c4_347 = arith.constant 4 : index
    %c0_348 = arith.constant 0 : index
    %c0_349 = arith.constant 0 : index
    %680 = vector.load %arg13[%c4_347, %c0_348, %c0_349] : memref<6x8x32xf32, #tpu.memory_space<vmem>>, vector<1x8x32xf32>
    %681 = vector.shape_cast %680 : vector<1x8x32xf32> to vector<8x32xf32>
    %682 = vector.extract_strided_slice %681 {offsets = [0, 0], sizes = [1, 32], strides = [1, 1]} : vector<8x32xf32> to vector<1x32xf32>
    %683 = vector.extract_strided_slice %681 {offsets = [1, 0], sizes = [1, 32], strides = [1, 1]} : vector<8x32xf32> to vector<1x32xf32>
    %684 = vector.extract_strided_slice %681 {offsets = [2, 0], sizes = [1, 32], strides = [1, 1]} : vector<8x32xf32> to vector<1x32xf32>
    %685 = vector.extract_strided_slice %681 {offsets = [3, 0], sizes = [1, 32], strides = [1, 1]} : vector<8x32xf32> to vector<1x32xf32>
    %686 = vector.extract_strided_slice %681 {offsets = [4, 0], sizes = [1, 32], strides = [1, 1]} : vector<8x32xf32> to vector<1x32xf32>
    %687 = vector.extract_strided_slice %681 {offsets = [5, 0], sizes = [1, 32], strides = [1, 1]} : vector<8x32xf32> to vector<1x32xf32>
    %cst_350 = arith.constant 0.000000e+00 : f32
    %688 = vector.broadcast %cst_350 : f32 to vector<8x32xf32>
    %c8_351 = arith.constant 8 : index
    %c0_352 = arith.constant 0 : index
    %c0_353 = arith.constant 0 : index
    %689 = vector.load %arg5[%c8_351, %c0_352, %c0_353] : memref<12x32x16xf32, #tpu.memory_space<vmem>>, vector<1x32x16xf32>
    %690 = vector.shape_cast %689 : vector<1x32x16xf32> to vector<32x16xf32>
    %cst_354 = arith.constant dense<0.000000e+00> : vector<8x16xf32>
    %691 = tpu.matmul %679, %690, %cst_354 {dimension_numbers = #tpu.dot_dimension_numbers<[1], [0], [0], [1], [0, 0, 1, 1], [], []>} : vector<8x32xf32>, vector<32x16xf32>, vector<8x16xf32> -> vector<8x16xf32>
    %c24 = arith.constant 24 : index
    %c0_355 = arith.constant 0 : index
    %c0_356 = arith.constant 0 : index
    %692 = vector.load %arg9[%c24, %c0_355, %c0_356] : memref<36x1x16xf32, #tpu.memory_space<vmem>>, vector<1x1x16xf32>
    %693 = vector.shape_cast %692 : vector<1x1x16xf32> to vector<1x16xf32>
    %694 = vector.broadcast %693 : vector<1x16xf32> to vector<8x16xf32>
    %695 = arith.addf %691, %694 : vector<8x16xf32>
    %c8_357 = arith.constant 8 : index
    %c0_358 = arith.constant 0 : index
    %c0_359 = arith.constant 0 : index
    %696 = vector.load %arg6[%c8_357, %c0_358, %c0_359] : memref<12x32x16xf32, #tpu.memory_space<vmem>>, vector<1x32x16xf32>
    %697 = vector.shape_cast %696 : vector<1x32x16xf32> to vector<32x16xf32>
    %cst_360 = arith.constant dense<0.000000e+00> : vector<8x16xf32>
    %698 = tpu.matmul %679, %697, %cst_360 {dimension_numbers = #tpu.dot_dimension_numbers<[1], [0], [0], [1], [0, 0, 1, 1], [], []>} : vector<8x32xf32>, vector<32x16xf32>, vector<8x16xf32> -> vector<8x16xf32>
    %c25 = arith.constant 25 : index
    %c0_361 = arith.constant 0 : index
    %c0_362 = arith.constant 0 : index
    %699 = vector.load %arg9[%c25, %c0_361, %c0_362] : memref<36x1x16xf32, #tpu.memory_space<vmem>>, vector<1x1x16xf32>
    %700 = vector.shape_cast %699 : vector<1x1x16xf32> to vector<1x16xf32>
    %701 = vector.broadcast %700 : vector<1x16xf32> to vector<8x16xf32>
    %702 = arith.addf %698, %701 : vector<8x16xf32>
    %c8_363 = arith.constant 8 : index
    %c0_364 = arith.constant 0 : index
    %c0_365 = arith.constant 0 : index
    %703 = vector.load %arg7[%c8_363, %c0_364, %c0_365] : memref<12x32x16xf32, #tpu.memory_space<vmem>>, vector<1x32x16xf32>
    %704 = vector.shape_cast %703 : vector<1x32x16xf32> to vector<32x16xf32>
    %cst_366 = arith.constant dense<0.000000e+00> : vector<8x16xf32>
    %705 = tpu.matmul %679, %704, %cst_366 {dimension_numbers = #tpu.dot_dimension_numbers<[1], [0], [0], [1], [0, 0, 1, 1], [], []>} : vector<8x32xf32>, vector<32x16xf32>, vector<8x16xf32> -> vector<8x16xf32>
    %c26 = arith.constant 26 : index
    %c0_367 = arith.constant 0 : index
    %c0_368 = arith.constant 0 : index
    %706 = vector.load %arg9[%c26, %c0_367, %c0_368] : memref<36x1x16xf32, #tpu.memory_space<vmem>>, vector<1x1x16xf32>
    %707 = vector.shape_cast %706 : vector<1x1x16xf32> to vector<1x16xf32>
    %708 = vector.broadcast %707 : vector<1x16xf32> to vector<8x16xf32>
    %709 = arith.addf %705, %708 : vector<8x16xf32>
    %710 = tpu.transpose %702, [1, 0] : vector<8x16xf32> -> vector<16x8xf32>
    %cst_369 = arith.constant dense<0.000000e+00> : vector<8x8xf32>
    %711 = tpu.matmul %695, %710, %cst_369 {dimension_numbers = #tpu.dot_dimension_numbers<[1], [0], [0], [1], [0, 0, 1, 1], [], []>} : vector<8x16xf32>, vector<16x8xf32>, vector<8x8xf32> -> vector<8x8xf32>
    %cst_370 = arith.constant 2.500000e-01 : f32
    %712 = vector.broadcast %cst_370 : f32 to vector<8x8xf32>
    %713 = arith.mulf %711, %712 : vector<8x8xf32>
    %714 = arith.addf %713, %39 : vector<8x8xf32>
    %cst_371 = arith.constant dense<0xFF800000> : vector<8xf32>
    %715 = vector.multi_reduction <maximumf>, %714, %cst_371 [1] : vector<8x8xf32> to vector<8xf32>
    %716 = vector.shape_cast %715 : vector<8xf32> to vector<8x1xf32>
    %717 = vector.broadcast %716 : vector<8x1xf32> to vector<8x8xf32>
    %718 = arith.subf %714, %717 : vector<8x8xf32>
    %719 = math.exp %718 : vector<8x8xf32>
    %cst_372 = arith.constant dense<0.000000e+00> : vector<8xf32>
    %720 = vector.multi_reduction <add>, %719, %cst_372 [1] : vector<8x8xf32> to vector<8xf32>
    %721 = vector.shape_cast %720 : vector<8xf32> to vector<8x1xf32>
    %722 = tpu.reciprocal %721 {approx = true} : vector<8x1xf32> -> vector<8x1xf32>
    %723 = vector.broadcast %722 : vector<8x1xf32> to vector<8x8xf32>
    %724 = arith.mulf %719, %723 : vector<8x8xf32>
    %cst_373 = arith.constant dense<0.000000e+00> : vector<8x16xf32>
    %725 = tpu.matmul %724, %709, %cst_373 {dimension_numbers = #tpu.dot_dimension_numbers<[1], [0], [0], [1], [0, 0, 1, 1], [], []>} : vector<8x8xf32>, vector<8x16xf32>, vector<8x16xf32> -> vector<8x16xf32>
    %c8_374 = arith.constant 8 : index
    %c0_375 = arith.constant 0 : index
    %c0_376 = arith.constant 0 : index
    %726 = vector.load %arg8[%c8_374, %c0_375, %c0_376] : memref<12x16x32xf32, #tpu.memory_space<vmem>>, vector<1x16x32xf32>
    %727 = vector.shape_cast %726 : vector<1x16x32xf32> to vector<16x32xf32>
    %cst_377 = arith.constant dense<0.000000e+00> : vector<8x32xf32>
    %728 = tpu.matmul %725, %727, %cst_377 {dimension_numbers = #tpu.dot_dimension_numbers<[1], [0], [0], [1], [0, 0, 1, 1], [], []>} : vector<8x16xf32>, vector<16x32xf32>, vector<8x32xf32> -> vector<8x32xf32>
    %729 = arith.addf %688, %728 : vector<8x32xf32>
    %c9_378 = arith.constant 9 : index
    %c0_379 = arith.constant 0 : index
    %c0_380 = arith.constant 0 : index
    %730 = vector.load %arg5[%c9_378, %c0_379, %c0_380] : memref<12x32x16xf32, #tpu.memory_space<vmem>>, vector<1x32x16xf32>
    %731 = vector.shape_cast %730 : vector<1x32x16xf32> to vector<32x16xf32>
    %cst_381 = arith.constant dense<0.000000e+00> : vector<8x16xf32>
    %732 = tpu.matmul %679, %731, %cst_381 {dimension_numbers = #tpu.dot_dimension_numbers<[1], [0], [0], [1], [0, 0, 1, 1], [], []>} : vector<8x32xf32>, vector<32x16xf32>, vector<8x16xf32> -> vector<8x16xf32>
    %c27 = arith.constant 27 : index
    %c0_382 = arith.constant 0 : index
    %c0_383 = arith.constant 0 : index
    %733 = vector.load %arg9[%c27, %c0_382, %c0_383] : memref<36x1x16xf32, #tpu.memory_space<vmem>>, vector<1x1x16xf32>
    %734 = vector.shape_cast %733 : vector<1x1x16xf32> to vector<1x16xf32>
    %735 = vector.broadcast %734 : vector<1x16xf32> to vector<8x16xf32>
    %736 = arith.addf %732, %735 : vector<8x16xf32>
    %c9_384 = arith.constant 9 : index
    %c0_385 = arith.constant 0 : index
    %c0_386 = arith.constant 0 : index
    %737 = vector.load %arg6[%c9_384, %c0_385, %c0_386] : memref<12x32x16xf32, #tpu.memory_space<vmem>>, vector<1x32x16xf32>
    %738 = vector.shape_cast %737 : vector<1x32x16xf32> to vector<32x16xf32>
    %cst_387 = arith.constant dense<0.000000e+00> : vector<8x16xf32>
    %739 = tpu.matmul %679, %738, %cst_387 {dimension_numbers = #tpu.dot_dimension_numbers<[1], [0], [0], [1], [0, 0, 1, 1], [], []>} : vector<8x32xf32>, vector<32x16xf32>, vector<8x16xf32> -> vector<8x16xf32>
    %c28 = arith.constant 28 : index
    %c0_388 = arith.constant 0 : index
    %c0_389 = arith.constant 0 : index
    %740 = vector.load %arg9[%c28, %c0_388, %c0_389] : memref<36x1x16xf32, #tpu.memory_space<vmem>>, vector<1x1x16xf32>
    %741 = vector.shape_cast %740 : vector<1x1x16xf32> to vector<1x16xf32>
    %742 = vector.broadcast %741 : vector<1x16xf32> to vector<8x16xf32>
    %743 = arith.addf %739, %742 : vector<8x16xf32>
    %c9_390 = arith.constant 9 : index
    %c0_391 = arith.constant 0 : index
    %c0_392 = arith.constant 0 : index
    %744 = vector.load %arg7[%c9_390, %c0_391, %c0_392] : memref<12x32x16xf32, #tpu.memory_space<vmem>>, vector<1x32x16xf32>
    %745 = vector.shape_cast %744 : vector<1x32x16xf32> to vector<32x16xf32>
    %cst_393 = arith.constant dense<0.000000e+00> : vector<8x16xf32>
    %746 = tpu.matmul %679, %745, %cst_393 {dimension_numbers = #tpu.dot_dimension_numbers<[1], [0], [0], [1], [0, 0, 1, 1], [], []>} : vector<8x32xf32>, vector<32x16xf32>, vector<8x16xf32> -> vector<8x16xf32>
    %c29 = arith.constant 29 : index
    %c0_394 = arith.constant 0 : index
    %c0_395 = arith.constant 0 : index
    %747 = vector.load %arg9[%c29, %c0_394, %c0_395] : memref<36x1x16xf32, #tpu.memory_space<vmem>>, vector<1x1x16xf32>
    %748 = vector.shape_cast %747 : vector<1x1x16xf32> to vector<1x16xf32>
    %749 = vector.broadcast %748 : vector<1x16xf32> to vector<8x16xf32>
    %750 = arith.addf %746, %749 : vector<8x16xf32>
    %751 = tpu.transpose %743, [1, 0] : vector<8x16xf32> -> vector<16x8xf32>
    %cst_396 = arith.constant dense<0.000000e+00> : vector<8x8xf32>
    %752 = tpu.matmul %736, %751, %cst_396 {dimension_numbers = #tpu.dot_dimension_numbers<[1], [0], [0], [1], [0, 0, 1, 1], [], []>} : vector<8x16xf32>, vector<16x8xf32>, vector<8x8xf32> -> vector<8x8xf32>
    %cst_397 = arith.constant 2.500000e-01 : f32
    %753 = vector.broadcast %cst_397 : f32 to vector<8x8xf32>
    %754 = arith.mulf %752, %753 : vector<8x8xf32>
    %755 = arith.addf %754, %39 : vector<8x8xf32>
    %cst_398 = arith.constant dense<0xFF800000> : vector<8xf32>
    %756 = vector.multi_reduction <maximumf>, %755, %cst_398 [1] : vector<8x8xf32> to vector<8xf32>
    %757 = vector.shape_cast %756 : vector<8xf32> to vector<8x1xf32>
    %758 = vector.broadcast %757 : vector<8x1xf32> to vector<8x8xf32>
    %759 = arith.subf %755, %758 : vector<8x8xf32>
    %760 = math.exp %759 : vector<8x8xf32>
    %cst_399 = arith.constant dense<0.000000e+00> : vector<8xf32>
    %761 = vector.multi_reduction <add>, %760, %cst_399 [1] : vector<8x8xf32> to vector<8xf32>
    %762 = vector.shape_cast %761 : vector<8xf32> to vector<8x1xf32>
    %763 = tpu.reciprocal %762 {approx = true} : vector<8x1xf32> -> vector<8x1xf32>
    %764 = vector.broadcast %763 : vector<8x1xf32> to vector<8x8xf32>
    %765 = arith.mulf %760, %764 : vector<8x8xf32>
    %cst_400 = arith.constant dense<0.000000e+00> : vector<8x16xf32>
    %766 = tpu.matmul %765, %750, %cst_400 {dimension_numbers = #tpu.dot_dimension_numbers<[1], [0], [0], [1], [0, 0, 1, 1], [], []>} : vector<8x8xf32>, vector<8x16xf32>, vector<8x16xf32> -> vector<8x16xf32>
    %c9_401 = arith.constant 9 : index
    %c0_402 = arith.constant 0 : index
    %c0_403 = arith.constant 0 : index
    %767 = vector.load %arg8[%c9_401, %c0_402, %c0_403] : memref<12x16x32xf32, #tpu.memory_space<vmem>>, vector<1x16x32xf32>
    %768 = vector.shape_cast %767 : vector<1x16x32xf32> to vector<16x32xf32>
    %cst_404 = arith.constant dense<0.000000e+00> : vector<8x32xf32>
    %769 = tpu.matmul %766, %768, %cst_404 {dimension_numbers = #tpu.dot_dimension_numbers<[1], [0], [0], [1], [0, 0, 1, 1], [], []>} : vector<8x16xf32>, vector<16x32xf32>, vector<8x32xf32> -> vector<8x32xf32>
    %770 = arith.addf %729, %769 : vector<8x32xf32>
    %771 = vector.broadcast %682 : vector<1x32xf32> to vector<8x32xf32>
    %772 = arith.addf %770, %771 : vector<8x32xf32>
    %773 = arith.addf %772, %679 : vector<8x32xf32>
    %cst_405 = arith.constant dense<0.000000e+00> : vector<8xf32>
    %774 = vector.multi_reduction <add>, %773, %cst_405 [1] : vector<8x32xf32> to vector<8xf32>
    %775 = vector.shape_cast %774 : vector<8xf32> to vector<8x1xf32>
    %cst_406 = arith.constant 3.200000e+01 : f32
    %776 = vector.broadcast %cst_406 : f32 to vector<8x1xf32>
    %777 = arith.divf %775, %776 : vector<8x1xf32>
    %778 = vector.broadcast %777 : vector<8x1xf32> to vector<8x32xf32>
    %779 = arith.subf %773, %778 : vector<8x32xf32>
    %780 = arith.mulf %779, %779 : vector<8x32xf32>
    %cst_407 = arith.constant dense<0.000000e+00> : vector<8xf32>
    %781 = vector.multi_reduction <add>, %780, %cst_407 [1] : vector<8x32xf32> to vector<8xf32>
    %782 = vector.shape_cast %781 : vector<8xf32> to vector<8x1xf32>
    %cst_408 = arith.constant 3.200000e+01 : f32
    %783 = vector.broadcast %cst_408 : f32 to vector<8x1xf32>
    %784 = arith.divf %782, %783 : vector<8x1xf32>
    %785 = vector.broadcast %777 : vector<8x1xf32> to vector<8x32xf32>
    %786 = arith.subf %773, %785 : vector<8x32xf32>
    %cst_409 = arith.constant 9.99999996E-13 : f32
    %787 = vector.broadcast %cst_409 : f32 to vector<8x1xf32>
    %788 = arith.addf %784, %787 : vector<8x1xf32>
    %789 = math.sqrt %788 : vector<8x1xf32>
    %790 = vector.broadcast %789 : vector<8x1xf32> to vector<8x32xf32>
    %791 = arith.divf %786, %790 : vector<8x32xf32>
    %792 = vector.broadcast %684 : vector<1x32xf32> to vector<8x32xf32>
    %793 = arith.mulf %791, %792 : vector<8x32xf32>
    %794 = vector.broadcast %685 : vector<1x32xf32> to vector<8x32xf32>
    %795 = arith.addf %793, %794 : vector<8x32xf32>
    %c4_410 = arith.constant 4 : index
    %c0_411 = arith.constant 0 : index
    %c0_412 = arith.constant 0 : index
    %796 = vector.load %arg10[%c4_410, %c0_411, %c0_412] : memref<6x32x128xf32, #tpu.memory_space<vmem>>, vector<1x32x128xf32>
    %797 = vector.shape_cast %796 : vector<1x32x128xf32> to vector<32x128xf32>
    %cst_413 = arith.constant dense<0.000000e+00> : vector<8x128xf32>
    %798 = tpu.matmul %795, %797, %cst_413 {dimension_numbers = #tpu.dot_dimension_numbers<[1], [0], [0], [1], [0, 0, 1, 1], [], []>} : vector<8x32xf32>, vector<32x128xf32>, vector<8x128xf32> -> vector<8x128xf32>
    %c4_414 = arith.constant 4 : index
    %c0_415 = arith.constant 0 : index
    %c0_416 = arith.constant 0 : index
    %799 = vector.load %arg12[%c4_414, %c0_415, %c0_416] : memref<6x1x128xf32, #tpu.memory_space<vmem>>, vector<1x1x128xf32>
    %800 = vector.shape_cast %799 : vector<1x1x128xf32> to vector<1x128xf32>
    %801 = vector.broadcast %800 : vector<1x128xf32> to vector<8x128xf32>
    %802 = arith.addf %798, %801 : vector<8x128xf32>
    %cst_417 = arith.constant 5.000000e-01 : f32
    %803 = vector.broadcast %cst_417 : f32 to vector<8x128xf32>
    %804 = arith.mulf %803, %802 : vector<8x128xf32>
    %cst_418 = arith.constant 0.707106769 : f32
    %805 = vector.broadcast %cst_418 : f32 to vector<8x128xf32>
    %806 = arith.mulf %802, %805 : vector<8x128xf32>
    %807 = math.erf %806 : vector<8x128xf32>
    %cst_419 = arith.constant 1.000000e+00 : f32
    %808 = vector.broadcast %cst_419 : f32 to vector<8x128xf32>
    %809 = arith.addf %808, %807 : vector<8x128xf32>
    %810 = arith.mulf %804, %809 : vector<8x128xf32>
    %c4_420 = arith.constant 4 : index
    %c0_421 = arith.constant 0 : index
    %c0_422 = arith.constant 0 : index
    %811 = vector.load %arg11[%c4_420, %c0_421, %c0_422] : memref<6x128x32xf32, #tpu.memory_space<vmem>>, vector<1x128x32xf32>
    %812 = vector.shape_cast %811 : vector<1x128x32xf32> to vector<128x32xf32>
    %cst_423 = arith.constant dense<0.000000e+00> : vector<8x32xf32>
    %813 = tpu.matmul %810, %812, %cst_423 {dimension_numbers = #tpu.dot_dimension_numbers<[1], [0], [0], [1], [0, 0, 1, 1], [], []>} : vector<8x128xf32>, vector<128x32xf32>, vector<8x32xf32> -> vector<8x32xf32>
    %814 = vector.broadcast %683 : vector<1x32xf32> to vector<8x32xf32>
    %815 = arith.addf %813, %814 : vector<8x32xf32>
    %816 = arith.addf %815, %795 : vector<8x32xf32>
    %cst_424 = arith.constant dense<0.000000e+00> : vector<8xf32>
    %817 = vector.multi_reduction <add>, %816, %cst_424 [1] : vector<8x32xf32> to vector<8xf32>
    %818 = vector.shape_cast %817 : vector<8xf32> to vector<8x1xf32>
    %cst_425 = arith.constant 3.200000e+01 : f32
    %819 = vector.broadcast %cst_425 : f32 to vector<8x1xf32>
    %820 = arith.divf %818, %819 : vector<8x1xf32>
    %821 = vector.broadcast %820 : vector<8x1xf32> to vector<8x32xf32>
    %822 = arith.subf %816, %821 : vector<8x32xf32>
    %823 = arith.mulf %822, %822 : vector<8x32xf32>
    %cst_426 = arith.constant dense<0.000000e+00> : vector<8xf32>
    %824 = vector.multi_reduction <add>, %823, %cst_426 [1] : vector<8x32xf32> to vector<8xf32>
    %825 = vector.shape_cast %824 : vector<8xf32> to vector<8x1xf32>
    %cst_427 = arith.constant 3.200000e+01 : f32
    %826 = vector.broadcast %cst_427 : f32 to vector<8x1xf32>
    %827 = arith.divf %825, %826 : vector<8x1xf32>
    %828 = vector.broadcast %820 : vector<8x1xf32> to vector<8x32xf32>
    %829 = arith.subf %816, %828 : vector<8x32xf32>
    %cst_428 = arith.constant 9.99999996E-13 : f32
    %830 = vector.broadcast %cst_428 : f32 to vector<8x1xf32>
    %831 = arith.addf %827, %830 : vector<8x1xf32>
    %832 = math.sqrt %831 : vector<8x1xf32>
    %833 = vector.broadcast %832 : vector<8x1xf32> to vector<8x32xf32>
    %834 = arith.divf %829, %833 : vector<8x32xf32>
    %835 = vector.broadcast %686 : vector<1x32xf32> to vector<8x32xf32>
    %836 = arith.mulf %834, %835 : vector<8x32xf32>
    %837 = vector.broadcast %687 : vector<1x32xf32> to vector<8x32xf32>
    %838 = arith.addf %836, %837 : vector<8x32xf32>
    %c5_429 = arith.constant 5 : index
    %c0_430 = arith.constant 0 : index
    %c0_431 = arith.constant 0 : index
    %839 = vector.load %arg13[%c5_429, %c0_430, %c0_431] : memref<6x8x32xf32, #tpu.memory_space<vmem>>, vector<1x8x32xf32>
    %840 = vector.shape_cast %839 : vector<1x8x32xf32> to vector<8x32xf32>
    %841 = vector.extract_strided_slice %840 {offsets = [0, 0], sizes = [1, 32], strides = [1, 1]} : vector<8x32xf32> to vector<1x32xf32>
    %842 = vector.extract_strided_slice %840 {offsets = [1, 0], sizes = [1, 32], strides = [1, 1]} : vector<8x32xf32> to vector<1x32xf32>
    %843 = vector.extract_strided_slice %840 {offsets = [2, 0], sizes = [1, 32], strides = [1, 1]} : vector<8x32xf32> to vector<1x32xf32>
    %844 = vector.extract_strided_slice %840 {offsets = [3, 0], sizes = [1, 32], strides = [1, 1]} : vector<8x32xf32> to vector<1x32xf32>
    %845 = vector.extract_strided_slice %840 {offsets = [4, 0], sizes = [1, 32], strides = [1, 1]} : vector<8x32xf32> to vector<1x32xf32>
    %846 = vector.extract_strided_slice %840 {offsets = [5, 0], sizes = [1, 32], strides = [1, 1]} : vector<8x32xf32> to vector<1x32xf32>
    %cst_432 = arith.constant 0.000000e+00 : f32
    %847 = vector.broadcast %cst_432 : f32 to vector<8x32xf32>
    %c10_433 = arith.constant 10 : index
    %c0_434 = arith.constant 0 : index
    %c0_435 = arith.constant 0 : index
    %848 = vector.load %arg5[%c10_433, %c0_434, %c0_435] : memref<12x32x16xf32, #tpu.memory_space<vmem>>, vector<1x32x16xf32>
    %849 = vector.shape_cast %848 : vector<1x32x16xf32> to vector<32x16xf32>
    %cst_436 = arith.constant dense<0.000000e+00> : vector<8x16xf32>
    %850 = tpu.matmul %838, %849, %cst_436 {dimension_numbers = #tpu.dot_dimension_numbers<[1], [0], [0], [1], [0, 0, 1, 1], [], []>} : vector<8x32xf32>, vector<32x16xf32>, vector<8x16xf32> -> vector<8x16xf32>
    %c30 = arith.constant 30 : index
    %c0_437 = arith.constant 0 : index
    %c0_438 = arith.constant 0 : index
    %851 = vector.load %arg9[%c30, %c0_437, %c0_438] : memref<36x1x16xf32, #tpu.memory_space<vmem>>, vector<1x1x16xf32>
    %852 = vector.shape_cast %851 : vector<1x1x16xf32> to vector<1x16xf32>
    %853 = vector.broadcast %852 : vector<1x16xf32> to vector<8x16xf32>
    %854 = arith.addf %850, %853 : vector<8x16xf32>
    %c10_439 = arith.constant 10 : index
    %c0_440 = arith.constant 0 : index
    %c0_441 = arith.constant 0 : index
    %855 = vector.load %arg6[%c10_439, %c0_440, %c0_441] : memref<12x32x16xf32, #tpu.memory_space<vmem>>, vector<1x32x16xf32>
    %856 = vector.shape_cast %855 : vector<1x32x16xf32> to vector<32x16xf32>
    %cst_442 = arith.constant dense<0.000000e+00> : vector<8x16xf32>
    %857 = tpu.matmul %838, %856, %cst_442 {dimension_numbers = #tpu.dot_dimension_numbers<[1], [0], [0], [1], [0, 0, 1, 1], [], []>} : vector<8x32xf32>, vector<32x16xf32>, vector<8x16xf32> -> vector<8x16xf32>
    %c31 = arith.constant 31 : index
    %c0_443 = arith.constant 0 : index
    %c0_444 = arith.constant 0 : index
    %858 = vector.load %arg9[%c31, %c0_443, %c0_444] : memref<36x1x16xf32, #tpu.memory_space<vmem>>, vector<1x1x16xf32>
    %859 = vector.shape_cast %858 : vector<1x1x16xf32> to vector<1x16xf32>
    %860 = vector.broadcast %859 : vector<1x16xf32> to vector<8x16xf32>
    %861 = arith.addf %857, %860 : vector<8x16xf32>
    %c10_445 = arith.constant 10 : index
    %c0_446 = arith.constant 0 : index
    %c0_447 = arith.constant 0 : index
    %862 = vector.load %arg7[%c10_445, %c0_446, %c0_447] : memref<12x32x16xf32, #tpu.memory_space<vmem>>, vector<1x32x16xf32>
    %863 = vector.shape_cast %862 : vector<1x32x16xf32> to vector<32x16xf32>
    %cst_448 = arith.constant dense<0.000000e+00> : vector<8x16xf32>
    %864 = tpu.matmul %838, %863, %cst_448 {dimension_numbers = #tpu.dot_dimension_numbers<[1], [0], [0], [1], [0, 0, 1, 1], [], []>} : vector<8x32xf32>, vector<32x16xf32>, vector<8x16xf32> -> vector<8x16xf32>
    %c32 = arith.constant 32 : index
    %c0_449 = arith.constant 0 : index
    %c0_450 = arith.constant 0 : index
    %865 = vector.load %arg9[%c32, %c0_449, %c0_450] : memref<36x1x16xf32, #tpu.memory_space<vmem>>, vector<1x1x16xf32>
    %866 = vector.shape_cast %865 : vector<1x1x16xf32> to vector<1x16xf32>
    %867 = vector.broadcast %866 : vector<1x16xf32> to vector<8x16xf32>
    %868 = arith.addf %864, %867 : vector<8x16xf32>
    %869 = tpu.transpose %861, [1, 0] : vector<8x16xf32> -> vector<16x8xf32>
    %cst_451 = arith.constant dense<0.000000e+00> : vector<8x8xf32>
    %870 = tpu.matmul %854, %869, %cst_451 {dimension_numbers = #tpu.dot_dimension_numbers<[1], [0], [0], [1], [0, 0, 1, 1], [], []>} : vector<8x16xf32>, vector<16x8xf32>, vector<8x8xf32> -> vector<8x8xf32>
    %cst_452 = arith.constant 2.500000e-01 : f32
    %871 = vector.broadcast %cst_452 : f32 to vector<8x8xf32>
    %872 = arith.mulf %870, %871 : vector<8x8xf32>
    %873 = arith.addf %872, %39 : vector<8x8xf32>
    %cst_453 = arith.constant dense<0xFF800000> : vector<8xf32>
    %874 = vector.multi_reduction <maximumf>, %873, %cst_453 [1] : vector<8x8xf32> to vector<8xf32>
    %875 = vector.shape_cast %874 : vector<8xf32> to vector<8x1xf32>
    %876 = vector.broadcast %875 : vector<8x1xf32> to vector<8x8xf32>
    %877 = arith.subf %873, %876 : vector<8x8xf32>
    %878 = math.exp %877 : vector<8x8xf32>
    %cst_454 = arith.constant dense<0.000000e+00> : vector<8xf32>
    %879 = vector.multi_reduction <add>, %878, %cst_454 [1] : vector<8x8xf32> to vector<8xf32>
    %880 = vector.shape_cast %879 : vector<8xf32> to vector<8x1xf32>
    %881 = tpu.reciprocal %880 {approx = true} : vector<8x1xf32> -> vector<8x1xf32>
    %882 = vector.broadcast %881 : vector<8x1xf32> to vector<8x8xf32>
    %883 = arith.mulf %878, %882 : vector<8x8xf32>
    %cst_455 = arith.constant dense<0.000000e+00> : vector<8x16xf32>
    %884 = tpu.matmul %883, %868, %cst_455 {dimension_numbers = #tpu.dot_dimension_numbers<[1], [0], [0], [1], [0, 0, 1, 1], [], []>} : vector<8x8xf32>, vector<8x16xf32>, vector<8x16xf32> -> vector<8x16xf32>
    %c10_456 = arith.constant 10 : index
    %c0_457 = arith.constant 0 : index
    %c0_458 = arith.constant 0 : index
    %885 = vector.load %arg8[%c10_456, %c0_457, %c0_458] : memref<12x16x32xf32, #tpu.memory_space<vmem>>, vector<1x16x32xf32>
    %886 = vector.shape_cast %885 : vector<1x16x32xf32> to vector<16x32xf32>
    %cst_459 = arith.constant dense<0.000000e+00> : vector<8x32xf32>
    %887 = tpu.matmul %884, %886, %cst_459 {dimension_numbers = #tpu.dot_dimension_numbers<[1], [0], [0], [1], [0, 0, 1, 1], [], []>} : vector<8x16xf32>, vector<16x32xf32>, vector<8x32xf32> -> vector<8x32xf32>
    %888 = arith.addf %847, %887 : vector<8x32xf32>
    %c11_460 = arith.constant 11 : index
    %c0_461 = arith.constant 0 : index
    %c0_462 = arith.constant 0 : index
    %889 = vector.load %arg5[%c11_460, %c0_461, %c0_462] : memref<12x32x16xf32, #tpu.memory_space<vmem>>, vector<1x32x16xf32>
    %890 = vector.shape_cast %889 : vector<1x32x16xf32> to vector<32x16xf32>
    %cst_463 = arith.constant dense<0.000000e+00> : vector<8x16xf32>
    %891 = tpu.matmul %838, %890, %cst_463 {dimension_numbers = #tpu.dot_dimension_numbers<[1], [0], [0], [1], [0, 0, 1, 1], [], []>} : vector<8x32xf32>, vector<32x16xf32>, vector<8x16xf32> -> vector<8x16xf32>
    %c33 = arith.constant 33 : index
    %c0_464 = arith.constant 0 : index
    %c0_465 = arith.constant 0 : index
    %892 = vector.load %arg9[%c33, %c0_464, %c0_465] : memref<36x1x16xf32, #tpu.memory_space<vmem>>, vector<1x1x16xf32>
    %893 = vector.shape_cast %892 : vector<1x1x16xf32> to vector<1x16xf32>
    %894 = vector.broadcast %893 : vector<1x16xf32> to vector<8x16xf32>
    %895 = arith.addf %891, %894 : vector<8x16xf32>
    %c11_466 = arith.constant 11 : index
    %c0_467 = arith.constant 0 : index
    %c0_468 = arith.constant 0 : index
    %896 = vector.load %arg6[%c11_466, %c0_467, %c0_468] : memref<12x32x16xf32, #tpu.memory_space<vmem>>, vector<1x32x16xf32>
    %897 = vector.shape_cast %896 : vector<1x32x16xf32> to vector<32x16xf32>
    %cst_469 = arith.constant dense<0.000000e+00> : vector<8x16xf32>
    %898 = tpu.matmul %838, %897, %cst_469 {dimension_numbers = #tpu.dot_dimension_numbers<[1], [0], [0], [1], [0, 0, 1, 1], [], []>} : vector<8x32xf32>, vector<32x16xf32>, vector<8x16xf32> -> vector<8x16xf32>
    %c34 = arith.constant 34 : index
    %c0_470 = arith.constant 0 : index
    %c0_471 = arith.constant 0 : index
    %899 = vector.load %arg9[%c34, %c0_470, %c0_471] : memref<36x1x16xf32, #tpu.memory_space<vmem>>, vector<1x1x16xf32>
    %900 = vector.shape_cast %899 : vector<1x1x16xf32> to vector<1x16xf32>
    %901 = vector.broadcast %900 : vector<1x16xf32> to vector<8x16xf32>
    %902 = arith.addf %898, %901 : vector<8x16xf32>
    %c11_472 = arith.constant 11 : index
    %c0_473 = arith.constant 0 : index
    %c0_474 = arith.constant 0 : index
    %903 = vector.load %arg7[%c11_472, %c0_473, %c0_474] : memref<12x32x16xf32, #tpu.memory_space<vmem>>, vector<1x32x16xf32>
    %904 = vector.shape_cast %903 : vector<1x32x16xf32> to vector<32x16xf32>
    %cst_475 = arith.constant dense<0.000000e+00> : vector<8x16xf32>
    %905 = tpu.matmul %838, %904, %cst_475 {dimension_numbers = #tpu.dot_dimension_numbers<[1], [0], [0], [1], [0, 0, 1, 1], [], []>} : vector<8x32xf32>, vector<32x16xf32>, vector<8x16xf32> -> vector<8x16xf32>
    %c35 = arith.constant 35 : index
    %c0_476 = arith.constant 0 : index
    %c0_477 = arith.constant 0 : index
    %906 = vector.load %arg9[%c35, %c0_476, %c0_477] : memref<36x1x16xf32, #tpu.memory_space<vmem>>, vector<1x1x16xf32>
    %907 = vector.shape_cast %906 : vector<1x1x16xf32> to vector<1x16xf32>
    %908 = vector.broadcast %907 : vector<1x16xf32> to vector<8x16xf32>
    %909 = arith.addf %905, %908 : vector<8x16xf32>
    %910 = tpu.transpose %902, [1, 0] : vector<8x16xf32> -> vector<16x8xf32>
    %cst_478 = arith.constant dense<0.000000e+00> : vector<8x8xf32>
    %911 = tpu.matmul %895, %910, %cst_478 {dimension_numbers = #tpu.dot_dimension_numbers<[1], [0], [0], [1], [0, 0, 1, 1], [], []>} : vector<8x16xf32>, vector<16x8xf32>, vector<8x8xf32> -> vector<8x8xf32>
    %cst_479 = arith.constant 2.500000e-01 : f32
    %912 = vector.broadcast %cst_479 : f32 to vector<8x8xf32>
    %913 = arith.mulf %911, %912 : vector<8x8xf32>
    %914 = arith.addf %913, %39 : vector<8x8xf32>
    %cst_480 = arith.constant dense<0xFF800000> : vector<8xf32>
    %915 = vector.multi_reduction <maximumf>, %914, %cst_480 [1] : vector<8x8xf32> to vector<8xf32>
    %916 = vector.shape_cast %915 : vector<8xf32> to vector<8x1xf32>
    %917 = vector.broadcast %916 : vector<8x1xf32> to vector<8x8xf32>
    %918 = arith.subf %914, %917 : vector<8x8xf32>
    %919 = math.exp %918 : vector<8x8xf32>
    %cst_481 = arith.constant dense<0.000000e+00> : vector<8xf32>
    %920 = vector.multi_reduction <add>, %919, %cst_481 [1] : vector<8x8xf32> to vector<8xf32>
    %921 = vector.shape_cast %920 : vector<8xf32> to vector<8x1xf32>
    %922 = tpu.reciprocal %921 {approx = true} : vector<8x1xf32> -> vector<8x1xf32>
    %923 = vector.broadcast %922 : vector<8x1xf32> to vector<8x8xf32>
    %924 = arith.mulf %919, %923 : vector<8x8xf32>
    %cst_482 = arith.constant dense<0.000000e+00> : vector<8x16xf32>
    %925 = tpu.matmul %924, %909, %cst_482 {dimension_numbers = #tpu.dot_dimension_numbers<[1], [0], [0], [1], [0, 0, 1, 1], [], []>} : vector<8x8xf32>, vector<8x16xf32>, vector<8x16xf32> -> vector<8x16xf32>
    %c11_483 = arith.constant 11 : index
    %c0_484 = arith.constant 0 : index
    %c0_485 = arith.constant 0 : index
    %926 = vector.load %arg8[%c11_483, %c0_484, %c0_485] : memref<12x16x32xf32, #tpu.memory_space<vmem>>, vector<1x16x32xf32>
    %927 = vector.shape_cast %926 : vector<1x16x32xf32> to vector<16x32xf32>
    %cst_486 = arith.constant dense<0.000000e+00> : vector<8x32xf32>
    %928 = tpu.matmul %925, %927, %cst_486 {dimension_numbers = #tpu.dot_dimension_numbers<[1], [0], [0], [1], [0, 0, 1, 1], [], []>} : vector<8x16xf32>, vector<16x32xf32>, vector<8x32xf32> -> vector<8x32xf32>
    %929 = arith.addf %888, %928 : vector<8x32xf32>
    %930 = vector.broadcast %841 : vector<1x32xf32> to vector<8x32xf32>
    %931 = arith.addf %929, %930 : vector<8x32xf32>
    %932 = arith.addf %931, %838 : vector<8x32xf32>
    %cst_487 = arith.constant dense<0.000000e+00> : vector<8xf32>
    %933 = vector.multi_reduction <add>, %932, %cst_487 [1] : vector<8x32xf32> to vector<8xf32>
    %934 = vector.shape_cast %933 : vector<8xf32> to vector<8x1xf32>
    %cst_488 = arith.constant 3.200000e+01 : f32
    %935 = vector.broadcast %cst_488 : f32 to vector<8x1xf32>
    %936 = arith.divf %934, %935 : vector<8x1xf32>
    %937 = vector.broadcast %936 : vector<8x1xf32> to vector<8x32xf32>
    %938 = arith.subf %932, %937 : vector<8x32xf32>
    %939 = arith.mulf %938, %938 : vector<8x32xf32>
    %cst_489 = arith.constant dense<0.000000e+00> : vector<8xf32>
    %940 = vector.multi_reduction <add>, %939, %cst_489 [1] : vector<8x32xf32> to vector<8xf32>
    %941 = vector.shape_cast %940 : vector<8xf32> to vector<8x1xf32>
    %cst_490 = arith.constant 3.200000e+01 : f32
    %942 = vector.broadcast %cst_490 : f32 to vector<8x1xf32>
    %943 = arith.divf %941, %942 : vector<8x1xf32>
    %944 = vector.broadcast %936 : vector<8x1xf32> to vector<8x32xf32>
    %945 = arith.subf %932, %944 : vector<8x32xf32>
    %cst_491 = arith.constant 9.99999996E-13 : f32
    %946 = vector.broadcast %cst_491 : f32 to vector<8x1xf32>
    %947 = arith.addf %943, %946 : vector<8x1xf32>
    %948 = math.sqrt %947 : vector<8x1xf32>
    %949 = vector.broadcast %948 : vector<8x1xf32> to vector<8x32xf32>
    %950 = arith.divf %945, %949 : vector<8x32xf32>
    %951 = vector.broadcast %843 : vector<1x32xf32> to vector<8x32xf32>
    %952 = arith.mulf %950, %951 : vector<8x32xf32>
    %953 = vector.broadcast %844 : vector<1x32xf32> to vector<8x32xf32>
    %954 = arith.addf %952, %953 : vector<8x32xf32>
    %c5_492 = arith.constant 5 : index
    %c0_493 = arith.constant 0 : index
    %c0_494 = arith.constant 0 : index
    %955 = vector.load %arg10[%c5_492, %c0_493, %c0_494] : memref<6x32x128xf32, #tpu.memory_space<vmem>>, vector<1x32x128xf32>
    %956 = vector.shape_cast %955 : vector<1x32x128xf32> to vector<32x128xf32>
    %cst_495 = arith.constant dense<0.000000e+00> : vector<8x128xf32>
    %957 = tpu.matmul %954, %956, %cst_495 {dimension_numbers = #tpu.dot_dimension_numbers<[1], [0], [0], [1], [0, 0, 1, 1], [], []>} : vector<8x32xf32>, vector<32x128xf32>, vector<8x128xf32> -> vector<8x128xf32>
    %c5_496 = arith.constant 5 : index
    %c0_497 = arith.constant 0 : index
    %c0_498 = arith.constant 0 : index
    %958 = vector.load %arg12[%c5_496, %c0_497, %c0_498] : memref<6x1x128xf32, #tpu.memory_space<vmem>>, vector<1x1x128xf32>
    %959 = vector.shape_cast %958 : vector<1x1x128xf32> to vector<1x128xf32>
    %960 = vector.broadcast %959 : vector<1x128xf32> to vector<8x128xf32>
    %961 = arith.addf %957, %960 : vector<8x128xf32>
    %cst_499 = arith.constant 5.000000e-01 : f32
    %962 = vector.broadcast %cst_499 : f32 to vector<8x128xf32>
    %963 = arith.mulf %962, %961 : vector<8x128xf32>
    %cst_500 = arith.constant 0.707106769 : f32
    %964 = vector.broadcast %cst_500 : f32 to vector<8x128xf32>
    %965 = arith.mulf %961, %964 : vector<8x128xf32>
    %966 = math.erf %965 : vector<8x128xf32>
    %cst_501 = arith.constant 1.000000e+00 : f32
    %967 = vector.broadcast %cst_501 : f32 to vector<8x128xf32>
    %968 = arith.addf %967, %966 : vector<8x128xf32>
    %969 = arith.mulf %963, %968 : vector<8x128xf32>
    %c5_502 = arith.constant 5 : index
    %c0_503 = arith.constant 0 : index
    %c0_504 = arith.constant 0 : index
    %970 = vector.load %arg11[%c5_502, %c0_503, %c0_504] : memref<6x128x32xf32, #tpu.memory_space<vmem>>, vector<1x128x32xf32>
    %971 = vector.shape_cast %970 : vector<1x128x32xf32> to vector<128x32xf32>
    %cst_505 = arith.constant dense<0.000000e+00> : vector<8x32xf32>
    %972 = tpu.matmul %969, %971, %cst_505 {dimension_numbers = #tpu.dot_dimension_numbers<[1], [0], [0], [1], [0, 0, 1, 1], [], []>} : vector<8x128xf32>, vector<128x32xf32>, vector<8x32xf32> -> vector<8x32xf32>
    %973 = vector.broadcast %842 : vector<1x32xf32> to vector<8x32xf32>
    %974 = arith.addf %972, %973 : vector<8x32xf32>
    %975 = arith.addf %974, %954 : vector<8x32xf32>
    %cst_506 = arith.constant dense<0.000000e+00> : vector<8xf32>
    %976 = vector.multi_reduction <add>, %975, %cst_506 [1] : vector<8x32xf32> to vector<8xf32>
    %977 = vector.shape_cast %976 : vector<8xf32> to vector<8x1xf32>
    %cst_507 = arith.constant 3.200000e+01 : f32
    %978 = vector.broadcast %cst_507 : f32 to vector<8x1xf32>
    %979 = arith.divf %977, %978 : vector<8x1xf32>
    %980 = vector.broadcast %979 : vector<8x1xf32> to vector<8x32xf32>
    %981 = arith.subf %975, %980 : vector<8x32xf32>
    %982 = arith.mulf %981, %981 : vector<8x32xf32>
    %cst_508 = arith.constant dense<0.000000e+00> : vector<8xf32>
    %983 = vector.multi_reduction <add>, %982, %cst_508 [1] : vector<8x32xf32> to vector<8xf32>
    %984 = vector.shape_cast %983 : vector<8xf32> to vector<8x1xf32>
    %cst_509 = arith.constant 3.200000e+01 : f32
    %985 = vector.broadcast %cst_509 : f32 to vector<8x1xf32>
    %986 = arith.divf %984, %985 : vector<8x1xf32>
    %987 = vector.broadcast %979 : vector<8x1xf32> to vector<8x32xf32>
    %988 = arith.subf %975, %987 : vector<8x32xf32>
    %cst_510 = arith.constant 9.99999996E-13 : f32
    %989 = vector.broadcast %cst_510 : f32 to vector<8x1xf32>
    %990 = arith.addf %986, %989 : vector<8x1xf32>
    %991 = math.sqrt %990 : vector<8x1xf32>
    %992 = vector.broadcast %991 : vector<8x1xf32> to vector<8x32xf32>
    %993 = arith.divf %988, %992 : vector<8x32xf32>
    %994 = vector.broadcast %845 : vector<1x32xf32> to vector<8x32xf32>
    %995 = arith.mulf %993, %994 : vector<8x32xf32>
    %996 = vector.broadcast %846 : vector<1x32xf32> to vector<8x32xf32>
    %997 = arith.addf %995, %996 : vector<8x32xf32>
    %c0_511 = arith.constant 0 : index
    %c0_512 = arith.constant 0 : index
    %c0_513 = arith.constant 0 : index
    %998 = vector.load %arg14[%c0_511, %c0_512, %c0_513] : memref<1x8x32xf32, #tpu.memory_space<vmem>>, vector<1x8x32xf32>
    %999 = vector.shape_cast %998 : vector<1x8x32xf32> to vector<8x32xf32>
    %1000 = vector.shape_cast %997 : vector<8x32xf32> to vector<1x8x32xf32>
    tpu.vector_store %arg14[%c0_511, %c0_512, %c0_513], %1000 {strides = array<i32>} : memref<1x8x32xf32, #tpu.memory_space<vmem>>, vector<1x8x32xf32>,
    %c0_514 = arith.constant 0 : index
    %c0_515 = arith.constant 0 : index
    %c0_516 = arith.constant 0 : index
    %1001 = vector.load %arg15[%c0_514, %c0_515, %c0_516] : memref<1x8x32xf32, #tpu.memory_space<vmem>>, vector<1x8x32xf32>
    %1002 = vector.shape_cast %1001 : vector<1x8x32xf32> to vector<8x32xf32>
    %1003 = vector.shape_cast %357 : vector<8x32xf32> to vector<1x8x32xf32>
    tpu.vector_store %arg15[%c0_514, %c0_515, %c0_516], %1003 {strides = array<i32>} : memref<1x8x32xf32, #tpu.memory_space<vmem>>, vector<1x8x32xf32>,
    %c0_517 = arith.constant 0 : index
    %c0_518 = arith.constant 0 : index
    %c0_519 = arith.constant 0 : index
    %1004 = vector.load %arg16[%c0_517, %c0_518, %c0_519] : memref<1x8x32xf32, #tpu.memory_space<vmem>>, vector<1x8x32xf32>
    %1005 = vector.shape_cast %1004 : vector<1x8x32xf32> to vector<8x32xf32>
    %1006 = vector.shape_cast %675 : vector<8x32xf32> to vector<1x8x32xf32>
    tpu.vector_store %arg16[%c0_517, %c0_518, %c0_519], %1006 {strides = array<i32>} : memref<1x8x32xf32, #tpu.memory_space<vmem>>, vector<1x8x32xf32>,
    %c0_520 = arith.constant 0 : index
    %c0_521 = arith.constant 0 : index
    %c0_522 = arith.constant 0 : index
    %1007 = vector.load %arg17[%c0_520, %c0_521, %c0_522] : memref<1x8x32xf32, #tpu.memory_space<vmem>>, vector<1x8x32xf32>
    %1008 = vector.shape_cast %1007 : vector<1x8x32xf32> to vector<8x32xf32>
    %1009 = vector.shape_cast %679 : vector<8x32xf32> to vector<1x8x32xf32>
    tpu.vector_store %arg17[%c0_520, %c0_521, %c0_522], %1009 {strides = array<i32>} : memref<1x8x32xf32, #tpu.memory_space<vmem>>, vector<1x8x32xf32>,
    return
  }
  func.func @transform_0(%arg0: i32) -> (i32, i32, i32) {
    %c0_i32 = arith.constant 0 : i32
    %c0_i32_0 = arith.constant 0 : i32
    %c0_i32_1 = arith.constant 0 : i32
    return %arg0, %c0_i32, %c0_i32_0 : i32, i32, i32
  }
  func.func @transform_1(%arg0: i32) -> (i32, i32, i32) {
    %c0_i32 = arith.constant 0 : i32
    %c0_i32_0 = arith.constant 0 : i32
    %c0_i32_1 = arith.constant 0 : i32
    return %arg0, %c0_i32, %c0_i32_0 : i32, i32, i32
  }
  func.func @transform_2(%arg0: i32) -> (i32, i32) {
    %c0_i32 = arith.constant 0 : i32
    %c0_i32_0 = arith.constant 0 : i32
    %c0_i32_1 = arith.constant 0 : i32
    return %c0_i32, %c0_i32_0 : i32, i32
  }
  func.func @transform_3(%arg0: i32) -> (i32, i32) {
    %c0_i32 = arith.constant 0 : i32
    %c0_i32_0 = arith.constant 0 : i32
    %c0_i32_1 = arith.constant 0 : i32
    return %c0_i32, %c0_i32_0 : i32, i32
  }
  func.func @transform_4(%arg0: i32) -> (i32, i32, i32) {
    %c0_i32 = arith.constant 0 : i32
    %c0_i32_0 = arith.constant 0 : i32
    %c0_i32_1 = arith.constant 0 : i32
    %c0_i32_2 = arith.constant 0 : i32
    return %c0_i32, %c0_i32_0, %c0_i32_1 : i32, i32, i32
  }
  func.func @transform_5(%arg0: i32) -> (i32, i32, i32) {
    %c0_i32 = arith.constant 0 : i32
    %c0_i32_0 = arith.constant 0 : i32
    %c0_i32_1 = arith.constant 0 : i32
    %c0_i32_2 = arith.constant 0 : i32
    return %c0_i32, %c0_i32_0, %c0_i32_1 : i32, i32, i32
  }
  func.func @transform_6(%arg0: i32) -> (i32, i32, i32) {
    %c0_i32 = arith.constant 0 : i32
    %c0_i32_0 = arith.constant 0 : i32
    %c0_i32_1 = arith.constant 0 : i32
    %c0_i32_2 = arith.constant 0 : i32
    return %c0_i32, %c0_i32_0, %c0_i32_1 : i32, i32, i32
  }
  func.func @transform_7(%arg0: i32) -> (i32, i32, i32) {
    %c0_i32 = arith.constant 0 : i32
    %c0_i32_0 = arith.constant 0 : i32
    %c0_i32_1 = arith.constant 0 : i32
    %c0_i32_2 = arith.constant 0 : i32
    return %c0_i32, %c0_i32_0, %c0_i32_1 : i32, i32, i32
  }
  func.func @transform_8(%arg0: i32) -> (i32, i32, i32) {
    %c0_i32 = arith.constant 0 : i32
    %c0_i32_0 = arith.constant 0 : i32
    %c0_i32_1 = arith.constant 0 : i32
    %c0_i32_2 = arith.constant 0 : i32
    return %c0_i32, %c0_i32_0, %c0_i32_1 : i32, i32, i32
  }
  func.func @transform_9(%arg0: i32) -> (i32, i32, i32) {
    %c0_i32 = arith.constant 0 : i32
    %c0_i32_0 = arith.constant 0 : i32
    %c0_i32_1 = arith.constant 0 : i32
    %c0_i32_2 = arith.constant 0 : i32
    return %c0_i32, %c0_i32_0, %c0_i32_1 : i32, i32, i32
  }
  func.func @transform_10(%arg0: i32) -> (i32, i32, i32) {
    %c0_i32 = arith.constant 0 : i32
    %c0_i32_0 = arith.constant 0 : i32
    %c0_i32_1 = arith.constant 0 : i32
    %c0_i32_2 = arith.constant 0 : i32
    return %c0_i32, %c0_i32_0, %c0_i32_1 : i32, i32, i32
  }
  func.func @transform_11(%arg0: i32) -> (i32, i32, i32) {
    %c0_i32 = arith.constant 0 : i32
    %c0_i32_0 = arith.constant 0 : i32
    %c0_i32_1 = arith.constant 0 : i32
    %c0_i32_2 = arith.constant 0 : i32
    return %c0_i32, %c0_i32_0, %c0_i32_1 : i32, i32, i32
  }
  func.func @transform_12(%arg0: i32) -> (i32, i32, i32) {
    %c0_i32 = arith.constant 0 : i32
    %c0_i32_0 = arith.constant 0 : i32
    %c0_i32_1 = arith.constant 0 : i32
    %c0_i32_2 = arith.constant 0 : i32
    return %c0_i32, %c0_i32_0, %c0_i32_1 : i32, i32, i32
  }
  func.func @transform_13(%arg0: i32) -> (i32, i32, i32) {
    %c0_i32 = arith.constant 0 : i32
    %c0_i32_0 = arith.constant 0 : i32
    %c0_i32_1 = arith.constant 0 : i32
    return %arg0, %c0_i32, %c0_i32_0 : i32, i32, i32
  }
  func.func @transform_14(%arg0: i32) -> (i32, i32, i32) {
    %c0_i32 = arith.constant 0 : i32
    %c0_i32_0 = arith.constant 0 : i32
    %c0_i32_1 = arith.constant 0 : i32
    return %arg0, %c0_i32, %c0_i32_0 : i32, i32, i32
  }
  func.func @transform_15(%arg0: i32) -> (i32, i32, i32) {
    %c0_i32 = arith.constant 0 : i32
    %c0_i32_0 = arith.constant 0 : i32
    %c0_i32_1 = arith.constant 0 : i32
    return %arg0, %c0_i32, %c0_i32_0 : i32, i32, i32
  }
  func.func @transform_16(%arg0: i32) -> (i32, i32, i32) {
    %c0_i32 = arith.constant 0 : i32
    %c0_i32_0 = arith.constant 0 : i32
    %c0_i32_1 = arith.constant 0 : i32
    return %arg0, %c0_i32, %c0_i32_0 : i32, i32, i32
  }
}

</mosaic_0001>

<llo_original>
// kernel: tpu_custom_call.1
$region0: #{tpu_custom_call.1}
  #allocation0 [shape = 'u32[]', space=smem, size = 0x4, offset = 0x4, fixed_abs, tag = 'smem constant byte address 0x4 - core index']
  #allocation1 [shape = 'u32[144,128]{1,0:T(1,128)}', space=vmem, size = 0x12000, scoped, tag = 'internal scratch']
  %s0 = inlined_call_operand.vmem [shape: s32[2,1,8], index: 0, kind: input, shape index: {}]
  %s1 = inlined_call_operand.vmem [shape: f32[2,8,32], index: 1, kind: input, shape index: {}]
  %s2 = inlined_call_operand.vmem [shape: f32[8,32], index: 2, kind: input, shape index: {}]
  %s3 = inlined_call_operand.vmem [shape: f32[2,32], index: 3, kind: input, shape index: {}]
  %s4 = inlined_call_operand.vmem [shape: f32[12,32,16], index: 4, kind: input, shape index: {}]
  %s5 = inlined_call_operand.vmem [shape: f32[12,32,16], index: 5, kind: input, shape index: {}]
  %s6 = inlined_call_operand.vmem [shape: f32[12,32,16], index: 6, kind: input, shape index: {}]
  %s7 = inlined_call_operand.vmem [shape: f32[12,16,32], index: 7, kind: input, shape index: {}]
  %s8 = inlined_call_operand.vmem [shape: f32[36,1,16], index: 8, kind: input, shape index: {}]
  %s9 = inlined_call_operand.vmem [shape: f32[6,32,128], index: 9, kind: input, shape index: {}]
  %s10 = inlined_call_operand.vmem [shape: f32[6,128,32], index: 10, kind: input, shape index: {}]
  %s11 = inlined_call_operand.vmem [shape: f32[6,1,128], index: 11, kind: input, shape index: {}]
  %s12 = inlined_call_operand.vmem [shape: f32[6,8,32], index: 12, kind: input, shape index: {}]
  %s13 = inlined_call_operand.hbm [shape: f32[2,8,32], index: 13, kind: output, shape index: {0}]
  %s14 = inlined_call_operand.hbm [shape: f32[2,8,32], index: 14, kind: output, shape index: {1}]
  %s15 = inlined_call_operand.hbm [shape: f32[2,8,32], index: 15, kind: output, shape index: {2}]
  %s16 = inlined_call_operand.hbm [shape: f32[2,8,32], index: 16, kind: output, shape index: {3}]
  %17 = xla_tuple %s13, %s14, %s15, %s16
  %s18 = sld [smem:[#allocation0]]
  $region109: #{tpu_custom_call.1} parent=0
    _
  %s20 = ssub.s32 1, %s18
  %s21 = scalar_select 0, %s20, %s18
  $region1: #{tpu_custom_call.1} parent=0
    #allocation2 [shape = 'u8[8192]{0}', space=vmem, size = 0x2000, scoped, tag = 'output window, operand 0']
    #allocation3 [shape = 's32[2]{0}', space=sflag, size = 0x8, scoped, tag = 'scoped memory for tpu_custom_call.1']
    #allocation4 [shape = 'u8[8192]{0}', space=vmem, size = 0x2000, scoped, tag = 'output window, operand 1']
    #allocation5 [shape = 's32[2]{0}', space=sflag, size = 0x8, scoped, tag = 'scoped memory for tpu_custom_call.1']
    #allocation6 [shape = 'u8[8192]{0}', space=vmem, size = 0x2000, scoped, tag = 'output window, operand 2']
    #allocation7 [shape = 'u8[8192]{0}', space=vmem, size = 0x2000, scoped, tag = 'output window, operand 3']
    #allocation8 [shape = 's32[2]{0}', space=sflag, size = 0x8, scoped, tag = 'scoped memory for tpu_custom_call.1']
    %22 = vsyncpa [#allocation3], 0
    %s23 = scalar_lea.sflag [#allocation3], 1
    %24 = vsyncpa %s23, 0
    %25 = vsyncpa [#allocation5], 0
    %s26 = scalar_lea.sflag [#allocation5], 1
    %27 = vsyncpa %s26, 0
    %28 = vsyncpa [#allocation8], 0
    %s29 = scalar_lea.sflag [#allocation8], 1
    %30 = vsyncpa %s29, 0
    loop: start=0, step=1, limit=4
    $region2: #{tpu_custom_call.1} parent=1 // loop_pre_header
      _
    $region3: #{tpu_custom_call.1} parent=1 // loop_header
      %s32 = sphi 0, %s36
      %p33 = scmp.ge.s32.totalorder %s32, 4
      %s42 = sphi 0, %s44
      %s45 = sphi 0, %s42
      %s46 = sphi 0, %s45
      %s62 = sphi 0, %s46
      %s68 = sphi 0, %s70
      %s71 = sphi 0, %s68
      %s72 = sphi 0, %s71
      %s88 = sphi 0, %s72
      %s92 = sphi 0, %s92
      %s94 = sphi 0, %s92
      %s95 = sphi 0, %s94
      %s109 = sphi 0, %s95
      %s113 = sphi 0, %s113
      %s115 = sphi 0, %s113
      %s116 = sphi 0, %s115
      %s130 = sphi 0, %s116
      %s134 = sphi 0, %s134
      %s136 = sphi 0, %s134
      %s137 = sphi 0, %s136
      %s151 = sphi 0, %s137
      %s155 = sphi 0, %s155
      %s157 = sphi 0, %s155
      %s158 = sphi 0, %s157
      %s172 = sphi 0, %s158
      %s176 = sphi 0, %s176
      %s178 = sphi 0, %s176
      %s179 = sphi 0, %s178
      %s193 = sphi 0, %s179
      %s197 = sphi 0, %s197
      %s199 = sphi 0, %s197
      %s200 = sphi 0, %s199
      %s214 = sphi 0, %s200
      %s218 = sphi 0, %s218
      %s220 = sphi 0, %s218
      %s221 = sphi 0, %s220
      %s235 = sphi 0, %s221
      %s239 = sphi 0, %s239
      %s241 = sphi 0, %s239
      %s242 = sphi 0, %s241
      %s256 = sphi 0, %s242
      %s260 = sphi 0, %s260
      %s262 = sphi 0, %s260
      %s263 = sphi 0, %s262
      %s277 = sphi 0, %s263
      %s281 = sphi 0, %s281
      %s283 = sphi 0, %s281
      %s284 = sphi 0, %s283
      %s298 = sphi 0, %s284
      %s302 = sphi 0, %s302
      %s304 = sphi 0, %s302
      %s305 = sphi 0, %s304
      %s319 = sphi 0, %s305
      %s325 = sphi 0, %s327
      %s328 = sphi 0, %s325
      %s329 = sphi 0, %s328
      %s345 = sphi 0, %s329
      %s351 = sphi 0, %s353
      %s354 = sphi 0, %s351
      %s355 = sphi 0, %s354
      %s371 = sphi 0, %s355
      %s377 = sphi 0, %s379
      %s380 = sphi 0, %s377
      %s381 = sphi 0, %s380
      %s397 = sphi 0, %s381
      %s403 = sphi 0, %s405
      %s406 = sphi 0, %s403
      %s407 = sphi 0, %s406
      %s423 = sphi 0, %s407
    $region4: #{tpu_custom_call.1} parent=1 // loop_header_branch
      %35 = sbr.rel (%p33) target = $region8
    $region5: #{tpu_custom_call.1} parent=1 // loop_body
      %s37 = ssub.s32 %s32, 1
      %s38 = ssub.s32 %s32, 2
      %s39 = sadd.s32 %s32, 1
      %s40 = ssub.s32 %s32, %s39
      %p41 = scmp.eq.s32.totalorder %s40, 0
      %s43 = sadd.s32 %s42, 1
      %s44 = scalar_select %p41, %s42, %s43
      %p47 = pneg %p41
      %p48 = scmp.eq.s32.totalorder %s32, 1
      %p49 = por %p47, %p48
      %p50 = scmp.ne.s32.totalorder %s42, %s45
      %p51 = scmp.eq.s32.totalorder %s32, 0
      %p52 = por %p50, %p51
      %p53 = scmp.ne.s32.totalorder %s42, %s45
      %p54 = scmp.eq.s32.totalorder %s37, 1
      %p55 = por %p53, %p54
      %p56 = scmp.ne.s32.totalorder %s45, %s46
      %p57 = scmp.eq.s32.totalorder %s37, 0
      %p58 = por %p56, %p57
      %p59 = scmp.ne.s32.totalorder %s45, %s46
      %p60 = scmp.eq.s32.totalorder %s38, 1
      %p61 = por %p59, %p60
      %p63 = scmp.ne.s32.totalorder %s46, %s62
      %p64 = scmp.eq.s32.totalorder %s38, 0
      %p65 = por %p63, %p64
      %s66 = ssub.s32 %s32, %s39
      %p67 = scmp.eq.s32.totalorder %s66, 0
      %s69 = sadd.s32 %s68, 1
      %s70 = scalar_select %p67, %s68, %s69
      %p73 = pneg %p67
      %p74 = scmp.eq.s32.totalorder %s32, 1
      %p75 = por %p73, %p74
      %p76 = scmp.ne.s32.totalorder %s68, %s71
      %p77 = scmp.eq.s32.totalorder %s32, 0
      %p78 = por %p76, %p77
      %p79 = scmp.ne.s32.totalorder %s68, %s71
      %p80 = scmp.eq.s32.totalorder %s37, 1
      %p81 = por %p79, %p80
      %p82 = scmp.ne.s32.totalorder %s71, %s72
      %p83 = scmp.eq.s32.totalorder %s37, 0
      %p84 = por %p82, %p83
      %p85 = scmp.ne.s32.totalorder %s71, %s72
      %p86 = scmp.eq.s32.totalorder %s38, 1
      %p87 = por %p85, %p86
      %p89 = scmp.ne.s32.totalorder %s72, %s88
      %p90 = scmp.eq.s32.totalorder %s38, 0
      %p91 = por %p89, %p90
      %s93 = sadd.s32 %s92, 1
      %p96 = scmp.eq.s32.totalorder %s32, 1
      %p97 = scmp.ne.s32.totalorder %s92, %s94
      %p98 = scmp.eq.s32.totalorder %s32, 0
      %p99 = por %p97, %p98
      %p100 = scmp.ne.s32.totalorder %s92, %s94
      %p101 = scmp.eq.s32.totalorder %s37, 1
      %p102 = por %p100, %p101
      %p103 = scmp.ne.s32.totalorder %s94, %s95
      %p104 = scmp.eq.s32.totalorder %s37, 0
      %p105 = por %p103, %p104
      %p106 = scmp.ne.s32.totalorder %s94, %s95
      %p107 = scmp.eq.s32.totalorder %s38, 1
      %p108 = por %p106, %p107
      %p110 = scmp.ne.s32.totalorder %s95, %s109
      %p111 = scmp.eq.s32.totalorder %s38, 0
      %p112 = por %p110, %p111
      %s114 = sadd.s32 %s113, 1
      %p117 = scmp.eq.s32.totalorder %s32, 1
      %p118 = scmp.ne.s32.totalorder %s113, %s115
      %p119 = scmp.eq.s32.totalorder %s32, 0
      %p120 = por %p118, %p119
      %p121 = scmp.ne.s32.totalorder %s113, %s115
      %p122 = scmp.eq.s32.totalorder %s37, 1
      %p123 = por %p121, %p122
      %p124 = scmp.ne.s32.totalorder %s115, %s116
      %p125 = scmp.eq.s32.totalorder %s37, 0
      %p126 = por %p124, %p125
      %p127 = scmp.ne.s32.totalorder %s115, %s116
      %p128 = scmp.eq.s32.totalorder %s38, 1
      %p129 = por %p127, %p128
      %p131 = scmp.ne.s32.totalorder %s116, %s130
      %p132 = scmp.eq.s32.totalorder %s38, 0
      %p133 = por %p131, %p132
      %s135 = sadd.s32 %s134, 1
      %p138 = scmp.eq.s32.totalorder %s32, 1
      %p139 = scmp.ne.s32.totalorder %s134, %s136
      %p140 = scmp.eq.s32.totalorder %s32, 0
      %p141 = por %p139, %p140
      %p142 = scmp.ne.s32.totalorder %s134, %s136
      %p143 = scmp.eq.s32.totalorder %s37, 1
      %p144 = por %p142, %p143
      %p145 = scmp.ne.s32.totalorder %s136, %s137
      %p146 = scmp.eq.s32.totalorder %s37, 0
      %p147 = por %p145, %p146
      %p148 = scmp.ne.s32.totalorder %s136, %s137
      %p149 = scmp.eq.s32.totalorder %s38, 1
      %p150 = por %p148, %p149
      %p152 = scmp.ne.s32.totalorder %s137, %s151
      %p153 = scmp.eq.s32.totalorder %s38, 0
      %p154 = por %p152, %p153
      %s156 = sadd.s32 %s155, 1
      %p159 = scmp.eq.s32.totalorder %s32, 1
      %p160 = scmp.ne.s32.totalorder %s155, %s157
      %p161 = scmp.eq.s32.totalorder %s32, 0
      %p162 = por %p160, %p161
      %p163 = scmp.ne.s32.totalorder %s155, %s157
      %p164 = scmp.eq.s32.totalorder %s37, 1
      %p165 = por %p163, %p164
      %p166 = scmp.ne.s32.totalorder %s157, %s158
      %p167 = scmp.eq.s32.totalorder %s37, 0
      %p168 = por %p166, %p167
      %p169 = scmp.ne.s32.totalorder %s157, %s158
      %p170 = scmp.eq.s32.totalorder %s38, 1
      %p171 = por %p169, %p170
      %p173 = scmp.ne.s32.totalorder %s158, %s172
      %p174 = scmp.eq.s32.totalorder %s38, 0
      %p175 = por %p173, %p174
      %s177 = sadd.s32 %s176, 1
      %p180 = scmp.eq.s32.totalorder %s32, 1
      %p181 = scmp.ne.s32.totalorder %s176, %s178
      %p182 = scmp.eq.s32.totalorder %s32, 0
      %p183 = por %p181, %p182
      %p184 = scmp.ne.s32.totalorder %s176, %s178
      %p185 = scmp.eq.s32.totalorder %s37, 1
      %p186 = por %p184, %p185
      %p187 = scmp.ne.s32.totalorder %s178, %s179
      %p188 = scmp.eq.s32.totalorder %s37, 0
      %p189 = por %p187, %p188
      %p190 = scmp.ne.s32.totalorder %s178, %s179
      %p191 = scmp.eq.s32.totalorder %s38, 1
      %p192 = por %p190, %p191
      %p194 = scmp.ne.s32.totalorder %s179, %s193
      %p195 = scmp.eq.s32.totalorder %s38, 0
      %p196 = por %p194, %p195
      %s198 = sadd.s32 %s197, 1
      %p201 = scmp.eq.s32.totalorder %s32, 1
      %p202 = scmp.ne.s32.totalorder %s197, %s199
      %p203 = scmp.eq.s32.totalorder %s32, 0
      %p204 = por %p202, %p203
      %p205 = scmp.ne.s32.totalorder %s197, %s199
      %p206 = scmp.eq.s32.totalorder %s37, 1
      %p207 = por %p205, %p206
      %p208 = scmp.ne.s32.totalorder %s199, %s200
      %p209 = scmp.eq.s32.totalorder %s37, 0
      %p210 = por %p208, %p209
      %p211 = scmp.ne.s32.totalorder %s199, %s200
      %p212 = scmp.eq.s32.totalorder %s38, 1
      %p213 = por %p211, %p212
      %p215 = scmp.ne.s32.totalorder %s200, %s214
      %p216 = scmp.eq.s32.totalorder %s38, 0
      %p217 = por %p215, %p216
      %s219 = sadd.s32 %s218, 1
      %p222 = scmp.eq.s32.totalorder %s32, 1
      %p223 = scmp.ne.s32.totalorder %s218, %s220
      %p224 = scmp.eq.s32.totalorder %s32, 0
      %p225 = por %p223, %p224
      %p226 = scmp.ne.s32.totalorder %s218, %s220
      %p227 = scmp.eq.s32.totalorder %s37, 1
      %p228 = por %p226, %p227
      %p229 = scmp.ne.s32.totalorder %s220, %s221
      %p230 = scmp.eq.s32.totalorder %s37, 0
      %p231 = por %p229, %p230
      %p232 = scmp.ne.s32.totalorder %s220, %s221
      %p233 = scmp.eq.s32.totalorder %s38, 1
      %p234 = por %p232, %p233
      %p236 = scmp.ne.s32.totalorder %s221, %s235
      %p237 = scmp.eq.s32.totalorder %s38, 0
      %p238 = por %p236, %p237
      %s240 = sadd.s32 %s239, 1
      %p243 = scmp.eq.s32.totalorder %s32, 1
      %p244 = scmp.ne.s32.totalorder %s239, %s241
      %p245 = scmp.eq.s32.totalorder %s32, 0
      %p246 = por %p244, %p245
      %p247 = scmp.ne.s32.totalorder %s239, %s241
      %p248 = scmp.eq.s32.totalorder %s37, 1
      %p249 = por %p247, %p248
      %p250 = scmp.ne.s32.totalorder %s241, %s242
      %p251 = scmp.eq.s32.totalorder %s37, 0
      %p252 = por %p250, %p251
      %p253 = scmp.ne.s32.totalorder %s241, %s242
      %p254 = scmp.eq.s32.totalorder %s38, 1
      %p255 = por %p253, %p254
      %p257 = scmp.ne.s32.totalorder %s242, %s256
      %p258 = scmp.eq.s32.totalorder %s38, 0
      %p259 = por %p257, %p258
      %s261 = sadd.s32 %s260, 1
      %p264 = scmp.eq.s32.totalorder %s32, 1
      %p265 = scmp.ne.s32.totalorder %s260, %s262
      %p266 = scmp.eq.s32.totalorder %s32, 0
      %p267 = por %p265, %p266
      %p268 = scmp.ne.s32.totalorder %s260, %s262
      %p269 = scmp.eq.s32.totalorder %s37, 1
      %p270 = por %p268, %p269
      %p271 = scmp.ne.s32.totalorder %s262, %s263
      %p272 = scmp.eq.s32.totalorder %s37, 0
      %p273 = por %p271, %p272
      %p274 = scmp.ne.s32.totalorder %s262, %s263
      %p275 = scmp.eq.s32.totalorder %s38, 1
      %p276 = por %p274, %p275
      %p278 = scmp.ne.s32.totalorder %s263, %s277
      %p279 = scmp.eq.s32.totalorder %s38, 0
      %p280 = por %p278, %p279
      %s282 = sadd.s32 %s281, 1
      %p285 = scmp.eq.s32.totalorder %s32, 1
      %p286 = scmp.ne.s32.totalorder %s281, %s283
      %p287 = scmp.eq.s32.totalorder %s32, 0
      %p288 = por %p286, %p287
      %p289 = scmp.ne.s32.totalorder %s281, %s283
      %p290 = scmp.eq.s32.totalorder %s37, 1
      %p291 = por %p289, %p290
      %p292 = scmp.ne.s32.totalorder %s283, %s284
      %p293 = scmp.eq.s32.totalorder %s37, 0
      %p294 = por %p292, %p293
      %p295 = scmp.ne.s32.totalorder %s283, %s284
      %p296 = scmp.eq.s32.totalorder %s38, 1
      %p297 = por %p295, %p296
      %p299 = scmp.ne.s32.totalorder %s284, %s298
      %p300 = scmp.eq.s32.totalorder %s38, 0
      %p301 = por %p299, %p300
      %s303 = sadd.s32 %s302, 1
      %p306 = scmp.eq.s32.totalorder %s32, 1
      %p307 = scmp.ne.s32.totalorder %s302, %s304
      %p308 = scmp.eq.s32.totalorder %s32, 0
      %p309 = por %p307, %p308
      %p310 = scmp.ne.s32.totalorder %s302, %s304
      %p311 = scmp.eq.s32.totalorder %s37, 1
      %p312 = por %p310, %p311
      %p313 = scmp.ne.s32.totalorder %s304, %s305
      %p314 = scmp.eq.s32.totalorder %s37, 0
      %p315 = por %p313, %p314
      %p316 = scmp.ne.s32.totalorder %s304, %s305
      %p317 = scmp.eq.s32.totalorder %s38, 1
      %p318 = por %p316, %p317
      %p320 = scmp.ne.s32.totalorder %s305, %s319
      %p321 = scmp.eq.s32.totalorder %s38, 0
      %p322 = por %p320, %p321
      %s323 = ssub.s32 %s32, %s39
      %p324 = scmp.eq.s32.totalorder %s323, 0
      %s326 = sadd.s32 %s325, 1
      %s327 = scalar_select %p324, %s325, %s326
      %p330 = pneg %p324
      %p331 = scmp.eq.s32.totalorder %s32, 1
      %p332 = por %p330, %p331
      %p333 = scmp.ne.s32.totalorder %s325, %s328
      %p334 = scmp.eq.s32.totalorder %s32, 0
      %p335 = por %p333, %p334
      %p336 = scmp.ne.s32.totalorder %s325, %s328
      %p337 = scmp.eq.s32.totalorder %s37, 1
      %p338 = por %p336, %p337
      %p339 = scmp.ne.s32.totalorder %s328, %s329
      %p340 = scmp.eq.s32.totalorder %s37, 0
      %p341 = por %p339, %p340
      %p342 = scmp.ne.s32.totalorder %s328, %s329
      %p343 = scmp.eq.s32.totalorder %s38, 1
      %p344 = por %p342, %p343
      %p346 = scmp.ne.s32.totalorder %s329, %s345
      %p347 = scmp.eq.s32.totalorder %s38, 0
      %p348 = por %p346, %p347
      %s349 = ssub.s32 %s32, %s39
      %p350 = scmp.eq.s32.totalorder %s349, 0
      %s352 = sadd.s32 %s351, 1
      %s353 = scalar_select %p350, %s351, %s352
      %p356 = pneg %p350
      %p357 = scmp.eq.s32.totalorder %s32, 1
      %p358 = por %p356, %p357
      %p359 = scmp.ne.s32.totalorder %s351, %s354
      %p360 = scmp.eq.s32.totalorder %s32, 0
      %p361 = por %p359, %p360
      %p362 = scmp.ne.s32.totalorder %s351, %s354
      %p363 = scmp.eq.s32.totalorder %s37, 1
      %p364 = por %p362, %p363
      %p365 = scmp.ne.s32.totalorder %s354, %s355
      %p366 = scmp.eq.s32.totalorder %s37, 0
      %p367 = por %p365, %p366
      %p368 = scmp.ne.s32.totalorder %s354, %s355
      %p369 = scmp.eq.s32.totalorder %s38, 1
      %p370 = por %p368, %p369
      %p372 = scmp.ne.s32.totalorder %s355, %s371
      %p373 = scmp.eq.s32.totalorder %s38, 0
      %p374 = por %p372, %p373
      %s375 = ssub.s32 %s32, %s39
      %p376 = scmp.eq.s32.totalorder %s375, 0
      %s378 = sadd.s32 %s377, 1
      %s379 = scalar_select %p376, %s377, %s378
      %p382 = pneg %p376
      %p383 = scmp.eq.s32.totalorder %s32, 1
      %p384 = por %p382, %p383
      %p385 = scmp.ne.s32.totalorder %s377, %s380
      %p386 = scmp.eq.s32.totalorder %s32, 0
      %p387 = por %p385, %p386
      %p388 = scmp.ne.s32.totalorder %s377, %s380
      %p389 = scmp.eq.s32.totalorder %s37, 1
      %p390 = por %p388, %p389
      %p391 = scmp.ne.s32.totalorder %s380, %s381
      %p392 = scmp.eq.s32.totalorder %s37, 0
      %p393 = por %p391, %p392
      %p394 = scmp.ne.s32.totalorder %s380, %s381
      %p395 = scmp.eq.s32.totalorder %s38, 1
      %p396 = por %p394, %p395
      %p398 = scmp.ne.s32.totalorder %s381, %s397
      %p399 = scmp.eq.s32.totalorder %s38, 0
      %p400 = por %p398, %p399
      %s401 = ssub.s32 %s32, %s39
      %p402 = scmp.eq.s32.totalorder %s401, 0
      %s404 = sadd.s32 %s403, 1
      %s405 = scalar_select %p402, %s403, %s404
      %p408 = pneg %p402
      %p409 = scmp.eq.s32.totalorder %s32, 1
      %p410 = por %p408, %p409
      %p411 = scmp.ne.s32.totalorder %s403, %s406
      %p412 = scmp.eq.s32.totalorder %s32, 0
      %p413 = por %p411, %p412
      %p414 = scmp.ne.s32.totalorder %s403, %s406
      %p415 = scmp.eq.s32.totalorder %s37, 1
      %p416 = por %p414, %p415
      %p417 = scmp.ne.s32.totalorder %s406, %s407
      %p418 = scmp.eq.s32.totalorder %s37, 0
      %p419 = por %p417, %p418
      %p420 = scmp.ne.s32.totalorder %s406, %s407
      %p421 = scmp.eq.s32.totalorder %s38, 1
      %p422 = por %p420, %p421
      %p424 = scmp.ne.s32.totalorder %s407, %s423
      %p425 = scmp.eq.s32.totalorder %s38, 0
      %p426 = por %p424, %p425
      %p427 = scmp.le.s32.totalorder 1, %s32
      %p428 = scmp.lt.s32.totalorder %s32, 3
      %p429 = pnand %p427, %p428
      %p430 = pneg %p429
      // Predicated region
      $region9: #{tpu_custom_call.1} parent=5 // pred_check
        _
      $region10: #{tpu_custom_call.1} parent=5 // pred_check_branch
        %432 = sbr.rel (%p429) target = $region12
      $region11: #{tpu_custom_call.1} parent=5 // pred_region
        %s433 = ssub.s32 %s32, 1
        // Predicated region
        $region13: #{tpu_custom_call.1} parent=11 // pred_check
          %p434 = pneg %p105
        $region14: #{tpu_custom_call.1} parent=11 // pred_check_branch
          %436 = sbr.rel (%p434) target = $region16
        $region15: #{tpu_custom_call.1} parent=11 // pred_region
          _
        $region16: #{tpu_custom_call.1} parent=11 // pred_fallthru
          _
        // Predicated region
        $region17: #{tpu_custom_call.1} parent=11 // pred_check
          %p437 = pneg %p126
        $region18: #{tpu_custom_call.1} parent=11 // pred_check_branch
          %439 = sbr.rel (%p437) target = $region20
        $region19: #{tpu_custom_call.1} parent=11 // pred_region
          _
        $region20: #{tpu_custom_call.1} parent=11 // pred_fallthru
          _
        // Predicated region
        $region21: #{tpu_custom_call.1} parent=11 // pred_check
          %p440 = pneg %p147
        $region22: #{tpu_custom_call.1} parent=11 // pred_check_branch
          %442 = sbr.rel (%p440) target = $region24
        $region23: #{tpu_custom_call.1} parent=11 // pred_region
          _
        $region24: #{tpu_custom_call.1} parent=11 // pred_fallthru
          _
        // Predicated region
        $region25: #{tpu_custom_call.1} parent=11 // pred_check
          %p443 = pneg %p168
        $region26: #{tpu_custom_call.1} parent=11 // pred_check_branch
          %445 = sbr.rel (%p443) target = $region28
        $region27: #{tpu_custom_call.1} parent=11 // pred_region
          _
        $region28: #{tpu_custom_call.1} parent=11 // pred_fallthru
          _
        // Predicated region
        $region29: #{tpu_custom_call.1} parent=11 // pred_check
          %p446 = pneg %p189
        $region30: #{tpu_custom_call.1} parent=11 // pred_check_branch
          %448 = sbr.rel (%p446) target = $region32
        $region31: #{tpu_custom_call.1} parent=11 // pred_region
          _
        $region32: #{tpu_custom_call.1} parent=11 // pred_fallthru
          _
        // Predicated region
        $region33: #{tpu_custom_call.1} parent=11 // pred_check
          %p449 = pneg %p210
        $region34: #{tpu_custom_call.1} parent=11 // pred_check_branch
          %451 = sbr.rel (%p449) target = $region36
        $region35: #{tpu_custom_call.1} parent=11 // pred_region
          _
        $region36: #{tpu_custom_call.1} parent=11 // pred_fallthru
          _
        // Predicated region
        $region37: #{tpu_custom_call.1} parent=11 // pred_check
          %p452 = pneg %p231
        $region38: #{tpu_custom_call.1} parent=11 // pred_check_branch
          %454 = sbr.rel (%p452) target = $region40
        $region39: #{tpu_custom_call.1} parent=11 // pred_region
          _
        $region40: #{tpu_custom_call.1} parent=11 // pred_fallthru
          _
        // Predicated region
        $region41: #{tpu_custom_call.1} parent=11 // pred_check
          %p455 = pneg %p252
        $region42: #{tpu_custom_call.1} parent=11 // pred_check_branch
          %457 = sbr.rel (%p455) target = $region44
        $region43: #{tpu_custom_call.1} parent=11 // pred_region
          _
        $region44: #{tpu_custom_call.1} parent=11 // pred_fallthru
          _
        // Predicated region
        $region45: #{tpu_custom_call.1} parent=11 // pred_check
          %p458 = pneg %p273
        $region46: #{tpu_custom_call.1} parent=11 // pred_check_branch
          %460 = sbr.rel (%p458) target = $region48
        $region47: #{tpu_custom_call.1} parent=11 // pred_region
          _
        $region48: #{tpu_custom_call.1} parent=11 // pred_fallthru
          _
        // Predicated region
        $region49: #{tpu_custom_call.1} parent=11 // pred_check
          %p461 = pneg %p294
        $region50: #{tpu_custom_call.1} parent=11 // pred_check_branch
          %463 = sbr.rel (%p461) target = $region52
        $region51: #{tpu_custom_call.1} parent=11 // pred_region
          _
        $region52: #{tpu_custom_call.1} parent=11 // pred_fallthru
          _
        // Predicated region
        $region53: #{tpu_custom_call.1} parent=11 // pred_check
          %p464 = pneg %p315
        $region54: #{tpu_custom_call.1} parent=11 // pred_check_branch
          %466 = sbr.rel (%p464) target = $region56
        $region55: #{tpu_custom_call.1} parent=11 // pred_region
          _
        $region56: #{tpu_custom_call.1} parent=11 // pred_fallthru
          _
      $region12: #{tpu_custom_call.1} parent=5 // pred_fallthru
        _
      %p467 = scmp.lt.s32.totalorder %s32, 2
      // Predicated region
      $region57: #{tpu_custom_call.1} parent=5 // pred_check
        %p468 = pneg %p467
      $region58: #{tpu_custom_call.1} parent=5 // pred_check_branch
        %470 = sbr.rel (%p468) target = $region60
      $region59: #{tpu_custom_call.1} parent=5 // pred_region
        // Predicated region
        $region61: #{tpu_custom_call.1} parent=59 // pred_check
          %p471 = pneg %p52
        $region62: #{tpu_custom_call.1} parent=59 // pred_check_branch
          %473 = sbr.rel (%p471) target = $region64
        $region63: #{tpu_custom_call.1} parent=59 // pred_region
          %p474 = scmp.lt.s32.totalorder %s32, 1
          %s475 = scalar_select %p474, %s32, 1
          %s476 = scalar_lea.vmem %s0, %s475
        $region64: #{tpu_custom_call.1} parent=59 // pred_fallthru
          _
        // Predicated region
        $region65: #{tpu_custom_call.1} parent=59 // pred_check
          %p477 = pneg %p78
        $region66: #{tpu_custom_call.1} parent=59 // pred_check_branch
          %479 = sbr.rel (%p477) target = $region68
        $region67: #{tpu_custom_call.1} parent=59 // pred_region
          %p480 = scmp.lt.s32.totalorder %s32, 1
          %s481 = scalar_select %p480, %s32, 1
          %s482 = smul.addr %s481, 8
          %s483 = scalar_lea.vmem %s1, %s482
        $region68: #{tpu_custom_call.1} parent=59 // pred_fallthru
          _
      $region60: #{tpu_custom_call.1} parent=5 // pred_fallthru
        _
      %p484 = scmp.le.s32.totalorder 1, %s32
      %p485 = scmp.lt.s32.totalorder %s32, 3
      %p486 = pnand %p484, %p485
      %p487 = pneg %p486
      // Predicated region
      $region69: #{tpu_custom_call.1} parent=5 // pred_check
        _
      $region70: #{tpu_custom_call.1} parent=5 // pred_check_branch
        %489 = sbr.rel (%p486) target = $region72
      $region71: #{tpu_custom_call.1} parent=5 // pred_region
        %s490 = ssub.s32 %s32, 1
        %p491 = scmp.lt.s32.totalorder %s37, 1
        %s492 = scalar_select %p491, %s37, 1
        %s493 = scalar_lea.vmem %s0, %s492
        %p494 = pneg %p58
        %p495 = pneg %p55
        %p496 = scmp.lt.s32.totalorder %s37, 1
        %s497 = scalar_select %p496, %s37, 1
        %s498 = smul.addr %s497, 8
        %s499 = scalar_lea.vmem %s1, %s498
        %p500 = pneg %p84
        %p501 = pneg %p81
        %p502 = pneg %p105
        %p503 = pneg %p102
        %p504 = pneg %p126
        %p505 = pneg %p123
        %p506 = pneg %p147
        %p507 = pneg %p144
        %p508 = pneg %p168
        %p509 = pneg %p165
        %p510 = pneg %p189
        %p511 = pneg %p186
        %p512 = pneg %p210
        %p513 = pneg %p207
        %p514 = pneg %p231
        %p515 = pneg %p228
        %p516 = pneg %p252
        %p517 = pneg %p249
        %p518 = pneg %p273
        %p519 = pneg %p270
        %p520 = pneg %p294
        %p521 = pneg %p291
        %p522 = pneg %p315
        %p523 = pneg %p312
        %p524 = pneg %p341
        %p525 = pneg %p338
        %s526 = sand.u32 %s328, 1
        %s527 = scalar_lea.sflag [#allocation3], %s526
        %s528 = sand.u32 %s328, 1
        %s529 = smul.addr %s528, 8
        %s530 = scalar_lea.vmem [#allocation2], %s529
        %p531 = pneg %p367
        %p532 = pneg %p364
        %s533 = sand.u32 %s37, 1
        %s534 = scalar_lea.sflag [#allocation5], %s533
        %s535 = sand.u32 %s354, 1
        %s536 = smul.addr %s535, 8
        %s537 = scalar_lea.vmem [#allocation4], %s536
        %p538 = pneg %p393
        %p539 = pneg %p390
        %s540 = sand.u32 %s37, 1
        %s541 = scalar_lea.sflag [#allocation5], %s540
        %s542 = sand.u32 %s380, 1
        %s543 = smul.addr %s542, 8
        %s544 = scalar_lea.vmem [#allocation6], %s543
        %p545 = pneg %p419
        %p546 = pneg %p416
        %s547 = sand.u32 %s406, 1
        %s548 = scalar_lea.sflag [#allocation8], %s547
        %s549 = sand.u32 %s406, 1
        %s550 = smul.addr %s549, 8
        %s551 = scalar_lea.vmem [#allocation7], %s550
        %p552 = scmp.lt.s32.totalorder %s37, 1
        %s553 = scalar_select %p552, %s37, 1
        %s554 = scalar_lea.vmem %s0, %s553
        %p555 = scmp.lt.s32.totalorder %s37, 1
        %s556 = scalar_select %p555, %s37, 1
        %s557 = smul.addr %s556, 8
        %s558 = scalar_lea.vmem %s1, %s557
        %v559 = vld [vmem:[%s558] sm:$0xff]
        %v560 = vld [vmem:[%s2] sm:$0xff]
        %v561 = vadd.f32 %v559, %v560
        %v562 = vld [vmem:[%s3] sm:$0x1]
        %v563 = vld [vmem:[%s3 + $0x1] sm:$0x1]
        %vm564 = vcmask 261120
        %v565 = vsel %vm564, %v561, 0.0
        %566 = vadd.xlane.f32.xlu0 %v565
        %v567 = vpop.xlane.xlu0 %566
        %v568 = vrcp.pop 32.0
        %v569 = vmul.f32 %v567, %v568
        %v570 = vsub.f32 %v561, %v569
        %v571 = vmul.f32 %v570, %v570
        %v572 = vsel %vm564, %v571, 0.0
        %573 = vadd.xlane.f32.xlu0 %v572
        %v574 = vpop.xlane.xlu0 %573
        %v575 = vmul.f32 %v574, %v568
        %v576 = vadd.f32 %v575, 1e-12
        %v577 = vrsqrt.pop %v576
        %v578 = vmul.f32 %v576, %v577
        %vm579 = vcmp.eq.f32.partialorder %v576, inf
        %v580 = vsel %vm579, %v576, %v578
        %vm581 = vcmp.eq.f32.partialorder %v576, 0.0
        %v582 = vand.u32 %v576, 2147483648
        %v583 = vsel %vm581, %v582, %v580
        %v584 = vrcp.pop %v583
        %v585 = vmul.f32 %v570, %v584
        %v586 = vlaneseq
        %v587 = vshrl.u32 %v586, 7
        %v588 = vsub.s32 0, %v587
        %v589 = vrot.slane %v562, %v588
        %v590 = vmul.f32 %v585, %v589
        %v591 = vlaneseq
        %v592 = vshrl.u32 %v591, 7
        %v593 = vsub.s32 0, %v592
        %v594 = vrot.slane %v563, %v593
        %v595 = vadd.f32 %v590, %v594
        %v596 = vld [vmem:[%s554] sm:$0x1]
        %vm597 = vcmp.gt.s32.totalorder %v596, 0
        %v598 = vlaneseq
        %v599 = vshrl.u32 %v598, 7
        %v600 = vlaneseq
        %v601 = vand.u32 %v600, 127
        %vm602 = vcmp.ge.s32.totalorder %v599, %v601
        %v603 = vsel %vm597, 1, 0
        %v604 = vlaneseq
        %v605 = vshrl.u32 %v604, 7
        %v606 = vsub.s32 0, %v605
        %v607 = vrot.slane %v603, %v606
        %vm608 = vcmp.eq.s32.totalorder %v607, 1
        %vm609 = vmand %vm602, %vm608
        %v610 = vsel %vm609, 0.0, -10000.0
        %v611 = vld [vmem:[%s12] sm:$0xff]
        %v612 = vld [vmem:[%s4] sm:$0xff]
        %v613 = vld [vmem:[%s4 + $0x8] sm:$0xff]
        %v614 = vld [vmem:[%s4 + $0x10] sm:$0xff]
        %v615 = vld [vmem:[%s4 + $0x18] sm:$0xff]
        %v616 = vld [vmem:[%s8] sm:$0x1]
        %v618 = vlaneseq
        %v619 = vshrl.u32 %v618, 7
        %v620 = vsub.s32 0, %v619
        %v621 = vrot.slane %v616, %v620
        %v624 = vsel %vm564, %v595, 0
        %626 = vmatprep.subr.mxu0 0.0
        %627 = vmatpush1.msra.mxu0 %v612
        %628 = vmatprep.subr.mxu0 0.0
        %629 = vmatpush1.msra.mxu0 %v613
        %630 = vmatprep.subr.mxu0 0.0
        %631 = vmatpush1.msra.mxu0 %v614
        %632 = vmatprep.subr.mxu0 0.0
        %633 = vmatpush1.msra.mxu0 %v615
        %634 = vmatprep.subr.mxu0 0.0
        %635 = vmatpush1.msra.mxu0 0.0
        %636 = vmatprep.subr.mxu0 0.0
        %637 = vmatpush1.msra.mxu0 0.0
        %638 = vmatprep.subr.mxu0 0.0
        %639 = vmatpush1.msra.mxu0 0.0
        %640 = vmatprep.subr.mxu0 0.0
        %641 = vmatpush1.msra.mxu0 0.0
        %642 = vmatprep.subr.mxu0 0.0
        %643 = vmatpush1.msra.mxu0 0.0
        %644 = vmatprep.subr.mxu0 0.0
        %645 = vmatpush1.msra.mxu0 0.0
        %646 = vmatprep.subr.mxu0 0.0
        %647 = vmatpush1.msra.mxu0 0.0
        %648 = vmatprep.subr.mxu0 0.0
        %649 = vmatpush1.msra.mxu0 0.0
        %650 = vmatprep.subr.mxu0 0.0
        %651 = vmatpush1.msra.mxu0 0.0
        %652 = vmatprep.subr.mxu0 0.0
        %653 = vmatpush1.msra.mxu0 0.0
        %654 = vmatprep.subr.mxu0 0.0
        %655 = vmatpush1.msra.mxu0 0.0
        %656 = vmatprep.subr.mxu0 0.0
        %657 = vmatpush1.msra.mxu0 0.0
        %658 = vmatprep.subr.mxu0 0.0
        %659 = vmatpush1.msra.mxu0 0.0
        %660 = vmatprep.subr.mxu0 0.0
        %661 = vmatpush1.msra.mxu0 0.0
        %662 = vmatprep.subr.mxu0 0.0
        %663 = vmatpush1.msra.mxu0 0.0
        %664 = vmatprep.subr.mxu0 0.0
        %665 = vmatpush1.msra.mxu0 0.0
        %666 = vmatprep.subr.mxu0 0.0
        %667 = vmatpush1.msra.mxu0 0.0
        %668 = vmatprep.subr.mxu0 0.0
        %669 = vmatpush1.msra.mxu0 0.0
        %670 = vmatprep.subr.mxu0 0.0
        %671 = vmatpush1.msra.mxu0 0.0
        %672 = vmatprep.subr.mxu0 0.0
        %673 = vmatpush1.msra.mxu0 0.0
        %674 = vmatprep.subr.mxu0 0.0
        %675 = vmatpush1.msra.mxu0 0.0
        %676 = vmatprep.subr.mxu0 0.0
        %677 = vmatpush1.msra.mxu0 0.0
        %678 = vmatprep.subr.mxu0 0.0
        %679 = vmatpush1.msra.mxu0 0.0
        %680 = vmatprep.subr.mxu0 0.0
        %681 = vmatpush1.msra.mxu0 0.0
        %682 = vmatprep.subr.mxu0 0.0
        %683 = vmatpush1.msra.mxu0 0.0
        %684 = vmatprep.subr.mxu0 0.0
        %685 = vmatpush1.msra.mxu0 0.0
        %686 = vmatprep.subr.mxu0 0.0
        %687 = vmatpush1.msra.mxu0 0.0
        %688 = vmatprep.subr.mxu0 0.0
        %689 = vmatpush1.msra.mxu0 0.0
        %690 = vmatprep.mubr.f32.mxu0 0.0
        %691 = vmatmul.mubr.f32.gmra.mrb[0].mxu0 %v624
        %v692 = vpop.f32.mrb[0].mxu0
        %v693 = vadd.f32 %v621, %v692
        %v694 = vpop.f32.mrb[0].mxu0
        %695 = vdwg.mxu0
        %v696 = vld [vmem:[%s5] sm:$0xff]
        %v697 = vld [vmem:[%s5 + $0x8] sm:$0xff]
        %v698 = vld [vmem:[%s5 + $0x10] sm:$0xff]
        %v699 = vld [vmem:[%s5 + $0x18] sm:$0xff]
        %s700 = scalar_lea.vmem %s8, 1
        %v701 = vld [vmem:[%s700] sm:$0x1]
        %v703 = vlaneseq
        %v704 = vshrl.u32 %v703, 7
        %v705 = vsub.s32 0, %v704
        %v706 = vrot.slane %v701, %v705
        %708 = vmatprep.subr.mxu0 0.0
        %709 = vmatpush1.msra.mxu0 %v696
        %710 = vmatprep.subr.mxu0 0.0
        %711 = vmatpush1.msra.mxu0 %v697
        %712 = vmatprep.subr.mxu0 0.0
        %713 = vmatpush1.msra.mxu0 %v698
        %714 = vmatprep.subr.mxu0 0.0
        %715 = vmatpush1.msra.mxu0 %v699
        %716 = vmatprep.subr.mxu0 0.0
        %717 = vmatpush1.msra.mxu0 0.0
        %718 = vmatprep.subr.mxu0 0.0
        %719 = vmatpush1.msra.mxu0 0.0
        %720 = vmatprep.subr.mxu0 0.0
        %721 = vmatpush1.msra.mxu0 0.0
        %722 = vmatprep.subr.mxu0 0.0
        %723 = vmatpush1.msra.mxu0 0.0
        %724 = vmatprep.subr.mxu0 0.0
        %725 = vmatpush1.msra.mxu0 0.0
        %726 = vmatprep.subr.mxu0 0.0
        %727 = vmatpush1.msra.mxu0 0.0
        %728 = vmatprep.subr.mxu0 0.0
        %729 = vmatpush1.msra.mxu0 0.0
        %730 = vmatprep.subr.mxu0 0.0
        %731 = vmatpush1.msra.mxu0 0.0
        %732 = vmatprep.subr.mxu0 0.0
        %733 = vmatpush1.msra.mxu0 0.0
        %734 = vmatprep.subr.mxu0 0.0
        %735 = vmatpush1.msra.mxu0 0.0
        %736 = vmatprep.subr.mxu0 0.0
        %737 = vmatpush1.msra.mxu0 0.0
        %738 = vmatprep.subr.mxu0 0.0
        %739 = vmatpush1.msra.mxu0 0.0
        %740 = vmatprep.subr.mxu0 0.0
        %741 = vmatpush1.msra.mxu0 0.0
        %742 = vmatprep.subr.mxu0 0.0
        %743 = vmatpush1.msra.mxu0 0.0
        %744 = vmatprep.subr.mxu0 0.0
        %745 = vmatpush1.msra.mxu0 0.0
        %746 = vmatprep.subr.mxu0 0.0
        %747 = vmatpush1.msra.mxu0 0.0
        %748 = vmatprep.subr.mxu0 0.0
        %749 = vmatpush1.msra.mxu0 0.0
        %750 = vmatprep.subr.mxu0 0.0
        %751 = vmatpush1.msra.mxu0 0.0
        %752 = vmatprep.subr.mxu0 0.0
        %753 = vmatpush1.msra.mxu0 0.0
        %754 = vmatprep.subr.mxu0 0.0
        %755 = vmatpush1.msra.mxu0 0.0
        %756 = vmatprep.subr.mxu0 0.0
        %757 = vmatpush1.msra.mxu0 0.0
        %758 = vmatprep.subr.mxu0 0.0
        %759 = vmatpush1.msra.mxu0 0.0
        %760 = vmatprep.subr.mxu0 0.0
        %761 = vmatpush1.msra.mxu0 0.0
        %762 = vmatprep.subr.mxu0 0.0
        %763 = vmatpush1.msra.mxu0 0.0
        %764 = vmatprep.subr.mxu0 0.0
        %765 = vmatpush1.msra.mxu0 0.0
        %766 = vmatprep.subr.mxu0 0.0
        %767 = vmatpush1.msra.mxu0 0.0
        %768 = vmatprep.subr.mxu0 0.0
        %769 = vmatpush1.msra.mxu0 0.0
        %770 = vmatprep.subr.mxu0 0.0
        %771 = vmatpush1.msra.mxu0 0.0
        %772 = vmatprep.mubr.f32.mxu0 0.0
        %773 = vmatmul.mubr.f32.gmra.mrb[0].mxu0 %v624
        %v774 = vpop.f32.mrb[0].mxu0
        %v775 = vadd.f32 %v706, %v774
        %v776 = vpop.f32.mrb[0].mxu0
        %777 = vdwg.mxu0
        %v778 = vld [vmem:[%s6] sm:$0xff]
        %v779 = vld [vmem:[%s6 + $0x8] sm:$0xff]
        %v780 = vld [vmem:[%s6 + $0x10] sm:$0xff]
        %v781 = vld [vmem:[%s6 + $0x18] sm:$0xff]
        %s782 = scalar_lea.vmem %s8, 2
        %v783 = vld [vmem:[%s782] sm:$0x1]
        %v785 = vlaneseq
        %v786 = vshrl.u32 %v785, 7
        %v787 = vsub.s32 0, %v786
        %v788 = vrot.slane %v783, %v787
        %790 = vmatprep.subr.mxu0 0.0
        %791 = vmatpush1.msra.mxu0 %v778
        %792 = vmatprep.subr.mxu0 0.0
        %793 = vmatpush1.msra.mxu0 %v779
        %794 = vmatprep.subr.mxu0 0.0
        %795 = vmatpush1.msra.mxu0 %v780
        %796 = vmatprep.subr.mxu0 0.0
        %797 = vmatpush1.msra.mxu0 %v781
        %798 = vmatprep.subr.mxu0 0.0
        %799 = vmatpush1.msra.mxu0 0.0
        %800 = vmatprep.subr.mxu0 0.0
        %801 = vmatpush1.msra.mxu0 0.0
        %802 = vmatprep.subr.mxu0 0.0
        %803 = vmatpush1.msra.mxu0 0.0
        %804 = vmatprep.subr.mxu0 0.0
        %805 = vmatpush1.msra.mxu0 0.0
        %806 = vmatprep.subr.mxu0 0.0
        %807 = vmatpush1.msra.mxu0 0.0
        %808 = vmatprep.subr.mxu0 0.0
        %809 = vmatpush1.msra.mxu0 0.0
        %810 = vmatprep.subr.mxu0 0.0
        %811 = vmatpush1.msra.mxu0 0.0
        %812 = vmatprep.subr.mxu0 0.0
        %813 = vmatpush1.msra.mxu0 0.0
        %814 = vmatprep.subr.mxu0 0.0
        %815 = vmatpush1.msra.mxu0 0.0
        %816 = vmatprep.subr.mxu0 0.0
        %817 = vmatpush1.msra.mxu0 0.0
        %818 = vmatprep.subr.mxu0 0.0
        %819 = vmatpush1.msra.mxu0 0.0
        %820 = vmatprep.subr.mxu0 0.0
        %821 = vmatpush1.msra.mxu0 0.0
        %822 = vmatprep.subr.mxu0 0.0
        %823 = vmatpush1.msra.mxu0 0.0
        %824 = vmatprep.subr.mxu0 0.0
        %825 = vmatpush1.msra.mxu0 0.0
        %826 = vmatprep.subr.mxu0 0.0
        %827 = vmatpush1.msra.mxu0 0.0
        %828 = vmatprep.subr.mxu0 0.0
        %829 = vmatpush1.msra.mxu0 0.0
        %830 = vmatprep.subr.mxu0 0.0
        %831 = vmatpush1.msra.mxu0 0.0
        %832 = vmatprep.subr.mxu0 0.0
        %833 = vmatpush1.msra.mxu0 0.0
        %834 = vmatprep.subr.mxu0 0.0
        %835 = vmatpush1.msra.mxu0 0.0
        %836 = vmatprep.subr.mxu0 0.0
        %837 = vmatpush1.msra.mxu0 0.0
        %838 = vmatprep.subr.mxu0 0.0
        %839 = vmatpush1.msra.mxu0 0.0
        %840 = vmatprep.subr.mxu0 0.0
        %841 = vmatpush1.msra.mxu0 0.0
        %842 = vmatprep.subr.mxu0 0.0
        %843 = vmatpush1.msra.mxu0 0.0
        %844 = vmatprep.subr.mxu0 0.0
        %845 = vmatpush1.msra.mxu0 0.0
        %846 = vmatprep.subr.mxu0 0.0
        %847 = vmatpush1.msra.mxu0 0.0
        %848 = vmatprep.subr.mxu0 0.0
        %849 = vmatpush1.msra.mxu0 0.0
        %850 = vmatprep.subr.mxu0 0.0
        %851 = vmatpush1.msra.mxu0 0.0
        %852 = vmatprep.subr.mxu0 0.0
        %853 = vmatpush1.msra.mxu0 0.0
        %854 = vmatprep.mubr.f32.mxu0 0.0
        %855 = vmatmul.mubr.f32.gmra.mrb[0].mxu0 %v624
        %v856 = vpop.f32.mrb[0].mxu0
        %v857 = vadd.f32 %v788, %v856
        %v858 = vpop.f32.mrb[0].mxu0
        %859 = vdwg.mxu0
        %vm860 = vcmask 130048
        %v862 = vsel %vm860, %v693, 0
        %v865 = vsel %vm860, %v775, 0
        %867 = vmatprep.subr.mxu0 0.0
        %868 = vmatpush1.xpose.msra.mxu0 %v865
        %869 = vmatprep.subr.mxu0 0.0
        %870 = vmatpush1.xpose.msra.mxu0 0.0
        %871 = vmatprep.subr.mxu0 0.0
        %872 = vmatpush1.xpose.msra.mxu0 0.0
        %873 = vmatprep.subr.mxu0 0.0
        %874 = vmatpush1.xpose.msra.mxu0 0.0
        %875 = vmatprep.subr.mxu0 0.0
        %876 = vmatpush1.xpose.msra.mxu0 0.0
        %877 = vmatprep.subr.mxu0 0.0
        %878 = vmatpush1.xpose.msra.mxu0 0.0
        %879 = vmatprep.subr.mxu0 0.0
        %880 = vmatpush1.xpose.msra.mxu0 0.0
        %881 = vmatprep.subr.mxu0 0.0
        %882 = vmatpush1.xpose.msra.mxu0 0.0
        %883 = vmatprep.subr.mxu0 0.0
        %884 = vmatpush1.xpose.msra.mxu0 0.0
        %885 = vmatprep.subr.mxu0 0.0
        %886 = vmatpush1.xpose.msra.mxu0 0.0
        %887 = vmatprep.subr.mxu0 0.0
        %888 = vmatpush1.xpose.msra.mxu0 0.0
        %889 = vmatprep.subr.mxu0 0.0
        %890 = vmatpush1.xpose.msra.mxu0 0.0
        %891 = vmatprep.subr.mxu0 0.0
        %892 = vmatpush1.xpose.msra.mxu0 0.0
        %893 = vmatprep.subr.mxu0 0.0
        %894 = vmatpush1.xpose.msra.mxu0 0.0
        %895 = vmatprep.subr.mxu0 0.0
        %896 = vmatpush1.xpose.msra.mxu0 0.0
        %897 = vmatprep.subr.mxu0 0.0
        %898 = vmatpush1.xpose.msra.mxu0 0.0
        %899 = vmatprep.subr.mxu0 0.0
        %900 = vmatpush1.xpose.msra.mxu0 0.0
        %901 = vmatprep.subr.mxu0 0.0
        %902 = vmatpush1.xpose.msra.mxu0 0.0
        %903 = vmatprep.subr.mxu0 0.0
        %904 = vmatpush1.xpose.msra.mxu0 0.0
        %905 = vmatprep.subr.mxu0 0.0
        %906 = vmatpush1.xpose.msra.mxu0 0.0
        %907 = vmatprep.subr.mxu0 0.0
        %908 = vmatpush1.xpose.msra.mxu0 0.0
        %909 = vmatprep.subr.mxu0 0.0
        %910 = vmatpush1.xpose.msra.mxu0 0.0
        %911 = vmatprep.subr.mxu0 0.0
        %912 = vmatpush1.xpose.msra.mxu0 0.0
        %913 = vmatprep.subr.mxu0 0.0
        %914 = vmatpush1.xpose.msra.mxu0 0.0
        %915 = vmatprep.subr.mxu0 0.0
        %916 = vmatpush1.xpose.msra.mxu0 0.0
        %917 = vmatprep.subr.mxu0 0.0
        %918 = vmatpush1.xpose.msra.mxu0 0.0
        %919 = vmatprep.subr.mxu0 0.0
        %920 = vmatpush1.xpose.msra.mxu0 0.0
        %921 = vmatprep.subr.mxu0 0.0
        %922 = vmatpush1.xpose.msra.mxu0 0.0
        %923 = vmatprep.subr.mxu0 0.0
        %924 = vmatpush1.xpose.msra.mxu0 0.0
        %925 = vmatprep.subr.mxu0 0.0
        %926 = vmatpush1.xpose.msra.mxu0 0.0
        %927 = vmatprep.subr.mxu0 0.0
        %928 = vmatpush1.xpose.msra.mxu0 0.0
        %929 = vmatprep.subr.mxu0 0.0
        %930 = vmatpush1.xpose.msra.mxu0 0.0
        %931 = vmatprep.mubr.f32.mxu0 0.0
        %932 = vmatmul.mubr.f32.gmra.mrb[0].mxu0 %v862
        %v933 = vpop.f32.mrb[0].mxu0
        %v934 = vadd.f32 0.0, %v933
        %v935 = vpop.f32.mrb[0].mxu0
        %936 = vdwg.mxu0
        %v937 = vmul.f32 %v934, 0.25
        %v938 = vadd.f32 %v937, %v610
        %vm939 = vcmask 64512
        %v940 = vsel %vm939, %v938, -inf
        %941 = vmax.xlane.f32.xlu0 %v940
        %v942 = vpop.xlane.xlu0 %941
        %v943 = vsub.f32 %v938, %v942
        %v944 = vmul.f32 %v943, 1.442695
        %v945 = vpow.pop %v944
        %v946 = vsel %vm939, %v945, 0.0
        %947 = vadd.xlane.f32.xlu0 %v946
        %v948 = vpop.xlane.xlu0 %947
        %v949 = vrcp.pop %v948
        %v950 = vmul.f32 %v945, %v949
        %v952 = vsel %vm939, %v950, 0
        %954 = vmatprep.subr.mxu0 0.0
        %955 = vmatpush1.msra.mxu0 %v857
        %956 = vmatprep.subr.mxu0 0.0
        %957 = vmatpush1.msra.mxu0 0.0
        %958 = vmatprep.subr.mxu0 0.0
        %959 = vmatpush1.msra.mxu0 0.0
        %960 = vmatprep.subr.mxu0 0.0
        %961 = vmatpush1.msra.mxu0 0.0
        %962 = vmatprep.subr.mxu0 0.0
        %963 = vmatpush1.msra.mxu0 0.0
        %964 = vmatprep.subr.mxu0 0.0
        %965 = vmatpush1.msra.mxu0 0.0
        %966 = vmatprep.subr.mxu0 0.0
        %967 = vmatpush1.msra.mxu0 0.0
        %968 = vmatprep.subr.mxu0 0.0
        %969 = vmatpush1.msra.mxu0 0.0
        %970 = vmatprep.subr.mxu0 0.0
        %971 = vmatpush1.msra.mxu0 0.0
        %972 = vmatprep.subr.mxu0 0.0
        %973 = vmatpush1.msra.mxu0 0.0
        %974 = vmatprep.subr.mxu0 0.0
        %975 = vmatpush1.msra.mxu0 0.0
        %976 = vmatprep.subr.mxu0 0.0
        %977 = vmatpush1.msra.mxu0 0.0
        %978 = vmatprep.subr.mxu0 0.0
        %979 = vmatpush1.msra.mxu0 0.0
        %980 = vmatprep.subr.mxu0 0.0
        %981 = vmatpush1.msra.mxu0 0.0
        %982 = vmatprep.subr.mxu0 0.0
        %983 = vmatpush1.msra.mxu0 0.0
        %984 = vmatprep.subr.mxu0 0.0
        %985 = vmatpush1.msra.mxu0 0.0
        %986 = vmatprep.subr.mxu0 0.0
        %987 = vmatpush1.msra.mxu0 0.0
        %988 = vmatprep.subr.mxu0 0.0
        %989 = vmatpush1.msra.mxu0 0.0
        %990 = vmatprep.subr.mxu0 0.0
        %991 = vmatpush1.msra.mxu0 0.0
        %992 = vmatprep.subr.mxu0 0.0
        %993 = vmatpush1.msra.mxu0 0.0
        %994 = vmatprep.subr.mxu0 0.0
        %995 = vmatpush1.msra.mxu0 0.0
        %996 = vmatprep.subr.mxu0 0.0
        %997 = vmatpush1.msra.mxu0 0.0
        %998 = vmatprep.subr.mxu0 0.0
        %999 = vmatpush1.msra.mxu0 0.0
        %1000 = vmatprep.subr.mxu0 0.0
        %1001 = vmatpush1.msra.mxu0 0.0
        %1002 = vmatprep.subr.mxu0 0.0
        %1003 = vmatpush1.msra.mxu0 0.0
        %1004 = vmatprep.subr.mxu0 0.0
        %1005 = vmatpush1.msra.mxu0 0.0
        %1006 = vmatprep.subr.mxu0 0.0
        %1007 = vmatpush1.msra.mxu0 0.0
        %1008 = vmatprep.subr.mxu0 0.0
        %1009 = vmatpush1.msra.mxu0 0.0
        %1010 = vmatprep.subr.mxu0 0.0
        %1011 = vmatpush1.msra.mxu0 0.0
        %1012 = vmatprep.subr.mxu0 0.0
        %1013 = vmatpush1.msra.mxu0 0.0
        %1014 = vmatprep.subr.mxu0 0.0
        %1015 = vmatpush1.msra.mxu0 0.0
        %1016 = vmatprep.subr.mxu0 0.0
        %1017 = vmatpush1.msra.mxu0 0.0
        %1018 = vmatprep.mubr.f32.mxu0 0.0
        %1019 = vmatmul.mubr.f32.gmra.mrb[0].mxu0 %v952
        %v1020 = vpop.f32.mrb[0].mxu0
        %v1021 = vadd.f32 0.0, %v1020
        %v1022 = vpop.f32.mrb[0].mxu0
        %1023 = vdwg.mxu0
        %v1024 = vld [vmem:[%s7] sm:$0xff]
        %v1025 = vld [vmem:[%s7 + $0x8] sm:$0xff]
        %s1026 = scalar_lea.vmem %s4, 32
        %v1027 = vld [vmem:[%s1026] sm:$0xff]
        %v1028 = vld [vmem:[%s1026 + $0x8] sm:$0xff]
        %v1029 = vld [vmem:[%s1026 + $0x10] sm:$0xff]
        %v1030 = vld [vmem:[%s1026 + $0x18] sm:$0xff]
        %s1031 = scalar_lea.vmem %s8, 3
        %v1032 = vld [vmem:[%s1031] sm:$0x1]
        %v1034 = vlaneseq
        %v1035 = vshrl.u32 %v1034, 7
        %v1036 = vsub.s32 0, %v1035
        %v1037 = vrot.slane %v1032, %v1036
        %1039 = vmatprep.subr.mxu0 0.0
        %1040 = vmatpush1.msra.mxu0 %v1027
        %1041 = vmatprep.subr.mxu0 0.0
        %1042 = vmatpush1.msra.mxu0 %v1028
        %1043 = vmatprep.subr.mxu0 0.0
        %1044 = vmatpush1.msra.mxu0 %v1029
        %1045 = vmatprep.subr.mxu0 0.0
        %1046 = vmatpush1.msra.mxu0 %v1030
        %1047 = vmatprep.subr.mxu0 0.0
        %1048 = vmatpush1.msra.mxu0 0.0
        %1049 = vmatprep.subr.mxu0 0.0
        %1050 = vmatpush1.msra.mxu0 0.0
        %1051 = vmatprep.subr.mxu0 0.0
        %1052 = vmatpush1.msra.mxu0 0.0
        %1053 = vmatprep.subr.mxu0 0.0
        %1054 = vmatpush1.msra.mxu0 0.0
        %1055 = vmatprep.subr.mxu0 0.0
        %1056 = vmatpush1.msra.mxu0 0.0
        %1057 = vmatprep.subr.mxu0 0.0
        %1058 = vmatpush1.msra.mxu0 0.0
        %1059 = vmatprep.subr.mxu0 0.0
        %1060 = vmatpush1.msra.mxu0 0.0
        %1061 = vmatprep.subr.mxu0 0.0
        %1062 = vmatpush1.msra.mxu0 0.0
        %1063 = vmatprep.subr.mxu0 0.0
        %1064 = vmatpush1.msra.mxu0 0.0
        %1065 = vmatprep.subr.mxu0 0.0
        %1066 = vmatpush1.msra.mxu0 0.0
        %1067 = vmatprep.subr.mxu0 0.0
        %1068 = vmatpush1.msra.mxu0 0.0
        %1069 = vmatprep.subr.mxu0 0.0
        %1070 = vmatpush1.msra.mxu0 0.0
        %1071 = vmatprep.subr.mxu0 0.0
        %1072 = vmatpush1.msra.mxu0 0.0
        %1073 = vmatprep.subr.mxu0 0.0
        %1074 = vmatpush1.msra.mxu0 0.0
        %1075 = vmatprep.subr.mxu0 0.0
        %1076 = vmatpush1.msra.mxu0 0.0
        %1077 = vmatprep.subr.mxu0 0.0
        %1078 = vmatpush1.msra.mxu0 0.0
        %1079 = vmatprep.subr.mxu0 0.0
        %1080 = vmatpush1.msra.mxu0 0.0
        %1081 = vmatprep.subr.mxu0 0.0
        %1082 = vmatpush1.msra.mxu0 0.0
        %1083 = vmatprep.subr.mxu0 0.0
        %1084 = vmatpush1.msra.mxu0 0.0
        %1085 = vmatprep.subr.mxu0 0.0
        %1086 = vmatpush1.msra.mxu0 0.0
        %1087 = vmatprep.subr.mxu0 0.0
        %1088 = vmatpush1.msra.mxu0 0.0
        %1089 = vmatprep.subr.mxu0 0.0
        %1090 = vmatpush1.msra.mxu0 0.0
        %1091 = vmatprep.subr.mxu0 0.0
        %1092 = vmatpush1.msra.mxu0 0.0
        %1093 = vmatprep.subr.mxu0 0.0
        %1094 = vmatpush1.msra.mxu0 0.0
        %1095 = vmatprep.subr.mxu0 0.0
        %1096 = vmatpush1.msra.mxu0 0.0
        %1097 = vmatprep.subr.mxu0 0.0
        %1098 = vmatpush1.msra.mxu0 0.0
        %1099 = vmatprep.subr.mxu0 0.0
        %1100 = vmatpush1.msra.mxu0 0.0
        %1101 = vmatprep.subr.mxu0 0.0
        %1102 = vmatpush1.msra.mxu0 0.0
        %1103 = vmatprep.mubr.f32.mxu0 0.0
        %1104 = vmatmul.mubr.f32.gmra.mrb[0].mxu0 %v624
        %v1105 = vpop.f32.mrb[0].mxu0
        %v1106 = vadd.f32 %v1037, %v1105
        %v1107 = vpop.f32.mrb[0].mxu0
        %1108 = vdwg.mxu0
        %s1109 = scalar_lea.vmem %s5, 32
        %v1110 = vld [vmem:[%s1109] sm:$0xff]
        %v1111 = vld [vmem:[%s1109 + $0x8] sm:$0xff]
        %v1112 = vld [vmem:[%s1109 + $0x10] sm:$0xff]
        %v1113 = vld [vmem:[%s1109 + $0x18] sm:$0xff]
        %s1114 = scalar_lea.vmem %s8, 4
        %v1115 = vld [vmem:[%s1114] sm:$0x1]
        %v1117 = vlaneseq
        %v1118 = vshrl.u32 %v1117, 7
        %v1119 = vsub.s32 0, %v1118
        %v1120 = vrot.slane %v1115, %v1119
        %1122 = vmatprep.subr.mxu0 0.0
        %1123 = vmatpush1.msra.mxu0 %v1110
        %1124 = vmatprep.subr.mxu0 0.0
        %1125 = vmatpush1.msra.mxu0 %v1111
        %1126 = vmatprep.subr.mxu0 0.0
        %1127 = vmatpush1.msra.mxu0 %v1112
        %1128 = vmatprep.subr.mxu0 0.0
        %1129 = vmatpush1.msra.mxu0 %v1113
        %1130 = vmatprep.subr.mxu0 0.0
        %1131 = vmatpush1.msra.mxu0 0.0
        %1132 = vmatprep.subr.mxu0 0.0
        %1133 = vmatpush1.msra.mxu0 0.0
        %1134 = vmatprep.subr.mxu0 0.0
        %1135 = vmatpush1.msra.mxu0 0.0
        %1136 = vmatprep.subr.mxu0 0.0
        %1137 = vmatpush1.msra.mxu0 0.0
        %1138 = vmatprep.subr.mxu0 0.0
        %1139 = vmatpush1.msra.mxu0 0.0
        %1140 = vmatprep.subr.mxu0 0.0
        %1141 = vmatpush1.msra.mxu0 0.0
        %1142 = vmatprep.subr.mxu0 0.0
        %1143 = vmatpush1.msra.mxu0 0.0
        %1144 = vmatprep.subr.mxu0 0.0
        %1145 = vmatpush1.msra.mxu0 0.0
        %1146 = vmatprep.subr.mxu0 0.0
        %1147 = vmatpush1.msra.mxu0 0.0
        %1148 = vmatprep.subr.mxu0 0.0
        %1149 = vmatpush1.msra.mxu0 0.0
        %1150 = vmatprep.subr.mxu0 0.0
        %1151 = vmatpush1.msra.mxu0 0.0
        %1152 = vmatprep.subr.mxu0 0.0
        %1153 = vmatpush1.msra.mxu0 0.0
        %1154 = vmatprep.subr.mxu0 0.0
        %1155 = vmatpush1.msra.mxu0 0.0
        %1156 = vmatprep.subr.mxu0 0.0
        %1157 = vmatpush1.msra.mxu0 0.0
        %1158 = vmatprep.subr.mxu0 0.0
        %1159 = vmatpush1.msra.mxu0 0.0
        %1160 = vmatprep.subr.mxu0 0.0
        %1161 = vmatpush1.msra.mxu0 0.0
        %1162 = vmatprep.subr.mxu0 0.0
        %1163 = vmatpush1.msra.mxu0 0.0
        %1164 = vmatprep.subr.mxu0 0.0
        %1165 = vmatpush1.msra.mxu0 0.0
        %1166 = vmatprep.subr.mxu0 0.0
        %1167 = vmatpush1.msra.mxu0 0.0
        %1168 = vmatprep.subr.mxu0 0.0
        %1169 = vmatpush1.msra.mxu0 0.0
        %1170 = vmatprep.subr.mxu0 0.0
        %1171 = vmatpush1.msra.mxu0 0.0
        %1172 = vmatprep.subr.mxu0 0.0
        %1173 = vmatpush1.msra.mxu0 0.0
        %1174 = vmatprep.subr.mxu0 0.0
        %1175 = vmatpush1.msra.mxu0 0.0
        %1176 = vmatprep.subr.mxu0 0.0
        %1177 = vmatpush1.msra.mxu0 0.0
        %1178 = vmatprep.subr.mxu0 0.0
        %1179 = vmatpush1.msra.mxu0 0.0
        %1180 = vmatprep.subr.mxu0 0.0
        %1181 = vmatpush1.msra.mxu0 0.0
        %1182 = vmatprep.subr.mxu0 0.0
        %1183 = vmatpush1.msra.mxu0 0.0
        %1184 = vmatprep.subr.mxu0 0.0
        %1185 = vmatpush1.msra.mxu0 0.0
        %1186 = vmatprep.mubr.f32.mxu0 0.0
        %1187 = vmatmul.mubr.f32.gmra.mrb[0].mxu0 %v624
        %v1188 = vpop.f32.mrb[0].mxu0
        %v1189 = vadd.f32 %v1120, %v1188
        %v1190 = vpop.f32.mrb[0].mxu0
        %1191 = vdwg.mxu0
        %s1192 = scalar_lea.vmem %s6, 32
        %v1193 = vld [vmem:[%s1192] sm:$0xff]
        %v1194 = vld [vmem:[%s1192 + $0x8] sm:$0xff]
        %v1195 = vld [vmem:[%s1192 + $0x10] sm:$0xff]
        %v1196 = vld [vmem:[%s1192 + $0x18] sm:$0xff]
        %s1197 = scalar_lea.vmem %s8, 5
        %v1198 = vld [vmem:[%s1197] sm:$0x1]
        %v1200 = vlaneseq
        %v1201 = vshrl.u32 %v1200, 7
        %v1202 = vsub.s32 0, %v1201
        %v1203 = vrot.slane %v1198, %v1202
        %1205 = vmatprep.subr.mxu0 0.0
        %1206 = vmatpush1.msra.mxu0 %v1193
        %1207 = vmatprep.subr.mxu0 0.0
        %1208 = vmatpush1.msra.mxu0 %v1194
        %1209 = vmatprep.subr.mxu0 0.0
        %1210 = vmatpush1.msra.mxu0 %v1195
        %1211 = vmatprep.subr.mxu0 0.0
        %1212 = vmatpush1.msra.mxu0 %v1196
        %1213 = vmatprep.subr.mxu0 0.0
        %1214 = vmatpush1.msra.mxu0 0.0
        %1215 = vmatprep.subr.mxu0 0.0
        %1216 = vmatpush1.msra.mxu0 0.0
        %1217 = vmatprep.subr.mxu0 0.0
        %1218 = vmatpush1.msra.mxu0 0.0
        %1219 = vmatprep.subr.mxu0 0.0
        %1220 = vmatpush1.msra.mxu0 0.0
        %1221 = vmatprep.subr.mxu0 0.0
        %1222 = vmatpush1.msra.mxu0 0.0
        %1223 = vmatprep.subr.mxu0 0.0
        %1224 = vmatpush1.msra.mxu0 0.0
        %1225 = vmatprep.subr.mxu0 0.0
        %1226 = vmatpush1.msra.mxu0 0.0
        %1227 = vmatprep.subr.mxu0 0.0
        %1228 = vmatpush1.msra.mxu0 0.0
        %1229 = vmatprep.subr.mxu0 0.0
        %1230 = vmatpush1.msra.mxu0 0.0
        %1231 = vmatprep.subr.mxu0 0.0
        %1232 = vmatpush1.msra.mxu0 0.0
        %1233 = vmatprep.subr.mxu0 0.0
        %1234 = vmatpush1.msra.mxu0 0.0
        %1235 = vmatprep.subr.mxu0 0.0
        %1236 = vmatpush1.msra.mxu0 0.0
        %1237 = vmatprep.subr.mxu0 0.0
        %1238 = vmatpush1.msra.mxu0 0.0
        %1239 = vmatprep.subr.mxu0 0.0
        %1240 = vmatpush1.msra.mxu0 0.0
        %1241 = vmatprep.subr.mxu0 0.0
        %1242 = vmatpush1.msra.mxu0 0.0
        %1243 = vmatprep.subr.mxu0 0.0
        %1244 = vmatpush1.msra.mxu0 0.0
        %1245 = vmatprep.subr.mxu0 0.0
        %1246 = vmatpush1.msra.mxu0 0.0
        %1247 = vmatprep.subr.mxu0 0.0
        %1248 = vmatpush1.msra.mxu0 0.0
        %1249 = vmatprep.subr.mxu0 0.0
        %1250 = vmatpush1.msra.mxu0 0.0
        %1251 = vmatprep.subr.mxu0 0.0
        %1252 = vmatpush1.msra.mxu0 0.0
        %1253 = vmatprep.subr.mxu0 0.0
        %1254 = vmatpush1.msra.mxu0 0.0
        %1255 = vmatprep.subr.mxu0 0.0
        %1256 = vmatpush1.msra.mxu0 0.0
        %1257 = vmatprep.subr.mxu0 0.0
        %1258 = vmatpush1.msra.mxu0 0.0
        %1259 = vmatprep.subr.mxu0 0.0
        %1260 = vmatpush1.msra.mxu0 0.0
        %1261 = vmatprep.subr.mxu0 0.0
        %1262 = vmatpush1.msra.mxu0 0.0
        %1263 = vmatprep.subr.mxu0 0.0
        %1264 = vmatpush1.msra.mxu0 0.0
        %1265 = vmatprep.subr.mxu0 0.0
        %1266 = vmatpush1.msra.mxu0 0.0
        %1267 = vmatprep.subr.mxu0 0.0
        %1268 = vmatpush1.msra.mxu0 0.0
        %1269 = vmatprep.mubr.f32.mxu0 0.0
        %1270 = vmatmul.mubr.f32.gmra.mrb[0].mxu0 %v624
        %v1271 = vpop.f32.mrb[0].mxu0
        %v1272 = vadd.f32 %v1203, %v1271
        %v1273 = vpop.f32.mrb[0].mxu0
        %1274 = vdwg.mxu0
        %v1276 = vsel %vm860, %v1106, 0
        %v1279 = vsel %vm860, %v1189, 0
        %1281 = vmatprep.subr.mxu0 0.0
        %1282 = vmatpush1.xpose.msra.mxu0 %v1279
        %1283 = vmatprep.subr.mxu0 0.0
        %1284 = vmatpush1.xpose.msra.mxu0 0.0
        %1285 = vmatprep.subr.mxu0 0.0
        %1286 = vmatpush1.xpose.msra.mxu0 0.0
        %1287 = vmatprep.subr.mxu0 0.0
        %1288 = vmatpush1.xpose.msra.mxu0 0.0
        %1289 = vmatprep.subr.mxu0 0.0
        %1290 = vmatpush1.xpose.msra.mxu0 0.0
        %1291 = vmatprep.subr.mxu0 0.0
        %1292 = vmatpush1.xpose.msra.mxu0 0.0
        %1293 = vmatprep.subr.mxu0 0.0
        %1294 = vmatpush1.xpose.msra.mxu0 0.0
        %1295 = vmatprep.subr.mxu0 0.0
        %1296 = vmatpush1.xpose.msra.mxu0 0.0
        %1297 = vmatprep.subr.mxu0 0.0
        %1298 = vmatpush1.xpose.msra.mxu0 0.0
        %1299 = vmatprep.subr.mxu0 0.0
        %1300 = vmatpush1.xpose.msra.mxu0 0.0
        %1301 = vmatprep.subr.mxu0 0.0
        %1302 = vmatpush1.xpose.msra.mxu0 0.0
        %1303 = vmatprep.subr.mxu0 0.0
        %1304 = vmatpush1.xpose.msra.mxu0 0.0
        %1305 = vmatprep.subr.mxu0 0.0
        %1306 = vmatpush1.xpose.msra.mxu0 0.0
        %1307 = vmatprep.subr.mxu0 0.0
        %1308 = vmatpush1.xpose.msra.mxu0 0.0
        %1309 = vmatprep.subr.mxu0 0.0
        %1310 = vmatpush1.xpose.msra.mxu0 0.0
        %1311 = vmatprep.subr.mxu0 0.0
        %1312 = vmatpush1.xpose.msra.mxu0 0.0
        %1313 = vmatprep.subr.mxu0 0.0
        %1314 = vmatpush1.xpose.msra.mxu0 0.0
        %1315 = vmatprep.subr.mxu0 0.0
        %1316 = vmatpush1.xpose.msra.mxu0 0.0
        %1317 = vmatprep.subr.mxu0 0.0
        %1318 = vmatpush1.xpose.msra.mxu0 0.0
        %1319 = vmatprep.subr.mxu0 0.0
        %1320 = vmatpush1.xpose.msra.mxu0 0.0
        %1321 = vmatprep.subr.mxu0 0.0
        %1322 = vmatpush1.xpose.msra.mxu0 0.0
        %1323 = vmatprep.subr.mxu0 0.0
        %1324 = vmatpush1.xpose.msra.mxu0 0.0
        %1325 = vmatprep.subr.mxu0 0.0
        %1326 = vmatpush1.xpose.msra.mxu0 0.0
        %1327 = vmatprep.subr.mxu0 0.0
        %1328 = vmatpush1.xpose.msra.mxu0 0.0
        %1329 = vmatprep.subr.mxu0 0.0
        %1330 = vmatpush1.xpose.msra.mxu0 0.0
        %1331 = vmatprep.subr.mxu0 0.0
        %1332 = vmatpush1.xpose.msra.mxu0 0.0
        %1333 = vmatprep.subr.mxu0 0.0
        %1334 = vmatpush1.xpose.msra.mxu0 0.0
        %1335 = vmatprep.subr.mxu0 0.0
        %1336 = vmatpush1.xpose.msra.mxu0 0.0
        %1337 = vmatprep.subr.mxu0 0.0
        %1338 = vmatpush1.xpose.msra.mxu0 0.0
        %1339 = vmatprep.subr.mxu0 0.0
        %1340 = vmatpush1.xpose.msra.mxu0 0.0
        %1341 = vmatprep.subr.mxu0 0.0
        %1342 = vmatpush1.xpose.msra.mxu0 0.0
        %1343 = vmatprep.subr.mxu0 0.0
        %1344 = vmatpush1.xpose.msra.mxu0 0.0
        %1345 = vmatprep.mubr.f32.mxu0 0.0
        %1346 = vmatmul.mubr.f32.gmra.mrb[0].mxu0 %v1276
        %v1347 = vpop.f32.mrb[0].mxu0
        %v1348 = vadd.f32 0.0, %v1347
        %v1349 = vpop.f32.mrb[0].mxu0
        %1350 = vdwg.mxu0
        %v1351 = vmul.f32 %v1348, 0.25
        %v1352 = vadd.f32 %v1351, %v610
        %v1353 = vsel %vm939, %v1352, -inf
        %1354 = vmax.xlane.f32.xlu0 %v1353
        %v1355 = vpop.xlane.xlu0 %1354
        %v1356 = vsub.f32 %v1352, %v1355
        %v1357 = vmul.f32 %v1356, 1.442695
        %v1358 = vpow.pop %v1357
        %v1359 = vsel %vm939, %v1358, 0.0
        %1360 = vadd.xlane.f32.xlu0 %v1359
        %v1361 = vpop.xlane.xlu0 %1360
        %v1362 = vrcp.pop %v1361
        %v1363 = vmul.f32 %v1358, %v1362
        %v1365 = vsel %vm939, %v1363, 0
        %1367 = vmatprep.subr.mxu0 0.0
        %1368 = vmatpush1.msra.mxu0 %v1272
        %1369 = vmatprep.subr.mxu0 0.0
        %1370 = vmatpush1.msra.mxu0 0.0
        %1371 = vmatprep.subr.mxu0 0.0
        %1372 = vmatpush1.msra.mxu0 0.0
        %1373 = vmatprep.subr.mxu0 0.0
        %1374 = vmatpush1.msra.mxu0 0.0
        %1375 = vmatprep.subr.mxu0 0.0
        %1376 = vmatpush1.msra.mxu0 0.0
        %1377 = vmatprep.subr.mxu0 0.0
        %1378 = vmatpush1.msra.mxu0 0.0
        %1379 = vmatprep.subr.mxu0 0.0
        %1380 = vmatpush1.msra.mxu0 0.0
        %1381 = vmatprep.subr.mxu0 0.0
        %1382 = vmatpush1.msra.mxu0 0.0
        %1383 = vmatprep.subr.mxu0 0.0
        %1384 = vmatpush1.msra.mxu0 0.0
        %1385 = vmatprep.subr.mxu0 0.0
        %1386 = vmatpush1.msra.mxu0 0.0
        %1387 = vmatprep.subr.mxu0 0.0
        %1388 = vmatpush1.msra.mxu0 0.0
        %1389 = vmatprep.subr.mxu0 0.0
        %1390 = vmatpush1.msra.mxu0 0.0
        %1391 = vmatprep.subr.mxu0 0.0
        %1392 = vmatpush1.msra.mxu0 0.0
        %1393 = vmatprep.subr.mxu0 0.0
        %1394 = vmatpush1.msra.mxu0 0.0
        %1395 = vmatprep.subr.mxu0 0.0
        %1396 = vmatpush1.msra.mxu0 0.0
        %1397 = vmatprep.subr.mxu0 0.0
        %1398 = vmatpush1.msra.mxu0 0.0
        %1399 = vmatprep.subr.mxu0 0.0
        %1400 = vmatpush1.msra.mxu0 0.0
        %1401 = vmatprep.subr.mxu0 0.0
        %1402 = vmatpush1.msra.mxu0 0.0
        %1403 = vmatprep.subr.mxu0 0.0
        %1404 = vmatpush1.msra.mxu0 0.0
        %1405 = vmatprep.subr.mxu0 0.0
        %1406 = vmatpush1.msra.mxu0 0.0
        %1407 = vmatprep.subr.mxu0 0.0
        %1408 = vmatpush1.msra.mxu0 0.0
        %1409 = vmatprep.subr.mxu0 0.0
        %1410 = vmatpush1.msra.mxu0 0.0
        %1411 = vmatprep.subr.mxu0 0.0
        %1412 = vmatpush1.msra.mxu0 0.0
        %1413 = vmatprep.subr.mxu0 0.0
        %1414 = vmatpush1.msra.mxu0 0.0
        %1415 = vmatprep.subr.mxu0 0.0
        %1416 = vmatpush1.msra.mxu0 0.0
        %1417 = vmatprep.subr.mxu0 0.0
        %1418 = vmatpush1.msra.mxu0 0.0
        %1419 = vmatprep.subr.mxu0 0.0
        %1420 = vmatpush1.msra.mxu0 0.0
        %1421 = vmatprep.subr.mxu0 0.0
        %1422 = vmatpush1.msra.mxu0 0.0
        %1423 = vmatprep.subr.mxu0 0.0
        %1424 = vmatpush1.msra.mxu0 0.0
        %1425 = vmatprep.subr.mxu0 0.0
        %1426 = vmatpush1.msra.mxu0 0.0
        %1427 = vmatprep.subr.mxu0 0.0
        %1428 = vmatpush1.msra.mxu0 0.0
        %1429 = vmatprep.subr.mxu0 0.0
        %1430 = vmatpush1.msra.mxu0 0.0
        %1431 = vmatprep.mubr.f32.mxu0 0.0
        %1432 = vmatmul.mubr.f32.gmra.mrb[0].mxu0 %v1365
        %v1433 = vpop.f32.mrb[0].mxu0
        %v1434 = vadd.f32 0.0, %v1433
        %v1435 = vpop.f32.mrb[0].mxu0
        %1436 = vdwg.mxu0
        %s1437 = scalar_lea.vmem %s7, 16
        %v1438 = vld [vmem:[%s1437] sm:$0xff]
        %v1439 = vld [vmem:[%s1437 + $0x8] sm:$0xff]
        %v1441 = vsel %vm860, %v1434, 0
        %1443 = vmatprep.subr.mxu0 0.0
        %1444 = vmatpush1.msra.mxu0 %v1438
        %1445 = vmatprep.subr.mxu0 0.0
        %1446 = vmatpush1.msra.mxu0 %v1439
        %1447 = vmatprep.subr.mxu0 0.0
        %1448 = vmatpush1.msra.mxu0 0.0
        %1449 = vmatprep.subr.mxu0 0.0
        %1450 = vmatpush1.msra.mxu0 0.0
        %1451 = vmatprep.subr.mxu0 0.0
        %1452 = vmatpush1.msra.mxu0 0.0
        %1453 = vmatprep.subr.mxu0 0.0
        %1454 = vmatpush1.msra.mxu0 0.0
        %1455 = vmatprep.subr.mxu0 0.0
        %1456 = vmatpush1.msra.mxu0 0.0
        %1457 = vmatprep.subr.mxu0 0.0
        %1458 = vmatpush1.msra.mxu0 0.0
        %1459 = vmatprep.subr.mxu0 0.0
        %1460 = vmatpush1.msra.mxu0 0.0
        %1461 = vmatprep.subr.mxu0 0.0
        %1462 = vmatpush1.msra.mxu0 0.0
        %1463 = vmatprep.subr.mxu0 0.0
        %1464 = vmatpush1.msra.mxu0 0.0
        %1465 = vmatprep.subr.mxu0 0.0
        %1466 = vmatpush1.msra.mxu0 0.0
        %1467 = vmatprep.subr.mxu0 0.0
        %1468 = vmatpush1.msra.mxu0 0.0
        %1469 = vmatprep.subr.mxu0 0.0
        %1470 = vmatpush1.msra.mxu0 0.0
        %1471 = vmatprep.subr.mxu0 0.0
        %1472 = vmatpush1.msra.mxu0 0.0
        %1473 = vmatprep.subr.mxu0 0.0
        %1474 = vmatpush1.msra.mxu0 0.0
        %1475 = vmatprep.subr.mxu0 0.0
        %1476 = vmatpush1.msra.mxu0 0.0
        %1477 = vmatprep.subr.mxu0 0.0
        %1478 = vmatpush1.msra.mxu0 0.0
        %1479 = vmatprep.subr.mxu0 0.0
        %1480 = vmatpush1.msra.mxu0 0.0
        %1481 = vmatprep.subr.mxu0 0.0
        %1482 = vmatpush1.msra.mxu0 0.0
        %1483 = vmatprep.subr.mxu0 0.0
        %1484 = vmatpush1.msra.mxu0 0.0
        %1485 = vmatprep.subr.mxu0 0.0
        %1486 = vmatpush1.msra.mxu0 0.0
        %1487 = vmatprep.subr.mxu0 0.0
        %1488 = vmatpush1.msra.mxu0 0.0
        %1489 = vmatprep.subr.mxu0 0.0
        %1490 = vmatpush1.msra.mxu0 0.0
        %1491 = vmatprep.subr.mxu0 0.0
        %1492 = vmatpush1.msra.mxu0 0.0
        %1493 = vmatprep.subr.mxu0 0.0
        %1494 = vmatpush1.msra.mxu0 0.0
        %1495 = vmatprep.subr.mxu0 0.0
        %1496 = vmatpush1.msra.mxu0 0.0
        %1497 = vmatprep.subr.mxu0 0.0
        %1498 = vmatpush1.msra.mxu0 0.0
        %1499 = vmatprep.subr.mxu0 0.0
        %1500 = vmatpush1.msra.mxu0 0.0
        %1501 = vmatprep.subr.mxu0 0.0
        %1502 = vmatpush1.msra.mxu0 0.0
        %1503 = vmatprep.subr.mxu0 0.0
        %1504 = vmatpush1.msra.mxu0 0.0
        %1505 = vmatprep.subr.mxu0 0.0
        %1506 = vmatpush1.msra.mxu0 0.0
        %1507 = vmatprep.mubr.f32.mxu0 0.0
        %1508 = vmatmul.mubr.f32.gmra.mrb[0].mxu0 %v1441
        %v1509 = vpop.f32.mrb[0].mxu0
        %v1510 = vadd.f32 0.0, %v1509
        %v1511 = vpop.f32.mrb[0].mxu0
        %1512 = vdwg.mxu0
        %v1514 = vsel %vm860, %v1021, 0
        %1516 = vmatprep.subr.mxu0 0.0
        %1517 = vmatpush1.msra.mxu0 %v1024
        %1518 = vmatprep.subr.mxu0 0.0
        %1519 = vmatpush1.msra.mxu0 %v1025
        %1520 = vmatprep.subr.mxu0 0.0
        %1521 = vmatpush1.msra.mxu0 0.0
        %1522 = vmatprep.subr.mxu0 0.0
        %1523 = vmatpush1.msra.mxu0 0.0
        %1524 = vmatprep.subr.mxu0 0.0
        %1525 = vmatpush1.msra.mxu0 0.0
        %1526 = vmatprep.subr.mxu0 0.0
        %1527 = vmatpush1.msra.mxu0 0.0
        %1528 = vmatprep.subr.mxu0 0.0
        %1529 = vmatpush1.msra.mxu0 0.0
        %1530 = vmatprep.subr.mxu0 0.0
        %1531 = vmatpush1.msra.mxu0 0.0
        %1532 = vmatprep.subr.mxu0 0.0
        %1533 = vmatpush1.msra.mxu0 0.0
        %1534 = vmatprep.subr.mxu0 0.0
        %1535 = vmatpush1.msra.mxu0 0.0
        %1536 = vmatprep.subr.mxu0 0.0
        %1537 = vmatpush1.msra.mxu0 0.0
        %1538 = vmatprep.subr.mxu0 0.0
        %1539 = vmatpush1.msra.mxu0 0.0
        %1540 = vmatprep.subr.mxu0 0.0
        %1541 = vmatpush1.msra.mxu0 0.0
        %1542 = vmatprep.subr.mxu0 0.0
        %1543 = vmatpush1.msra.mxu0 0.0
        %1544 = vmatprep.subr.mxu0 0.0
        %1545 = vmatpush1.msra.mxu0 0.0
        %1546 = vmatprep.subr.mxu0 0.0
        %1547 = vmatpush1.msra.mxu0 0.0
        %1548 = vmatprep.subr.mxu0 0.0
        %1549 = vmatpush1.msra.mxu0 0.0
        %1550 = vmatprep.subr.mxu0 0.0
        %1551 = vmatpush1.msra.mxu0 0.0
        %1552 = vmatprep.subr.mxu0 0.0
        %1553 = vmatpush1.msra.mxu0 0.0
        %1554 = vmatprep.subr.mxu0 0.0
        %1555 = vmatpush1.msra.mxu0 0.0
        %1556 = vmatprep.subr.mxu0 0.0
        %1557 = vmatpush1.msra.mxu0 0.0
        %1558 = vmatprep.subr.mxu0 0.0
        %1559 = vmatpush1.msra.mxu0 0.0
        %1560 = vmatprep.subr.mxu0 0.0
        %1561 = vmatpush1.msra.mxu0 0.0
        %1562 = vmatprep.subr.mxu0 0.0
        %1563 = vmatpush1.msra.mxu0 0.0
        %1564 = vmatprep.subr.mxu0 0.0
        %1565 = vmatpush1.msra.mxu0 0.0
        %1566 = vmatprep.subr.mxu0 0.0
        %1567 = vmatpush1.msra.mxu0 0.0
        %1568 = vmatprep.subr.mxu0 0.0
        %1569 = vmatpush1.msra.mxu0 0.0
        %1570 = vmatprep.subr.mxu0 0.0
        %1571 = vmatpush1.msra.mxu0 0.0
        %1572 = vmatprep.subr.mxu0 0.0
        %1573 = vmatpush1.msra.mxu0 0.0
        %1574 = vmatprep.subr.mxu0 0.0
        %1575 = vmatpush1.msra.mxu0 0.0
        %1576 = vmatprep.subr.mxu0 0.0
        %1577 = vmatpush1.msra.mxu0 0.0
        %1578 = vmatprep.subr.mxu0 0.0
        %1579 = vmatpush1.msra.mxu0 0.0
        %1580 = vmatprep.mubr.f32.mxu0 0.0
        %1581 = vmatmul.mubr.f32.gmra.mrb[0].mxu0 %v1514
        %v1582 = vpop.f32.mrb[0].mxu0
        %v1583 = vadd.f32 %v1510, %v1582
        %v1584 = vpop.f32.mrb[0].mxu0
        %1585 = vdwg.mxu0
        %v1586 = vlaneseq
        %v1587 = vshrl.u32 %v1586, 7
        %v1588 = vsub.s32 0, %v1587
        %v1589 = vrot.slane %v611, %v1588
        %v1590 = vadd.f32 %v1583, %v1589
        %v1591 = vadd.f32 %v1590, %v595
        %v1592 = vsel %vm564, %v1591, 0.0
        %1593 = vadd.xlane.f32.xlu0 %v1592
        %v1594 = vpop.xlane.xlu0 %1593
        %v1595 = vmul.f32 %v1594, %v568
        %v1596 = vsub.f32 %v1591, %v1595
        %v1597 = vmul.f32 %v1596, %v1596
        %v1598 = vsel %vm564, %v1597, 0.0
        %1599 = vadd.xlane.f32.xlu0 %v1598
        %v1600 = vpop.xlane.xlu0 %1599
        %v1601 = vmul.f32 %v1600, %v568
        %v1602 = vadd.f32 %v1601, 1e-12
        %v1603 = vrsqrt.pop %v1602
        %v1604 = vmul.f32 %v1602, %v1603
        %vm1605 = vcmp.eq.f32.partialorder %v1602, inf
        %v1606 = vsel %vm1605, %v1602, %v1604
        %vm1607 = vcmp.eq.f32.partialorder %v1602, 0.0
        %v1608 = vand.u32 %v1602, 2147483648
        %v1609 = vsel %vm1607, %v1608, %v1606
        %v1610 = vrcp.pop %v1609
        %v1611 = vmul.f32 %v1596, %v1610
        %v1612 = vlaneseq
        %v1613 = vshrl.u32 %v1612, 7
        %v1614 = vsub.s32 2, %v1613
        %v1615 = vrot.slane %v611, %v1614
        %v1616 = vmul.f32 %v1611, %v1615
        %v1617 = vlaneseq
        %v1618 = vshrl.u32 %v1617, 7
        %v1619 = vsub.s32 3, %v1618
        %v1620 = vrot.slane %v611, %v1619
        %v1621 = vadd.f32 %v1616, %v1620
        %v1622 = vld [vmem:[%s9] sm:$0xff]
        %v1623 = vld [vmem:[%s9 + $0x8] sm:$0xff]
        %v1624 = vld [vmem:[%s9 + $0x10] sm:$0xff]
        %v1625 = vld [vmem:[%s9 + $0x18] sm:$0xff]
        %v1626 = vld [vmem:[%s11] sm:$0x1]
        %v1628 = vlaneseq
        %v1629 = vshrl.u32 %v1628, 7
        %v1630 = vsub.s32 0, %v1629
        %v1631 = vrot.slane %v1626, %v1630
        %v1634 = vsel %vm564, %v1621, 0
        %1636 = vmatprep.subr.mxu0 0.0
        %1637 = vmatpush1.msra.mxu0 %v1622
        %1638 = vmatprep.subr.mxu0 0.0
        %1639 = vmatpush1.msra.mxu0 %v1623
        %1640 = vmatprep.subr.mxu0 0.0
        %1641 = vmatpush1.msra.mxu0 %v1624
        %1642 = vmatprep.subr.mxu0 0.0
        %1643 = vmatpush1.msra.mxu0 %v1625
        %1644 = vmatprep.subr.mxu0 0.0
        %1645 = vmatpush1.msra.mxu0 0.0
        %1646 = vmatprep.subr.mxu0 0.0
        %1647 = vmatpush1.msra.mxu0 0.0
        %1648 = vmatprep.subr.mxu0 0.0
        %1649 = vmatpush1.msra.mxu0 0.0
        %1650 = vmatprep.subr.mxu0 0.0
        %1651 = vmatpush1.msra.mxu0 0.0
        %1652 = vmatprep.subr.mxu0 0.0
        %1653 = vmatpush1.msra.mxu0 0.0
        %1654 = vmatprep.subr.mxu0 0.0
        %1655 = vmatpush1.msra.mxu0 0.0
        %1656 = vmatprep.subr.mxu0 0.0
        %1657 = vmatpush1.msra.mxu0 0.0
        %1658 = vmatprep.subr.mxu0 0.0
        %1659 = vmatpush1.msra.mxu0 0.0
        %1660 = vmatprep.subr.mxu0 0.0
        %1661 = vmatpush1.msra.mxu0 0.0
        %1662 = vmatprep.subr.mxu0 0.0
        %1663 = vmatpush1.msra.mxu0 0.0
        %1664 = vmatprep.subr.mxu0 0.0
        %1665 = vmatpush1.msra.mxu0 0.0
        %1666 = vmatprep.subr.mxu0 0.0
        %1667 = vmatpush1.msra.mxu0 0.0
        %1668 = vmatprep.subr.mxu0 0.0
        %1669 = vmatpush1.msra.mxu0 0.0
        %1670 = vmatprep.subr.mxu0 0.0
        %1671 = vmatpush1.msra.mxu0 0.0
        %1672 = vmatprep.subr.mxu0 0.0
        %1673 = vmatpush1.msra.mxu0 0.0
        %1674 = vmatprep.subr.mxu0 0.0
        %1675 = vmatpush1.msra.mxu0 0.0
        %1676 = vmatprep.subr.mxu0 0.0
        %1677 = vmatpush1.msra.mxu0 0.0
        %1678 = vmatprep.subr.mxu0 0.0
        %1679 = vmatpush1.msra.mxu0 0.0
        %1680 = vmatprep.subr.mxu0 0.0
        %1681 = vmatpush1.msra.mxu0 0.0
        %1682 = vmatprep.subr.mxu0 0.0
        %1683 = vmatpush1.msra.mxu0 0.0
        %1684 = vmatprep.subr.mxu0 0.0
        %1685 = vmatpush1.msra.mxu0 0.0
        %1686 = vmatprep.subr.mxu0 0.0
        %1687 = vmatpush1.msra.mxu0 0.0
        %1688 = vmatprep.subr.mxu0 0.0
        %1689 = vmatpush1.msra.mxu0 0.0
        %1690 = vmatprep.subr.mxu0 0.0
        %1691 = vmatpush1.msra.mxu0 0.0
        %1692 = vmatprep.subr.mxu0 0.0
        %1693 = vmatpush1.msra.mxu0 0.0
        %1694 = vmatprep.subr.mxu0 0.0
        %1695 = vmatpush1.msra.mxu0 0.0
        %1696 = vmatprep.subr.mxu0 0.0
        %1697 = vmatpush1.msra.mxu0 0.0
        %1698 = vmatprep.subr.mxu0 0.0
        %1699 = vmatpush1.msra.mxu0 0.0
        %1700 = vmatprep.mubr.f32.mxu0 0.0
        %1701 = vmatmul.mubr.f32.gmra.mrb[0].mxu0 %v1634
        %v1702 = vpop.f32.mrb[0].mxu0
        %v1703 = vadd.f32 %v1631, %v1702
        %v1704 = vpop.f32.mrb[0].mxu0
        %1705 = vdwg.mxu0
        %v1706 = vmul.f32 %v1703, 0.5
        %v1707 = vmul.f32 %v1703, 0.70710677
        %v1708 = verf.f32.pop %v1707
        %v1709 = vadd.f32 %v1708, 1.0
        %v1710 = vmul.f32 %v1706, %v1709
        %v1711 = vld [vmem:[%s10] sm:$0xff]
        %v1712 = vld [vmem:[%s10 + $0x8] sm:$0xff]
        %v1713 = vld [vmem:[%s10 + $0x10] sm:$0xff]
        %v1714 = vld [vmem:[%s10 + $0x18] sm:$0xff]
        %v1715 = vld [vmem:[%s10 + $0x20] sm:$0xff]
        %v1716 = vld [vmem:[%s10 + $0x28] sm:$0xff]
        %v1717 = vld [vmem:[%s10 + $0x30] sm:$0xff]
        %v1718 = vld [vmem:[%s10 + $0x38] sm:$0xff]
        %v1719 = vld [vmem:[%s10 + $0x40] sm:$0xff]
        %v1720 = vld [vmem:[%s10 + $0x48] sm:$0xff]
        %v1721 = vld [vmem:[%s10 + $0x50] sm:$0xff]
        %v1722 = vld [vmem:[%s10 + $0x58] sm:$0xff]
        %v1723 = vld [vmem:[%s10 + $0x60] sm:$0xff]
        %v1724 = vld [vmem:[%s10 + $0x68] sm:$0xff]
        %v1725 = vld [vmem:[%s10 + $0x70] sm:$0xff]
        %v1726 = vld [vmem:[%s10 + $0x78] sm:$0xff]
        %v1727 = vlaneseq
        %v1728 = vshrl.u32 %v1727, 7
        %v1729 = vsub.s32 1, %v1728
        %v1730 = vrot.slane %v611, %v1729
        %1731 = vmatprep.subr.mxu0 0.0
        %1732 = vmatpush1.msra.mxu0 %v1711
        %1733 = vmatprep.subr.mxu0 0.0
        %1734 = vmatpush1.msra.mxu0 %v1712
        %1735 = vmatprep.subr.mxu0 0.0
        %1736 = vmatpush1.msra.mxu0 %v1713
        %1737 = vmatprep.subr.mxu0 0.0
        %1738 = vmatpush1.msra.mxu0 %v1714
        %1739 = vmatprep.subr.mxu0 0.0
        %1740 = vmatpush1.msra.mxu0 %v1715
        %1741 = vmatprep.subr.mxu0 0.0
        %1742 = vmatpush1.msra.mxu0 %v1716
        %1743 = vmatprep.subr.mxu0 0.0
        %1744 = vmatpush1.msra.mxu0 %v1717
        %1745 = vmatprep.subr.mxu0 0.0
        %1746 = vmatpush1.msra.mxu0 %v1718
        %1747 = vmatprep.subr.mxu0 0.0
        %1748 = vmatpush1.msra.mxu0 %v1719
        %1749 = vmatprep.subr.mxu0 0.0
        %1750 = vmatpush1.msra.mxu0 %v1720
        %1751 = vmatprep.subr.mxu0 0.0
        %1752 = vmatpush1.msra.mxu0 %v1721
        %1753 = vmatprep.subr.mxu0 0.0
        %1754 = vmatpush1.msra.mxu0 %v1722
        %1755 = vmatprep.subr.mxu0 0.0
        %1756 = vmatpush1.msra.mxu0 %v1723
        %1757 = vmatprep.subr.mxu0 0.0
        %1758 = vmatpush1.msra.mxu0 %v1724
        %1759 = vmatprep.subr.mxu0 0.0
        %1760 = vmatpush1.msra.mxu0 %v1725
        %1761 = vmatprep.subr.mxu0 0.0
        %1762 = vmatpush1.msra.mxu0 %v1726
        %1763 = vmatprep.subr.mxu0 0.0
        %1764 = vmatpush1.msra.mxu0 0.0
        %1765 = vmatprep.subr.mxu0 0.0
        %1766 = vmatpush1.msra.mxu0 0.0
        %1767 = vmatprep.subr.mxu0 0.0
        %1768 = vmatpush1.msra.mxu0 0.0
        %1769 = vmatprep.subr.mxu0 0.0
        %1770 = vmatpush1.msra.mxu0 0.0
        %1771 = vmatprep.subr.mxu0 0.0
        %1772 = vmatpush1.msra.mxu0 0.0
        %1773 = vmatprep.subr.mxu0 0.0
        %1774 = vmatpush1.msra.mxu0 0.0
        %1775 = vmatprep.subr.mxu0 0.0
        %1776 = vmatpush1.msra.mxu0 0.0
        %1777 = vmatprep.subr.mxu0 0.0
        %1778 = vmatpush1.msra.mxu0 0.0
        %1779 = vmatprep.subr.mxu0 0.0
        %1780 = vmatpush1.msra.mxu0 0.0
        %1781 = vmatprep.subr.mxu0 0.0
        %1782 = vmatpush1.msra.mxu0 0.0
        %1783 = vmatprep.subr.mxu0 0.0
        %1784 = vmatpush1.msra.mxu0 0.0
        %1785 = vmatprep.subr.mxu0 0.0
        %1786 = vmatpush1.msra.mxu0 0.0
        %1787 = vmatprep.subr.mxu0 0.0
        %1788 = vmatpush1.msra.mxu0 0.0
        %1789 = vmatprep.subr.mxu0 0.0
        %1790 = vmatpush1.msra.mxu0 0.0
        %1791 = vmatprep.subr.mxu0 0.0
        %1792 = vmatpush1.msra.mxu0 0.0
        %1793 = vmatprep.subr.mxu0 0.0
        %1794 = vmatpush1.msra.mxu0 0.0
        %1795 = vmatprep.mubr.f32.mxu0 0.0
        %1796 = vmatmul.mubr.f32.gmra.mrb[0].mxu0 %v1710
        %v1797 = vpop.f32.mrb[0].mxu0
        %v1798 = vadd.f32 %v1730, %v1797
        %v1799 = vpop.f32.mrb[0].mxu0
        %1800 = vdwg.mxu0
        %v1801 = vadd.f32 %v1798, %v1621
        %v1802 = vsel %vm564, %v1801, 0.0
        %1803 = vadd.xlane.f32.xlu0 %v1802
        %v1804 = vpop.xlane.xlu0 %1803
        %v1805 = vmul.f32 %v1804, %v568
        %v1806 = vsub.f32 %v1801, %v1805
        %v1807 = vmul.f32 %v1806, %v1806
        %v1808 = vsel %vm564, %v1807, 0.0
        %1809 = vadd.xlane.f32.xlu0 %v1808
        %v1810 = vpop.xlane.xlu0 %1809
        %v1811 = vmul.f32 %v1810, %v568
        %v1812 = vadd.f32 %v1811, 1e-12
        %v1813 = vrsqrt.pop %v1812
        %v1814 = vmul.f32 %v1812, %v1813
        %vm1815 = vcmp.eq.f32.partialorder %v1812, inf
        %v1816 = vsel %vm1815, %v1812, %v1814
        %vm1817 = vcmp.eq.f32.partialorder %v1812, 0.0
        %v1818 = vand.u32 %v1812, 2147483648
        %v1819 = vsel %vm1817, %v1818, %v1816
        %v1820 = vrcp.pop %v1819
        %v1821 = vmul.f32 %v1806, %v1820
        %v1822 = vlaneseq
        %v1823 = vshrl.u32 %v1822, 7
        %v1824 = vsub.s32 4, %v1823
        %v1825 = vrot.slane %v611, %v1824
        %v1826 = vmul.f32 %v1821, %v1825
        %v1827 = vlaneseq
        %v1828 = vshrl.u32 %v1827, 7
        %v1829 = vsub.s32 5, %v1828
        %v1830 = vrot.slane %v611, %v1829
        %v1831 = vadd.f32 %v1826, %v1830
        %s1832 = scalar_lea.vmem %s12, 8
        %v1833 = vld [vmem:[%s1832] sm:$0xff]
        %s1834 = scalar_lea.vmem %s4, 64
        %v1835 = vld [vmem:[%s1834] sm:$0xff]
        %v1836 = vld [vmem:[%s1834 + $0x8] sm:$0xff]
        %v1837 = vld [vmem:[%s1834 + $0x10] sm:$0xff]
        %v1838 = vld [vmem:[%s1834 + $0x18] sm:$0xff]
        %s1839 = scalar_lea.vmem %s8, 6
        %v1840 = vld [vmem:[%s1839] sm:$0x1]
        %v1842 = vlaneseq
        %v1843 = vshrl.u32 %v1842, 7
        %v1844 = vsub.s32 0, %v1843
        %v1845 = vrot.slane %v1840, %v1844
        %v1848 = vsel %vm564, %v1831, 0
        %1850 = vmatprep.subr.mxu0 0.0
        %1851 = vmatpush1.msra.mxu0 %v1835
        %1852 = vmatprep.subr.mxu0 0.0
        %1853 = vmatpush1.msra.mxu0 %v1836
        %1854 = vmatprep.subr.mxu0 0.0
        %1855 = vmatpush1.msra.mxu0 %v1837
        %1856 = vmatprep.subr.mxu0 0.0
        %1857 = vmatpush1.msra.mxu0 %v1838
        %1858 = vmatprep.subr.mxu0 0.0
        %1859 = vmatpush1.msra.mxu0 0.0
        %1860 = vmatprep.subr.mxu0 0.0
        %1861 = vmatpush1.msra.mxu0 0.0
        %1862 = vmatprep.subr.mxu0 0.0
        %1863 = vmatpush1.msra.mxu0 0.0
        %1864 = vmatprep.subr.mxu0 0.0
        %1865 = vmatpush1.msra.mxu0 0.0
        %1866 = vmatprep.subr.mxu0 0.0
        %1867 = vmatpush1.msra.mxu0 0.0
        %1868 = vmatprep.subr.mxu0 0.0
        %1869 = vmatpush1.msra.mxu0 0.0
        %1870 = vmatprep.subr.mxu0 0.0
        %1871 = vmatpush1.msra.mxu0 0.0
        %1872 = vmatprep.subr.mxu0 0.0
        %1873 = vmatpush1.msra.mxu0 0.0
        %1874 = vmatprep.subr.mxu0 0.0
        %1875 = vmatpush1.msra.mxu0 0.0
        %1876 = vmatprep.subr.mxu0 0.0
        %1877 = vmatpush1.msra.mxu0 0.0
        %1878 = vmatprep.subr.mxu0 0.0
        %1879 = vmatpush1.msra.mxu0 0.0
        %1880 = vmatprep.subr.mxu0 0.0
        %1881 = vmatpush1.msra.mxu0 0.0
        %1882 = vmatprep.subr.mxu0 0.0
        %1883 = vmatpush1.msra.mxu0 0.0
        %1884 = vmatprep.subr.mxu0 0.0
        %1885 = vmatpush1.msra.mxu0 0.0
        %1886 = vmatprep.subr.mxu0 0.0
        %1887 = vmatpush1.msra.mxu0 0.0
        %1888 = vmatprep.subr.mxu0 0.0
        %1889 = vmatpush1.msra.mxu0 0.0
        %1890 = vmatprep.subr.mxu0 0.0
        %1891 = vmatpush1.msra.mxu0 0.0
        %1892 = vmatprep.subr.mxu0 0.0
        %1893 = vmatpush1.msra.mxu0 0.0
        %1894 = vmatprep.subr.mxu0 0.0
        %1895 = vmatpush1.msra.mxu0 0.0
        %1896 = vmatprep.subr.mxu0 0.0
        %1897 = vmatpush1.msra.mxu0 0.0
        %1898 = vmatprep.subr.mxu0 0.0
        %1899 = vmatpush1.msra.mxu0 0.0
        %1900 = vmatprep.subr.mxu0 0.0
        %1901 = vmatpush1.msra.mxu0 0.0
        %1902 = vmatprep.subr.mxu0 0.0
        %1903 = vmatpush1.msra.mxu0 0.0
        %1904 = vmatprep.subr.mxu0 0.0
        %1905 = vmatpush1.msra.mxu0 0.0
        %1906 = vmatprep.subr.mxu0 0.0
        %1907 = vmatpush1.msra.mxu0 0.0
        %1908 = vmatprep.subr.mxu0 0.0
        %1909 = vmatpush1.msra.mxu0 0.0
        %1910 = vmatprep.subr.mxu0 0.0
        %1911 = vmatpush1.msra.mxu0 0.0
        %1912 = vmatprep.subr.mxu0 0.0
        %1913 = vmatpush1.msra.mxu0 0.0
        %1914 = vmatprep.mubr.f32.mxu0 0.0
        %1915 = vmatmul.mubr.f32.gmra.mrb[0].mxu0 %v1848
        %v1916 = vpop.f32.mrb[0].mxu0
        %v1917 = vadd.f32 %v1845, %v1916
        %v1918 = vpop.f32.mrb[0].mxu0
        %1919 = vdwg.mxu0
        %s1920 = scalar_lea.vmem %s5, 64
        %v1921 = vld [vmem:[%s1920] sm:$0xff]
        %v1922 = vld [vmem:[%s1920 + $0x8] sm:$0xff]
        %v1923 = vld [vmem:[%s1920 + $0x10] sm:$0xff]
        %v1924 = vld [vmem:[%s1920 + $0x18] sm:$0xff]
        %s1925 = scalar_lea.vmem %s8, 7
        %v1926 = vld [vmem:[%s1925] sm:$0x1]
        %v1928 = vlaneseq
        %v1929 = vshrl.u32 %v1928, 7
        %v1930 = vsub.s32 0, %v1929
        %v1931 = vrot.slane %v1926, %v1930
        %1933 = vmatprep.subr.mxu0 0.0
        %1934 = vmatpush1.msra.mxu0 %v1921
        %1935 = vmatprep.subr.mxu0 0.0
        %1936 = vmatpush1.msra.mxu0 %v1922
        %1937 = vmatprep.subr.mxu0 0.0
        %1938 = vmatpush1.msra.mxu0 %v1923
        %1939 = vmatprep.subr.mxu0 0.0
        %1940 = vmatpush1.msra.mxu0 %v1924
        %1941 = vmatprep.subr.mxu0 0.0
        %1942 = vmatpush1.msra.mxu0 0.0
        %1943 = vmatprep.subr.mxu0 0.0
        %1944 = vmatpush1.msra.mxu0 0.0
        %1945 = vmatprep.subr.mxu0 0.0
        %1946 = vmatpush1.msra.mxu0 0.0
        %1947 = vmatprep.subr.mxu0 0.0
        %1948 = vmatpush1.msra.mxu0 0.0
        %1949 = vmatprep.subr.mxu0 0.0
        %1950 = vmatpush1.msra.mxu0 0.0
        %1951 = vmatprep.subr.mxu0 0.0
        %1952 = vmatpush1.msra.mxu0 0.0
        %1953 = vmatprep.subr.mxu0 0.0
        %1954 = vmatpush1.msra.mxu0 0.0
        %1955 = vmatprep.subr.mxu0 0.0
        %1956 = vmatpush1.msra.mxu0 0.0
        %1957 = vmatprep.subr.mxu0 0.0
        %1958 = vmatpush1.msra.mxu0 0.0
        %1959 = vmatprep.subr.mxu0 0.0
        %1960 = vmatpush1.msra.mxu0 0.0
        %1961 = vmatprep.subr.mxu0 0.0
        %1962 = vmatpush1.msra.mxu0 0.0
        %1963 = vmatprep.subr.mxu0 0.0
        %1964 = vmatpush1.msra.mxu0 0.0
        %1965 = vmatprep.subr.mxu0 0.0
        %1966 = vmatpush1.msra.mxu0 0.0
        %1967 = vmatprep.subr.mxu0 0.0
        %1968 = vmatpush1.msra.mxu0 0.0
        %1969 = vmatprep.subr.mxu0 0.0
        %1970 = vmatpush1.msra.mxu0 0.0
        %1971 = vmatprep.subr.mxu0 0.0
        %1972 = vmatpush1.msra.mxu0 0.0
        %1973 = vmatprep.subr.mxu0 0.0
        %1974 = vmatpush1.msra.mxu0 0.0
        %1975 = vmatprep.subr.mxu0 0.0
        %1976 = vmatpush1.msra.mxu0 0.0
        %1977 = vmatprep.subr.mxu0 0.0
        %1978 = vmatpush1.msra.mxu0 0.0
        %1979 = vmatprep.subr.mxu0 0.0
        %1980 = vmatpush1.msra.mxu0 0.0
        %1981 = vmatprep.subr.mxu0 0.0
        %1982 = vmatpush1.msra.mxu0 0.0
        %1983 = vmatprep.subr.mxu0 0.0
        %1984 = vmatpush1.msra.mxu0 0.0
        %1985 = vmatprep.subr.mxu0 0.0
        %1986 = vmatpush1.msra.mxu0 0.0
        %1987 = vmatprep.subr.mxu0 0.0
        %1988 = vmatpush1.msra.mxu0 0.0
        %1989 = vmatprep.subr.mxu0 0.0
        %1990 = vmatpush1.msra.mxu0 0.0
        %1991 = vmatprep.subr.mxu0 0.0
        %1992 = vmatpush1.msra.mxu0 0.0
        %1993 = vmatprep.subr.mxu0 0.0
        %1994 = vmatpush1.msra.mxu0 0.0
        %1995 = vmatprep.subr.mxu0 0.0
        %1996 = vmatpush1.msra.mxu0 0.0
        %1997 = vmatprep.mubr.f32.mxu0 0.0
        %1998 = vmatmul.mubr.f32.gmra.mrb[0].mxu0 %v1848
        %v1999 = vpop.f32.mrb[0].mxu0
        %v2000 = vadd.f32 %v1931, %v1999
        %v2001 = vpop.f32.mrb[0].mxu0
        %2002 = vdwg.mxu0
        %s2003 = scalar_lea.vmem %s6, 64
        %v2004 = vld [vmem:[%s2003] sm:$0xff]
        %v2005 = vld [vmem:[%s2003 + $0x8] sm:$0xff]
        %v2006 = vld [vmem:[%s2003 + $0x10] sm:$0xff]
        %v2007 = vld [vmem:[%s2003 + $0x18] sm:$0xff]
        %s2008 = scalar_lea.vmem %s8, 8
        %v2009 = vld [vmem:[%s2008] sm:$0x1]
        %v2011 = vlaneseq
        %v2012 = vshrl.u32 %v2011, 7
        %v2013 = vsub.s32 0, %v2012
        %v2014 = vrot.slane %v2009, %v2013
        %2016 = vmatprep.subr.mxu0 0.0
        %2017 = vmatpush1.msra.mxu0 %v2004
        %2018 = vmatprep.subr.mxu0 0.0
        %2019 = vmatpush1.msra.mxu0 %v2005
        %2020 = vmatprep.subr.mxu0 0.0
        %2021 = vmatpush1.msra.mxu0 %v2006
        %2022 = vmatprep.subr.mxu0 0.0
        %2023 = vmatpush1.msra.mxu0 %v2007
        %2024 = vmatprep.subr.mxu0 0.0
        %2025 = vmatpush1.msra.mxu0 0.0
        %2026 = vmatprep.subr.mxu0 0.0
        %2027 = vmatpush1.msra.mxu0 0.0
        %2028 = vmatprep.subr.mxu0 0.0
        %2029 = vmatpush1.msra.mxu0 0.0
        %2030 = vmatprep.subr.mxu0 0.0
        %2031 = vmatpush1.msra.mxu0 0.0
        %2032 = vmatprep.subr.mxu0 0.0
        %2033 = vmatpush1.msra.mxu0 0.0
        %2034 = vmatprep.subr.mxu0 0.0
        %2035 = vmatpush1.msra.mxu0 0.0
        %2036 = vmatprep.subr.mxu0 0.0
        %2037 = vmatpush1.msra.mxu0 0.0
        %2038 = vmatprep.subr.mxu0 0.0
        %2039 = vmatpush1.msra.mxu0 0.0
        %2040 = vmatprep.subr.mxu0 0.0
        %2041 = vmatpush1.msra.mxu0 0.0
        %2042 = vmatprep.subr.mxu0 0.0
        %2043 = vmatpush1.msra.mxu0 0.0
        %2044 = vmatprep.subr.mxu0 0.0
        %2045 = vmatpush1.msra.mxu0 0.0
        %2046 = vmatprep.subr.mxu0 0.0
        %2047 = vmatpush1.msra.mxu0 0.0
        %2048 = vmatprep.subr.mxu0 0.0
        %2049 = vmatpush1.msra.mxu0 0.0
        %2050 = vmatprep.subr.mxu0 0.0
        %2051 = vmatpush1.msra.mxu0 0.0
        %2052 = vmatprep.subr.mxu0 0.0
        %2053 = vmatpush1.msra.mxu0 0.0
        %2054 = vmatprep.subr.mxu0 0.0
        %2055 = vmatpush1.msra.mxu0 0.0
        %2056 = vmatprep.subr.mxu0 0.0
        %2057 = vmatpush1.msra.mxu0 0.0
        %2058 = vmatprep.subr.mxu0 0.0
        %2059 = vmatpush1.msra.mxu0 0.0
        %2060 = vmatprep.subr.mxu0 0.0
        %2061 = vmatpush1.msra.mxu0 0.0
        %2062 = vmatprep.subr.mxu0 0.0
        %2063 = vmatpush1.msra.mxu0 0.0
        %2064 = vmatprep.subr.mxu0 0.0
        %2065 = vmatpush1.msra.mxu0 0.0
        %2066 = vmatprep.subr.mxu0 0.0
        %2067 = vmatpush1.msra.mxu0 0.0
        %2068 = vmatprep.subr.mxu0 0.0
        %2069 = vmatpush1.msra.mxu0 0.0
        %2070 = vmatprep.subr.mxu0 0.0
        %2071 = vmatpush1.msra.mxu0 0.0
        %2072 = vmatprep.subr.mxu0 0.0
        %2073 = vmatpush1.msra.mxu0 0.0
        %2074 = vmatprep.subr.mxu0 0.0
        %2075 = vmatpush1.msra.mxu0 0.0
        %2076 = vmatprep.subr.mxu0 0.0
        %2077 = vmatpush1.msra.mxu0 0.0
        %2078 = vmatprep.subr.mxu0 0.0
        %2079 = vmatpush1.msra.mxu0 0.0
        %2080 = vmatprep.mubr.f32.mxu0 0.0
        %2081 = vmatmul.mubr.f32.gmra.mrb[0].mxu0 %v1848
        %v2082 = vpop.f32.mrb[0].mxu0
        %v2083 = vadd.f32 %v2014, %v2082
        %v2084 = vpop.f32.mrb[0].mxu0
        %2085 = vdwg.mxu0
        %v2087 = vsel %vm860, %v1917, 0
        %v2090 = vsel %vm860, %v2000, 0
        %2092 = vmatprep.subr.mxu0 0.0
        %2093 = vmatpush1.xpose.msra.mxu0 %v2090
        %2094 = vmatprep.subr.mxu0 0.0
        %2095 = vmatpush1.xpose.msra.mxu0 0.0
        %2096 = vmatprep.subr.mxu0 0.0
        %2097 = vmatpush1.xpose.msra.mxu0 0.0
        %2098 = vmatprep.subr.mxu0 0.0
        %2099 = vmatpush1.xpose.msra.mxu0 0.0
        %2100 = vmatprep.subr.mxu0 0.0
        %2101 = vmatpush1.xpose.msra.mxu0 0.0
        %2102 = vmatprep.subr.mxu0 0.0
        %2103 = vmatpush1.xpose.msra.mxu0 0.0
        %2104 = vmatprep.subr.mxu0 0.0
        %2105 = vmatpush1.xpose.msra.mxu0 0.0
        %2106 = vmatprep.subr.mxu0 0.0
        %2107 = vmatpush1.xpose.msra.mxu0 0.0
        %2108 = vmatprep.subr.mxu0 0.0
        %2109 = vmatpush1.xpose.msra.mxu0 0.0
        %2110 = vmatprep.subr.mxu0 0.0
        %2111 = vmatpush1.xpose.msra.mxu0 0.0
        %2112 = vmatprep.subr.mxu0 0.0
        %2113 = vmatpush1.xpose.msra.mxu0 0.0
        %2114 = vmatprep.subr.mxu0 0.0
        %2115 = vmatpush1.xpose.msra.mxu0 0.0
        %2116 = vmatprep.subr.mxu0 0.0
        %2117 = vmatpush1.xpose.msra.mxu0 0.0
        %2118 = vmatprep.subr.mxu0 0.0
        %2119 = vmatpush1.xpose.msra.mxu0 0.0
        %2120 = vmatprep.subr.mxu0 0.0
        %2121 = vmatpush1.xpose.msra.mxu0 0.0
        %2122 = vmatprep.subr.mxu0 0.0
        %2123 = vmatpush1.xpose.msra.mxu0 0.0
        %2124 = vmatprep.subr.mxu0 0.0
        %2125 = vmatpush1.xpose.msra.mxu0 0.0
        %2126 = vmatprep.subr.mxu0 0.0
        %2127 = vmatpush1.xpose.msra.mxu0 0.0
        %2128 = vmatprep.subr.mxu0 0.0
        %2129 = vmatpush1.xpose.msra.mxu0 0.0
        %2130 = vmatprep.subr.mxu0 0.0
        %2131 = vmatpush1.xpose.msra.mxu0 0.0
        %2132 = vmatprep.subr.mxu0 0.0
        %2133 = vmatpush1.xpose.msra.mxu0 0.0
        %2134 = vmatprep.subr.mxu0 0.0
        %2135 = vmatpush1.xpose.msra.mxu0 0.0
        %2136 = vmatprep.subr.mxu0 0.0
        %2137 = vmatpush1.xpose.msra.mxu0 0.0
        %2138 = vmatprep.subr.mxu0 0.0
        %2139 = vmatpush1.xpose.msra.mxu0 0.0
        %2140 = vmatprep.subr.mxu0 0.0
        %2141 = vmatpush1.xpose.msra.mxu0 0.0
        %2142 = vmatprep.subr.mxu0 0.0
        %2143 = vmatpush1.xpose.msra.mxu0 0.0
        %2144 = vmatprep.subr.mxu0 0.0
        %2145 = vmatpush1.xpose.msra.mxu0 0.0
        %2146 = vmatprep.subr.mxu0 0.0
        %2147 = vmatpush1.xpose.msra.mxu0 0.0
        %2148 = vmatprep.subr.mxu0 0.0
        %2149 = vmatpush1.xpose.msra.mxu0 0.0
        %2150 = vmatprep.subr.mxu0 0.0
        %2151 = vmatpush1.xpose.msra.mxu0 0.0
        %2152 = vmatprep.subr.mxu0 0.0
        %2153 = vmatpush1.xpose.msra.mxu0 0.0
        %2154 = vmatprep.subr.mxu0 0.0
        %2155 = vmatpush1.xpose.msra.mxu0 0.0
        %2156 = vmatprep.mubr.f32.mxu0 0.0
        %2157 = vmatmul.mubr.f32.gmra.mrb[0].mxu0 %v2087
        %v2158 = vpop.f32.mrb[0].mxu0
        %v2159 = vadd.f32 0.0, %v2158
        %v2160 = vpop.f32.mrb[0].mxu0
        %2161 = vdwg.mxu0
        %v2162 = vmul.f32 %v2159, 0.25
        %v2163 = vadd.f32 %v2162, %v610
        %v2164 = vsel %vm939, %v2163, -inf
        %2165 = vmax.xlane.f32.xlu0 %v2164
        %v2166 = vpop.xlane.xlu0 %2165
        %v2167 = vsub.f32 %v2163, %v2166
        %v2168 = vmul.f32 %v2167, 1.442695
        %v2169 = vpow.pop %v2168
        %v2170 = vsel %vm939, %v2169, 0.0
        %2171 = vadd.xlane.f32.xlu0 %v2170
        %v2172 = vpop.xlane.xlu0 %2171
        %v2173 = vrcp.pop %v2172
        %v2174 = vmul.f32 %v2169, %v2173
        %v2176 = vsel %vm939, %v2174, 0
        %2178 = vmatprep.subr.mxu0 0.0
        %2179 = vmatpush1.msra.mxu0 %v2083
        %2180 = vmatprep.subr.mxu0 0.0
        %2181 = vmatpush1.msra.mxu0 0.0
        %2182 = vmatprep.subr.mxu0 0.0
        %2183 = vmatpush1.msra.mxu0 0.0
        %2184 = vmatprep.subr.mxu0 0.0
        %2185 = vmatpush1.msra.mxu0 0.0
        %2186 = vmatprep.subr.mxu0 0.0
        %2187 = vmatpush1.msra.mxu0 0.0
        %2188 = vmatprep.subr.mxu0 0.0
        %2189 = vmatpush1.msra.mxu0 0.0
        %2190 = vmatprep.subr.mxu0 0.0
        %2191 = vmatpush1.msra.mxu0 0.0
        %2192 = vmatprep.subr.mxu0 0.0
        %2193 = vmatpush1.msra.mxu0 0.0
        %2194 = vmatprep.subr.mxu0 0.0
        %2195 = vmatpush1.msra.mxu0 0.0
        %2196 = vmatprep.subr.mxu0 0.0
        %2197 = vmatpush1.msra.mxu0 0.0
        %2198 = vmatprep.subr.mxu0 0.0
        %2199 = vmatpush1.msra.mxu0 0.0
        %2200 = vmatprep.subr.mxu0 0.0
        %2201 = vmatpush1.msra.mxu0 0.0
        %2202 = vmatprep.subr.mxu0 0.0
        %2203 = vmatpush1.msra.mxu0 0.0
        %2204 = vmatprep.subr.mxu0 0.0
        %2205 = vmatpush1.msra.mxu0 0.0
        %2206 = vmatprep.subr.mxu0 0.0
        %2207 = vmatpush1.msra.mxu0 0.0
        %2208 = vmatprep.subr.mxu0 0.0
        %2209 = vmatpush1.msra.mxu0 0.0
        %2210 = vmatprep.subr.mxu0 0.0
        %2211 = vmatpush1.msra.mxu0 0.0
        %2212 = vmatprep.subr.mxu0 0.0
        %2213 = vmatpush1.msra.mxu0 0.0
        %2214 = vmatprep.subr.mxu0 0.0
        %2215 = vmatpush1.msra.mxu0 0.0
        %2216 = vmatprep.subr.mxu0 0.0
        %2217 = vmatpush1.msra.mxu0 0.0
        %2218 = vmatprep.subr.mxu0 0.0
        %2219 = vmatpush1.msra.mxu0 0.0
        %2220 = vmatprep.subr.mxu0 0.0
        %2221 = vmatpush1.msra.mxu0 0.0
        %2222 = vmatprep.subr.mxu0 0.0
        %2223 = vmatpush1.msra.mxu0 0.0
        %2224 = vmatprep.subr.mxu0 0.0
        %2225 = vmatpush1.msra.mxu0 0.0
        %2226 = vmatprep.subr.mxu0 0.0
        %2227 = vmatpush1.msra.mxu0 0.0
        %2228 = vmatprep.subr.mxu0 0.0
        %2229 = vmatpush1.msra.mxu0 0.0
        %2230 = vmatprep.subr.mxu0 0.0
        %2231 = vmatpush1.msra.mxu0 0.0
        %2232 = vmatprep.subr.mxu0 0.0
        %2233 = vmatpush1.msra.mxu0 0.0
        %2234 = vmatprep.subr.mxu0 0.0
        %2235 = vmatpush1.msra.mxu0 0.0
        %2236 = vmatprep.subr.mxu0 0.0
        %2237 = vmatpush1.msra.mxu0 0.0
        %2238 = vmatprep.subr.mxu0 0.0
        %2239 = vmatpush1.msra.mxu0 0.0
        %2240 = vmatprep.subr.mxu0 0.0
        %2241 = vmatpush1.msra.mxu0 0.0
        %2242 = vmatprep.mubr.f32.mxu0 0.0
        %2243 = vmatmul.mubr.f32.gmra.mrb[0].mxu0 %v2176
        %v2244 = vpop.f32.mrb[0].mxu0
        %v2245 = vadd.f32 0.0, %v2244
        %v2246 = vpop.f32.mrb[0].mxu0
        %2247 = vdwg.mxu0
        %s2248 = scalar_lea.vmem %s7, 32
        %v2249 = vld [vmem:[%s2248] sm:$0xff]
        %v2250 = vld [vmem:[%s2248 + $0x8] sm:$0xff]
        %s2251 = scalar_lea.vmem %s4, 96
        %v2252 = vld [vmem:[%s2251] sm:$0xff]
        %v2253 = vld [vmem:[%s2251 + $0x8] sm:$0xff]
        %v2254 = vld [vmem:[%s2251 + $0x10] sm:$0xff]
        %v2255 = vld [vmem:[%s2251 + $0x18] sm:$0xff]
        %s2256 = scalar_lea.vmem %s8, 9
        %v2257 = vld [vmem:[%s2256] sm:$0x1]
        %v2259 = vlaneseq
        %v2260 = vshrl.u32 %v2259, 7
        %v2261 = vsub.s32 0, %v2260
        %v2262 = vrot.slane %v2257, %v2261
        %2264 = vmatprep.subr.mxu0 0.0
        %2265 = vmatpush1.msra.mxu0 %v2252
        %2266 = vmatprep.subr.mxu0 0.0
        %2267 = vmatpush1.msra.mxu0 %v2253
        %2268 = vmatprep.subr.mxu0 0.0
        %2269 = vmatpush1.msra.mxu0 %v2254
        %2270 = vmatprep.subr.mxu0 0.0
        %2271 = vmatpush1.msra.mxu0 %v2255
        %2272 = vmatprep.subr.mxu0 0.0
        %2273 = vmatpush1.msra.mxu0 0.0
        %2274 = vmatprep.subr.mxu0 0.0
        %2275 = vmatpush1.msra.mxu0 0.0
        %2276 = vmatprep.subr.mxu0 0.0
        %2277 = vmatpush1.msra.mxu0 0.0
        %2278 = vmatprep.subr.mxu0 0.0
        %2279 = vmatpush1.msra.mxu0 0.0
        %2280 = vmatprep.subr.mxu0 0.0
        %2281 = vmatpush1.msra.mxu0 0.0
        %2282 = vmatprep.subr.mxu0 0.0
        %2283 = vmatpush1.msra.mxu0 0.0
        %2284 = vmatprep.subr.mxu0 0.0
        %2285 = vmatpush1.msra.mxu0 0.0
        %2286 = vmatprep.subr.mxu0 0.0
        %2287 = vmatpush1.msra.mxu0 0.0
        %2288 = vmatprep.subr.mxu0 0.0
        %2289 = vmatpush1.msra.mxu0 0.0
        %2290 = vmatprep.subr.mxu0 0.0
        %2291 = vmatpush1.msra.mxu0 0.0
        %2292 = vmatprep.subr.mxu0 0.0
        %2293 = vmatpush1.msra.mxu0 0.0
        %2294 = vmatprep.subr.mxu0 0.0
        %2295 = vmatpush1.msra.mxu0 0.0
        %2296 = vmatprep.subr.mxu0 0.0
        %2297 = vmatpush1.msra.mxu0 0.0
        %2298 = vmatprep.subr.mxu0 0.0
        %2299 = vmatpush1.msra.mxu0 0.0
        %2300 = vmatprep.subr.mxu0 0.0
        %2301 = vmatpush1.msra.mxu0 0.0
        %2302 = vmatprep.subr.mxu0 0.0
        %2303 = vmatpush1.msra.mxu0 0.0
        %2304 = vmatprep.subr.mxu0 0.0
        %2305 = vmatpush1.msra.mxu0 0.0
        %2306 = vmatprep.subr.mxu0 0.0
        %2307 = vmatpush1.msra.mxu0 0.0
        %2308 = vmatprep.subr.mxu0 0.0
        %2309 = vmatpush1.msra.mxu0 0.0
        %2310 = vmatprep.subr.mxu0 0.0
        %2311 = vmatpush1.msra.mxu0 0.0
        %2312 = vmatprep.subr.mxu0 0.0
        %2313 = vmatpush1.msra.mxu0 0.0
        %2314 = vmatprep.subr.mxu0 0.0
        %2315 = vmatpush1.msra.mxu0 0.0
        %2316 = vmatprep.subr.mxu0 0.0
        %2317 = vmatpush1.msra.mxu0 0.0
        %2318 = vmatprep.subr.mxu0 0.0
        %2319 = vmatpush1.msra.mxu0 0.0
        %2320 = vmatprep.subr.mxu0 0.0
        %2321 = vmatpush1.msra.mxu0 0.0
        %2322 = vmatprep.subr.mxu0 0.0
        %2323 = vmatpush1.msra.mxu0 0.0
        %2324 = vmatprep.subr.mxu0 0.0
        %2325 = vmatpush1.msra.mxu0 0.0
        %2326 = vmatprep.subr.mxu0 0.0
        %2327 = vmatpush1.msra.mxu0 0.0
        %2328 = vmatprep.mubr.f32.mxu0 0.0
        %2329 = vmatmul.mubr.f32.gmra.mrb[0].mxu0 %v1848
        %v2330 = vpop.f32.mrb[0].mxu0
        %v2331 = vadd.f32 %v2262, %v2330
        %v2332 = vpop.f32.mrb[0].mxu0
        %2333 = vdwg.mxu0
        %s2334 = scalar_lea.vmem %s5, 96
        %v2335 = vld [vmem:[%s2334] sm:$0xff]
        %v2336 = vld [vmem:[%s2334 + $0x8] sm:$0xff]
        %v2337 = vld [vmem:[%s2334 + $0x10] sm:$0xff]
        %v2338 = vld [vmem:[%s2334 + $0x18] sm:$0xff]
        %s2339 = scalar_lea.vmem %s8, 10
        %v2340 = vld [vmem:[%s2339] sm:$0x1]
        %v2342 = vlaneseq
        %v2343 = vshrl.u32 %v2342, 7
        %v2344 = vsub.s32 0, %v2343
        %v2345 = vrot.slane %v2340, %v2344
        %2347 = vmatprep.subr.mxu0 0.0
        %2348 = vmatpush1.msra.mxu0 %v2335
        %2349 = vmatprep.subr.mxu0 0.0
        %2350 = vmatpush1.msra.mxu0 %v2336
        %2351 = vmatprep.subr.mxu0 0.0
        %2352 = vmatpush1.msra.mxu0 %v2337
        %2353 = vmatprep.subr.mxu0 0.0
        %2354 = vmatpush1.msra.mxu0 %v2338
        %2355 = vmatprep.subr.mxu0 0.0
        %2356 = vmatpush1.msra.mxu0 0.0
        %2357 = vmatprep.subr.mxu0 0.0
        %2358 = vmatpush1.msra.mxu0 0.0
        %2359 = vmatprep.subr.mxu0 0.0
        %2360 = vmatpush1.msra.mxu0 0.0
        %2361 = vmatprep.subr.mxu0 0.0
        %2362 = vmatpush1.msra.mxu0 0.0
        %2363 = vmatprep.subr.mxu0 0.0
        %2364 = vmatpush1.msra.mxu0 0.0
        %2365 = vmatprep.subr.mxu0 0.0
        %2366 = vmatpush1.msra.mxu0 0.0
        %2367 = vmatprep.subr.mxu0 0.0
        %2368 = vmatpush1.msra.mxu0 0.0
        %2369 = vmatprep.subr.mxu0 0.0
        %2370 = vmatpush1.msra.mxu0 0.0
        %2371 = vmatprep.subr.mxu0 0.0
        %2372 = vmatpush1.msra.mxu0 0.0
        %2373 = vmatprep.subr.mxu0 0.0
        %2374 = vmatpush1.msra.mxu0 0.0
        %2375 = vmatprep.subr.mxu0 0.0
        %2376 = vmatpush1.msra.mxu0 0.0
        %2377 = vmatprep.subr.mxu0 0.0
        %2378 = vmatpush1.msra.mxu0 0.0
        %2379 = vmatprep.subr.mxu0 0.0
        %2380 = vmatpush1.msra.mxu0 0.0
        %2381 = vmatprep.subr.mxu0 0.0
        %2382 = vmatpush1.msra.mxu0 0.0
        %2383 = vmatprep.subr.mxu0 0.0
        %2384 = vmatpush1.msra.mxu0 0.0
        %2385 = vmatprep.subr.mxu0 0.0
        %2386 = vmatpush1.msra.mxu0 0.0
        %2387 = vmatprep.subr.mxu0 0.0
        %2388 = vmatpush1.msra.mxu0 0.0
        %2389 = vmatprep.subr.mxu0 0.0
        %2390 = vmatpush1.msra.mxu0 0.0
        %2391 = vmatprep.subr.mxu0 0.0
        %2392 = vmatpush1.msra.mxu0 0.0
        %2393 = vmatprep.subr.mxu0 0.0
        %2394 = vmatpush1.msra.mxu0 0.0
        %2395 = vmatprep.subr.mxu0 0.0
        %2396 = vmatpush1.msra.mxu0 0.0
        %2397 = vmatprep.subr.mxu0 0.0
        %2398 = vmatpush1.msra.mxu0 0.0
        %2399 = vmatprep.subr.mxu0 0.0
        %2400 = vmatpush1.msra.mxu0 0.0
        %2401 = vmatprep.subr.mxu0 0.0
        %2402 = vmatpush1.msra.mxu0 0.0
        %2403 = vmatprep.subr.mxu0 0.0
        %2404 = vmatpush1.msra.mxu0 0.0
        %2405 = vmatprep.subr.mxu0 0.0
        %2406 = vmatpush1.msra.mxu0 0.0
        %2407 = vmatprep.subr.mxu0 0.0
        %2408 = vmatpush1.msra.mxu0 0.0
        %2409 = vmatprep.subr.mxu0 0.0
        %2410 = vmatpush1.msra.mxu0 0.0
        %2411 = vmatprep.mubr.f32.mxu0 0.0
        %2412 = vmatmul.mubr.f32.gmra.mrb[0].mxu0 %v1848
        %v2413 = vpop.f32.mrb[0].mxu0
        %v2414 = vadd.f32 %v2345, %v2413
        %v2415 = vpop.f32.mrb[0].mxu0
        %2416 = vdwg.mxu0
        %s2417 = scalar_lea.vmem %s6, 96
        %v2418 = vld [vmem:[%s2417] sm:$0xff]
        %v2419 = vld [vmem:[%s2417 + $0x8] sm:$0xff]
        %v2420 = vld [vmem:[%s2417 + $0x10] sm:$0xff]
        %v2421 = vld [vmem:[%s2417 + $0x18] sm:$0xff]
        %s2422 = scalar_lea.vmem %s8, 11
        %v2423 = vld [vmem:[%s2422] sm:$0x1]
        %v2425 = vlaneseq
        %v2426 = vshrl.u32 %v2425, 7
        %v2427 = vsub.s32 0, %v2426
        %v2428 = vrot.slane %v2423, %v2427
        %2430 = vmatprep.subr.mxu0 0.0
        %2431 = vmatpush1.msra.mxu0 %v2418
        %2432 = vmatprep.subr.mxu0 0.0
        %2433 = vmatpush1.msra.mxu0 %v2419
        %2434 = vmatprep.subr.mxu0 0.0
        %2435 = vmatpush1.msra.mxu0 %v2420
        %2436 = vmatprep.subr.mxu0 0.0
        %2437 = vmatpush1.msra.mxu0 %v2421
        %2438 = vmatprep.subr.mxu0 0.0
        %2439 = vmatpush1.msra.mxu0 0.0
        %2440 = vmatprep.subr.mxu0 0.0
        %2441 = vmatpush1.msra.mxu0 0.0
        %2442 = vmatprep.subr.mxu0 0.0
        %2443 = vmatpush1.msra.mxu0 0.0
        %2444 = vmatprep.subr.mxu0 0.0
        %2445 = vmatpush1.msra.mxu0 0.0
        %2446 = vmatprep.subr.mxu0 0.0
        %2447 = vmatpush1.msra.mxu0 0.0
        %2448 = vmatprep.subr.mxu0 0.0
        %2449 = vmatpush1.msra.mxu0 0.0
        %2450 = vmatprep.subr.mxu0 0.0
        %2451 = vmatpush1.msra.mxu0 0.0
        %2452 = vmatprep.subr.mxu0 0.0
        %2453 = vmatpush1.msra.mxu0 0.0
        %2454 = vmatprep.subr.mxu0 0.0
        %2455 = vmatpush1.msra.mxu0 0.0
        %2456 = vmatprep.subr.mxu0 0.0
        %2457 = vmatpush1.msra.mxu0 0.0
        %2458 = vmatprep.subr.mxu0 0.0
        %2459 = vmatpush1.msra.mxu0 0.0
        %2460 = vmatprep.subr.mxu0 0.0
        %2461 = vmatpush1.msra.mxu0 0.0
        %2462 = vmatprep.subr.mxu0 0.0
        %2463 = vmatpush1.msra.mxu0 0.0
        %2464 = vmatprep.subr.mxu0 0.0
        %2465 = vmatpush1.msra.mxu0 0.0
        %2466 = vmatprep.subr.mxu0 0.0
        %2467 = vmatpush1.msra.mxu0 0.0
        %2468 = vmatprep.subr.mxu0 0.0
        %2469 = vmatpush1.msra.mxu0 0.0
        %2470 = vmatprep.subr.mxu0 0.0
        %2471 = vmatpush1.msra.mxu0 0.0
        %2472 = vmatprep.subr.mxu0 0.0
        %2473 = vmatpush1.msra.mxu0 0.0
        %2474 = vmatprep.subr.mxu0 0.0
        %2475 = vmatpush1.msra.mxu0 0.0
        %2476 = vmatprep.subr.mxu0 0.0
        %2477 = vmatpush1.msra.mxu0 0.0
        %2478 = vmatprep.subr.mxu0 0.0
        %2479 = vmatpush1.msra.mxu0 0.0
        %2480 = vmatprep.subr.mxu0 0.0
        %2481 = vmatpush1.msra.mxu0 0.0
        %2482 = vmatprep.subr.mxu0 0.0
        %2483 = vmatpush1.msra.mxu0 0.0
        %2484 = vmatprep.subr.mxu0 0.0
        %2485 = vmatpush1.msra.mxu0 0.0
        %2486 = vmatprep.subr.mxu0 0.0
        %2487 = vmatpush1.msra.mxu0 0.0
        %2488 = vmatprep.subr.mxu0 0.0
        %2489 = vmatpush1.msra.mxu0 0.0
        %2490 = vmatprep.subr.mxu0 0.0
        %2491 = vmatpush1.msra.mxu0 0.0
        %2492 = vmatprep.subr.mxu0 0.0
        %2493 = vmatpush1.msra.mxu0 0.0
        %2494 = vmatprep.mubr.f32.mxu0 0.0
        %2495 = vmatmul.mubr.f32.gmra.mrb[0].mxu0 %v1848
        %v2496 = vpop.f32.mrb[0].mxu0
        %v2497 = vadd.f32 %v2428, %v2496
        %v2498 = vpop.f32.mrb[0].mxu0
        %2499 = vdwg.mxu0
        %v2501 = vsel %vm860, %v2331, 0
        %v2504 = vsel %vm860, %v2414, 0
        %2506 = vmatprep.subr.mxu0 0.0
        %2507 = vmatpush1.xpose.msra.mxu0 %v2504
        %2508 = vmatprep.subr.mxu0 0.0
        %2509 = vmatpush1.xpose.msra.mxu0 0.0
        %2510 = vmatprep.subr.mxu0 0.0
        %2511 = vmatpush1.xpose.msra.mxu0 0.0
        %2512 = vmatprep.subr.mxu0 0.0
        %2513 = vmatpush1.xpose.msra.mxu0 0.0
        %2514 = vmatprep.subr.mxu0 0.0
        %2515 = vmatpush1.xpose.msra.mxu0 0.0
        %2516 = vmatprep.subr.mxu0 0.0
        %2517 = vmatpush1.xpose.msra.mxu0 0.0
        %2518 = vmatprep.subr.mxu0 0.0
        %2519 = vmatpush1.xpose.msra.mxu0 0.0
        %2520 = vmatprep.subr.mxu0 0.0
        %2521 = vmatpush1.xpose.msra.mxu0 0.0
        %2522 = vmatprep.subr.mxu0 0.0
        %2523 = vmatpush1.xpose.msra.mxu0 0.0
        %2524 = vmatprep.subr.mxu0 0.0
        %2525 = vmatpush1.xpose.msra.mxu0 0.0
        %2526 = vmatprep.subr.mxu0 0.0
        %2527 = vmatpush1.xpose.msra.mxu0 0.0
        %2528 = vmatprep.subr.mxu0 0.0
        %2529 = vmatpush1.xpose.msra.mxu0 0.0
        %2530 = vmatprep.subr.mxu0 0.0
        %2531 = vmatpush1.xpose.msra.mxu0 0.0
        %2532 = vmatprep.subr.mxu0 0.0
        %2533 = vmatpush1.xpose.msra.mxu0 0.0
        %2534 = vmatprep.subr.mxu0 0.0
        %2535 = vmatpush1.xpose.msra.mxu0 0.0
        %2536 = vmatprep.subr.mxu0 0.0
        %2537 = vmatpush1.xpose.msra.mxu0 0.0
        %2538 = vmatprep.subr.mxu0 0.0
        %2539 = vmatpush1.xpose.msra.mxu0 0.0
        %2540 = vmatprep.subr.mxu0 0.0
        %2541 = vmatpush1.xpose.msra.mxu0 0.0
        %2542 = vmatprep.subr.mxu0 0.0
        %2543 = vmatpush1.xpose.msra.mxu0 0.0
        %2544 = vmatprep.subr.mxu0 0.0
        %2545 = vmatpush1.xpose.msra.mxu0 0.0
        %2546 = vmatprep.subr.mxu0 0.0
        %2547 = vmatpush1.xpose.msra.mxu0 0.0
        %2548 = vmatprep.subr.mxu0 0.0
        %2549 = vmatpush1.xpose.msra.mxu0 0.0
        %2550 = vmatprep.subr.mxu0 0.0
        %2551 = vmatpush1.xpose.msra.mxu0 0.0
        %2552 = vmatprep.subr.mxu0 0.0
        %2553 = vmatpush1.xpose.msra.mxu0 0.0
        %2554 = vmatprep.subr.mxu0 0.0
        %2555 = vmatpush1.xpose.msra.mxu0 0.0
        %2556 = vmatprep.subr.mxu0 0.0
        %2557 = vmatpush1.xpose.msra.mxu0 0.0
        %2558 = vmatprep.subr.mxu0 0.0
        %2559 = vmatpush1.xpose.msra.mxu0 0.0
        %2560 = vmatprep.subr.mxu0 0.0
        %2561 = vmatpush1.xpose.msra.mxu0 0.0
        %2562 = vmatprep.subr.mxu0 0.0
        %2563 = vmatpush1.xpose.msra.mxu0 0.0
        %2564 = vmatprep.subr.mxu0 0.0
        %2565 = vmatpush1.xpose.msra.mxu0 0.0
        %2566 = vmatprep.subr.mxu0 0.0
        %2567 = vmatpush1.xpose.msra.mxu0 0.0
        %2568 = vmatprep.subr.mxu0 0.0
        %2569 = vmatpush1.xpose.msra.mxu0 0.0
        %2570 = vmatprep.mubr.f32.mxu0 0.0
        %2571 = vmatmul.mubr.f32.gmra.mrb[0].mxu0 %v2501
        %v2572 = vpop.f32.mrb[0].mxu0
        %v2573 = vadd.f32 0.0, %v2572
        %v2574 = vpop.f32.mrb[0].mxu0
        %2575 = vdwg.mxu0
        %v2576 = vmul.f32 %v2573, 0.25
        %v2577 = vadd.f32 %v2576, %v610
        %v2578 = vsel %vm939, %v2577, -inf
        %2579 = vmax.xlane.f32.xlu0 %v2578
        %v2580 = vpop.xlane.xlu0 %2579
        %v2581 = vsub.f32 %v2577, %v2580
        %v2582 = vmul.f32 %v2581, 1.442695
        %v2583 = vpow.pop %v2582
        %v2584 = vsel %vm939, %v2583, 0.0
        %2585 = vadd.xlane.f32.xlu0 %v2584
        %v2586 = vpop.xlane.xlu0 %2585
        %v2587 = vrcp.pop %v2586
        %v2588 = vmul.f32 %v2583, %v2587
        %v2590 = vsel %vm939, %v2588, 0
        %2592 = vmatprep.subr.mxu0 0.0
        %2593 = vmatpush1.msra.mxu0 %v2497
        %2594 = vmatprep.subr.mxu0 0.0
        %2595 = vmatpush1.msra.mxu0 0.0
        %2596 = vmatprep.subr.mxu0 0.0
        %2597 = vmatpush1.msra.mxu0 0.0
        %2598 = vmatprep.subr.mxu0 0.0
        %2599 = vmatpush1.msra.mxu0 0.0
        %2600 = vmatprep.subr.mxu0 0.0
        %2601 = vmatpush1.msra.mxu0 0.0
        %2602 = vmatprep.subr.mxu0 0.0
        %2603 = vmatpush1.msra.mxu0 0.0
        %2604 = vmatprep.subr.mxu0 0.0
        %2605 = vmatpush1.msra.mxu0 0.0
        %2606 = vmatprep.subr.mxu0 0.0
        %2607 = vmatpush1.msra.mxu0 0.0
        %2608 = vmatprep.subr.mxu0 0.0
        %2609 = vmatpush1.msra.mxu0 0.0
        %2610 = vmatprep.subr.mxu0 0.0
        %2611 = vmatpush1.msra.mxu0 0.0
        %2612 = vmatprep.subr.mxu0 0.0
        %2613 = vmatpush1.msra.mxu0 0.0
        %2614 = vmatprep.subr.mxu0 0.0
        %2615 = vmatpush1.msra.mxu0 0.0
        %2616 = vmatprep.subr.mxu0 0.0
        %2617 = vmatpush1.msra.mxu0 0.0
        %2618 = vmatprep.subr.mxu0 0.0
        %2619 = vmatpush1.msra.mxu0 0.0
        %2620 = vmatprep.subr.mxu0 0.0
        %2621 = vmatpush1.msra.mxu0 0.0
        %2622 = vmatprep.subr.mxu0 0.0
        %2623 = vmatpush1.msra.mxu0 0.0
        %2624 = vmatprep.subr.mxu0 0.0
        %2625 = vmatpush1.msra.mxu0 0.0
        %2626 = vmatprep.subr.mxu0 0.0
        %2627 = vmatpush1.msra.mxu0 0.0
        %2628 = vmatprep.subr.mxu0 0.0
        %2629 = vmatpush1.msra.mxu0 0.0
        %2630 = vmatprep.subr.mxu0 0.0
        %2631 = vmatpush1.msra.mxu0 0.0
        %2632 = vmatprep.subr.mxu0 0.0
        %2633 = vmatpush1.msra.mxu0 0.0
        %2634 = vmatprep.subr.mxu0 0.0
        %2635 = vmatpush1.msra.mxu0 0.0
        %2636 = vmatprep.subr.mxu0 0.0
        %2637 = vmatpush1.msra.mxu0 0.0
        %2638 = vmatprep.subr.mxu0 0.0
        %2639 = vmatpush1.msra.mxu0 0.0
        %2640 = vmatprep.subr.mxu0 0.0
        %2641 = vmatpush1.msra.mxu0 0.0
        %2642 = vmatprep.subr.mxu0 0.0
        %2643 = vmatpush1.msra.mxu0 0.0
        %2644 = vmatprep.subr.mxu0 0.0
        %2645 = vmatpush1.msra.mxu0 0.0
        %2646 = vmatprep.subr.mxu0 0.0
        %2647 = vmatpush1.msra.mxu0 0.0
        %2648 = vmatprep.subr.mxu0 0.0
        %2649 = vmatpush1.msra.mxu0 0.0
        %2650 = vmatprep.subr.mxu0 0.0
        %2651 = vmatpush1.msra.mxu0 0.0
        %2652 = vmatprep.subr.mxu0 0.0
        %2653 = vmatpush1.msra.mxu0 0.0
        %2654 = vmatprep.subr.mxu0 0.0
        %2655 = vmatpush1.msra.mxu0 0.0
        %2656 = vmatprep.mubr.f32.mxu0 0.0
        %2657 = vmatmul.mubr.f32.gmra.mrb[0].mxu0 %v2590
        %v2658 = vpop.f32.mrb[0].mxu0
        %v2659 = vadd.f32 0.0, %v2658
        %v2660 = vpop.f32.mrb[0].mxu0
        %2661 = vdwg.mxu0
        %s2662 = scalar_lea.vmem %s7, 48
        %v2663 = vld [vmem:[%s2662] sm:$0xff]
        %v2664 = vld [vmem:[%s2662 + $0x8] sm:$0xff]
        %v2666 = vsel %vm860, %v2659, 0
        %2668 = vmatprep.subr.mxu0 0.0
        %2669 = vmatpush1.msra.mxu0 %v2663
        %2670 = vmatprep.subr.mxu0 0.0
        %2671 = vmatpush1.msra.mxu0 %v2664
        %2672 = vmatprep.subr.mxu0 0.0
        %2673 = vmatpush1.msra.mxu0 0.0
        %2674 = vmatprep.subr.mxu0 0.0
        %2675 = vmatpush1.msra.mxu0 0.0
        %2676 = vmatprep.subr.mxu0 0.0
        %2677 = vmatpush1.msra.mxu0 0.0
        %2678 = vmatprep.subr.mxu0 0.0
        %2679 = vmatpush1.msra.mxu0 0.0
        %2680 = vmatprep.subr.mxu0 0.0
        %2681 = vmatpush1.msra.mxu0 0.0
        %2682 = vmatprep.subr.mxu0 0.0
        %2683 = vmatpush1.msra.mxu0 0.0
        %2684 = vmatprep.subr.mxu0 0.0
        %2685 = vmatpush1.msra.mxu0 0.0
        %2686 = vmatprep.subr.mxu0 0.0
        %2687 = vmatpush1.msra.mxu0 0.0
        %2688 = vmatprep.subr.mxu0 0.0
        %2689 = vmatpush1.msra.mxu0 0.0
        %2690 = vmatprep.subr.mxu0 0.0
        %2691 = vmatpush1.msra.mxu0 0.0
        %2692 = vmatprep.subr.mxu0 0.0
        %2693 = vmatpush1.msra.mxu0 0.0
        %2694 = vmatprep.subr.mxu0 0.0
        %2695 = vmatpush1.msra.mxu0 0.0
        %2696 = vmatprep.subr.mxu0 0.0
        %2697 = vmatpush1.msra.mxu0 0.0
        %2698 = vmatprep.subr.mxu0 0.0
        %2699 = vmatpush1.msra.mxu0 0.0
        %2700 = vmatprep.subr.mxu0 0.0
        %2701 = vmatpush1.msra.mxu0 0.0
        %2702 = vmatprep.subr.mxu0 0.0
        %2703 = vmatpush1.msra.mxu0 0.0
        %2704 = vmatprep.subr.mxu0 0.0
        %2705 = vmatpush1.msra.mxu0 0.0
        %2706 = vmatprep.subr.mxu0 0.0
        %2707 = vmatpush1.msra.mxu0 0.0
        %2708 = vmatprep.subr.mxu0 0.0
        %2709 = vmatpush1.msra.mxu0 0.0
        %2710 = vmatprep.subr.mxu0 0.0
        %2711 = vmatpush1.msra.mxu0 0.0
        %2712 = vmatprep.subr.mxu0 0.0
        %2713 = vmatpush1.msra.mxu0 0.0
        %2714 = vmatprep.subr.mxu0 0.0
        %2715 = vmatpush1.msra.mxu0 0.0
        %2716 = vmatprep.subr.mxu0 0.0
        %2717 = vmatpush1.msra.mxu0 0.0
        %2718 = vmatprep.subr.mxu0 0.0
        %2719 = vmatpush1.msra.mxu0 0.0
        %2720 = vmatprep.subr.mxu0 0.0
        %2721 = vmatpush1.msra.mxu0 0.0
        %2722 = vmatprep.subr.mxu0 0.0
        %2723 = vmatpush1.msra.mxu0 0.0
        %2724 = vmatprep.subr.mxu0 0.0
        %2725 = vmatpush1.msra.mxu0 0.0
        %2726 = vmatprep.subr.mxu0 0.0
        %2727 = vmatpush1.msra.mxu0 0.0
        %2728 = vmatprep.subr.mxu0 0.0
        %2729 = vmatpush1.msra.mxu0 0.0
        %2730 = vmatprep.subr.mxu0 0.0
        %2731 = vmatpush1.msra.mxu0 0.0
        %2732 = vmatprep.mubr.f32.mxu0 0.0
        %2733 = vmatmul.mubr.f32.gmra.mrb[0].mxu0 %v2666
        %v2734 = vpop.f32.mrb[0].mxu0
        %v2735 = vadd.f32 0.0, %v2734
        %v2736 = vpop.f32.mrb[0].mxu0
        %2737 = vdwg.mxu0
        %v2739 = vsel %vm860, %v2245, 0
        %2741 = vmatprep.subr.mxu0 0.0
        %2742 = vmatpush1.msra.mxu0 %v2249
        %2743 = vmatprep.subr.mxu0 0.0
        %2744 = vmatpush1.msra.mxu0 %v2250
        %2745 = vmatprep.subr.mxu0 0.0
        %2746 = vmatpush1.msra.mxu0 0.0
        %2747 = vmatprep.subr.mxu0 0.0
        %2748 = vmatpush1.msra.mxu0 0.0
        %2749 = vmatprep.subr.mxu0 0.0
        %2750 = vmatpush1.msra.mxu0 0.0
        %2751 = vmatprep.subr.mxu0 0.0
        %2752 = vmatpush1.msra.mxu0 0.0
        %2753 = vmatprep.subr.mxu0 0.0
        %2754 = vmatpush1.msra.mxu0 0.0
        %2755 = vmatprep.subr.mxu0 0.0
        %2756 = vmatpush1.msra.mxu0 0.0
        %2757 = vmatprep.subr.mxu0 0.0
        %2758 = vmatpush1.msra.mxu0 0.0
        %2759 = vmatprep.subr.mxu0 0.0
        %2760 = vmatpush1.msra.mxu0 0.0
        %2761 = vmatprep.subr.mxu0 0.0
        %2762 = vmatpush1.msra.mxu0 0.0
        %2763 = vmatprep.subr.mxu0 0.0
        %2764 = vmatpush1.msra.mxu0 0.0
        %2765 = vmatprep.subr.mxu0 0.0
        %2766 = vmatpush1.msra.mxu0 0.0
        %2767 = vmatprep.subr.mxu0 0.0
        %2768 = vmatpush1.msra.mxu0 0.0
        %2769 = vmatprep.subr.mxu0 0.0
        %2770 = vmatpush1.msra.mxu0 0.0
        %2771 = vmatprep.subr.mxu0 0.0
        %2772 = vmatpush1.msra.mxu0 0.0
        %2773 = vmatprep.subr.mxu0 0.0
        %2774 = vmatpush1.msra.mxu0 0.0
        %2775 = vmatprep.subr.mxu0 0.0
        %2776 = vmatpush1.msra.mxu0 0.0
        %2777 = vmatprep.subr.mxu0 0.0
        %2778 = vmatpush1.msra.mxu0 0.0
        %2779 = vmatprep.subr.mxu0 0.0
        %2780 = vmatpush1.msra.mxu0 0.0
        %2781 = vmatprep.subr.mxu0 0.0
        %2782 = vmatpush1.msra.mxu0 0.0
        %2783 = vmatprep.subr.mxu0 0.0
        %2784 = vmatpush1.msra.mxu0 0.0
        %2785 = vmatprep.subr.mxu0 0.0
        %2786 = vmatpush1.msra.mxu0 0.0
        %2787 = vmatprep.subr.mxu0 0.0
        %2788 = vmatpush1.msra.mxu0 0.0
        %2789 = vmatprep.subr.mxu0 0.0
        %2790 = vmatpush1.msra.mxu0 0.0
        %2791 = vmatprep.subr.mxu0 0.0
        %2792 = vmatpush1.msra.mxu0 0.0
        %2793 = vmatprep.subr.mxu0 0.0
        %2794 = vmatpush1.msra.mxu0 0.0
        %2795 = vmatprep.subr.mxu0 0.0
        %2796 = vmatpush1.msra.mxu0 0.0
        %2797 = vmatprep.subr.mxu0 0.0
        %2798 = vmatpush1.msra.mxu0 0.0
        %2799 = vmatprep.subr.mxu0 0.0
        %2800 = vmatpush1.msra.mxu0 0.0
        %2801 = vmatprep.subr.mxu0 0.0
        %2802 = vmatpush1.msra.mxu0 0.0
        %2803 = vmatprep.subr.mxu0 0.0
        %2804 = vmatpush1.msra.mxu0 0.0
        %2805 = vmatprep.mubr.f32.mxu0 0.0
        %2806 = vmatmul.mubr.f32.gmra.mrb[0].mxu0 %v2739
        %v2807 = vpop.f32.mrb[0].mxu0
        %v2808 = vadd.f32 %v2735, %v2807
        %v2809 = vpop.f32.mrb[0].mxu0
        %2810 = vdwg.mxu0
        %v2811 = vlaneseq
        %v2812 = vshrl.u32 %v2811, 7
        %v2813 = vsub.s32 0, %v2812
        %v2814 = vrot.slane %v1833, %v2813
        %v2815 = vadd.f32 %v2808, %v2814
        %v2816 = vadd.f32 %v2815, %v1831
        %v2817 = vsel %vm564, %v2816, 0.0
        %2818 = vadd.xlane.f32.xlu0 %v2817
        %v2819 = vpop.xlane.xlu0 %2818
        %v2820 = vmul.f32 %v2819, %v568
        %v2821 = vsub.f32 %v2816, %v2820
        %v2822 = vmul.f32 %v2821, %v2821
        %v2823 = vsel %vm564, %v2822, 0.0
        %2824 = vadd.xlane.f32.xlu0 %v2823
        %v2825 = vpop.xlane.xlu0 %2824
        %v2826 = vmul.f32 %v2825, %v568
        %v2827 = vadd.f32 %v2826, 1e-12
        %v2828 = vrsqrt.pop %v2827
        %v2829 = vmul.f32 %v2827, %v2828
        %vm2830 = vcmp.eq.f32.partialorder %v2827, inf
        %v2831 = vsel %vm2830, %v2827, %v2829
        %vm2832 = vcmp.eq.f32.partialorder %v2827, 0.0
        %v2833 = vand.u32 %v2827, 2147483648
        %v2834 = vsel %vm2832, %v2833, %v2831
        %v2835 = vrcp.pop %v2834
        %v2836 = vmul.f32 %v2821, %v2835
        %v2837 = vlaneseq
        %v2838 = vshrl.u32 %v2837, 7
        %v2839 = vsub.s32 2, %v2838
        %v2840 = vrot.slane %v1833, %v2839
        %v2841 = vmul.f32 %v2836, %v2840
        %v2842 = vlaneseq
        %v2843 = vshrl.u32 %v2842, 7
        %v2844 = vsub.s32 3, %v2843
        %v2845 = vrot.slane %v1833, %v2844
        %v2846 = vadd.f32 %v2841, %v2845
        %s2847 = scalar_lea.vmem %s9, 32
        %v2848 = vld [vmem:[%s2847] sm:$0xff]
        %v2849 = vld [vmem:[%s2847 + $0x8] sm:$0xff]
        %v2850 = vld [vmem:[%s2847 + $0x10] sm:$0xff]
        %v2851 = vld [vmem:[%s2847 + $0x18] sm:$0xff]
        %s2852 = scalar_lea.vmem %s11, 1
        %v2853 = vld [vmem:[%s2852] sm:$0x1]
        %v2855 = vlaneseq
        %v2856 = vshrl.u32 %v2855, 7
        %v2857 = vsub.s32 0, %v2856
        %v2858 = vrot.slane %v2853, %v2857
        %v2861 = vsel %vm564, %v2846, 0
        %2863 = vmatprep.subr.mxu0 0.0
        %2864 = vmatpush1.msra.mxu0 %v2848
        %2865 = vmatprep.subr.mxu0 0.0
        %2866 = vmatpush1.msra.mxu0 %v2849
        %2867 = vmatprep.subr.mxu0 0.0
        %2868 = vmatpush1.msra.mxu0 %v2850
        %2869 = vmatprep.subr.mxu0 0.0
        %2870 = vmatpush1.msra.mxu0 %v2851
        %2871 = vmatprep.subr.mxu0 0.0
        %2872 = vmatpush1.msra.mxu0 0.0
        %2873 = vmatprep.subr.mxu0 0.0
        %2874 = vmatpush1.msra.mxu0 0.0
        %2875 = vmatprep.subr.mxu0 0.0
        %2876 = vmatpush1.msra.mxu0 0.0
        %2877 = vmatprep.subr.mxu0 0.0
        %2878 = vmatpush1.msra.mxu0 0.0
        %2879 = vmatprep.subr.mxu0 0.0
        %2880 = vmatpush1.msra.mxu0 0.0
        %2881 = vmatprep.subr.mxu0 0.0
        %2882 = vmatpush1.msra.mxu0 0.0
        %2883 = vmatprep.subr.mxu0 0.0
        %2884 = vmatpush1.msra.mxu0 0.0
        %2885 = vmatprep.subr.mxu0 0.0
        %2886 = vmatpush1.msra.mxu0 0.0
        %2887 = vmatprep.subr.mxu0 0.0
        %2888 = vmatpush1.msra.mxu0 0.0
        %2889 = vmatprep.subr.mxu0 0.0
        %2890 = vmatpush1.msra.mxu0 0.0
        %2891 = vmatprep.subr.mxu0 0.0
        %2892 = vmatpush1.msra.mxu0 0.0
        %2893 = vmatprep.subr.mxu0 0.0
        %2894 = vmatpush1.msra.mxu0 0.0
        %2895 = vmatprep.subr.mxu0 0.0
        %2896 = vmatpush1.msra.mxu0 0.0
        %2897 = vmatprep.subr.mxu0 0.0
        %2898 = vmatpush1.msra.mxu0 0.0
        %2899 = vmatprep.subr.mxu0 0.0
        %2900 = vmatpush1.msra.mxu0 0.0
        %2901 = vmatprep.subr.mxu0 0.0
        %2902 = vmatpush1.msra.mxu0 0.0
        %2903 = vmatprep.subr.mxu0 0.0
        %2904 = vmatpush1.msra.mxu0 0.0
        %2905 = vmatprep.subr.mxu0 0.0
        %2906 = vmatpush1.msra.mxu0 0.0
        %2907 = vmatprep.subr.mxu0 0.0
        %2908 = vmatpush1.msra.mxu0 0.0
        %2909 = vmatprep.subr.mxu0 0.0
        %2910 = vmatpush1.msra.mxu0 0.0
        %2911 = vmatprep.subr.mxu0 0.0
        %2912 = vmatpush1.msra.mxu0 0.0
        %2913 = vmatprep.subr.mxu0 0.0
        %2914 = vmatpush1.msra.mxu0 0.0
        %2915 = vmatprep.subr.mxu0 0.0
        %2916 = vmatpush1.msra.mxu0 0.0
        %2917 = vmatprep.subr.mxu0 0.0
        %2918 = vmatpush1.msra.mxu0 0.0
        %2919 = vmatprep.subr.mxu0 0.0
        %2920 = vmatpush1.msra.mxu0 0.0
        %2921 = vmatprep.subr.mxu0 0.0
        %2922 = vmatpush1.msra.mxu0 0.0
        %2923 = vmatprep.subr.mxu0 0.0
        %2924 = vmatpush1.msra.mxu0 0.0
        %2925 = vmatprep.subr.mxu0 0.0
        %2926 = vmatpush1.msra.mxu0 0.0
        %2927 = vmatprep.mubr.f32.mxu0 0.0
        %2928 = vmatmul.mubr.f32.gmra.mrb[0].mxu0 %v2861
        %v2929 = vpop.f32.mrb[0].mxu0
        %v2930 = vadd.f32 %v2858, %v2929
        %v2931 = vpop.f32.mrb[0].mxu0
        %2932 = vdwg.mxu0
        %v2933 = vmul.f32 %v2930, 0.5
        %v2934 = vmul.f32 %v2930, 0.70710677
        %v2935 = verf.f32.pop %v2934
        %v2936 = vadd.f32 %v2935, 1.0
        %v2937 = vmul.f32 %v2933, %v2936
        %s2938 = scalar_lea.vmem %s10, 128
        %v2939 = vld [vmem:[%s2938] sm:$0xff]
        %v2940 = vld [vmem:[%s2938 + $0x8] sm:$0xff]
        %v2941 = vld [vmem:[%s2938 + $0x10] sm:$0xff]
        %v2942 = vld [vmem:[%s2938 + $0x18] sm:$0xff]
        %v2943 = vld [vmem:[%s2938 + $0x20] sm:$0xff]
        %v2944 = vld [vmem:[%s2938 + $0x28] sm:$0xff]
        %v2945 = vld [vmem:[%s2938 + $0x30] sm:$0xff]
        %v2946 = vld [vmem:[%s2938 + $0x38] sm:$0xff]
        %v2947 = vld [vmem:[%s2938 + $0x40] sm:$0xff]
        %v2948 = vld [vmem:[%s2938 + $0x48] sm:$0xff]
        %v2949 = vld [vmem:[%s2938 + $0x50] sm:$0xff]
        %v2950 = vld [vmem:[%s2938 + $0x58] sm:$0xff]
        %v2951 = vld [vmem:[%s2938 + $0x60] sm:$0xff]
        %v2952 = vld [vmem:[%s2938 + $0x68] sm:$0xff]
        %v2953 = vld [vmem:[%s2938 + $0x70] sm:$0xff]
        %v2954 = vld [vmem:[%s2938 + $0x78] sm:$0xff]
        %v2955 = vlaneseq
        %v2956 = vshrl.u32 %v2955, 7
        %v2957 = vsub.s32 1, %v2956
        %v2958 = vrot.slane %v1833, %v2957
        %2959 = vmatprep.subr.mxu0 0.0
        %2960 = vmatpush1.msra.mxu0 %v2939
        %2961 = vmatprep.subr.mxu0 0.0
        %2962 = vmatpush1.msra.mxu0 %v2940
        %2963 = vmatprep.subr.mxu0 0.0
        %2964 = vmatpush1.msra.mxu0 %v2941
        %2965 = vmatprep.subr.mxu0 0.0
        %2966 = vmatpush1.msra.mxu0 %v2942
        %2967 = vmatprep.subr.mxu0 0.0
        %2968 = vmatpush1.msra.mxu0 %v2943
        %2969 = vmatprep.subr.mxu0 0.0
        %2970 = vmatpush1.msra.mxu0 %v2944
        %2971 = vmatprep.subr.mxu0 0.0
        %2972 = vmatpush1.msra.mxu0 %v2945
        %2973 = vmatprep.subr.mxu0 0.0
        %2974 = vmatpush1.msra.mxu0 %v2946
        %2975 = vmatprep.subr.mxu0 0.0
        %2976 = vmatpush1.msra.mxu0 %v2947
        %2977 = vmatprep.subr.mxu0 0.0
        %2978 = vmatpush1.msra.mxu0 %v2948
        %2979 = vmatprep.subr.mxu0 0.0
        %2980 = vmatpush1.msra.mxu0 %v2949
        %2981 = vmatprep.subr.mxu0 0.0
        %2982 = vmatpush1.msra.mxu0 %v2950
        %2983 = vmatprep.subr.mxu0 0.0
        %2984 = vmatpush1.msra.mxu0 %v2951
        %2985 = vmatprep.subr.mxu0 0.0
        %2986 = vmatpush1.msra.mxu0 %v2952
        %2987 = vmatprep.subr.mxu0 0.0
        %2988 = vmatpush1.msra.mxu0 %v2953
        %2989 = vmatprep.subr.mxu0 0.0
        %2990 = vmatpush1.msra.mxu0 %v2954
        %2991 = vmatprep.subr.mxu0 0.0
        %2992 = vmatpush1.msra.mxu0 0.0
        %2993 = vmatprep.subr.mxu0 0.0
        %2994 = vmatpush1.msra.mxu0 0.0
        %2995 = vmatprep.subr.mxu0 0.0
        %2996 = vmatpush1.msra.mxu0 0.0
        %2997 = vmatprep.subr.mxu0 0.0
        %2998 = vmatpush1.msra.mxu0 0.0
        %2999 = vmatprep.subr.mxu0 0.0
        %3000 = vmatpush1.msra.mxu0 0.0
        %3001 = vmatprep.subr.mxu0 0.0
        %3002 = vmatpush1.msra.mxu0 0.0
        %3003 = vmatprep.subr.mxu0 0.0
        %3004 = vmatpush1.msra.mxu0 0.0
        %3005 = vmatprep.subr.mxu0 0.0
        %3006 = vmatpush1.msra.mxu0 0.0
        %3007 = vmatprep.subr.mxu0 0.0
        %3008 = vmatpush1.msra.mxu0 0.0
        %3009 = vmatprep.subr.mxu0 0.0
        %3010 = vmatpush1.msra.mxu0 0.0
        %3011 = vmatprep.subr.mxu0 0.0
        %3012 = vmatpush1.msra.mxu0 0.0
        %3013 = vmatprep.subr.mxu0 0.0
        %3014 = vmatpush1.msra.mxu0 0.0
        %3015 = vmatprep.subr.mxu0 0.0
        %3016 = vmatpush1.msra.mxu0 0.0
        %3017 = vmatprep.subr.mxu0 0.0
        %3018 = vmatpush1.msra.mxu0 0.0
        %3019 = vmatprep.subr.mxu0 0.0
        %3020 = vmatpush1.msra.mxu0 0.0
        %3021 = vmatprep.subr.mxu0 0.0
        %3022 = vmatpush1.msra.mxu0 0.0
        %3023 = vmatprep.mubr.f32.mxu0 0.0
        %3024 = vmatmul.mubr.f32.gmra.mrb[0].mxu0 %v2937
        %v3025 = vpop.f32.mrb[0].mxu0
        %v3026 = vadd.f32 %v2958, %v3025
        %v3027 = vpop.f32.mrb[0].mxu0
        %3028 = vdwg.mxu0
        %v3029 = vadd.f32 %v3026, %v2846
        %v3030 = vsel %vm564, %v3029, 0.0
        %3031 = vadd.xlane.f32.xlu0 %v3030
        %v3032 = vpop.xlane.xlu0 %3031
        %v3033 = vmul.f32 %v3032, %v568
        %v3034 = vsub.f32 %v3029, %v3033
        %v3035 = vmul.f32 %v3034, %v3034
        %v3036 = vsel %vm564, %v3035, 0.0
        %3037 = vadd.xlane.f32.xlu0 %v3036
        %v3038 = vpop.xlane.xlu0 %3037
        %v3039 = vmul.f32 %v3038, %v568
        %v3040 = vadd.f32 %v3039, 1e-12
        %v3041 = vrsqrt.pop %v3040
        %v3042 = vmul.f32 %v3040, %v3041
        %vm3043 = vcmp.eq.f32.partialorder %v3040, inf
        %v3044 = vsel %vm3043, %v3040, %v3042
        %vm3045 = vcmp.eq.f32.partialorder %v3040, 0.0
        %v3046 = vand.u32 %v3040, 2147483648
        %v3047 = vsel %vm3045, %v3046, %v3044
        %v3048 = vrcp.pop %v3047
        %v3049 = vmul.f32 %v3034, %v3048
        %v3050 = vlaneseq
        %v3051 = vshrl.u32 %v3050, 7
        %v3052 = vsub.s32 4, %v3051
        %v3053 = vrot.slane %v1833, %v3052
        %v3054 = vmul.f32 %v3049, %v3053
        %v3055 = vlaneseq
        %v3056 = vshrl.u32 %v3055, 7
        %v3057 = vsub.s32 5, %v3056
        %v3058 = vrot.slane %v1833, %v3057
        %v3059 = vadd.f32 %v3054, %v3058
        %s3060 = scalar_lea.vmem %s12, 16
        %v3061 = vld [vmem:[%s3060] sm:$0xff]
        %s3062 = scalar_lea.vmem %s4, 128
        %v3063 = vld [vmem:[%s3062] sm:$0xff]
        %v3064 = vld [vmem:[%s3062 + $0x8] sm:$0xff]
        %v3065 = vld [vmem:[%s3062 + $0x10] sm:$0xff]
        %v3066 = vld [vmem:[%s3062 + $0x18] sm:$0xff]
        %s3067 = scalar_lea.vmem %s8, 12
        %v3068 = vld [vmem:[%s3067] sm:$0x1]
        %v3070 = vlaneseq
        %v3071 = vshrl.u32 %v3070, 7
        %v3072 = vsub.s32 0, %v3071
        %v3073 = vrot.slane %v3068, %v3072
        %3075 = vmatprep.subr.mxu0 0.0
        %3076 = vmatpush1.msra.mxu0 %v3063
        %3077 = vmatprep.subr.mxu0 0.0
        %3078 = vmatpush1.msra.mxu0 %v3064
        %3079 = vmatprep.subr.mxu0 0.0
        %3080 = vmatpush1.msra.mxu0 %v3065
        %3081 = vmatprep.subr.mxu0 0.0
        %3082 = vmatpush1.msra.mxu0 %v3066
        %3083 = vmatprep.subr.mxu0 0.0
        %3084 = vmatpush1.msra.mxu0 0.0
        %3085 = vmatprep.subr.mxu0 0.0
        %3086 = vmatpush1.msra.mxu0 0.0
        %3087 = vmatprep.subr.mxu0 0.0
        %3088 = vmatpush1.msra.mxu0 0.0
        %3089 = vmatprep.subr.mxu0 0.0
        %3090 = vmatpush1.msra.mxu0 0.0
        %3091 = vmatprep.subr.mxu0 0.0
        %3092 = vmatpush1.msra.mxu0 0.0
        %3093 = vmatprep.subr.mxu0 0.0
        %3094 = vmatpush1.msra.mxu0 0.0
        %3095 = vmatprep.subr.mxu0 0.0
        %3096 = vmatpush1.msra.mxu0 0.0
        %3097 = vmatprep.subr.mxu0 0.0
        %3098 = vmatpush1.msra.mxu0 0.0
        %3099 = vmatprep.subr.mxu0 0.0
        %3100 = vmatpush1.msra.mxu0 0.0
        %3101 = vmatprep.subr.mxu0 0.0
        %3102 = vmatpush1.msra.mxu0 0.0
        %3103 = vmatprep.subr.mxu0 0.0
        %3104 = vmatpush1.msra.mxu0 0.0
        %3105 = vmatprep.subr.mxu0 0.0
        %3106 = vmatpush1.msra.mxu0 0.0
        %3107 = vmatprep.subr.mxu0 0.0
        %3108 = vmatpush1.msra.mxu0 0.0
        %3109 = vmatprep.subr.mxu0 0.0
        %3110 = vmatpush1.msra.mxu0 0.0
        %3111 = vmatprep.subr.mxu0 0.0
        %3112 = vmatpush1.msra.mxu0 0.0
        %3113 = vmatprep.subr.mxu0 0.0
        %3114 = vmatpush1.msra.mxu0 0.0
        %3115 = vmatprep.subr.mxu0 0.0
        %3116 = vmatpush1.msra.mxu0 0.0
        %3117 = vmatprep.subr.mxu0 0.0
        %3118 = vmatpush1.msra.mxu0 0.0
        %3119 = vmatprep.subr.mxu0 0.0
        %3120 = vmatpush1.msra.mxu0 0.0
        %3121 = vmatprep.subr.mxu0 0.0
        %3122 = vmatpush1.msra.mxu0 0.0
        %3123 = vmatprep.subr.mxu0 0.0
        %3124 = vmatpush1.msra.mxu0 0.0
        %3125 = vmatprep.subr.mxu0 0.0
        %3126 = vmatpush1.msra.mxu0 0.0
        %3127 = vmatprep.subr.mxu0 0.0
        %3128 = vmatpush1.msra.mxu0 0.0
        %3129 = vmatprep.subr.mxu0 0.0
        %3130 = vmatpush1.msra.mxu0 0.0
        %3131 = vmatprep.subr.mxu0 0.0
        %3132 = vmatpush1.msra.mxu0 0.0
        %3133 = vmatprep.subr.mxu0 0.0
        %3134 = vmatpush1.msra.mxu0 0.0
        %3135 = vmatprep.subr.mxu0 0.0
        %3136 = vmatpush1.msra.mxu0 0.0
        %3137 = vmatprep.subr.mxu0 0.0
        %3138 = vmatpush1.msra.mxu0 0.0
        %3139 = vmatprep.mubr.f32.mxu0 0.0
        %3140 = vmatmul.mubr.f32.gmra.mrb[0].mxu0 %v624
        %v3141 = vpop.f32.mrb[0].mxu0
        %v3142 = vadd.f32 %v3073, %v3141
        %v3143 = vpop.f32.mrb[0].mxu0
        %3144 = vdwg.mxu0
        %s3145 = scalar_lea.vmem %s5, 128
        %v3146 = vld [vmem:[%s3145] sm:$0xff]
        %v3147 = vld [vmem:[%s3145 + $0x8] sm:$0xff]
        %v3148 = vld [vmem:[%s3145 + $0x10] sm:$0xff]
        %v3149 = vld [vmem:[%s3145 + $0x18] sm:$0xff]
        %s3150 = scalar_lea.vmem %s8, 13
        %v3151 = vld [vmem:[%s3150] sm:$0x1]
        %v3153 = vlaneseq
        %v3154 = vshrl.u32 %v3153, 7
        %v3155 = vsub.s32 0, %v3154
        %v3156 = vrot.slane %v3151, %v3155
        %3158 = vmatprep.subr.mxu0 0.0
        %3159 = vmatpush1.msra.mxu0 %v3146
        %3160 = vmatprep.subr.mxu0 0.0
        %3161 = vmatpush1.msra.mxu0 %v3147
        %3162 = vmatprep.subr.mxu0 0.0
        %3163 = vmatpush1.msra.mxu0 %v3148
        %3164 = vmatprep.subr.mxu0 0.0
        %3165 = vmatpush1.msra.mxu0 %v3149
        %3166 = vmatprep.subr.mxu0 0.0
        %3167 = vmatpush1.msra.mxu0 0.0
        %3168 = vmatprep.subr.mxu0 0.0
        %3169 = vmatpush1.msra.mxu0 0.0
        %3170 = vmatprep.subr.mxu0 0.0
        %3171 = vmatpush1.msra.mxu0 0.0
        %3172 = vmatprep.subr.mxu0 0.0
        %3173 = vmatpush1.msra.mxu0 0.0
        %3174 = vmatprep.subr.mxu0 0.0
        %3175 = vmatpush1.msra.mxu0 0.0
        %3176 = vmatprep.subr.mxu0 0.0
        %3177 = vmatpush1.msra.mxu0 0.0
        %3178 = vmatprep.subr.mxu0 0.0
        %3179 = vmatpush1.msra.mxu0 0.0
        %3180 = vmatprep.subr.mxu0 0.0
        %3181 = vmatpush1.msra.mxu0 0.0
        %3182 = vmatprep.subr.mxu0 0.0
        %3183 = vmatpush1.msra.mxu0 0.0
        %3184 = vmatprep.subr.mxu0 0.0
        %3185 = vmatpush1.msra.mxu0 0.0
        %3186 = vmatprep.subr.mxu0 0.0
        %3187 = vmatpush1.msra.mxu0 0.0
        %3188 = vmatprep.subr.mxu0 0.0
        %3189 = vmatpush1.msra.mxu0 0.0
        %3190 = vmatprep.subr.mxu0 0.0
        %3191 = vmatpush1.msra.mxu0 0.0
        %3192 = vmatprep.subr.mxu0 0.0
        %3193 = vmatpush1.msra.mxu0 0.0
        %3194 = vmatprep.subr.mxu0 0.0
        %3195 = vmatpush1.msra.mxu0 0.0
        %3196 = vmatprep.subr.mxu0 0.0
        %3197 = vmatpush1.msra.mxu0 0.0
        %3198 = vmatprep.subr.mxu0 0.0
        %3199 = vmatpush1.msra.mxu0 0.0
        %3200 = vmatprep.subr.mxu0 0.0
        %3201 = vmatpush1.msra.mxu0 0.0
        %3202 = vmatprep.subr.mxu0 0.0
        %3203 = vmatpush1.msra.mxu0 0.0
        %3204 = vmatprep.subr.mxu0 0.0
        %3205 = vmatpush1.msra.mxu0 0.0
        %3206 = vmatprep.subr.mxu0 0.0
        %3207 = vmatpush1.msra.mxu0 0.0
        %3208 = vmatprep.subr.mxu0 0.0
        %3209 = vmatpush1.msra.mxu0 0.0
        %3210 = vmatprep.subr.mxu0 0.0
        %3211 = vmatpush1.msra.mxu0 0.0
        %3212 = vmatprep.subr.mxu0 0.0
        %3213 = vmatpush1.msra.mxu0 0.0
        %3214 = vmatprep.subr.mxu0 0.0
        %3215 = vmatpush1.msra.mxu0 0.0
        %3216 = vmatprep.subr.mxu0 0.0
        %3217 = vmatpush1.msra.mxu0 0.0
        %3218 = vmatprep.subr.mxu0 0.0
        %3219 = vmatpush1.msra.mxu0 0.0
        %3220 = vmatprep.subr.mxu0 0.0
        %3221 = vmatpush1.msra.mxu0 0.0
        %3222 = vmatprep.mubr.f32.mxu0 0.0
        %3223 = vmatmul.mubr.f32.gmra.mrb[0].mxu0 %v624
        %v3224 = vpop.f32.mrb[0].mxu0
        %v3225 = vadd.f32 %v3156, %v3224
        %v3226 = vpop.f32.mrb[0].mxu0
        %3227 = vdwg.mxu0
        %s3228 = scalar_lea.vmem %s6, 128
        %v3229 = vld [vmem:[%s3228] sm:$0xff]
        %v3230 = vld [vmem:[%s3228 + $0x8] sm:$0xff]
        %v3231 = vld [vmem:[%s3228 + $0x10] sm:$0xff]
        %v3232 = vld [vmem:[%s3228 + $0x18] sm:$0xff]
        %s3233 = scalar_lea.vmem %s8, 14
        %v3234 = vld [vmem:[%s3233] sm:$0x1]
        %v3236 = vlaneseq
        %v3237 = vshrl.u32 %v3236, 7
        %v3238 = vsub.s32 0, %v3237
        %v3239 = vrot.slane %v3234, %v3238
        %3241 = vmatprep.subr.mxu0 0.0
        %3242 = vmatpush1.msra.mxu0 %v3229
        %3243 = vmatprep.subr.mxu0 0.0
        %3244 = vmatpush1.msra.mxu0 %v3230
        %3245 = vmatprep.subr.mxu0 0.0
        %3246 = vmatpush1.msra.mxu0 %v3231
        %3247 = vmatprep.subr.mxu0 0.0
        %3248 = vmatpush1.msra.mxu0 %v3232
        %3249 = vmatprep.subr.mxu0 0.0
        %3250 = vmatpush1.msra.mxu0 0.0
        %3251 = vmatprep.subr.mxu0 0.0
        %3252 = vmatpush1.msra.mxu0 0.0
        %3253 = vmatprep.subr.mxu0 0.0
        %3254 = vmatpush1.msra.mxu0 0.0
        %3255 = vmatprep.subr.mxu0 0.0
        %3256 = vmatpush1.msra.mxu0 0.0
        %3257 = vmatprep.subr.mxu0 0.0
        %3258 = vmatpush1.msra.mxu0 0.0
        %3259 = vmatprep.subr.mxu0 0.0
        %3260 = vmatpush1.msra.mxu0 0.0
        %3261 = vmatprep.subr.mxu0 0.0
        %3262 = vmatpush1.msra.mxu0 0.0
        %3263 = vmatprep.subr.mxu0 0.0
        %3264 = vmatpush1.msra.mxu0 0.0
        %3265 = vmatprep.subr.mxu0 0.0
        %3266 = vmatpush1.msra.mxu0 0.0
        %3267 = vmatprep.subr.mxu0 0.0
        %3268 = vmatpush1.msra.mxu0 0.0
        %3269 = vmatprep.subr.mxu0 0.0
        %3270 = vmatpush1.msra.mxu0 0.0
        %3271 = vmatprep.subr.mxu0 0.0
        %3272 = vmatpush1.msra.mxu0 0.0
        %3273 = vmatprep.subr.mxu0 0.0
        %3274 = vmatpush1.msra.mxu0 0.0
        %3275 = vmatprep.subr.mxu0 0.0
        %3276 = vmatpush1.msra.mxu0 0.0
        %3277 = vmatprep.subr.mxu0 0.0
        %3278 = vmatpush1.msra.mxu0 0.0
        %3279 = vmatprep.subr.mxu0 0.0
        %3280 = vmatpush1.msra.mxu0 0.0
        %3281 = vmatprep.subr.mxu0 0.0
        %3282 = vmatpush1.msra.mxu0 0.0
        %3283 = vmatprep.subr.mxu0 0.0
        %3284 = vmatpush1.msra.mxu0 0.0
        %3285 = vmatprep.subr.mxu0 0.0
        %3286 = vmatpush1.msra.mxu0 0.0
        %3287 = vmatprep.subr.mxu0 0.0
        %3288 = vmatpush1.msra.mxu0 0.0
        %3289 = vmatprep.subr.mxu0 0.0
        %3290 = vmatpush1.msra.mxu0 0.0
        %3291 = vmatprep.subr.mxu0 0.0
        %3292 = vmatpush1.msra.mxu0 0.0
        %3293 = vmatprep.subr.mxu0 0.0
        %3294 = vmatpush1.msra.mxu0 0.0
        %3295 = vmatprep.subr.mxu0 0.0
        %3296 = vmatpush1.msra.mxu0 0.0
        %3297 = vmatprep.subr.mxu0 0.0
        %3298 = vmatpush1.msra.mxu0 0.0
        %3299 = vmatprep.subr.mxu0 0.0
        %3300 = vmatpush1.msra.mxu0 0.0
        %3301 = vmatprep.subr.mxu0 0.0
        %3302 = vmatpush1.msra.mxu0 0.0
        %3303 = vmatprep.subr.mxu0 0.0
        %3304 = vmatpush1.msra.mxu0 0.0
        %3305 = vmatprep.mubr.f32.mxu0 0.0
        %3306 = vmatmul.mubr.f32.gmra.mrb[0].mxu0 %v624
        %v3307 = vpop.f32.mrb[0].mxu0
        %v3308 = vadd.f32 %v3239, %v3307
        %v3309 = vpop.f32.mrb[0].mxu0
        %3310 = vdwg.mxu0
        %v3312 = vsel %vm860, %v3142, 0
        %v3315 = vsel %vm860, %v3225, 0
        %3317 = vmatprep.subr.mxu0 0.0
        %3318 = vmatpush1.xpose.msra.mxu0 %v3315
        %3319 = vmatprep.subr.mxu0 0.0
        %3320 = vmatpush1.xpose.msra.mxu0 0.0
        %3321 = vmatprep.subr.mxu0 0.0
        %3322 = vmatpush1.xpose.msra.mxu0 0.0
        %3323 = vmatprep.subr.mxu0 0.0
        %3324 = vmatpush1.xpose.msra.mxu0 0.0
        %3325 = vmatprep.subr.mxu0 0.0
        %3326 = vmatpush1.xpose.msra.mxu0 0.0
        %3327 = vmatprep.subr.mxu0 0.0
        %3328 = vmatpush1.xpose.msra.mxu0 0.0
        %3329 = vmatprep.subr.mxu0 0.0
        %3330 = vmatpush1.xpose.msra.mxu0 0.0
        %3331 = vmatprep.subr.mxu0 0.0
        %3332 = vmatpush1.xpose.msra.mxu0 0.0
        %3333 = vmatprep.subr.mxu0 0.0
        %3334 = vmatpush1.xpose.msra.mxu0 0.0
        %3335 = vmatprep.subr.mxu0 0.0
        %3336 = vmatpush1.xpose.msra.mxu0 0.0
        %3337 = vmatprep.subr.mxu0 0.0
        %3338 = vmatpush1.xpose.msra.mxu0 0.0
        %3339 = vmatprep.subr.mxu0 0.0
        %3340 = vmatpush1.xpose.msra.mxu0 0.0
        %3341 = vmatprep.subr.mxu0 0.0
        %3342 = vmatpush1.xpose.msra.mxu0 0.0
        %3343 = vmatprep.subr.mxu0 0.0
        %3344 = vmatpush1.xpose.msra.mxu0 0.0
        %3345 = vmatprep.subr.mxu0 0.0
        %3346 = vmatpush1.xpose.msra.mxu0 0.0
        %3347 = vmatprep.subr.mxu0 0.0
        %3348 = vmatpush1.xpose.msra.mxu0 0.0
        %3349 = vmatprep.subr.mxu0 0.0
        %3350 = vmatpush1.xpose.msra.mxu0 0.0
        %3351 = vmatprep.subr.mxu0 0.0
        %3352 = vmatpush1.xpose.msra.mxu0 0.0
        %3353 = vmatprep.subr.mxu0 0.0
        %3354 = vmatpush1.xpose.msra.mxu0 0.0
        %3355 = vmatprep.subr.mxu0 0.0
        %3356 = vmatpush1.xpose.msra.mxu0 0.0
        %3357 = vmatprep.subr.mxu0 0.0
        %3358 = vmatpush1.xpose.msra.mxu0 0.0
        %3359 = vmatprep.subr.mxu0 0.0
        %3360 = vmatpush1.xpose.msra.mxu0 0.0
        %3361 = vmatprep.subr.mxu0 0.0
        %3362 = vmatpush1.xpose.msra.mxu0 0.0
        %3363 = vmatprep.subr.mxu0 0.0
        %3364 = vmatpush1.xpose.msra.mxu0 0.0
        %3365 = vmatprep.subr.mxu0 0.0
        %3366 = vmatpush1.xpose.msra.mxu0 0.0
        %3367 = vmatprep.subr.mxu0 0.0
        %3368 = vmatpush1.xpose.msra.mxu0 0.0
        %3369 = vmatprep.subr.mxu0 0.0
        %3370 = vmatpush1.xpose.msra.mxu0 0.0
        %3371 = vmatprep.subr.mxu0 0.0
        %3372 = vmatpush1.xpose.msra.mxu0 0.0
        %3373 = vmatprep.subr.mxu0 0.0
        %3374 = vmatpush1.xpose.msra.mxu0 0.0
        %3375 = vmatprep.subr.mxu0 0.0
        %3376 = vmatpush1.xpose.msra.mxu0 0.0
        %3377 = vmatprep.subr.mxu0 0.0
        %3378 = vmatpush1.xpose.msra.mxu0 0.0
        %3379 = vmatprep.subr.mxu0 0.0
        %3380 = vmatpush1.xpose.msra.mxu0 0.0
        %3381 = vmatprep.mubr.f32.mxu0 0.0
        %3382 = vmatmul.mubr.f32.gmra.mrb[0].mxu0 %v3312
        %v3383 = vpop.f32.mrb[0].mxu0
        %v3384 = vadd.f32 0.0, %v3383
        %v3385 = vpop.f32.mrb[0].mxu0
        %3386 = vdwg.mxu0
        %v3387 = vmul.f32 %v3384, 0.25
        %v3388 = vadd.f32 %v3387, %v610
        %v3389 = vsel %vm939, %v3388, -inf
        %3390 = vmax.xlane.f32.xlu0 %v3389
        %v3391 = vpop.xlane.xlu0 %3390
        %v3392 = vsub.f32 %v3388, %v3391
        %v3393 = vmul.f32 %v3392, 1.442695
        %v3394 = vpow.pop %v3393
        %v3395 = vsel %vm939, %v3394, 0.0
        %3396 = vadd.xlane.f32.xlu0 %v3395
        %v3397 = vpop.xlane.xlu0 %3396
        %v3398 = vrcp.pop %v3397
        %v3399 = vmul.f32 %v3394, %v3398
        %v3401 = vsel %vm939, %v3399, 0
        %3403 = vmatprep.subr.mxu0 0.0
        %3404 = vmatpush1.msra.mxu0 %v3308
        %3405 = vmatprep.subr.mxu0 0.0
        %3406 = vmatpush1.msra.mxu0 0.0
        %3407 = vmatprep.subr.mxu0 0.0
        %3408 = vmatpush1.msra.mxu0 0.0
        %3409 = vmatprep.subr.mxu0 0.0
        %3410 = vmatpush1.msra.mxu0 0.0
        %3411 = vmatprep.subr.mxu0 0.0
        %3412 = vmatpush1.msra.mxu0 0.0
        %3413 = vmatprep.subr.mxu0 0.0
        %3414 = vmatpush1.msra.mxu0 0.0
        %3415 = vmatprep.subr.mxu0 0.0
        %3416 = vmatpush1.msra.mxu0 0.0
        %3417 = vmatprep.subr.mxu0 0.0
        %3418 = vmatpush1.msra.mxu0 0.0
        %3419 = vmatprep.subr.mxu0 0.0
        %3420 = vmatpush1.msra.mxu0 0.0
        %3421 = vmatprep.subr.mxu0 0.0
        %3422 = vmatpush1.msra.mxu0 0.0
        %3423 = vmatprep.subr.mxu0 0.0
        %3424 = vmatpush1.msra.mxu0 0.0
        %3425 = vmatprep.subr.mxu0 0.0
        %3426 = vmatpush1.msra.mxu0 0.0
        %3427 = vmatprep.subr.mxu0 0.0
        %3428 = vmatpush1.msra.mxu0 0.0
        %3429 = vmatprep.subr.mxu0 0.0
        %3430 = vmatpush1.msra.mxu0 0.0
        %3431 = vmatprep.subr.mxu0 0.0
        %3432 = vmatpush1.msra.mxu0 0.0
        %3433 = vmatprep.subr.mxu0 0.0
        %3434 = vmatpush1.msra.mxu0 0.0
        %3435 = vmatprep.subr.mxu0 0.0
        %3436 = vmatpush1.msra.mxu0 0.0
        %3437 = vmatprep.subr.mxu0 0.0
        %3438 = vmatpush1.msra.mxu0 0.0
        %3439 = vmatprep.subr.mxu0 0.0
        %3440 = vmatpush1.msra.mxu0 0.0
        %3441 = vmatprep.subr.mxu0 0.0
        %3442 = vmatpush1.msra.mxu0 0.0
        %3443 = vmatprep.subr.mxu0 0.0
        %3444 = vmatpush1.msra.mxu0 0.0
        %3445 = vmatprep.subr.mxu0 0.0
        %3446 = vmatpush1.msra.mxu0 0.0
        %3447 = vmatprep.subr.mxu0 0.0
        %3448 = vmatpush1.msra.mxu0 0.0
        %3449 = vmatprep.subr.mxu0 0.0
        %3450 = vmatpush1.msra.mxu0 0.0
        %3451 = vmatprep.subr.mxu0 0.0
        %3452 = vmatpush1.msra.mxu0 0.0
        %3453 = vmatprep.subr.mxu0 0.0
        %3454 = vmatpush1.msra.mxu0 0.0
        %3455 = vmatprep.subr.mxu0 0.0
        %3456 = vmatpush1.msra.mxu0 0.0
        %3457 = vmatprep.subr.mxu0 0.0
        %3458 = vmatpush1.msra.mxu0 0.0
        %3459 = vmatprep.subr.mxu0 0.0
        %3460 = vmatpush1.msra.mxu0 0.0
        %3461 = vmatprep.subr.mxu0 0.0
        %3462 = vmatpush1.msra.mxu0 0.0
        %3463 = vmatprep.subr.mxu0 0.0
        %3464 = vmatpush1.msra.mxu0 0.0
        %3465 = vmatprep.subr.mxu0 0.0
        %3466 = vmatpush1.msra.mxu0 0.0
        %3467 = vmatprep.mubr.f32.mxu0 0.0
        %3468 = vmatmul.mubr.f32.gmra.mrb[0].mxu0 %v3401
        %v3469 = vpop.f32.mrb[0].mxu0
        %v3470 = vadd.f32 0.0, %v3469
        %v3471 = vpop.f32.mrb[0].mxu0
        %3472 = vdwg.mxu0
        %s3473 = scalar_lea.vmem %s7, 64
        %v3474 = vld [vmem:[%s3473] sm:$0xff]
        %v3475 = vld [vmem:[%s3473 + $0x8] sm:$0xff]
        %s3476 = scalar_lea.vmem %s4, 160
        %v3477 = vld [vmem:[%s3476] sm:$0xff]
        %v3478 = vld [vmem:[%s3476 + $0x8] sm:$0xff]
        %v3479 = vld [vmem:[%s3476 + $0x10] sm:$0xff]
        %v3480 = vld [vmem:[%s3476 + $0x18] sm:$0xff]
        %s3481 = scalar_lea.vmem %s8, 15
        %v3482 = vld [vmem:[%s3481] sm:$0x1]
        %v3484 = vlaneseq
        %v3485 = vshrl.u32 %v3484, 7
        %v3486 = vsub.s32 0, %v3485
        %v3487 = vrot.slane %v3482, %v3486
        %3489 = vmatprep.subr.mxu0 0.0
        %3490 = vmatpush1.msra.mxu0 %v3477
        %3491 = vmatprep.subr.mxu0 0.0
        %3492 = vmatpush1.msra.mxu0 %v3478
        %3493 = vmatprep.subr.mxu0 0.0
        %3494 = vmatpush1.msra.mxu0 %v3479
        %3495 = vmatprep.subr.mxu0 0.0
        %3496 = vmatpush1.msra.mxu0 %v3480
        %3497 = vmatprep.subr.mxu0 0.0
        %3498 = vmatpush1.msra.mxu0 0.0
        %3499 = vmatprep.subr.mxu0 0.0
        %3500 = vmatpush1.msra.mxu0 0.0
        %3501 = vmatprep.subr.mxu0 0.0
        %3502 = vmatpush1.msra.mxu0 0.0
        %3503 = vmatprep.subr.mxu0 0.0
        %3504 = vmatpush1.msra.mxu0 0.0
        %3505 = vmatprep.subr.mxu0 0.0
        %3506 = vmatpush1.msra.mxu0 0.0
        %3507 = vmatprep.subr.mxu0 0.0
        %3508 = vmatpush1.msra.mxu0 0.0
        %3509 = vmatprep.subr.mxu0 0.0
        %3510 = vmatpush1.msra.mxu0 0.0
        %3511 = vmatprep.subr.mxu0 0.0
        %3512 = vmatpush1.msra.mxu0 0.0
        %3513 = vmatprep.subr.mxu0 0.0
        %3514 = vmatpush1.msra.mxu0 0.0
        %3515 = vmatprep.subr.mxu0 0.0
        %3516 = vmatpush1.msra.mxu0 0.0
        %3517 = vmatprep.subr.mxu0 0.0
        %3518 = vmatpush1.msra.mxu0 0.0
        %3519 = vmatprep.subr.mxu0 0.0
        %3520 = vmatpush1.msra.mxu0 0.0
        %3521 = vmatprep.subr.mxu0 0.0
        %3522 = vmatpush1.msra.mxu0 0.0
        %3523 = vmatprep.subr.mxu0 0.0
        %3524 = vmatpush1.msra.mxu0 0.0
        %3525 = vmatprep.subr.mxu0 0.0
        %3526 = vmatpush1.msra.mxu0 0.0
        %3527 = vmatprep.subr.mxu0 0.0
        %3528 = vmatpush1.msra.mxu0 0.0
        %3529 = vmatprep.subr.mxu0 0.0
        %3530 = vmatpush1.msra.mxu0 0.0
        %3531 = vmatprep.subr.mxu0 0.0
        %3532 = vmatpush1.msra.mxu0 0.0
        %3533 = vmatprep.subr.mxu0 0.0
        %3534 = vmatpush1.msra.mxu0 0.0
        %3535 = vmatprep.subr.mxu0 0.0
        %3536 = vmatpush1.msra.mxu0 0.0
        %3537 = vmatprep.subr.mxu0 0.0
        %3538 = vmatpush1.msra.mxu0 0.0
        %3539 = vmatprep.subr.mxu0 0.0
        %3540 = vmatpush1.msra.mxu0 0.0
        %3541 = vmatprep.subr.mxu0 0.0
        %3542 = vmatpush1.msra.mxu0 0.0
        %3543 = vmatprep.subr.mxu0 0.0
        %3544 = vmatpush1.msra.mxu0 0.0
        %3545 = vmatprep.subr.mxu0 0.0
        %3546 = vmatpush1.msra.mxu0 0.0
        %3547 = vmatprep.subr.mxu0 0.0
        %3548 = vmatpush1.msra.mxu0 0.0
        %3549 = vmatprep.subr.mxu0 0.0
        %3550 = vmatpush1.msra.mxu0 0.0
        %3551 = vmatprep.subr.mxu0 0.0
        %3552 = vmatpush1.msra.mxu0 0.0
        %3553 = vmatprep.mubr.f32.mxu0 0.0
        %3554 = vmatmul.mubr.f32.gmra.mrb[0].mxu0 %v624
        %v3555 = vpop.f32.mrb[0].mxu0
        %v3556 = vadd.f32 %v3487, %v3555
        %v3557 = vpop.f32.mrb[0].mxu0
        %3558 = vdwg.mxu0
        %s3559 = scalar_lea.vmem %s5, 160
        %v3560 = vld [vmem:[%s3559] sm:$0xff]
        %v3561 = vld [vmem:[%s3559 + $0x8] sm:$0xff]
        %v3562 = vld [vmem:[%s3559 + $0x10] sm:$0xff]
        %v3563 = vld [vmem:[%s3559 + $0x18] sm:$0xff]
        %s3564 = scalar_lea.vmem %s8, 16
        %v3565 = vld [vmem:[%s3564] sm:$0x1]
        %v3567 = vlaneseq
        %v3568 = vshrl.u32 %v3567, 7
        %v3569 = vsub.s32 0, %v3568
        %v3570 = vrot.slane %v3565, %v3569
        %3572 = vmatprep.subr.mxu0 0.0
        %3573 = vmatpush1.msra.mxu0 %v3560
        %3574 = vmatprep.subr.mxu0 0.0
        %3575 = vmatpush1.msra.mxu0 %v3561
        %3576 = vmatprep.subr.mxu0 0.0
        %3577 = vmatpush1.msra.mxu0 %v3562
        %3578 = vmatprep.subr.mxu0 0.0
        %3579 = vmatpush1.msra.mxu0 %v3563
        %3580 = vmatprep.subr.mxu0 0.0
        %3581 = vmatpush1.msra.mxu0 0.0
        %3582 = vmatprep.subr.mxu0 0.0
        %3583 = vmatpush1.msra.mxu0 0.0
        %3584 = vmatprep.subr.mxu0 0.0
        %3585 = vmatpush1.msra.mxu0 0.0
        %3586 = vmatprep.subr.mxu0 0.0
        %3587 = vmatpush1.msra.mxu0 0.0
        %3588 = vmatprep.subr.mxu0 0.0
        %3589 = vmatpush1.msra.mxu0 0.0
        %3590 = vmatprep.subr.mxu0 0.0
        %3591 = vmatpush1.msra.mxu0 0.0
        %3592 = vmatprep.subr.mxu0 0.0
        %3593 = vmatpush1.msra.mxu0 0.0
        %3594 = vmatprep.subr.mxu0 0.0
        %3595 = vmatpush1.msra.mxu0 0.0
        %3596 = vmatprep.subr.mxu0 0.0
        %3597 = vmatpush1.msra.mxu0 0.0
        %3598 = vmatprep.subr.mxu0 0.0
        %3599 = vmatpush1.msra.mxu0 0.0
        %3600 = vmatprep.subr.mxu0 0.0
        %3601 = vmatpush1.msra.mxu0 0.0
        %3602 = vmatprep.subr.mxu0 0.0
        %3603 = vmatpush1.msra.mxu0 0.0
        %3604 = vmatprep.subr.mxu0 0.0
        %3605 = vmatpush1.msra.mxu0 0.0
        %3606 = vmatprep.subr.mxu0 0.0
        %3607 = vmatpush1.msra.mxu0 0.0
        %3608 = vmatprep.subr.mxu0 0.0
        %3609 = vmatpush1.msra.mxu0 0.0
        %3610 = vmatprep.subr.mxu0 0.0
        %3611 = vmatpush1.msra.mxu0 0.0
        %3612 = vmatprep.subr.mxu0 0.0
        %3613 = vmatpush1.msra.mxu0 0.0
        %3614 = vmatprep.subr.mxu0 0.0
        %3615 = vmatpush1.msra.mxu0 0.0
        %3616 = vmatprep.subr.mxu0 0.0
        %3617 = vmatpush1.msra.mxu0 0.0
        %3618 = vmatprep.subr.mxu0 0.0
        %3619 = vmatpush1.msra.mxu0 0.0
        %3620 = vmatprep.subr.mxu0 0.0
        %3621 = vmatpush1.msra.mxu0 0.0
        %3622 = vmatprep.subr.mxu0 0.0
        %3623 = vmatpush1.msra.mxu0 0.0
        %3624 = vmatprep.subr.mxu0 0.0
        %3625 = vmatpush1.msra.mxu0 0.0
        %3626 = vmatprep.subr.mxu0 0.0
        %3627 = vmatpush1.msra.mxu0 0.0
        %3628 = vmatprep.subr.mxu0 0.0
        %3629 = vmatpush1.msra.mxu0 0.0
        %3630 = vmatprep.subr.mxu0 0.0
        %3631 = vmatpush1.msra.mxu0 0.0
        %3632 = vmatprep.subr.mxu0 0.0
        %3633 = vmatpush1.msra.mxu0 0.0
        %3634 = vmatprep.subr.mxu0 0.0
        %3635 = vmatpush1.msra.mxu0 0.0
        %3636 = vmatprep.mubr.f32.mxu0 0.0
        %3637 = vmatmul.mubr.f32.gmra.mrb[0].mxu0 %v624
        %v3638 = vpop.f32.mrb[0].mxu0
        %v3639 = vadd.f32 %v3570, %v3638
        %v3640 = vpop.f32.mrb[0].mxu0
        %3641 = vdwg.mxu0
        %s3642 = scalar_lea.vmem %s6, 160
        %v3643 = vld [vmem:[%s3642] sm:$0xff]
        %v3644 = vld [vmem:[%s3642 + $0x8] sm:$0xff]
        %v3645 = vld [vmem:[%s3642 + $0x10] sm:$0xff]
        %v3646 = vld [vmem:[%s3642 + $0x18] sm:$0xff]
        %s3647 = scalar_lea.vmem %s8, 17
        %v3648 = vld [vmem:[%s3647] sm:$0x1]
        %v3650 = vlaneseq
        %v3651 = vshrl.u32 %v3650, 7
        %v3652 = vsub.s32 0, %v3651
        %v3653 = vrot.slane %v3648, %v3652
        %3655 = vmatprep.subr.mxu0 0.0
        %3656 = vmatpush1.msra.mxu0 %v3643
        %3657 = vmatprep.subr.mxu0 0.0
        %3658 = vmatpush1.msra.mxu0 %v3644
        %3659 = vmatprep.subr.mxu0 0.0
        %3660 = vmatpush1.msra.mxu0 %v3645
        %3661 = vmatprep.subr.mxu0 0.0
        %3662 = vmatpush1.msra.mxu0 %v3646
        %3663 = vmatprep.subr.mxu0 0.0
        %3664 = vmatpush1.msra.mxu0 0.0
        %3665 = vmatprep.subr.mxu0 0.0
        %3666 = vmatpush1.msra.mxu0 0.0
        %3667 = vmatprep.subr.mxu0 0.0
        %3668 = vmatpush1.msra.mxu0 0.0
        %3669 = vmatprep.subr.mxu0 0.0
        %3670 = vmatpush1.msra.mxu0 0.0
        %3671 = vmatprep.subr.mxu0 0.0
        %3672 = vmatpush1.msra.mxu0 0.0
        %3673 = vmatprep.subr.mxu0 0.0
        %3674 = vmatpush1.msra.mxu0 0.0
        %3675 = vmatprep.subr.mxu0 0.0
        %3676 = vmatpush1.msra.mxu0 0.0
        %3677 = vmatprep.subr.mxu0 0.0
        %3678 = vmatpush1.msra.mxu0 0.0
        %3679 = vmatprep.subr.mxu0 0.0
        %3680 = vmatpush1.msra.mxu0 0.0
        %3681 = vmatprep.subr.mxu0 0.0
        %3682 = vmatpush1.msra.mxu0 0.0
        %3683 = vmatprep.subr.mxu0 0.0
        %3684 = vmatpush1.msra.mxu0 0.0
        %3685 = vmatprep.subr.mxu0 0.0
        %3686 = vmatpush1.msra.mxu0 0.0
        %3687 = vmatprep.subr.mxu0 0.0
        %3688 = vmatpush1.msra.mxu0 0.0
        %3689 = vmatprep.subr.mxu0 0.0
        %3690 = vmatpush1.msra.mxu0 0.0
        %3691 = vmatprep.subr.mxu0 0.0
        %3692 = vmatpush1.msra.mxu0 0.0
        %3693 = vmatprep.subr.mxu0 0.0
        %3694 = vmatpush1.msra.mxu0 0.0
        %3695 = vmatprep.subr.mxu0 0.0
        %3696 = vmatpush1.msra.mxu0 0.0
        %3697 = vmatprep.subr.mxu0 0.0
        %3698 = vmatpush1.msra.mxu0 0.0
        %3699 = vmatprep.subr.mxu0 0.0
        %3700 = vmatpush1.msra.mxu0 0.0
        %3701 = vmatprep.subr.mxu0 0.0
        %3702 = vmatpush1.msra.mxu0 0.0
        %3703 = vmatprep.subr.mxu0 0.0
        %3704 = vmatpush1.msra.mxu0 0.0
        %3705 = vmatprep.subr.mxu0 0.0
        %3706 = vmatpush1.msra.mxu0 0.0
        %3707 = vmatprep.subr.mxu0 0.0
        %3708 = vmatpush1.msra.mxu0 0.0
        %3709 = vmatprep.subr.mxu0 0.0
        %3710 = vmatpush1.msra.mxu0 0.0
        %3711 = vmatprep.subr.mxu0 0.0
        %3712 = vmatpush1.msra.mxu0 0.0
        %3713 = vmatprep.subr.mxu0 0.0
        %3714 = vmatpush1.msra.mxu0 0.0
        %3715 = vmatprep.subr.mxu0 0.0
        %3716 = vmatpush1.msra.mxu0 0.0
        %3717 = vmatprep.subr.mxu0 0.0
        %3718 = vmatpush1.msra.mxu0 0.0
        %3719 = vmatprep.mubr.f32.mxu0 0.0
        %3720 = vmatmul.mubr.f32.gmra.mrb[0].mxu0 %v624
        %v3721 = vpop.f32.mrb[0].mxu0
        %v3722 = vadd.f32 %v3653, %v3721
        %v3723 = vpop.f32.mrb[0].mxu0
        %3724 = vdwg.mxu0
        %v3726 = vsel %vm860, %v3556, 0
        %v3729 = vsel %vm860, %v3639, 0
        %3731 = vmatprep.subr.mxu0 0.0
        %3732 = vmatpush1.xpose.msra.mxu0 %v3729
        %3733 = vmatprep.subr.mxu0 0.0
        %3734 = vmatpush1.xpose.msra.mxu0 0.0
        %3735 = vmatprep.subr.mxu0 0.0
        %3736 = vmatpush1.xpose.msra.mxu0 0.0
        %3737 = vmatprep.subr.mxu0 0.0
        %3738 = vmatpush1.xpose.msra.mxu0 0.0
        %3739 = vmatprep.subr.mxu0 0.0
        %3740 = vmatpush1.xpose.msra.mxu0 0.0
        %3741 = vmatprep.subr.mxu0 0.0
        %3742 = vmatpush1.xpose.msra.mxu0 0.0
        %3743 = vmatprep.subr.mxu0 0.0
        %3744 = vmatpush1.xpose.msra.mxu0 0.0
        %3745 = vmatprep.subr.mxu0 0.0
        %3746 = vmatpush1.xpose.msra.mxu0 0.0
        %3747 = vmatprep.subr.mxu0 0.0
        %3748 = vmatpush1.xpose.msra.mxu0 0.0
        %3749 = vmatprep.subr.mxu0 0.0
        %3750 = vmatpush1.xpose.msra.mxu0 0.0
        %3751 = vmatprep.subr.mxu0 0.0
        %3752 = vmatpush1.xpose.msra.mxu0 0.0
        %3753 = vmatprep.subr.mxu0 0.0
        %3754 = vmatpush1.xpose.msra.mxu0 0.0
        %3755 = vmatprep.subr.mxu0 0.0
        %3756 = vmatpush1.xpose.msra.mxu0 0.0
        %3757 = vmatprep.subr.mxu0 0.0
        %3758 = vmatpush1.xpose.msra.mxu0 0.0
        %3759 = vmatprep.subr.mxu0 0.0
        %3760 = vmatpush1.xpose.msra.mxu0 0.0
        %3761 = vmatprep.subr.mxu0 0.0
        %3762 = vmatpush1.xpose.msra.mxu0 0.0
        %3763 = vmatprep.subr.mxu0 0.0
        %3764 = vmatpush1.xpose.msra.mxu0 0.0
        %3765 = vmatprep.subr.mxu0 0.0
        %3766 = vmatpush1.xpose.msra.mxu0 0.0
        %3767 = vmatprep.subr.mxu0 0.0
        %3768 = vmatpush1.xpose.msra.mxu0 0.0
        %3769 = vmatprep.subr.mxu0 0.0
        %3770 = vmatpush1.xpose.msra.mxu0 0.0
        %3771 = vmatprep.subr.mxu0 0.0
        %3772 = vmatpush1.xpose.msra.mxu0 0.0
        %3773 = vmatprep.subr.mxu0 0.0
        %3774 = vmatpush1.xpose.msra.mxu0 0.0
        %3775 = vmatprep.subr.mxu0 0.0
        %3776 = vmatpush1.xpose.msra.mxu0 0.0
        %3777 = vmatprep.subr.mxu0 0.0
        %3778 = vmatpush1.xpose.msra.mxu0 0.0
        %3779 = vmatprep.subr.mxu0 0.0
        %3780 = vmatpush1.xpose.msra.mxu0 0.0
        %3781 = vmatprep.subr.mxu0 0.0
        %3782 = vmatpush1.xpose.msra.mxu0 0.0
        %3783 = vmatprep.subr.mxu0 0.0
        %3784 = vmatpush1.xpose.msra.mxu0 0.0
        %3785 = vmatprep.subr.mxu0 0.0
        %3786 = vmatpush1.xpose.msra.mxu0 0.0
        %3787 = vmatprep.subr.mxu0 0.0
        %3788 = vmatpush1.xpose.msra.mxu0 0.0
        %3789 = vmatprep.subr.mxu0 0.0
        %3790 = vmatpush1.xpose.msra.mxu0 0.0
        %3791 = vmatprep.subr.mxu0 0.0
        %3792 = vmatpush1.xpose.msra.mxu0 0.0
        %3793 = vmatprep.subr.mxu0 0.0
        %3794 = vmatpush1.xpose.msra.mxu0 0.0
        %3795 = vmatprep.mubr.f32.mxu0 0.0
        %3796 = vmatmul.mubr.f32.gmra.mrb[0].mxu0 %v3726
        %v3797 = vpop.f32.mrb[0].mxu0
        %v3798 = vadd.f32 0.0, %v3797
        %v3799 = vpop.f32.mrb[0].mxu0
        %3800 = vdwg.mxu0
        %v3801 = vmul.f32 %v3798, 0.25
        %v3802 = vadd.f32 %v3801, %v610
        %v3803 = vsel %vm939, %v3802, -inf
        %3804 = vmax.xlane.f32.xlu0 %v3803
        %v3805 = vpop.xlane.xlu0 %3804
        %v3806 = vsub.f32 %v3802, %v3805
        %v3807 = vmul.f32 %v3806, 1.442695
        %v3808 = vpow.pop %v3807
        %v3809 = vsel %vm939, %v3808, 0.0
        %3810 = vadd.xlane.f32.xlu0 %v3809
        %v3811 = vpop.xlane.xlu0 %3810
        %v3812 = vrcp.pop %v3811
        %v3813 = vmul.f32 %v3808, %v3812
        %v3815 = vsel %vm939, %v3813, 0
        %3817 = vmatprep.subr.mxu0 0.0
        %3818 = vmatpush1.msra.mxu0 %v3722
        %3819 = vmatprep.subr.mxu0 0.0
        %3820 = vmatpush1.msra.mxu0 0.0
        %3821 = vmatprep.subr.mxu0 0.0
        %3822 = vmatpush1.msra.mxu0 0.0
        %3823 = vmatprep.subr.mxu0 0.0
        %3824 = vmatpush1.msra.mxu0 0.0
        %3825 = vmatprep.subr.mxu0 0.0
        %3826 = vmatpush1.msra.mxu0 0.0
        %3827 = vmatprep.subr.mxu0 0.0
        %3828 = vmatpush1.msra.mxu0 0.0
        %3829 = vmatprep.subr.mxu0 0.0
        %3830 = vmatpush1.msra.mxu0 0.0
        %3831 = vmatprep.subr.mxu0 0.0
        %3832 = vmatpush1.msra.mxu0 0.0
        %3833 = vmatprep.subr.mxu0 0.0
        %3834 = vmatpush1.msra.mxu0 0.0
        %3835 = vmatprep.subr.mxu0 0.0
        %3836 = vmatpush1.msra.mxu0 0.0
        %3837 = vmatprep.subr.mxu0 0.0
        %3838 = vmatpush1.msra.mxu0 0.0
        %3839 = vmatprep.subr.mxu0 0.0
        %3840 = vmatpush1.msra.mxu0 0.0
        %3841 = vmatprep.subr.mxu0 0.0
        %3842 = vmatpush1.msra.mxu0 0.0
        %3843 = vmatprep.subr.mxu0 0.0
        %3844 = vmatpush1.msra.mxu0 0.0
        %3845 = vmatprep.subr.mxu0 0.0
        %3846 = vmatpush1.msra.mxu0 0.0
        %3847 = vmatprep.subr.mxu0 0.0
        %3848 = vmatpush1.msra.mxu0 0.0
        %3849 = vmatprep.subr.mxu0 0.0
        %3850 = vmatpush1.msra.mxu0 0.0
        %3851 = vmatprep.subr.mxu0 0.0
        %3852 = vmatpush1.msra.mxu0 0.0
        %3853 = vmatprep.subr.mxu0 0.0
        %3854 = vmatpush1.msra.mxu0 0.0
        %3855 = vmatprep.subr.mxu0 0.0
        %3856 = vmatpush1.msra.mxu0 0.0
        %3857 = vmatprep.subr.mxu0 0.0
        %3858 = vmatpush1.msra.mxu0 0.0
        %3859 = vmatprep.subr.mxu0 0.0
        %3860 = vmatpush1.msra.mxu0 0.0
        %3861 = vmatprep.subr.mxu0 0.0
        %3862 = vmatpush1.msra.mxu0 0.0
        %3863 = vmatprep.subr.mxu0 0.0
        %3864 = vmatpush1.msra.mxu0 0.0
        %3865 = vmatprep.subr.mxu0 0.0
        %3866 = vmatpush1.msra.mxu0 0.0
        %3867 = vmatprep.subr.mxu0 0.0
        %3868 = vmatpush1.msra.mxu0 0.0
        %3869 = vmatprep.subr.mxu0 0.0
        %3870 = vmatpush1.msra.mxu0 0.0
        %3871 = vmatprep.subr.mxu0 0.0
        %3872 = vmatpush1.msra.mxu0 0.0
        %3873 = vmatprep.subr.mxu0 0.0
        %3874 = vmatpush1.msra.mxu0 0.0
        %3875 = vmatprep.subr.mxu0 0.0
        %3876 = vmatpush1.msra.mxu0 0.0
        %3877 = vmatprep.subr.mxu0 0.0
        %3878 = vmatpush1.msra.mxu0 0.0
        %3879 = vmatprep.subr.mxu0 0.0
        %3880 = vmatpush1.msra.mxu0 0.0
        %3881 = vmatprep.mubr.f32.mxu0 0.0
        %3882 = vmatmul.mubr.f32.gmra.mrb[0].mxu0 %v3815
        %v3883 = vpop.f32.mrb[0].mxu0
        %v3884 = vadd.f32 0.0, %v3883
        %v3885 = vpop.f32.mrb[0].mxu0
        %3886 = vdwg.mxu0
        %s3887 = scalar_lea.vmem %s7, 80
        %v3888 = vld [vmem:[%s3887] sm:$0xff]
        %v3889 = vld [vmem:[%s3887 + $0x8] sm:$0xff]
        %v3891 = vsel %vm860, %v3884, 0
        %3893 = vmatprep.subr.mxu0 0.0
        %3894 = vmatpush1.msra.mxu0 %v3888
        %3895 = vmatprep.subr.mxu0 0.0
        %3896 = vmatpush1.msra.mxu0 %v3889
        %3897 = vmatprep.subr.mxu0 0.0
        %3898 = vmatpush1.msra.mxu0 0.0
        %3899 = vmatprep.subr.mxu0 0.0
        %3900 = vmatpush1.msra.mxu0 0.0
        %3901 = vmatprep.subr.mxu0 0.0
        %3902 = vmatpush1.msra.mxu0 0.0
        %3903 = vmatprep.subr.mxu0 0.0
        %3904 = vmatpush1.msra.mxu0 0.0
        %3905 = vmatprep.subr.mxu0 0.0
        %3906 = vmatpush1.msra.mxu0 0.0
        %3907 = vmatprep.subr.mxu0 0.0
        %3908 = vmatpush1.msra.mxu0 0.0
        %3909 = vmatprep.subr.mxu0 0.0
        %3910 = vmatpush1.msra.mxu0 0.0
        %3911 = vmatprep.subr.mxu0 0.0
        %3912 = vmatpush1.msra.mxu0 0.0
        %3913 = vmatprep.subr.mxu0 0.0
        %3914 = vmatpush1.msra.mxu0 0.0
        %3915 = vmatprep.subr.mxu0 0.0
        %3916 = vmatpush1.msra.mxu0 0.0
        %3917 = vmatprep.subr.mxu0 0.0
        %3918 = vmatpush1.msra.mxu0 0.0
        %3919 = vmatprep.subr.mxu0 0.0
        %3920 = vmatpush1.msra.mxu0 0.0
        %3921 = vmatprep.subr.mxu0 0.0
        %3922 = vmatpush1.msra.mxu0 0.0
        %3923 = vmatprep.subr.mxu0 0.0
        %3924 = vmatpush1.msra.mxu0 0.0
        %3925 = vmatprep.subr.mxu0 0.0
        %3926 = vmatpush1.msra.mxu0 0.0
        %3927 = vmatprep.subr.mxu0 0.0
        %3928 = vmatpush1.msra.mxu0 0.0
        %3929 = vmatprep.subr.mxu0 0.0
        %3930 = vmatpush1.msra.mxu0 0.0
        %3931 = vmatprep.subr.mxu0 0.0
        %3932 = vmatpush1.msra.mxu0 0.0
        %3933 = vmatprep.subr.mxu0 0.0
        %3934 = vmatpush1.msra.mxu0 0.0
        %3935 = vmatprep.subr.mxu0 0.0
        %3936 = vmatpush1.msra.mxu0 0.0
        %3937 = vmatprep.subr.mxu0 0.0
        %3938 = vmatpush1.msra.mxu0 0.0
        %3939 = vmatprep.subr.mxu0 0.0
        %3940 = vmatpush1.msra.mxu0 0.0
        %3941 = vmatprep.subr.mxu0 0.0
        %3942 = vmatpush1.msra.mxu0 0.0
        %3943 = vmatprep.subr.mxu0 0.0
        %3944 = vmatpush1.msra.mxu0 0.0
        %3945 = vmatprep.subr.mxu0 0.0
        %3946 = vmatpush1.msra.mxu0 0.0
        %3947 = vmatprep.subr.mxu0 0.0
        %3948 = vmatpush1.msra.mxu0 0.0
        %3949 = vmatprep.subr.mxu0 0.0
        %3950 = vmatpush1.msra.mxu0 0.0
        %3951 = vmatprep.subr.mxu0 0.0
        %3952 = vmatpush1.msra.mxu0 0.0
        %3953 = vmatprep.subr.mxu0 0.0
        %3954 = vmatpush1.msra.mxu0 0.0
        %3955 = vmatprep.subr.mxu0 0.0
        %3956 = vmatpush1.msra.mxu0 0.0
        %3957 = vmatprep.mubr.f32.mxu0 0.0
        %3958 = vmatmul.mubr.f32.gmra.mrb[0].mxu0 %v3891
        %v3959 = vpop.f32.mrb[0].mxu0
        %v3960 = vadd.f32 0.0, %v3959
        %v3961 = vpop.f32.mrb[0].mxu0
        %3962 = vdwg.mxu0
        %v3964 = vsel %vm860, %v3470, 0
        %3966 = vmatprep.subr.mxu0 0.0
        %3967 = vmatpush1.msra.mxu0 %v3474
        %3968 = vmatprep.subr.mxu0 0.0
        %3969 = vmatpush1.msra.mxu0 %v3475
        %3970 = vmatprep.subr.mxu0 0.0
        %3971 = vmatpush1.msra.mxu0 0.0
        %3972 = vmatprep.subr.mxu0 0.0
        %3973 = vmatpush1.msra.mxu0 0.0
        %3974 = vmatprep.subr.mxu0 0.0
        %3975 = vmatpush1.msra.mxu0 0.0
        %3976 = vmatprep.subr.mxu0 0.0
        %3977 = vmatpush1.msra.mxu0 0.0
        %3978 = vmatprep.subr.mxu0 0.0
        %3979 = vmatpush1.msra.mxu0 0.0
        %3980 = vmatprep.subr.mxu0 0.0
        %3981 = vmatpush1.msra.mxu0 0.0
        %3982 = vmatprep.subr.mxu0 0.0
        %3983 = vmatpush1.msra.mxu0 0.0
        %3984 = vmatprep.subr.mxu0 0.0
        %3985 = vmatpush1.msra.mxu0 0.0
        %3986 = vmatprep.subr.mxu0 0.0
        %3987 = vmatpush1.msra.mxu0 0.0
        %3988 = vmatprep.subr.mxu0 0.0
        %3989 = vmatpush1.msra.mxu0 0.0
        %3990 = vmatprep.subr.mxu0 0.0
        %3991 = vmatpush1.msra.mxu0 0.0
        %3992 = vmatprep.subr.mxu0 0.0
        %3993 = vmatpush1.msra.mxu0 0.0
        %3994 = vmatprep.subr.mxu0 0.0
        %3995 = vmatpush1.msra.mxu0 0.0
        %3996 = vmatprep.subr.mxu0 0.0
        %3997 = vmatpush1.msra.mxu0 0.0
        %3998 = vmatprep.subr.mxu0 0.0
        %3999 = vmatpush1.msra.mxu0 0.0
        %4000 = vmatprep.subr.mxu0 0.0
        %4001 = vmatpush1.msra.mxu0 0.0
        %4002 = vmatprep.subr.mxu0 0.0
        %4003 = vmatpush1.msra.mxu0 0.0
        %4004 = vmatprep.subr.mxu0 0.0
        %4005 = vmatpush1.msra.mxu0 0.0
        %4006 = vmatprep.subr.mxu0 0.0
        %4007 = vmatpush1.msra.mxu0 0.0
        %4008 = vmatprep.subr.mxu0 0.0
        %4009 = vmatpush1.msra.mxu0 0.0
        %4010 = vmatprep.subr.mxu0 0.0
        %4011 = vmatpush1.msra.mxu0 0.0
        %4012 = vmatprep.subr.mxu0 0.0
        %4013 = vmatpush1.msra.mxu0 0.0
        %4014 = vmatprep.subr.mxu0 0.0
        %4015 = vmatpush1.msra.mxu0 0.0
        %4016 = vmatprep.subr.mxu0 0.0
        %4017 = vmatpush1.msra.mxu0 0.0
        %4018 = vmatprep.subr.mxu0 0.0
        %4019 = vmatpush1.msra.mxu0 0.0
        %4020 = vmatprep.subr.mxu0 0.0
        %4021 = vmatpush1.msra.mxu0 0.0
        %4022 = vmatprep.subr.mxu0 0.0
        %4023 = vmatpush1.msra.mxu0 0.0
        %4024 = vmatprep.subr.mxu0 0.0
        %4025 = vmatpush1.msra.mxu0 0.0
        %4026 = vmatprep.subr.mxu0 0.0
        %4027 = vmatpush1.msra.mxu0 0.0
        %4028 = vmatprep.subr.mxu0 0.0
        %4029 = vmatpush1.msra.mxu0 0.0
        %4030 = vmatprep.mubr.f32.mxu0 0.0
        %4031 = vmatmul.mubr.f32.gmra.mrb[0].mxu0 %v3964
        %v4032 = vpop.f32.mrb[0].mxu0
        %v4033 = vadd.f32 %v3960, %v4032
        %v4034 = vpop.f32.mrb[0].mxu0
        %4035 = vdwg.mxu0
        %v4036 = vlaneseq
        %v4037 = vshrl.u32 %v4036, 7
        %v4038 = vsub.s32 0, %v4037
        %v4039 = vrot.slane %v3061, %v4038
        %v4040 = vadd.f32 %v4033, %v4039
        %v4041 = vadd.f32 %v4040, %v595
        %v4042 = vsel %vm564, %v4041, 0.0
        %4043 = vadd.xlane.f32.xlu0 %v4042
        %v4044 = vpop.xlane.xlu0 %4043
        %v4045 = vmul.f32 %v4044, %v568
        %v4046 = vsub.f32 %v4041, %v4045
        %v4047 = vmul.f32 %v4046, %v4046
        %v4048 = vsel %vm564, %v4047, 0.0
        %4049 = vadd.xlane.f32.xlu0 %v4048
        %v4050 = vpop.xlane.xlu0 %4049
        %v4051 = vmul.f32 %v4050, %v568
        %v4052 = vadd.f32 %v4051, 1e-12
        %v4053 = vrsqrt.pop %v4052
        %v4054 = vmul.f32 %v4052, %v4053
        %vm4055 = vcmp.eq.f32.partialorder %v4052, inf
        %v4056 = vsel %vm4055, %v4052, %v4054
        %vm4057 = vcmp.eq.f32.partialorder %v4052, 0.0
        %v4058 = vand.u32 %v4052, 2147483648
        %v4059 = vsel %vm4057, %v4058, %v4056
        %v4060 = vrcp.pop %v4059
        %v4061 = vmul.f32 %v4046, %v4060
        %v4062 = vlaneseq
        %v4063 = vshrl.u32 %v4062, 7
        %v4064 = vsub.s32 2, %v4063
        %v4065 = vrot.slane %v3061, %v4064
        %v4066 = vmul.f32 %v4061, %v4065
        %v4067 = vlaneseq
        %v4068 = vshrl.u32 %v4067, 7
        %v4069 = vsub.s32 3, %v4068
        %v4070 = vrot.slane %v3061, %v4069
        %v4071 = vadd.f32 %v4066, %v4070
        %s4072 = scalar_lea.vmem %s9, 64
        %v4073 = vld [vmem:[%s4072] sm:$0xff]
        %v4074 = vld [vmem:[%s4072 + $0x8] sm:$0xff]
        %v4075 = vld [vmem:[%s4072 + $0x10] sm:$0xff]
        %v4076 = vld [vmem:[%s4072 + $0x18] sm:$0xff]
        %s4077 = scalar_lea.vmem %s11, 2
        %v4078 = vld [vmem:[%s4077] sm:$0x1]
        %v4080 = vlaneseq
        %v4081 = vshrl.u32 %v4080, 7
        %v4082 = vsub.s32 0, %v4081
        %v4083 = vrot.slane %v4078, %v4082
        %v4086 = vsel %vm564, %v4071, 0
        %4088 = vmatprep.subr.mxu0 0.0
        %4089 = vmatpush1.msra.mxu0 %v4073
        %4090 = vmatprep.subr.mxu0 0.0
        %4091 = vmatpush1.msra.mxu0 %v4074
        %4092 = vmatprep.subr.mxu0 0.0
        %4093 = vmatpush1.msra.mxu0 %v4075
        %4094 = vmatprep.subr.mxu0 0.0
        %4095 = vmatpush1.msra.mxu0 %v4076
        %4096 = vmatprep.subr.mxu0 0.0
        %4097 = vmatpush1.msra.mxu0 0.0
        %4098 = vmatprep.subr.mxu0 0.0
        %4099 = vmatpush1.msra.mxu0 0.0
        %4100 = vmatprep.subr.mxu0 0.0
        %4101 = vmatpush1.msra.mxu0 0.0
        %4102 = vmatprep.subr.mxu0 0.0
        %4103 = vmatpush1.msra.mxu0 0.0
        %4104 = vmatprep.subr.mxu0 0.0
        %4105 = vmatpush1.msra.mxu0 0.0
        %4106 = vmatprep.subr.mxu0 0.0
        %4107 = vmatpush1.msra.mxu0 0.0
        %4108 = vmatprep.subr.mxu0 0.0
        %4109 = vmatpush1.msra.mxu0 0.0
        %4110 = vmatprep.subr.mxu0 0.0
        %4111 = vmatpush1.msra.mxu0 0.0
        %4112 = vmatprep.subr.mxu0 0.0
        %4113 = vmatpush1.msra.mxu0 0.0
        %4114 = vmatprep.subr.mxu0 0.0
        %4115 = vmatpush1.msra.mxu0 0.0
        %4116 = vmatprep.subr.mxu0 0.0
        %4117 = vmatpush1.msra.mxu0 0.0
        %4118 = vmatprep.subr.mxu0 0.0
        %4119 = vmatpush1.msra.mxu0 0.0
        %4120 = vmatprep.subr.mxu0 0.0
        %4121 = vmatpush1.msra.mxu0 0.0
        %4122 = vmatprep.subr.mxu0 0.0
        %4123 = vmatpush1.msra.mxu0 0.0
        %4124 = vmatprep.subr.mxu0 0.0
        %4125 = vmatpush1.msra.mxu0 0.0
        %4126 = vmatprep.subr.mxu0 0.0
        %4127 = vmatpush1.msra.mxu0 0.0
        %4128 = vmatprep.subr.mxu0 0.0
        %4129 = vmatpush1.msra.mxu0 0.0
        %4130 = vmatprep.subr.mxu0 0.0
        %4131 = vmatpush1.msra.mxu0 0.0
        %4132 = vmatprep.subr.mxu0 0.0
        %4133 = vmatpush1.msra.mxu0 0.0
        %4134 = vmatprep.subr.mxu0 0.0
        %4135 = vmatpush1.msra.mxu0 0.0
        %4136 = vmatprep.subr.mxu0 0.0
        %4137 = vmatpush1.msra.mxu0 0.0
        %4138 = vmatprep.subr.mxu0 0.0
        %4139 = vmatpush1.msra.mxu0 0.0
        %4140 = vmatprep.subr.mxu0 0.0
        %4141 = vmatpush1.msra.mxu0 0.0
        %4142 = vmatprep.subr.mxu0 0.0
        %4143 = vmatpush1.msra.mxu0 0.0
        %4144 = vmatprep.subr.mxu0 0.0
        %4145 = vmatpush1.msra.mxu0 0.0
        %4146 = vmatprep.subr.mxu0 0.0
        %4147 = vmatpush1.msra.mxu0 0.0
        %4148 = vmatprep.subr.mxu0 0.0
        %4149 = vmatpush1.msra.mxu0 0.0
        %4150 = vmatprep.subr.mxu0 0.0
        %4151 = vmatpush1.msra.mxu0 0.0
        %4152 = vmatprep.mubr.f32.mxu0 0.0
        %4153 = vmatmul.mubr.f32.gmra.mrb[0].mxu0 %v4086
        %v4154 = vpop.f32.mrb[0].mxu0
        %v4155 = vadd.f32 %v4083, %v4154
        %v4156 = vpop.f32.mrb[0].mxu0
        %4157 = vdwg.mxu0
        %v4158 = vmul.f32 %v4155, 0.5
        %v4159 = vmul.f32 %v4155, 0.70710677
        %v4160 = verf.f32.pop %v4159
        %v4161 = vadd.f32 %v4160, 1.0
        %v4162 = vmul.f32 %v4158, %v4161
        %s4163 = scalar_lea.vmem %s10, 256
        %v4164 = vld [vmem:[%s4163] sm:$0xff]
        %v4165 = vld [vmem:[%s4163 + $0x8] sm:$0xff]
        %v4166 = vld [vmem:[%s4163 + $0x10] sm:$0xff]
        %v4167 = vld [vmem:[%s4163 + $0x18] sm:$0xff]
        %v4168 = vld [vmem:[%s4163 + $0x20] sm:$0xff]
        %v4169 = vld [vmem:[%s4163 + $0x28] sm:$0xff]
        %v4170 = vld [vmem:[%s4163 + $0x30] sm:$0xff]
        %v4171 = vld [vmem:[%s4163 + $0x38] sm:$0xff]
        %v4172 = vld [vmem:[%s4163 + $0x40] sm:$0xff]
        %v4173 = vld [vmem:[%s4163 + $0x48] sm:$0xff]
        %v4174 = vld [vmem:[%s4163 + $0x50] sm:$0xff]
        %v4175 = vld [vmem:[%s4163 + $0x58] sm:$0xff]
        %v4176 = vld [vmem:[%s4163 + $0x60] sm:$0xff]
        %v4177 = vld [vmem:[%s4163 + $0x68] sm:$0xff]
        %v4178 = vld [vmem:[%s4163 + $0x70] sm:$0xff]
        %v4179 = vld [vmem:[%s4163 + $0x78] sm:$0xff]
        %v4180 = vlaneseq
        %v4181 = vshrl.u32 %v4180, 7
        %v4182 = vsub.s32 1, %v4181
        %v4183 = vrot.slane %v3061, %v4182
        %4184 = vmatprep.subr.mxu0 0.0
        %4185 = vmatpush1.msra.mxu0 %v4164
        %4186 = vmatprep.subr.mxu0 0.0
        %4187 = vmatpush1.msra.mxu0 %v4165
        %4188 = vmatprep.subr.mxu0 0.0
        %4189 = vmatpush1.msra.mxu0 %v4166
        %4190 = vmatprep.subr.mxu0 0.0
        %4191 = vmatpush1.msra.mxu0 %v4167
        %4192 = vmatprep.subr.mxu0 0.0
        %4193 = vmatpush1.msra.mxu0 %v4168
        %4194 = vmatprep.subr.mxu0 0.0
        %4195 = vmatpush1.msra.mxu0 %v4169
        %4196 = vmatprep.subr.mxu0 0.0
        %4197 = vmatpush1.msra.mxu0 %v4170
        %4198 = vmatprep.subr.mxu0 0.0
        %4199 = vmatpush1.msra.mxu0 %v4171
        %4200 = vmatprep.subr.mxu0 0.0
        %4201 = vmatpush1.msra.mxu0 %v4172
        %4202 = vmatprep.subr.mxu0 0.0
        %4203 = vmatpush1.msra.mxu0 %v4173
        %4204 = vmatprep.subr.mxu0 0.0
        %4205 = vmatpush1.msra.mxu0 %v4174
        %4206 = vmatprep.subr.mxu0 0.0
        %4207 = vmatpush1.msra.mxu0 %v4175
        %4208 = vmatprep.subr.mxu0 0.0
        %4209 = vmatpush1.msra.mxu0 %v4176
        %4210 = vmatprep.subr.mxu0 0.0
        %4211 = vmatpush1.msra.mxu0 %v4177
        %4212 = vmatprep.subr.mxu0 0.0
        %4213 = vmatpush1.msra.mxu0 %v4178
        %4214 = vmatprep.subr.mxu0 0.0
        %4215 = vmatpush1.msra.mxu0 %v4179
        %4216 = vmatprep.subr.mxu0 0.0
        %4217 = vmatpush1.msra.mxu0 0.0
        %4218 = vmatprep.subr.mxu0 0.0
        %4219 = vmatpush1.msra.mxu0 0.0
        %4220 = vmatprep.subr.mxu0 0.0
        %4221 = vmatpush1.msra.mxu0 0.0
        %4222 = vmatprep.subr.mxu0 0.0
        %4223 = vmatpush1.msra.mxu0 0.0
        %4224 = vmatprep.subr.mxu0 0.0
        %4225 = vmatpush1.msra.mxu0 0.0
        %4226 = vmatprep.subr.mxu0 0.0
        %4227 = vmatpush1.msra.mxu0 0.0
        %4228 = vmatprep.subr.mxu0 0.0
        %4229 = vmatpush1.msra.mxu0 0.0
        %4230 = vmatprep.subr.mxu0 0.0
        %4231 = vmatpush1.msra.mxu0 0.0
        %4232 = vmatprep.subr.mxu0 0.0
        %4233 = vmatpush1.msra.mxu0 0.0
        %4234 = vmatprep.subr.mxu0 0.0
        %4235 = vmatpush1.msra.mxu0 0.0
        %4236 = vmatprep.subr.mxu0 0.0
        %4237 = vmatpush1.msra.mxu0 0.0
        %4238 = vmatprep.subr.mxu0 0.0
        %4239 = vmatpush1.msra.mxu0 0.0
        %4240 = vmatprep.subr.mxu0 0.0
        %4241 = vmatpush1.msra.mxu0 0.0
        %4242 = vmatprep.subr.mxu0 0.0
        %4243 = vmatpush1.msra.mxu0 0.0
        %4244 = vmatprep.subr.mxu0 0.0
        %4245 = vmatpush1.msra.mxu0 0.0
        %4246 = vmatprep.subr.mxu0 0.0
        %4247 = vmatpush1.msra.mxu0 0.0
        %4248 = vmatprep.mubr.f32.mxu0 0.0
        %4249 = vmatmul.mubr.f32.gmra.mrb[0].mxu0 %v4162
        %v4250 = vpop.f32.mrb[0].mxu0
        %v4251 = vadd.f32 %v4183, %v4250
        %v4252 = vpop.f32.mrb[0].mxu0
        %4253 = vdwg.mxu0
        %v4254 = vadd.f32 %v4251, %v4071
        %v4255 = vsel %vm564, %v4254, 0.0
        %4256 = vadd.xlane.f32.xlu0 %v4255
        %v4257 = vpop.xlane.xlu0 %4256
        %v4258 = vmul.f32 %v4257, %v568
        %v4259 = vsub.f32 %v4254, %v4258
        %v4260 = vmul.f32 %v4259, %v4259
        %v4261 = vsel %vm564, %v4260, 0.0
        %4262 = vadd.xlane.f32.xlu0 %v4261
        %v4263 = vpop.xlane.xlu0 %4262
        %v4264 = vmul.f32 %v4263, %v568
        %v4265 = vadd.f32 %v4264, 1e-12
        %v4266 = vrsqrt.pop %v4265
        %v4267 = vmul.f32 %v4265, %v4266
        %vm4268 = vcmp.eq.f32.partialorder %v4265, inf
        %v4269 = vsel %vm4268, %v4265, %v4267
        %vm4270 = vcmp.eq.f32.partialorder %v4265, 0.0
        %v4271 = vand.u32 %v4265, 2147483648
        %v4272 = vsel %vm4270, %v4271, %v4269
        %v4273 = vrcp.pop %v4272
        %v4274 = vmul.f32 %v4259, %v4273
        %v4275 = vlaneseq
        %v4276 = vshrl.u32 %v4275, 7
        %v4277 = vsub.s32 4, %v4276
        %v4278 = vrot.slane %v3061, %v4277
        %v4279 = vmul.f32 %v4274, %v4278
        %v4280 = vlaneseq
        %v4281 = vshrl.u32 %v4280, 7
        %v4282 = vsub.s32 5, %v4281
        %v4283 = vrot.slane %v3061, %v4282
        %v4284 = vadd.f32 %v4279, %v4283
        %s4285 = scalar_lea.vmem %s12, 24
        %v4286 = vld [vmem:[%s4285] sm:$0xff]
        %s4287 = scalar_lea.vmem %s4, 192
        %v4288 = vld [vmem:[%s4287] sm:$0xff]
        %v4289 = vld [vmem:[%s4287 + $0x8] sm:$0xff]
        %v4290 = vld [vmem:[%s4287 + $0x10] sm:$0xff]
        %v4291 = vld [vmem:[%s4287 + $0x18] sm:$0xff]
        %s4292 = scalar_lea.vmem %s8, 18
        %v4293 = vld [vmem:[%s4292] sm:$0x1]
        %v4295 = vlaneseq
        %v4296 = vshrl.u32 %v4295, 7
        %v4297 = vsub.s32 0, %v4296
        %v4298 = vrot.slane %v4293, %v4297
        %v4301 = vsel %vm564, %v4284, 0
        %4303 = vmatprep.subr.mxu0 0.0
        %4304 = vmatpush1.msra.mxu0 %v4288
        %4305 = vmatprep.subr.mxu0 0.0
        %4306 = vmatpush1.msra.mxu0 %v4289
        %4307 = vmatprep.subr.mxu0 0.0
        %4308 = vmatpush1.msra.mxu0 %v4290
        %4309 = vmatprep.subr.mxu0 0.0
        %4310 = vmatpush1.msra.mxu0 %v4291
        %4311 = vmatprep.subr.mxu0 0.0
        %4312 = vmatpush1.msra.mxu0 0.0
        %4313 = vmatprep.subr.mxu0 0.0
        %4314 = vmatpush1.msra.mxu0 0.0
        %4315 = vmatprep.subr.mxu0 0.0
        %4316 = vmatpush1.msra.mxu0 0.0
        %4317 = vmatprep.subr.mxu0 0.0
        %4318 = vmatpush1.msra.mxu0 0.0
        %4319 = vmatprep.subr.mxu0 0.0
        %4320 = vmatpush1.msra.mxu0 0.0
        %4321 = vmatprep.subr.mxu0 0.0
        %4322 = vmatpush1.msra.mxu0 0.0
        %4323 = vmatprep.subr.mxu0 0.0
        %4324 = vmatpush1.msra.mxu0 0.0
        %4325 = vmatprep.subr.mxu0 0.0
        %4326 = vmatpush1.msra.mxu0 0.0
        %4327 = vmatprep.subr.mxu0 0.0
        %4328 = vmatpush1.msra.mxu0 0.0
        %4329 = vmatprep.subr.mxu0 0.0
        %4330 = vmatpush1.msra.mxu0 0.0
        %4331 = vmatprep.subr.mxu0 0.0
        %4332 = vmatpush1.msra.mxu0 0.0
        %4333 = vmatprep.subr.mxu0 0.0
        %4334 = vmatpush1.msra.mxu0 0.0
        %4335 = vmatprep.subr.mxu0 0.0
        %4336 = vmatpush1.msra.mxu0 0.0
        %4337 = vmatprep.subr.mxu0 0.0
        %4338 = vmatpush1.msra.mxu0 0.0
        %4339 = vmatprep.subr.mxu0 0.0
        %4340 = vmatpush1.msra.mxu0 0.0
        %4341 = vmatprep.subr.mxu0 0.0
        %4342 = vmatpush1.msra.mxu0 0.0
        %4343 = vmatprep.subr.mxu0 0.0
        %4344 = vmatpush1.msra.mxu0 0.0
        %4345 = vmatprep.subr.mxu0 0.0
        %4346 = vmatpush1.msra.mxu0 0.0
        %4347 = vmatprep.subr.mxu0 0.0
        %4348 = vmatpush1.msra.mxu0 0.0
        %4349 = vmatprep.subr.mxu0 0.0
        %4350 = vmatpush1.msra.mxu0 0.0
        %4351 = vmatprep.subr.mxu0 0.0
        %4352 = vmatpush1.msra.mxu0 0.0
        %4353 = vmatprep.subr.mxu0 0.0
        %4354 = vmatpush1.msra.mxu0 0.0
        %4355 = vmatprep.subr.mxu0 0.0
        %4356 = vmatpush1.msra.mxu0 0.0
        %4357 = vmatprep.subr.mxu0 0.0
        %4358 = vmatpush1.msra.mxu0 0.0
        %4359 = vmatprep.subr.mxu0 0.0
        %4360 = vmatpush1.msra.mxu0 0.0
        %4361 = vmatprep.subr.mxu0 0.0
        %4362 = vmatpush1.msra.mxu0 0.0
        %4363 = vmatprep.subr.mxu0 0.0
        %4364 = vmatpush1.msra.mxu0 0.0
        %4365 = vmatprep.subr.mxu0 0.0
        %4366 = vmatpush1.msra.mxu0 0.0
        %4367 = vmatprep.mubr.f32.mxu0 0.0
        %4368 = vmatmul.mubr.f32.gmra.mrb[0].mxu0 %v4301
        %v4369 = vpop.f32.mrb[0].mxu0
        %v4370 = vadd.f32 %v4298, %v4369
        %v4371 = vpop.f32.mrb[0].mxu0
        %4372 = vdwg.mxu0
        %s4373 = scalar_lea.vmem %s5, 192
        %v4374 = vld [vmem:[%s4373] sm:$0xff]
        %v4375 = vld [vmem:[%s4373 + $0x8] sm:$0xff]
        %v4376 = vld [vmem:[%s4373 + $0x10] sm:$0xff]
        %v4377 = vld [vmem:[%s4373 + $0x18] sm:$0xff]
        %s4378 = scalar_lea.vmem %s8, 19
        %v4379 = vld [vmem:[%s4378] sm:$0x1]
        %v4381 = vlaneseq
        %v4382 = vshrl.u32 %v4381, 7
        %v4383 = vsub.s32 0, %v4382
        %v4384 = vrot.slane %v4379, %v4383
        %4386 = vmatprep.subr.mxu0 0.0
        %4387 = vmatpush1.msra.mxu0 %v4374
        %4388 = vmatprep.subr.mxu0 0.0
        %4389 = vmatpush1.msra.mxu0 %v4375
        %4390 = vmatprep.subr.mxu0 0.0
        %4391 = vmatpush1.msra.mxu0 %v4376
        %4392 = vmatprep.subr.mxu0 0.0
        %4393 = vmatpush1.msra.mxu0 %v4377
        %4394 = vmatprep.subr.mxu0 0.0
        %4395 = vmatpush1.msra.mxu0 0.0
        %4396 = vmatprep.subr.mxu0 0.0
        %4397 = vmatpush1.msra.mxu0 0.0
        %4398 = vmatprep.subr.mxu0 0.0
        %4399 = vmatpush1.msra.mxu0 0.0
        %4400 = vmatprep.subr.mxu0 0.0
        %4401 = vmatpush1.msra.mxu0 0.0
        %4402 = vmatprep.subr.mxu0 0.0
        %4403 = vmatpush1.msra.mxu0 0.0
        %4404 = vmatprep.subr.mxu0 0.0
        %4405 = vmatpush1.msra.mxu0 0.0
        %4406 = vmatprep.subr.mxu0 0.0
        %4407 = vmatpush1.msra.mxu0 0.0
        %4408 = vmatprep.subr.mxu0 0.0
        %4409 = vmatpush1.msra.mxu0 0.0
        %4410 = vmatprep.subr.mxu0 0.0
        %4411 = vmatpush1.msra.mxu0 0.0
        %4412 = vmatprep.subr.mxu0 0.0
        %4413 = vmatpush1.msra.mxu0 0.0
        %4414 = vmatprep.subr.mxu0 0.0
        %4415 = vmatpush1.msra.mxu0 0.0
        %4416 = vmatprep.subr.mxu0 0.0
        %4417 = vmatpush1.msra.mxu0 0.0
        %4418 = vmatprep.subr.mxu0 0.0
        %4419 = vmatpush1.msra.mxu0 0.0
        %4420 = vmatprep.subr.mxu0 0.0
        %4421 = vmatpush1.msra.mxu0 0.0
        %4422 = vmatprep.subr.mxu0 0.0
        %4423 = vmatpush1.msra.mxu0 0.0
        %4424 = vmatprep.subr.mxu0 0.0
        %4425 = vmatpush1.msra.mxu0 0.0
        %4426 = vmatprep.subr.mxu0 0.0
        %4427 = vmatpush1.msra.mxu0 0.0
        %4428 = vmatprep.subr.mxu0 0.0
        %4429 = vmatpush1.msra.mxu0 0.0
        %4430 = vmatprep.subr.mxu0 0.0
        %4431 = vmatpush1.msra.mxu0 0.0
        %4432 = vmatprep.subr.mxu0 0.0
        %4433 = vmatpush1.msra.mxu0 0.0
        %4434 = vmatprep.subr.mxu0 0.0
        %4435 = vmatpush1.msra.mxu0 0.0
        %4436 = vmatprep.subr.mxu0 0.0
        %4437 = vmatpush1.msra.mxu0 0.0
        %4438 = vmatprep.subr.mxu0 0.0
        %4439 = vmatpush1.msra.mxu0 0.0
        %4440 = vmatprep.subr.mxu0 0.0
        %4441 = vmatpush1.msra.mxu0 0.0
        %4442 = vmatprep.subr.mxu0 0.0
        %4443 = vmatpush1.msra.mxu0 0.0
        %4444 = vmatprep.subr.mxu0 0.0
        %4445 = vmatpush1.msra.mxu0 0.0
        %4446 = vmatprep.subr.mxu0 0.0
        %4447 = vmatpush1.msra.mxu0 0.0
        %4448 = vmatprep.subr.mxu0 0.0
        %4449 = vmatpush1.msra.mxu0 0.0
        %4450 = vmatprep.mubr.f32.mxu0 0.0
        %4451 = vmatmul.mubr.f32.gmra.mrb[0].mxu0 %v4301
        %v4452 = vpop.f32.mrb[0].mxu0
        %v4453 = vadd.f32 %v4384, %v4452
        %v4454 = vpop.f32.mrb[0].mxu0
        %4455 = vdwg.mxu0
        %s4456 = scalar_lea.vmem %s6, 192
        %v4457 = vld [vmem:[%s4456] sm:$0xff]
        %v4458 = vld [vmem:[%s4456 + $0x8] sm:$0xff]
        %v4459 = vld [vmem:[%s4456 + $0x10] sm:$0xff]
        %v4460 = vld [vmem:[%s4456 + $0x18] sm:$0xff]
        %s4461 = scalar_lea.vmem %s8, 20
        %v4462 = vld [vmem:[%s4461] sm:$0x1]
        %v4464 = vlaneseq
        %v4465 = vshrl.u32 %v4464, 7
        %v4466 = vsub.s32 0, %v4465
        %v4467 = vrot.slane %v4462, %v4466
        %4469 = vmatprep.subr.mxu0 0.0
        %4470 = vmatpush1.msra.mxu0 %v4457
        %4471 = vmatprep.subr.mxu0 0.0
        %4472 = vmatpush1.msra.mxu0 %v4458
        %4473 = vmatprep.subr.mxu0 0.0
        %4474 = vmatpush1.msra.mxu0 %v4459
        %4475 = vmatprep.subr.mxu0 0.0
        %4476 = vmatpush1.msra.mxu0 %v4460
        %4477 = vmatprep.subr.mxu0 0.0
        %4478 = vmatpush1.msra.mxu0 0.0
        %4479 = vmatprep.subr.mxu0 0.0
        %4480 = vmatpush1.msra.mxu0 0.0
        %4481 = vmatprep.subr.mxu0 0.0
        %4482 = vmatpush1.msra.mxu0 0.0
        %4483 = vmatprep.subr.mxu0 0.0
        %4484 = vmatpush1.msra.mxu0 0.0
        %4485 = vmatprep.subr.mxu0 0.0
        %4486 = vmatpush1.msra.mxu0 0.0
        %4487 = vmatprep.subr.mxu0 0.0
        %4488 = vmatpush1.msra.mxu0 0.0
        %4489 = vmatprep.subr.mxu0 0.0
        %4490 = vmatpush1.msra.mxu0 0.0
        %4491 = vmatprep.subr.mxu0 0.0
        %4492 = vmatpush1.msra.mxu0 0.0
        %4493 = vmatprep.subr.mxu0 0.0
        %4494 = vmatpush1.msra.mxu0 0.0
        %4495 = vmatprep.subr.mxu0 0.0
        %4496 = vmatpush1.msra.mxu0 0.0
        %4497 = vmatprep.subr.mxu0 0.0
        %4498 = vmatpush1.msra.mxu0 0.0
        %4499 = vmatprep.subr.mxu0 0.0
        %4500 = vmatpush1.msra.mxu0 0.0
        %4501 = vmatprep.subr.mxu0 0.0
        %4502 = vmatpush1.msra.mxu0 0.0
        %4503 = vmatprep.subr.mxu0 0.0
        %4504 = vmatpush1.msra.mxu0 0.0
        %4505 = vmatprep.subr.mxu0 0.0
        %4506 = vmatpush1.msra.mxu0 0.0
        %4507 = vmatprep.subr.mxu0 0.0
        %4508 = vmatpush1.msra.mxu0 0.0
        %4509 = vmatprep.subr.mxu0 0.0
        %4510 = vmatpush1.msra.mxu0 0.0
        %4511 = vmatprep.subr.mxu0 0.0
        %4512 = vmatpush1.msra.mxu0 0.0
        %4513 = vmatprep.subr.mxu0 0.0
        %4514 = vmatpush1.msra.mxu0 0.0
        %4515 = vmatprep.subr.mxu0 0.0
        %4516 = vmatpush1.msra.mxu0 0.0
        %4517 = vmatprep.subr.mxu0 0.0
        %4518 = vmatpush1.msra.mxu0 0.0
        %4519 = vmatprep.subr.mxu0 0.0
        %4520 = vmatpush1.msra.mxu0 0.0
        %4521 = vmatprep.subr.mxu0 0.0
        %4522 = vmatpush1.msra.mxu0 0.0
        %4523 = vmatprep.subr.mxu0 0.0
        %4524 = vmatpush1.msra.mxu0 0.0
        %4525 = vmatprep.subr.mxu0 0.0
        %4526 = vmatpush1.msra.mxu0 0.0
        %4527 = vmatprep.subr.mxu0 0.0
        %4528 = vmatpush1.msra.mxu0 0.0
        %4529 = vmatprep.subr.mxu0 0.0
        %4530 = vmatpush1.msra.mxu0 0.0
        %4531 = vmatprep.subr.mxu0 0.0
        %4532 = vmatpush1.msra.mxu0 0.0
        %4533 = vmatprep.mubr.f32.mxu0 0.0
        %4534 = vmatmul.mubr.f32.gmra.mrb[0].mxu0 %v4301
        %v4535 = vpop.f32.mrb[0].mxu0
        %v4536 = vadd.f32 %v4467, %v4535
        %v4537 = vpop.f32.mrb[0].mxu0
        %4538 = vdwg.mxu0
        %v4540 = vsel %vm860, %v4370, 0
        %v4543 = vsel %vm860, %v4453, 0
        %4545 = vmatprep.subr.mxu0 0.0
        %4546 = vmatpush1.xpose.msra.mxu0 %v4543
        %4547 = vmatprep.subr.mxu0 0.0
        %4548 = vmatpush1.xpose.msra.mxu0 0.0
        %4549 = vmatprep.subr.mxu0 0.0
        %4550 = vmatpush1.xpose.msra.mxu0 0.0
        %4551 = vmatprep.subr.mxu0 0.0
        %4552 = vmatpush1.xpose.msra.mxu0 0.0
        %4553 = vmatprep.subr.mxu0 0.0
        %4554 = vmatpush1.xpose.msra.mxu0 0.0
        %4555 = vmatprep.subr.mxu0 0.0
        %4556 = vmatpush1.xpose.msra.mxu0 0.0
        %4557 = vmatprep.subr.mxu0 0.0
        %4558 = vmatpush1.xpose.msra.mxu0 0.0
        %4559 = vmatprep.subr.mxu0 0.0
        %4560 = vmatpush1.xpose.msra.mxu0 0.0
        %4561 = vmatprep.subr.mxu0 0.0
        %4562 = vmatpush1.xpose.msra.mxu0 0.0
        %4563 = vmatprep.subr.mxu0 0.0
        %4564 = vmatpush1.xpose.msra.mxu0 0.0
        %4565 = vmatprep.subr.mxu0 0.0
        %4566 = vmatpush1.xpose.msra.mxu0 0.0
        %4567 = vmatprep.subr.mxu0 0.0
        %4568 = vmatpush1.xpose.msra.mxu0 0.0
        %4569 = vmatprep.subr.mxu0 0.0
        %4570 = vmatpush1.xpose.msra.mxu0 0.0
        %4571 = vmatprep.subr.mxu0 0.0
        %4572 = vmatpush1.xpose.msra.mxu0 0.0
        %4573 = vmatprep.subr.mxu0 0.0
        %4574 = vmatpush1.xpose.msra.mxu0 0.0
        %4575 = vmatprep.subr.mxu0 0.0
        %4576 = vmatpush1.xpose.msra.mxu0 0.0
        %4577 = vmatprep.subr.mxu0 0.0
        %4578 = vmatpush1.xpose.msra.mxu0 0.0
        %4579 = vmatprep.subr.mxu0 0.0
        %4580 = vmatpush1.xpose.msra.mxu0 0.0
        %4581 = vmatprep.subr.mxu0 0.0
        %4582 = vmatpush1.xpose.msra.mxu0 0.0
        %4583 = vmatprep.subr.mxu0 0.0
        %4584 = vmatpush1.xpose.msra.mxu0 0.0
        %4585 = vmatprep.subr.mxu0 0.0
        %4586 = vmatpush1.xpose.msra.mxu0 0.0
        %4587 = vmatprep.subr.mxu0 0.0
        %4588 = vmatpush1.xpose.msra.mxu0 0.0
        %4589 = vmatprep.subr.mxu0 0.0
        %4590 = vmatpush1.xpose.msra.mxu0 0.0
        %4591 = vmatprep.subr.mxu0 0.0
        %4592 = vmatpush1.xpose.msra.mxu0 0.0
        %4593 = vmatprep.subr.mxu0 0.0
        %4594 = vmatpush1.xpose.msra.mxu0 0.0
        %4595 = vmatprep.subr.mxu0 0.0
        %4596 = vmatpush1.xpose.msra.mxu0 0.0
        %4597 = vmatprep.subr.mxu0 0.0
        %4598 = vmatpush1.xpose.msra.mxu0 0.0
        %4599 = vmatprep.subr.mxu0 0.0
        %4600 = vmatpush1.xpose.msra.mxu0 0.0
        %4601 = vmatprep.subr.mxu0 0.0
        %4602 = vmatpush1.xpose.msra.mxu0 0.0
        %4603 = vmatprep.subr.mxu0 0.0
        %4604 = vmatpush1.xpose.msra.mxu0 0.0
        %4605 = vmatprep.subr.mxu0 0.0
        %4606 = vmatpush1.xpose.msra.mxu0 0.0
        %4607 = vmatprep.subr.mxu0 0.0
        %4608 = vmatpush1.xpose.msra.mxu0 0.0
        %4609 = vmatprep.mubr.f32.mxu0 0.0
        %4610 = vmatmul.mubr.f32.gmra.mrb[0].mxu0 %v4540
        %v4611 = vpop.f32.mrb[0].mxu0
        %v4612 = vadd.f32 0.0, %v4611
        %v4613 = vpop.f32.mrb[0].mxu0
        %4614 = vdwg.mxu0
        %v4615 = vmul.f32 %v4612, 0.25
        %v4616 = vadd.f32 %v4615, %v610
        %v4617 = vsel %vm939, %v4616, -inf
        %4618 = vmax.xlane.f32.xlu0 %v4617
        %v4619 = vpop.xlane.xlu0 %4618
        %v4620 = vsub.f32 %v4616, %v4619
        %v4621 = vmul.f32 %v4620, 1.442695
        %v4622 = vpow.pop %v4621
        %v4623 = vsel %vm939, %v4622, 0.0
        %4624 = vadd.xlane.f32.xlu0 %v4623
        %v4625 = vpop.xlane.xlu0 %4624
        %v4626 = vrcp.pop %v4625
        %v4627 = vmul.f32 %v4622, %v4626
        %v4629 = vsel %vm939, %v4627, 0
        %4631 = vmatprep.subr.mxu0 0.0
        %4632 = vmatpush1.msra.mxu0 %v4536
        %4633 = vmatprep.subr.mxu0 0.0
        %4634 = vmatpush1.msra.mxu0 0.0
        %4635 = vmatprep.subr.mxu0 0.0
        %4636 = vmatpush1.msra.mxu0 0.0
        %4637 = vmatprep.subr.mxu0 0.0
        %4638 = vmatpush1.msra.mxu0 0.0
        %4639 = vmatprep.subr.mxu0 0.0
        %4640 = vmatpush1.msra.mxu0 0.0
        %4641 = vmatprep.subr.mxu0 0.0
        %4642 = vmatpush1.msra.mxu0 0.0
        %4643 = vmatprep.subr.mxu0 0.0
        %4644 = vmatpush1.msra.mxu0 0.0
        %4645 = vmatprep.subr.mxu0 0.0
        %4646 = vmatpush1.msra.mxu0 0.0
        %4647 = vmatprep.subr.mxu0 0.0
        %4648 = vmatpush1.msra.mxu0 0.0
        %4649 = vmatprep.subr.mxu0 0.0
        %4650 = vmatpush1.msra.mxu0 0.0
        %4651 = vmatprep.subr.mxu0 0.0
        %4652 = vmatpush1.msra.mxu0 0.0
        %4653 = vmatprep.subr.mxu0 0.0
        %4654 = vmatpush1.msra.mxu0 0.0
        %4655 = vmatprep.subr.mxu0 0.0
        %4656 = vmatpush1.msra.mxu0 0.0
        %4657 = vmatprep.subr.mxu0 0.0
        %4658 = vmatpush1.msra.mxu0 0.0
        %4659 = vmatprep.subr.mxu0 0.0
        %4660 = vmatpush1.msra.mxu0 0.0
        %4661 = vmatprep.subr.mxu0 0.0
        %4662 = vmatpush1.msra.mxu0 0.0
        %4663 = vmatprep.subr.mxu0 0.0
        %4664 = vmatpush1.msra.mxu0 0.0
        %4665 = vmatprep.subr.mxu0 0.0
        %4666 = vmatpush1.msra.mxu0 0.0
        %4667 = vmatprep.subr.mxu0 0.0
        %4668 = vmatpush1.msra.mxu0 0.0
        %4669 = vmatprep.subr.mxu0 0.0
        %4670 = vmatpush1.msra.mxu0 0.0
        %4671 = vmatprep.subr.mxu0 0.0
        %4672 = vmatpush1.msra.mxu0 0.0
        %4673 = vmatprep.subr.mxu0 0.0
        %4674 = vmatpush1.msra.mxu0 0.0
        %4675 = vmatprep.subr.mxu0 0.0
        %4676 = vmatpush1.msra.mxu0 0.0
        %4677 = vmatprep.subr.mxu0 0.0
        %4678 = vmatpush1.msra.mxu0 0.0
        %4679 = vmatprep.subr.mxu0 0.0
        %4680 = vmatpush1.msra.mxu0 0.0
        %4681 = vmatprep.subr.mxu0 0.0
        %4682 = vmatpush1.msra.mxu0 0.0
        %4683 = vmatprep.subr.mxu0 0.0
        %4684 = vmatpush1.msra.mxu0 0.0
        %4685 = vmatprep.subr.mxu0 0.0
        %4686 = vmatpush1.msra.mxu0 0.0
        %4687 = vmatprep.subr.mxu0 0.0
        %4688 = vmatpush1.msra.mxu0 0.0
        %4689 = vmatprep.subr.mxu0 0.0
        %4690 = vmatpush1.msra.mxu0 0.0
        %4691 = vmatprep.subr.mxu0 0.0
        %4692 = vmatpush1.msra.mxu0 0.0
        %4693 = vmatprep.subr.mxu0 0.0
        %4694 = vmatpush1.msra.mxu0 0.0
        %4695 = vmatprep.mubr.f32.mxu0 0.0
        %4696 = vmatmul.mubr.f32.gmra.mrb[0].mxu0 %v4629
        %v4697 = vpop.f32.mrb[0].mxu0
        %v4698 = vadd.f32 0.0, %v4697
        %v4699 = vpop.f32.mrb[0].mxu0
        %4700 = vdwg.mxu0
        %s4701 = scalar_lea.vmem %s7, 96
        %v4702 = vld [vmem:[%s4701] sm:$0xff]
        %v4703 = vld [vmem:[%s4701 + $0x8] sm:$0xff]
        %s4704 = scalar_lea.vmem %s4, 224
        %v4705 = vld [vmem:[%s4704] sm:$0xff]
        %v4706 = vld [vmem:[%s4704 + $0x8] sm:$0xff]
        %v4707 = vld [vmem:[%s4704 + $0x10] sm:$0xff]
        %v4708 = vld [vmem:[%s4704 + $0x18] sm:$0xff]
        %s4709 = scalar_lea.vmem %s8, 21
        %v4710 = vld [vmem:[%s4709] sm:$0x1]
        %v4712 = vlaneseq
        %v4713 = vshrl.u32 %v4712, 7
        %v4714 = vsub.s32 0, %v4713
        %v4715 = vrot.slane %v4710, %v4714
        %4717 = vmatprep.subr.mxu0 0.0
        %4718 = vmatpush1.msra.mxu0 %v4705
        %4719 = vmatprep.subr.mxu0 0.0
        %4720 = vmatpush1.msra.mxu0 %v4706
        %4721 = vmatprep.subr.mxu0 0.0
        %4722 = vmatpush1.msra.mxu0 %v4707
        %4723 = vmatprep.subr.mxu0 0.0
        %4724 = vmatpush1.msra.mxu0 %v4708
        %4725 = vmatprep.subr.mxu0 0.0
        %4726 = vmatpush1.msra.mxu0 0.0
        %4727 = vmatprep.subr.mxu0 0.0
        %4728 = vmatpush1.msra.mxu0 0.0
        %4729 = vmatprep.subr.mxu0 0.0
        %4730 = vmatpush1.msra.mxu0 0.0
        %4731 = vmatprep.subr.mxu0 0.0
        %4732 = vmatpush1.msra.mxu0 0.0
        %4733 = vmatprep.subr.mxu0 0.0
        %4734 = vmatpush1.msra.mxu0 0.0
        %4735 = vmatprep.subr.mxu0 0.0
        %4736 = vmatpush1.msra.mxu0 0.0
        %4737 = vmatprep.subr.mxu0 0.0
        %4738 = vmatpush1.msra.mxu0 0.0
        %4739 = vmatprep.subr.mxu0 0.0
        %4740 = vmatpush1.msra.mxu0 0.0
        %4741 = vmatprep.subr.mxu0 0.0
        %4742 = vmatpush1.msra.mxu0 0.0
        %4743 = vmatprep.subr.mxu0 0.0
        %4744 = vmatpush1.msra.mxu0 0.0
        %4745 = vmatprep.subr.mxu0 0.0
        %4746 = vmatpush1.msra.mxu0 0.0
        %4747 = vmatprep.subr.mxu0 0.0
        %4748 = vmatpush1.msra.mxu0 0.0
        %4749 = vmatprep.subr.mxu0 0.0
        %4750 = vmatpush1.msra.mxu0 0.0
        %4751 = vmatprep.subr.mxu0 0.0
        %4752 = vmatpush1.msra.mxu0 0.0
        %4753 = vmatprep.subr.mxu0 0.0
        %4754 = vmatpush1.msra.mxu0 0.0
        %4755 = vmatprep.subr.mxu0 0.0
        %4756 = vmatpush1.msra.mxu0 0.0
        %4757 = vmatprep.subr.mxu0 0.0
        %4758 = vmatpush1.msra.mxu0 0.0
        %4759 = vmatprep.subr.mxu0 0.0
        %4760 = vmatpush1.msra.mxu0 0.0
        %4761 = vmatprep.subr.mxu0 0.0
        %4762 = vmatpush1.msra.mxu0 0.0
        %4763 = vmatprep.subr.mxu0 0.0
        %4764 = vmatpush1.msra.mxu0 0.0
        %4765 = vmatprep.subr.mxu0 0.0
        %4766 = vmatpush1.msra.mxu0 0.0
        %4767 = vmatprep.subr.mxu0 0.0
        %4768 = vmatpush1.msra.mxu0 0.0
        %4769 = vmatprep.subr.mxu0 0.0
        %4770 = vmatpush1.msra.mxu0 0.0
        %4771 = vmatprep.subr.mxu0 0.0
        %4772 = vmatpush1.msra.mxu0 0.0
        %4773 = vmatprep.subr.mxu0 0.0
        %4774 = vmatpush1.msra.mxu0 0.0
        %4775 = vmatprep.subr.mxu0 0.0
        %4776 = vmatpush1.msra.mxu0 0.0
        %4777 = vmatprep.subr.mxu0 0.0
        %4778 = vmatpush1.msra.mxu0 0.0
        %4779 = vmatprep.subr.mxu0 0.0
        %4780 = vmatpush1.msra.mxu0 0.0
        %4781 = vmatprep.mubr.f32.mxu0 0.0
        %4782 = vmatmul.mubr.f32.gmra.mrb[0].mxu0 %v4301
        %v4783 = vpop.f32.mrb[0].mxu0
        %v4784 = vadd.f32 %v4715, %v4783
        %v4785 = vpop.f32.mrb[0].mxu0
        %4786 = vdwg.mxu0
        %s4787 = scalar_lea.vmem %s5, 224
        %v4788 = vld [vmem:[%s4787] sm:$0xff]
        %v4789 = vld [vmem:[%s4787 + $0x8] sm:$0xff]
        %v4790 = vld [vmem:[%s4787 + $0x10] sm:$0xff]
        %v4791 = vld [vmem:[%s4787 + $0x18] sm:$0xff]
        %s4792 = scalar_lea.vmem %s8, 22
        %v4793 = vld [vmem:[%s4792] sm:$0x1]
        %v4795 = vlaneseq
        %v4796 = vshrl.u32 %v4795, 7
        %v4797 = vsub.s32 0, %v4796
        %v4798 = vrot.slane %v4793, %v4797
        %4800 = vmatprep.subr.mxu0 0.0
        %4801 = vmatpush1.msra.mxu0 %v4788
        %4802 = vmatprep.subr.mxu0 0.0
        %4803 = vmatpush1.msra.mxu0 %v4789
        %4804 = vmatprep.subr.mxu0 0.0
        %4805 = vmatpush1.msra.mxu0 %v4790
        %4806 = vmatprep.subr.mxu0 0.0
        %4807 = vmatpush1.msra.mxu0 %v4791
        %4808 = vmatprep.subr.mxu0 0.0
        %4809 = vmatpush1.msra.mxu0 0.0
        %4810 = vmatprep.subr.mxu0 0.0
        %4811 = vmatpush1.msra.mxu0 0.0
        %4812 = vmatprep.subr.mxu0 0.0
        %4813 = vmatpush1.msra.mxu0 0.0
        %4814 = vmatprep.subr.mxu0 0.0
        %4815 = vmatpush1.msra.mxu0 0.0
        %4816 = vmatprep.subr.mxu0 0.0
        %4817 = vmatpush1.msra.mxu0 0.0
        %4818 = vmatprep.subr.mxu0 0.0
        %4819 = vmatpush1.msra.mxu0 0.0
        %4820 = vmatprep.subr.mxu0 0.0
        %4821 = vmatpush1.msra.mxu0 0.0
        %4822 = vmatprep.subr.mxu0 0.0
        %4823 = vmatpush1.msra.mxu0 0.0
        %4824 = vmatprep.subr.mxu0 0.0
        %4825 = vmatpush1.msra.mxu0 0.0
        %4826 = vmatprep.subr.mxu0 0.0
        %4827 = vmatpush1.msra.mxu0 0.0
        %4828 = vmatprep.subr.mxu0 0.0
        %4829 = vmatpush1.msra.mxu0 0.0
        %4830 = vmatprep.subr.mxu0 0.0
        %4831 = vmatpush1.msra.mxu0 0.0
        %4832 = vmatprep.subr.mxu0 0.0
        %4833 = vmatpush1.msra.mxu0 0.0
        %4834 = vmatprep.subr.mxu0 0.0
        %4835 = vmatpush1.msra.mxu0 0.0
        %4836 = vmatprep.subr.mxu0 0.0
        %4837 = vmatpush1.msra.mxu0 0.0
        %4838 = vmatprep.subr.mxu0 0.0
        %4839 = vmatpush1.msra.mxu0 0.0
        %4840 = vmatprep.subr.mxu0 0.0
        %4841 = vmatpush1.msra.mxu0 0.0
        %4842 = vmatprep.subr.mxu0 0.0
        %4843 = vmatpush1.msra.mxu0 0.0
        %4844 = vmatprep.subr.mxu0 0.0
        %4845 = vmatpush1.msra.mxu0 0.0
        %4846 = vmatprep.subr.mxu0 0.0
        %4847 = vmatpush1.msra.mxu0 0.0
        %4848 = vmatprep.subr.mxu0 0.0
        %4849 = vmatpush1.msra.mxu0 0.0
        %4850 = vmatprep.subr.mxu0 0.0
        %4851 = vmatpush1.msra.mxu0 0.0
        %4852 = vmatprep.subr.mxu0 0.0
        %4853 = vmatpush1.msra.mxu0 0.0
        %4854 = vmatprep.subr.mxu0 0.0
        %4855 = vmatpush1.msra.mxu0 0.0
        %4856 = vmatprep.subr.mxu0 0.0
        %4857 = vmatpush1.msra.mxu0 0.0
        %4858 = vmatprep.subr.mxu0 0.0
        %4859 = vmatpush1.msra.mxu0 0.0
        %4860 = vmatprep.subr.mxu0 0.0
        %4861 = vmatpush1.msra.mxu0 0.0
        %4862 = vmatprep.subr.mxu0 0.0
        %4863 = vmatpush1.msra.mxu0 0.0
        %4864 = vmatprep.mubr.f32.mxu0 0.0
        %4865 = vmatmul.mubr.f32.gmra.mrb[0].mxu0 %v4301
        %v4866 = vpop.f32.mrb[0].mxu0
        %v4867 = vadd.f32 %v4798, %v4866
        %v4868 = vpop.f32.mrb[0].mxu0
        %4869 = vdwg.mxu0
        %s4870 = scalar_lea.vmem %s6, 224
        %v4871 = vld [vmem:[%s4870] sm:$0xff]
        %v4872 = vld [vmem:[%s4870 + $0x8] sm:$0xff]
        %v4873 = vld [vmem:[%s4870 + $0x10] sm:$0xff]
        %v4874 = vld [vmem:[%s4870 + $0x18] sm:$0xff]
        %s4875 = scalar_lea.vmem %s8, 23
        %v4876 = vld [vmem:[%s4875] sm:$0x1]
        %v4878 = vlaneseq
        %v4879 = vshrl.u32 %v4878, 7
        %v4880 = vsub.s32 0, %v4879
        %v4881 = vrot.slane %v4876, %v4880
        %4883 = vmatprep.subr.mxu0 0.0
        %4884 = vmatpush1.msra.mxu0 %v4871
        %4885 = vmatprep.subr.mxu0 0.0
        %4886 = vmatpush1.msra.mxu0 %v4872
        %4887 = vmatprep.subr.mxu0 0.0
        %4888 = vmatpush1.msra.mxu0 %v4873
        %4889 = vmatprep.subr.mxu0 0.0
        %4890 = vmatpush1.msra.mxu0 %v4874
        %4891 = vmatprep.subr.mxu0 0.0
        %4892 = vmatpush1.msra.mxu0 0.0
        %4893 = vmatprep.subr.mxu0 0.0
        %4894 = vmatpush1.msra.mxu0 0.0
        %4895 = vmatprep.subr.mxu0 0.0
        %4896 = vmatpush1.msra.mxu0 0.0
        %4897 = vmatprep.subr.mxu0 0.0
        %4898 = vmatpush1.msra.mxu0 0.0
        %4899 = vmatprep.subr.mxu0 0.0
        %4900 = vmatpush1.msra.mxu0 0.0
        %4901 = vmatprep.subr.mxu0 0.0
        %4902 = vmatpush1.msra.mxu0 0.0
        %4903 = vmatprep.subr.mxu0 0.0
        %4904 = vmatpush1.msra.mxu0 0.0
        %4905 = vmatprep.subr.mxu0 0.0
        %4906 = vmatpush1.msra.mxu0 0.0
        %4907 = vmatprep.subr.mxu0 0.0
        %4908 = vmatpush1.msra.mxu0 0.0
        %4909 = vmatprep.subr.mxu0 0.0
        %4910 = vmatpush1.msra.mxu0 0.0
        %4911 = vmatprep.subr.mxu0 0.0
        %4912 = vmatpush1.msra.mxu0 0.0
        %4913 = vmatprep.subr.mxu0 0.0
        %4914 = vmatpush1.msra.mxu0 0.0
        %4915 = vmatprep.subr.mxu0 0.0
        %4916 = vmatpush1.msra.mxu0 0.0
        %4917 = vmatprep.subr.mxu0 0.0
        %4918 = vmatpush1.msra.mxu0 0.0
        %4919 = vmatprep.subr.mxu0 0.0
        %4920 = vmatpush1.msra.mxu0 0.0
        %4921 = vmatprep.subr.mxu0 0.0
        %4922 = vmatpush1.msra.mxu0 0.0
        %4923 = vmatprep.subr.mxu0 0.0
        %4924 = vmatpush1.msra.mxu0 0.0
        %4925 = vmatprep.subr.mxu0 0.0
        %4926 = vmatpush1.msra.mxu0 0.0
        %4927 = vmatprep.subr.mxu0 0.0
        %4928 = vmatpush1.msra.mxu0 0.0
        %4929 = vmatprep.subr.mxu0 0.0
        %4930 = vmatpush1.msra.mxu0 0.0
        %4931 = vmatprep.subr.mxu0 0.0
        %4932 = vmatpush1.msra.mxu0 0.0
        %4933 = vmatprep.subr.mxu0 0.0
        %4934 = vmatpush1.msra.mxu0 0.0
        %4935 = vmatprep.subr.mxu0 0.0
        %4936 = vmatpush1.msra.mxu0 0.0
        %4937 = vmatprep.subr.mxu0 0.0
        %4938 = vmatpush1.msra.mxu0 0.0
        %4939 = vmatprep.subr.mxu0 0.0
        %4940 = vmatpush1.msra.mxu0 0.0
        %4941 = vmatprep.subr.mxu0 0.0
        %4942 = vmatpush1.msra.mxu0 0.0
        %4943 = vmatprep.subr.mxu0 0.0
        %4944 = vmatpush1.msra.mxu0 0.0
        %4945 = vmatprep.subr.mxu0 0.0
        %4946 = vmatpush1.msra.mxu0 0.0
        %4947 = vmatprep.mubr.f32.mxu0 0.0
        %4948 = vmatmul.mubr.f32.gmra.mrb[0].mxu0 %v4301
        %v4949 = vpop.f32.mrb[0].mxu0
        %v4950 = vadd.f32 %v4881, %v4949
        %v4951 = vpop.f32.mrb[0].mxu0
        %4952 = vdwg.mxu0
        %v4954 = vsel %vm860, %v4784, 0
        %v4957 = vsel %vm860, %v4867, 0
        %4959 = vmatprep.subr.mxu0 0.0
        %4960 = vmatpush1.xpose.msra.mxu0 %v4957
        %4961 = vmatprep.subr.mxu0 0.0
        %4962 = vmatpush1.xpose.msra.mxu0 0.0
        %4963 = vmatprep.subr.mxu0 0.0
        %4964 = vmatpush1.xpose.msra.mxu0 0.0
        %4965 = vmatprep.subr.mxu0 0.0
        %4966 = vmatpush1.xpose.msra.mxu0 0.0
        %4967 = vmatprep.subr.mxu0 0.0
        %4968 = vmatpush1.xpose.msra.mxu0 0.0
        %4969 = vmatprep.subr.mxu0 0.0
        %4970 = vmatpush1.xpose.msra.mxu0 0.0
        %4971 = vmatprep.subr.mxu0 0.0
        %4972 = vmatpush1.xpose.msra.mxu0 0.0
        %4973 = vmatprep.subr.mxu0 0.0
        %4974 = vmatpush1.xpose.msra.mxu0 0.0
        %4975 = vmatprep.subr.mxu0 0.0
        %4976 = vmatpush1.xpose.msra.mxu0 0.0
        %4977 = vmatprep.subr.mxu0 0.0
        %4978 = vmatpush1.xpose.msra.mxu0 0.0
        %4979 = vmatprep.subr.mxu0 0.0
        %4980 = vmatpush1.xpose.msra.mxu0 0.0
        %4981 = vmatprep.subr.mxu0 0.0
        %4982 = vmatpush1.xpose.msra.mxu0 0.0
        %4983 = vmatprep.subr.mxu0 0.0
        %4984 = vmatpush1.xpose.msra.mxu0 0.0
        %4985 = vmatprep.subr.mxu0 0.0
        %4986 = vmatpush1.xpose.msra.mxu0 0.0
        %4987 = vmatprep.subr.mxu0 0.0
        %4988 = vmatpush1.xpose.msra.mxu0 0.0
        %4989 = vmatprep.subr.mxu0 0.0
        %4990 = vmatpush1.xpose.msra.mxu0 0.0
        %4991 = vmatprep.subr.mxu0 0.0
        %4992 = vmatpush1.xpose.msra.mxu0 0.0
        %4993 = vmatprep.subr.mxu0 0.0
        %4994 = vmatpush1.xpose.msra.mxu0 0.0
        %4995 = vmatprep.subr.mxu0 0.0
        %4996 = vmatpush1.xpose.msra.mxu0 0.0
        %4997 = vmatprep.subr.mxu0 0.0
        %4998 = vmatpush1.xpose.msra.mxu0 0.0
        %4999 = vmatprep.subr.mxu0 0.0
        %5000 = vmatpush1.xpose.msra.mxu0 0.0
        %5001 = vmatprep.subr.mxu0 0.0
        %5002 = vmatpush1.xpose.msra.mxu0 0.0
        %5003 = vmatprep.subr.mxu0 0.0
        %5004 = vmatpush1.xpose.msra.mxu0 0.0
        %5005 = vmatprep.subr.mxu0 0.0
        %5006 = vmatpush1.xpose.msra.mxu0 0.0
        %5007 = vmatprep.subr.mxu0 0.0
        %5008 = vmatpush1.xpose.msra.mxu0 0.0
        %5009 = vmatprep.subr.mxu0 0.0
        %5010 = vmatpush1.xpose.msra.mxu0 0.0
        %5011 = vmatprep.subr.mxu0 0.0
        %5012 = vmatpush1.xpose.msra.mxu0 0.0
        %5013 = vmatprep.subr.mxu0 0.0
        %5014 = vmatpush1.xpose.msra.mxu0 0.0
        %5015 = vmatprep.subr.mxu0 0.0
        %5016 = vmatpush1.xpose.msra.mxu0 0.0
        %5017 = vmatprep.subr.mxu0 0.0
        %5018 = vmatpush1.xpose.msra.mxu0 0.0
        %5019 = vmatprep.subr.mxu0 0.0
        %5020 = vmatpush1.xpose.msra.mxu0 0.0
        %5021 = vmatprep.subr.mxu0 0.0
        %5022 = vmatpush1.xpose.msra.mxu0 0.0
        %5023 = vmatprep.mubr.f32.mxu0 0.0
        %5024 = vmatmul.mubr.f32.gmra.mrb[0].mxu0 %v4954
        %v5025 = vpop.f32.mrb[0].mxu0
        %v5026 = vadd.f32 0.0, %v5025
        %v5027 = vpop.f32.mrb[0].mxu0
        %5028 = vdwg.mxu0
        %v5029 = vmul.f32 %v5026, 0.25
        %v5030 = vadd.f32 %v5029, %v610
        %v5031 = vsel %vm939, %v5030, -inf
        %5032 = vmax.xlane.f32.xlu0 %v5031
        %v5033 = vpop.xlane.xlu0 %5032
        %v5034 = vsub.f32 %v5030, %v5033
        %v5035 = vmul.f32 %v5034, 1.442695
        %v5036 = vpow.pop %v5035
        %v5037 = vsel %vm939, %v5036, 0.0
        %5038 = vadd.xlane.f32.xlu0 %v5037
        %v5039 = vpop.xlane.xlu0 %5038
        %v5040 = vrcp.pop %v5039
        %v5041 = vmul.f32 %v5036, %v5040
        %v5043 = vsel %vm939, %v5041, 0
        %5045 = vmatprep.subr.mxu0 0.0
        %5046 = vmatpush1.msra.mxu0 %v4950
        %5047 = vmatprep.subr.mxu0 0.0
        %5048 = vmatpush1.msra.mxu0 0.0
        %5049 = vmatprep.subr.mxu0 0.0
        %5050 = vmatpush1.msra.mxu0 0.0
        %5051 = vmatprep.subr.mxu0 0.0
        %5052 = vmatpush1.msra.mxu0 0.0
        %5053 = vmatprep.subr.mxu0 0.0
        %5054 = vmatpush1.msra.mxu0 0.0
        %5055 = vmatprep.subr.mxu0 0.0
        %5056 = vmatpush1.msra.mxu0 0.0
        %5057 = vmatprep.subr.mxu0 0.0
        %5058 = vmatpush1.msra.mxu0 0.0
        %5059 = vmatprep.subr.mxu0 0.0
        %5060 = vmatpush1.msra.mxu0 0.0
        %5061 = vmatprep.subr.mxu0 0.0
        %5062 = vmatpush1.msra.mxu0 0.0
        %5063 = vmatprep.subr.mxu0 0.0
        %5064 = vmatpush1.msra.mxu0 0.0
        %5065 = vmatprep.subr.mxu0 0.0
        %5066 = vmatpush1.msra.mxu0 0.0
        %5067 = vmatprep.subr.mxu0 0.0
        %5068 = vmatpush1.msra.mxu0 0.0
        %5069 = vmatprep.subr.mxu0 0.0
        %5070 = vmatpush1.msra.mxu0 0.0
        %5071 = vmatprep.subr.mxu0 0.0
        %5072 = vmatpush1.msra.mxu0 0.0
        %5073 = vmatprep.subr.mxu0 0.0
        %5074 = vmatpush1.msra.mxu0 0.0
        %5075 = vmatprep.subr.mxu0 0.0
        %5076 = vmatpush1.msra.mxu0 0.0
        %5077 = vmatprep.subr.mxu0 0.0
        %5078 = vmatpush1.msra.mxu0 0.0
        %5079 = vmatprep.subr.mxu0 0.0
        %5080 = vmatpush1.msra.mxu0 0.0
        %5081 = vmatprep.subr.mxu0 0.0
        %5082 = vmatpush1.msra.mxu0 0.0
        %5083 = vmatprep.subr.mxu0 0.0
        %5084 = vmatpush1.msra.mxu0 0.0
        %5085 = vmatprep.subr.mxu0 0.0
        %5086 = vmatpush1.msra.mxu0 0.0
        %5087 = vmatprep.subr.mxu0 0.0
        %5088 = vmatpush1.msra.mxu0 0.0
        %5089 = vmatprep.subr.mxu0 0.0
        %5090 = vmatpush1.msra.mxu0 0.0
        %5091 = vmatprep.subr.mxu0 0.0
        %5092 = vmatpush1.msra.mxu0 0.0
        %5093 = vmatprep.subr.mxu0 0.0
        %5094 = vmatpush1.msra.mxu0 0.0
        %5095 = vmatprep.subr.mxu0 0.0
        %5096 = vmatpush1.msra.mxu0 0.0
        %5097 = vmatprep.subr.mxu0 0.0
        %5098 = vmatpush1.msra.mxu0 0.0
        %5099 = vmatprep.subr.mxu0 0.0
        %5100 = vmatpush1.msra.mxu0 0.0
        %5101 = vmatprep.subr.mxu0 0.0
        %5102 = vmatpush1.msra.mxu0 0.0
        %5103 = vmatprep.subr.mxu0 0.0
        %5104 = vmatpush1.msra.mxu0 0.0
        %5105 = vmatprep.subr.mxu0 0.0
        %5106 = vmatpush1.msra.mxu0 0.0
        %5107 = vmatprep.subr.mxu0 0.0
        %5108 = vmatpush1.msra.mxu0 0.0
        %5109 = vmatprep.mubr.f32.mxu0 0.0
        %5110 = vmatmul.mubr.f32.gmra.mrb[0].mxu0 %v5043
        %v5111 = vpop.f32.mrb[0].mxu0
        %v5112 = vadd.f32 0.0, %v5111
        %v5113 = vpop.f32.mrb[0].mxu0
        %5114 = vdwg.mxu0
        %s5115 = scalar_lea.vmem %s7, 112
        %v5116 = vld [vmem:[%s5115] sm:$0xff]
        %v5117 = vld [vmem:[%s5115 + $0x8] sm:$0xff]
        %v5119 = vsel %vm860, %v5112, 0
        %5121 = vmatprep.subr.mxu0 0.0
        %5122 = vmatpush1.msra.mxu0 %v5116
        %5123 = vmatprep.subr.mxu0 0.0
        %5124 = vmatpush1.msra.mxu0 %v5117
        %5125 = vmatprep.subr.mxu0 0.0
        %5126 = vmatpush1.msra.mxu0 0.0
        %5127 = vmatprep.subr.mxu0 0.0
        %5128 = vmatpush1.msra.mxu0 0.0
        %5129 = vmatprep.subr.mxu0 0.0
        %5130 = vmatpush1.msra.mxu0 0.0
        %5131 = vmatprep.subr.mxu0 0.0
        %5132 = vmatpush1.msra.mxu0 0.0
        %5133 = vmatprep.subr.mxu0 0.0
        %5134 = vmatpush1.msra.mxu0 0.0
        %5135 = vmatprep.subr.mxu0 0.0
        %5136 = vmatpush1.msra.mxu0 0.0
        %5137 = vmatprep.subr.mxu0 0.0
        %5138 = vmatpush1.msra.mxu0 0.0
        %5139 = vmatprep.subr.mxu0 0.0
        %5140 = vmatpush1.msra.mxu0 0.0
        %5141 = vmatprep.subr.mxu0 0.0
        %5142 = vmatpush1.msra.mxu0 0.0
        %5143 = vmatprep.subr.mxu0 0.0
        %5144 = vmatpush1.msra.mxu0 0.0
        %5145 = vmatprep.subr.mxu0 0.0
        %5146 = vmatpush1.msra.mxu0 0.0
        %5147 = vmatprep.subr.mxu0 0.0
        %5148 = vmatpush1.msra.mxu0 0.0
        %5149 = vmatprep.subr.mxu0 0.0
        %5150 = vmatpush1.msra.mxu0 0.0
        %5151 = vmatprep.subr.mxu0 0.0
        %5152 = vmatpush1.msra.mxu0 0.0
        %5153 = vmatprep.subr.mxu0 0.0
        %5154 = vmatpush1.msra.mxu0 0.0
        %5155 = vmatprep.subr.mxu0 0.0
        %5156 = vmatpush1.msra.mxu0 0.0
        %5157 = vmatprep.subr.mxu0 0.0
        %5158 = vmatpush1.msra.mxu0 0.0
        %5159 = vmatprep.subr.mxu0 0.0
        %5160 = vmatpush1.msra.mxu0 0.0
        %5161 = vmatprep.subr.mxu0 0.0
        %5162 = vmatpush1.msra.mxu0 0.0
        %5163 = vmatprep.subr.mxu0 0.0
        %5164 = vmatpush1.msra.mxu0 0.0
        %5165 = vmatprep.subr.mxu0 0.0
        %5166 = vmatpush1.msra.mxu0 0.0
        %5167 = vmatprep.subr.mxu0 0.0
        %5168 = vmatpush1.msra.mxu0 0.0
        %5169 = vmatprep.subr.mxu0 0.0
        %5170 = vmatpush1.msra.mxu0 0.0
        %5171 = vmatprep.subr.mxu0 0.0
        %5172 = vmatpush1.msra.mxu0 0.0
        %5173 = vmatprep.subr.mxu0 0.0
        %5174 = vmatpush1.msra.mxu0 0.0
        %5175 = vmatprep.subr.mxu0 0.0
        %5176 = vmatpush1.msra.mxu0 0.0
        %5177 = vmatprep.subr.mxu0 0.0
        %5178 = vmatpush1.msra.mxu0 0.0
        %5179 = vmatprep.subr.mxu0 0.0
        %5180 = vmatpush1.msra.mxu0 0.0
        %5181 = vmatprep.subr.mxu0 0.0
        %5182 = vmatpush1.msra.mxu0 0.0
        %5183 = vmatprep.subr.mxu0 0.0
        %5184 = vmatpush1.msra.mxu0 0.0
        %5185 = vmatprep.mubr.f32.mxu0 0.0
        %5186 = vmatmul.mubr.f32.gmra.mrb[0].mxu0 %v5119
        %v5187 = vpop.f32.mrb[0].mxu0
        %v5188 = vadd.f32 0.0, %v5187
        %v5189 = vpop.f32.mrb[0].mxu0
        %5190 = vdwg.mxu0
        %v5192 = vsel %vm860, %v4698, 0
        %5194 = vmatprep.subr.mxu0 0.0
        %5195 = vmatpush1.msra.mxu0 %v4702
        %5196 = vmatprep.subr.mxu0 0.0
        %5197 = vmatpush1.msra.mxu0 %v4703
        %5198 = vmatprep.subr.mxu0 0.0
        %5199 = vmatpush1.msra.mxu0 0.0
        %5200 = vmatprep.subr.mxu0 0.0
        %5201 = vmatpush1.msra.mxu0 0.0
        %5202 = vmatprep.subr.mxu0 0.0
        %5203 = vmatpush1.msra.mxu0 0.0
        %5204 = vmatprep.subr.mxu0 0.0
        %5205 = vmatpush1.msra.mxu0 0.0
        %5206 = vmatprep.subr.mxu0 0.0
        %5207 = vmatpush1.msra.mxu0 0.0
        %5208 = vmatprep.subr.mxu0 0.0
        %5209 = vmatpush1.msra.mxu0 0.0
        %5210 = vmatprep.subr.mxu0 0.0
        %5211 = vmatpush1.msra.mxu0 0.0
        %5212 = vmatprep.subr.mxu0 0.0
        %5213 = vmatpush1.msra.mxu0 0.0
        %5214 = vmatprep.subr.mxu0 0.0
        %5215 = vmatpush1.msra.mxu0 0.0
        %5216 = vmatprep.subr.mxu0 0.0
        %5217 = vmatpush1.msra.mxu0 0.0
        %5218 = vmatprep.subr.mxu0 0.0
        %5219 = vmatpush1.msra.mxu0 0.0
        %5220 = vmatprep.subr.mxu0 0.0
        %5221 = vmatpush1.msra.mxu0 0.0
        %5222 = vmatprep.subr.mxu0 0.0
        %5223 = vmatpush1.msra.mxu0 0.0
        %5224 = vmatprep.subr.mxu0 0.0
        %5225 = vmatpush1.msra.mxu0 0.0
        %5226 = vmatprep.subr.mxu0 0.0
        %5227 = vmatpush1.msra.mxu0 0.0
        %5228 = vmatprep.subr.mxu0 0.0
        %5229 = vmatpush1.msra.mxu0 0.0
        %5230 = vmatprep.subr.mxu0 0.0
        %5231 = vmatpush1.msra.mxu0 0.0
        %5232 = vmatprep.subr.mxu0 0.0
        %5233 = vmatpush1.msra.mxu0 0.0
        %5234 = vmatprep.subr.mxu0 0.0
        %5235 = vmatpush1.msra.mxu0 0.0
        %5236 = vmatprep.subr.mxu0 0.0
        %5237 = vmatpush1.msra.mxu0 0.0
        %5238 = vmatprep.subr.mxu0 0.0
        %5239 = vmatpush1.msra.mxu0 0.0
        %5240 = vmatprep.subr.mxu0 0.0
        %5241 = vmatpush1.msra.mxu0 0.0
        %5242 = vmatprep.subr.mxu0 0.0
        %5243 = vmatpush1.msra.mxu0 0.0
        %5244 = vmatprep.subr.mxu0 0.0
        %5245 = vmatpush1.msra.mxu0 0.0
        %5246 = vmatprep.subr.mxu0 0.0
        %5247 = vmatpush1.msra.mxu0 0.0
        %5248 = vmatprep.subr.mxu0 0.0
        %5249 = vmatpush1.msra.mxu0 0.0
        %5250 = vmatprep.subr.mxu0 0.0
        %5251 = vmatpush1.msra.mxu0 0.0
        %5252 = vmatprep.subr.mxu0 0.0
        %5253 = vmatpush1.msra.mxu0 0.0
        %5254 = vmatprep.subr.mxu0 0.0
        %5255 = vmatpush1.msra.mxu0 0.0
        %5256 = vmatprep.subr.mxu0 0.0
        %5257 = vmatpush1.msra.mxu0 0.0
        %5258 = vmatprep.mubr.f32.mxu0 0.0
        %5259 = vmatmul.mubr.f32.gmra.mrb[0].mxu0 %v5192
        %v5260 = vpop.f32.mrb[0].mxu0
        %v5261 = vadd.f32 %v5188, %v5260
        %v5262 = vpop.f32.mrb[0].mxu0
        %5263 = vdwg.mxu0
        %v5264 = vlaneseq
        %v5265 = vshrl.u32 %v5264, 7
        %v5266 = vsub.s32 0, %v5265
        %v5267 = vrot.slane %v4286, %v5266
        %v5268 = vadd.f32 %v5261, %v5267
        %v5269 = vadd.f32 %v5268, %v4284
        %v5270 = vsel %vm564, %v5269, 0.0
        %5271 = vadd.xlane.f32.xlu0 %v5270
        %v5272 = vpop.xlane.xlu0 %5271
        %v5273 = vmul.f32 %v5272, %v568
        %v5274 = vsub.f32 %v5269, %v5273
        %v5275 = vmul.f32 %v5274, %v5274
        %v5276 = vsel %vm564, %v5275, 0.0
        %5277 = vadd.xlane.f32.xlu0 %v5276
        %v5278 = vpop.xlane.xlu0 %5277
        %v5279 = vmul.f32 %v5278, %v568
        %v5280 = vadd.f32 %v5279, 1e-12
        %v5281 = vrsqrt.pop %v5280
        %v5282 = vmul.f32 %v5280, %v5281
        %vm5283 = vcmp.eq.f32.partialorder %v5280, inf
        %v5284 = vsel %vm5283, %v5280, %v5282
        %vm5285 = vcmp.eq.f32.partialorder %v5280, 0.0
        %v5286 = vand.u32 %v5280, 2147483648
        %v5287 = vsel %vm5285, %v5286, %v5284
        %v5288 = vrcp.pop %v5287
        %v5289 = vmul.f32 %v5274, %v5288
        %v5290 = vlaneseq
        %v5291 = vshrl.u32 %v5290, 7
        %v5292 = vsub.s32 2, %v5291
        %v5293 = vrot.slane %v4286, %v5292
        %v5294 = vmul.f32 %v5289, %v5293
        %v5295 = vlaneseq
        %v5296 = vshrl.u32 %v5295, 7
        %v5297 = vsub.s32 3, %v5296
        %v5298 = vrot.slane %v4286, %v5297
        %v5299 = vadd.f32 %v5294, %v5298
        %s5300 = scalar_lea.vmem %s9, 96
        %v5301 = vld [vmem:[%s5300] sm:$0xff]
        %v5302 = vld [vmem:[%s5300 + $0x8] sm:$0xff]
        %v5303 = vld [vmem:[%s5300 + $0x10] sm:$0xff]
        %v5304 = vld [vmem:[%s5300 + $0x18] sm:$0xff]
        %s5305 = scalar_lea.vmem %s11, 3
        %v5306 = vld [vmem:[%s5305] sm:$0x1]
        %v5308 = vlaneseq
        %v5309 = vshrl.u32 %v5308, 7
        %v5310 = vsub.s32 0, %v5309
        %v5311 = vrot.slane %v5306, %v5310
        %v5314 = vsel %vm564, %v5299, 0
        %5316 = vmatprep.subr.mxu0 0.0
        %5317 = vmatpush1.msra.mxu0 %v5301
        %5318 = vmatprep.subr.mxu0 0.0
        %5319 = vmatpush1.msra.mxu0 %v5302
        %5320 = vmatprep.subr.mxu0 0.0
        %5321 = vmatpush1.msra.mxu0 %v5303
        %5322 = vmatprep.subr.mxu0 0.0
        %5323 = vmatpush1.msra.mxu0 %v5304
        %5324 = vmatprep.subr.mxu0 0.0
        %5325 = vmatpush1.msra.mxu0 0.0
        %5326 = vmatprep.subr.mxu0 0.0
        %5327 = vmatpush1.msra.mxu0 0.0
        %5328 = vmatprep.subr.mxu0 0.0
        %5329 = vmatpush1.msra.mxu0 0.0
        %5330 = vmatprep.subr.mxu0 0.0
        %5331 = vmatpush1.msra.mxu0 0.0
        %5332 = vmatprep.subr.mxu0 0.0
        %5333 = vmatpush1.msra.mxu0 0.0
        %5334 = vmatprep.subr.mxu0 0.0
        %5335 = vmatpush1.msra.mxu0 0.0
        %5336 = vmatprep.subr.mxu0 0.0
        %5337 = vmatpush1.msra.mxu0 0.0
        %5338 = vmatprep.subr.mxu0 0.0
        %5339 = vmatpush1.msra.mxu0 0.0
        %5340 = vmatprep.subr.mxu0 0.0
        %5341 = vmatpush1.msra.mxu0 0.0
        %5342 = vmatprep.subr.mxu0 0.0
        %5343 = vmatpush1.msra.mxu0 0.0
        %5344 = vmatprep.subr.mxu0 0.0
        %5345 = vmatpush1.msra.mxu0 0.0
        %5346 = vmatprep.subr.mxu0 0.0
        %5347 = vmatpush1.msra.mxu0 0.0
        %5348 = vmatprep.subr.mxu0 0.0
        %5349 = vmatpush1.msra.mxu0 0.0
        %5350 = vmatprep.subr.mxu0 0.0
        %5351 = vmatpush1.msra.mxu0 0.0
        %5352 = vmatprep.subr.mxu0 0.0
        %5353 = vmatpush1.msra.mxu0 0.0
        %5354 = vmatprep.subr.mxu0 0.0
        %5355 = vmatpush1.msra.mxu0 0.0
        %5356 = vmatprep.subr.mxu0 0.0
        %5357 = vmatpush1.msra.mxu0 0.0
        %5358 = vmatprep.subr.mxu0 0.0
        %5359 = vmatpush1.msra.mxu0 0.0
        %5360 = vmatprep.subr.mxu0 0.0
        %5361 = vmatpush1.msra.mxu0 0.0
        %5362 = vmatprep.subr.mxu0 0.0
        %5363 = vmatpush1.msra.mxu0 0.0
        %5364 = vmatprep.subr.mxu0 0.0
        %5365 = vmatpush1.msra.mxu0 0.0
        %5366 = vmatprep.subr.mxu0 0.0
        %5367 = vmatpush1.msra.mxu0 0.0
        %5368 = vmatprep.subr.mxu0 0.0
        %5369 = vmatpush1.msra.mxu0 0.0
        %5370 = vmatprep.subr.mxu0 0.0
        %5371 = vmatpush1.msra.mxu0 0.0
        %5372 = vmatprep.subr.mxu0 0.0
        %5373 = vmatpush1.msra.mxu0 0.0
        %5374 = vmatprep.subr.mxu0 0.0
        %5375 = vmatpush1.msra.mxu0 0.0
        %5376 = vmatprep.subr.mxu0 0.0
        %5377 = vmatpush1.msra.mxu0 0.0
        %5378 = vmatprep.subr.mxu0 0.0
        %5379 = vmatpush1.msra.mxu0 0.0
        %5380 = vmatprep.mubr.f32.mxu0 0.0
        %5381 = vmatmul.mubr.f32.gmra.mrb[0].mxu0 %v5314
        %v5382 = vpop.f32.mrb[0].mxu0
        %v5383 = vadd.f32 %v5311, %v5382
        %v5384 = vpop.f32.mrb[0].mxu0
        %5385 = vdwg.mxu0
        %v5386 = vmul.f32 %v5383, 0.5
        %v5387 = vmul.f32 %v5383, 0.70710677
        %v5388 = verf.f32.pop %v5387
        %v5389 = vadd.f32 %v5388, 1.0
        %v5390 = vmul.f32 %v5386, %v5389
        %s5391 = scalar_lea.vmem %s10, 384
        %v5392 = vld [vmem:[%s5391] sm:$0xff]
        %v5393 = vld [vmem:[%s5391 + $0x8] sm:$0xff]
        %v5394 = vld [vmem:[%s5391 + $0x10] sm:$0xff]
        %v5395 = vld [vmem:[%s5391 + $0x18] sm:$0xff]
        %v5396 = vld [vmem:[%s5391 + $0x20] sm:$0xff]
        %v5397 = vld [vmem:[%s5391 + $0x28] sm:$0xff]
        %v5398 = vld [vmem:[%s5391 + $0x30] sm:$0xff]
        %v5399 = vld [vmem:[%s5391 + $0x38] sm:$0xff]
        %v5400 = vld [vmem:[%s5391 + $0x40] sm:$0xff]
        %v5401 = vld [vmem:[%s5391 + $0x48] sm:$0xff]
        %v5402 = vld [vmem:[%s5391 + $0x50] sm:$0xff]
        %v5403 = vld [vmem:[%s5391 + $0x58] sm:$0xff]
        %v5404 = vld [vmem:[%s5391 + $0x60] sm:$0xff]
        %v5405 = vld [vmem:[%s5391 + $0x68] sm:$0xff]
        %v5406 = vld [vmem:[%s5391 + $0x70] sm:$0xff]
        %v5407 = vld [vmem:[%s5391 + $0x78] sm:$0xff]
        %v5408 = vlaneseq
        %v5409 = vshrl.u32 %v5408, 7
        %v5410 = vsub.s32 1, %v5409
        %v5411 = vrot.slane %v4286, %v5410
        %5412 = vmatprep.subr.mxu0 0.0
        %5413 = vmatpush1.msra.mxu0 %v5392
        %5414 = vmatprep.subr.mxu0 0.0
        %5415 = vmatpush1.msra.mxu0 %v5393
        %5416 = vmatprep.subr.mxu0 0.0
        %5417 = vmatpush1.msra.mxu0 %v5394
        %5418 = vmatprep.subr.mxu0 0.0
        %5419 = vmatpush1.msra.mxu0 %v5395
        %5420 = vmatprep.subr.mxu0 0.0
        %5421 = vmatpush1.msra.mxu0 %v5396
        %5422 = vmatprep.subr.mxu0 0.0
        %5423 = vmatpush1.msra.mxu0 %v5397
        %5424 = vmatprep.subr.mxu0 0.0
        %5425 = vmatpush1.msra.mxu0 %v5398
        %5426 = vmatprep.subr.mxu0 0.0
        %5427 = vmatpush1.msra.mxu0 %v5399
        %5428 = vmatprep.subr.mxu0 0.0
        %5429 = vmatpush1.msra.mxu0 %v5400
        %5430 = vmatprep.subr.mxu0 0.0
        %5431 = vmatpush1.msra.mxu0 %v5401
        %5432 = vmatprep.subr.mxu0 0.0
        %5433 = vmatpush1.msra.mxu0 %v5402
        %5434 = vmatprep.subr.mxu0 0.0
        %5435 = vmatpush1.msra.mxu0 %v5403
        %5436 = vmatprep.subr.mxu0 0.0
        %5437 = vmatpush1.msra.mxu0 %v5404
        %5438 = vmatprep.subr.mxu0 0.0
        %5439 = vmatpush1.msra.mxu0 %v5405
        %5440 = vmatprep.subr.mxu0 0.0
        %5441 = vmatpush1.msra.mxu0 %v5406
        %5442 = vmatprep.subr.mxu0 0.0
        %5443 = vmatpush1.msra.mxu0 %v5407
        %5444 = vmatprep.subr.mxu0 0.0
        %5445 = vmatpush1.msra.mxu0 0.0
        %5446 = vmatprep.subr.mxu0 0.0
        %5447 = vmatpush1.msra.mxu0 0.0
        %5448 = vmatprep.subr.mxu0 0.0
        %5449 = vmatpush1.msra.mxu0 0.0
        %5450 = vmatprep.subr.mxu0 0.0
        %5451 = vmatpush1.msra.mxu0 0.0
        %5452 = vmatprep.subr.mxu0 0.0
        %5453 = vmatpush1.msra.mxu0 0.0
        %5454 = vmatprep.subr.mxu0 0.0
        %5455 = vmatpush1.msra.mxu0 0.0
        %5456 = vmatprep.subr.mxu0 0.0
        %5457 = vmatpush1.msra.mxu0 0.0
        %5458 = vmatprep.subr.mxu0 0.0
        %5459 = vmatpush1.msra.mxu0 0.0
        %5460 = vmatprep.subr.mxu0 0.0
        %5461 = vmatpush1.msra.mxu0 0.0
        %5462 = vmatprep.subr.mxu0 0.0
        %5463 = vmatpush1.msra.mxu0 0.0
        %5464 = vmatprep.subr.mxu0 0.0
        %5465 = vmatpush1.msra.mxu0 0.0
        %5466 = vmatprep.subr.mxu0 0.0
        %5467 = vmatpush1.msra.mxu0 0.0
        %5468 = vmatprep.subr.mxu0 0.0
        %5469 = vmatpush1.msra.mxu0 0.0
        %5470 = vmatprep.subr.mxu0 0.0
        %5471 = vmatpush1.msra.mxu0 0.0
        %5472 = vmatprep.subr.mxu0 0.0
        %5473 = vmatpush1.msra.mxu0 0.0
        %5474 = vmatprep.subr.mxu0 0.0
        %5475 = vmatpush1.msra.mxu0 0.0
        %5476 = vmatprep.mubr.f32.mxu0 0.0
        %5477 = vmatmul.mubr.f32.gmra.mrb[0].mxu0 %v5390
        %v5478 = vpop.f32.mrb[0].mxu0
        %v5479 = vadd.f32 %v5411, %v5478
        %v5480 = vpop.f32.mrb[0].mxu0
        %5481 = vdwg.mxu0
        %v5482 = vadd.f32 %v5479, %v5299
        %v5483 = vsel %vm564, %v5482, 0.0
        %5484 = vadd.xlane.f32.xlu0 %v5483
        %v5485 = vpop.xlane.xlu0 %5484
        %v5486 = vmul.f32 %v5485, %v568
        %v5487 = vsub.f32 %v5482, %v5486
        %v5488 = vmul.f32 %v5487, %v5487
        %v5489 = vsel %vm564, %v5488, 0.0
        %5490 = vadd.xlane.f32.xlu0 %v5489
        %v5491 = vpop.xlane.xlu0 %5490
        %v5492 = vmul.f32 %v5491, %v568
        %v5493 = vadd.f32 %v5492, 1e-12
        %v5494 = vrsqrt.pop %v5493
        %v5495 = vmul.f32 %v5493, %v5494
        %vm5496 = vcmp.eq.f32.partialorder %v5493, inf
        %v5497 = vsel %vm5496, %v5493, %v5495
        %vm5498 = vcmp.eq.f32.partialorder %v5493, 0.0
        %v5499 = vand.u32 %v5493, 2147483648
        %v5500 = vsel %vm5498, %v5499, %v5497
        %v5501 = vrcp.pop %v5500
        %v5502 = vmul.f32 %v5487, %v5501
        %v5503 = vlaneseq
        %v5504 = vshrl.u32 %v5503, 7
        %v5505 = vsub.s32 4, %v5504
        %v5506 = vrot.slane %v4286, %v5505
        %v5507 = vmul.f32 %v5502, %v5506
        %v5508 = vlaneseq
        %v5509 = vshrl.u32 %v5508, 7
        %v5510 = vsub.s32 5, %v5509
        %v5511 = vrot.slane %v4286, %v5510
        %v5512 = vadd.f32 %v5507, %v5511
        %v5513 = vmul.f32 %v5512, 0.5
        %v5514 = vmul.f32 %v5513, 1.442695
        %v5515 = vpow.pop %v5514
        %v5516 = vadd.f32 %v3059, %v5515
        %s5517 = scalar_lea.vmem %s12, 32
        %v5518 = vld [vmem:[%s5517] sm:$0xff]
        %s5519 = scalar_lea.vmem %s4, 256
        %v5520 = vld [vmem:[%s5519] sm:$0xff]
        %v5521 = vld [vmem:[%s5519 + $0x8] sm:$0xff]
        %v5522 = vld [vmem:[%s5519 + $0x10] sm:$0xff]
        %v5523 = vld [vmem:[%s5519 + $0x18] sm:$0xff]
        %s5524 = scalar_lea.vmem %s8, 24
        %v5525 = vld [vmem:[%s5524] sm:$0x1]
        %v5527 = vlaneseq
        %v5528 = vshrl.u32 %v5527, 7
        %v5529 = vsub.s32 0, %v5528
        %v5530 = vrot.slane %v5525, %v5529
        %v5533 = vsel %vm564, %v5516, 0
        %5535 = vmatprep.subr.mxu0 0.0
        %5536 = vmatpush1.msra.mxu0 %v5520
        %5537 = vmatprep.subr.mxu0 0.0
        %5538 = vmatpush1.msra.mxu0 %v5521
        %5539 = vmatprep.subr.mxu0 0.0
        %5540 = vmatpush1.msra.mxu0 %v5522
        %5541 = vmatprep.subr.mxu0 0.0
        %5542 = vmatpush1.msra.mxu0 %v5523
        %5543 = vmatprep.subr.mxu0 0.0
        %5544 = vmatpush1.msra.mxu0 0.0
        %5545 = vmatprep.subr.mxu0 0.0
        %5546 = vmatpush1.msra.mxu0 0.0
        %5547 = vmatprep.subr.mxu0 0.0
        %5548 = vmatpush1.msra.mxu0 0.0
        %5549 = vmatprep.subr.mxu0 0.0
        %5550 = vmatpush1.msra.mxu0 0.0
        %5551 = vmatprep.subr.mxu0 0.0
        %5552 = vmatpush1.msra.mxu0 0.0
        %5553 = vmatprep.subr.mxu0 0.0
        %5554 = vmatpush1.msra.mxu0 0.0
        %5555 = vmatprep.subr.mxu0 0.0
        %5556 = vmatpush1.msra.mxu0 0.0
        %5557 = vmatprep.subr.mxu0 0.0
        %5558 = vmatpush1.msra.mxu0 0.0
        %5559 = vmatprep.subr.mxu0 0.0
        %5560 = vmatpush1.msra.mxu0 0.0
        %5561 = vmatprep.subr.mxu0 0.0
        %5562 = vmatpush1.msra.mxu0 0.0
        %5563 = vmatprep.subr.mxu0 0.0
        %5564 = vmatpush1.msra.mxu0 0.0
        %5565 = vmatprep.subr.mxu0 0.0
        %5566 = vmatpush1.msra.mxu0 0.0
        %5567 = vmatprep.subr.mxu0 0.0
        %5568 = vmatpush1.msra.mxu0 0.0
        %5569 = vmatprep.subr.mxu0 0.0
        %5570 = vmatpush1.msra.mxu0 0.0
        %5571 = vmatprep.subr.mxu0 0.0
        %5572 = vmatpush1.msra.mxu0 0.0
        %5573 = vmatprep.subr.mxu0 0.0
        %5574 = vmatpush1.msra.mxu0 0.0
        %5575 = vmatprep.subr.mxu0 0.0
        %5576 = vmatpush1.msra.mxu0 0.0
        %5577 = vmatprep.subr.mxu0 0.0
        %5578 = vmatpush1.msra.mxu0 0.0
        %5579 = vmatprep.subr.mxu0 0.0
        %5580 = vmatpush1.msra.mxu0 0.0
        %5581 = vmatprep.subr.mxu0 0.0
        %5582 = vmatpush1.msra.mxu0 0.0
        %5583 = vmatprep.subr.mxu0 0.0
        %5584 = vmatpush1.msra.mxu0 0.0
        %5585 = vmatprep.subr.mxu0 0.0
        %5586 = vmatpush1.msra.mxu0 0.0
        %5587 = vmatprep.subr.mxu0 0.0
        %5588 = vmatpush1.msra.mxu0 0.0
        %5589 = vmatprep.subr.mxu0 0.0
        %5590 = vmatpush1.msra.mxu0 0.0
        %5591 = vmatprep.subr.mxu0 0.0
        %5592 = vmatpush1.msra.mxu0 0.0
        %5593 = vmatprep.subr.mxu0 0.0
        %5594 = vmatpush1.msra.mxu0 0.0
        %5595 = vmatprep.subr.mxu0 0.0
        %5596 = vmatpush1.msra.mxu0 0.0
        %5597 = vmatprep.subr.mxu0 0.0
        %5598 = vmatpush1.msra.mxu0 0.0
        %5599 = vmatprep.mubr.f32.mxu0 0.0
        %5600 = vmatmul.mubr.f32.gmra.mrb[0].mxu0 %v5533
        %v5601 = vpop.f32.mrb[0].mxu0
        %v5602 = vadd.f32 %v5530, %v5601
        %v5603 = vpop.f32.mrb[0].mxu0
        %5604 = vdwg.mxu0
        %s5605 = scalar_lea.vmem %s5, 256
        %v5606 = vld [vmem:[%s5605] sm:$0xff]
        %v5607 = vld [vmem:[%s5605 + $0x8] sm:$0xff]
        %v5608 = vld [vmem:[%s5605 + $0x10] sm:$0xff]
        %v5609 = vld [vmem:[%s5605 + $0x18] sm:$0xff]
        %s5610 = scalar_lea.vmem %s8, 25
        %v5611 = vld [vmem:[%s5610] sm:$0x1]
        %v5613 = vlaneseq
        %v5614 = vshrl.u32 %v5613, 7
        %v5615 = vsub.s32 0, %v5614
        %v5616 = vrot.slane %v5611, %v5615
        %5618 = vmatprep.subr.mxu0 0.0
        %5619 = vmatpush1.msra.mxu0 %v5606
        %5620 = vmatprep.subr.mxu0 0.0
        %5621 = vmatpush1.msra.mxu0 %v5607
        %5622 = vmatprep.subr.mxu0 0.0
        %5623 = vmatpush1.msra.mxu0 %v5608
        %5624 = vmatprep.subr.mxu0 0.0
        %5625 = vmatpush1.msra.mxu0 %v5609
        %5626 = vmatprep.subr.mxu0 0.0
        %5627 = vmatpush1.msra.mxu0 0.0
        %5628 = vmatprep.subr.mxu0 0.0
        %5629 = vmatpush1.msra.mxu0 0.0
        %5630 = vmatprep.subr.mxu0 0.0
        %5631 = vmatpush1.msra.mxu0 0.0
        %5632 = vmatprep.subr.mxu0 0.0
        %5633 = vmatpush1.msra.mxu0 0.0
        %5634 = vmatprep.subr.mxu0 0.0
        %5635 = vmatpush1.msra.mxu0 0.0
        %5636 = vmatprep.subr.mxu0 0.0
        %5637 = vmatpush1.msra.mxu0 0.0
        %5638 = vmatprep.subr.mxu0 0.0
        %5639 = vmatpush1.msra.mxu0 0.0
        %5640 = vmatprep.subr.mxu0 0.0
        %5641 = vmatpush1.msra.mxu0 0.0
        %5642 = vmatprep.subr.mxu0 0.0
        %5643 = vmatpush1.msra.mxu0 0.0
        %5644 = vmatprep.subr.mxu0 0.0
        %5645 = vmatpush1.msra.mxu0 0.0
        %5646 = vmatprep.subr.mxu0 0.0
        %5647 = vmatpush1.msra.mxu0 0.0
        %5648 = vmatprep.subr.mxu0 0.0
        %5649 = vmatpush1.msra.mxu0 0.0
        %5650 = vmatprep.subr.mxu0 0.0
        %5651 = vmatpush1.msra.mxu0 0.0
        %5652 = vmatprep.subr.mxu0 0.0
        %5653 = vmatpush1.msra.mxu0 0.0
        %5654 = vmatprep.subr.mxu0 0.0
        %5655 = vmatpush1.msra.mxu0 0.0
        %5656 = vmatprep.subr.mxu0 0.0
        %5657 = vmatpush1.msra.mxu0 0.0
        %5658 = vmatprep.subr.mxu0 0.0
        %5659 = vmatpush1.msra.mxu0 0.0
        %5660 = vmatprep.subr.mxu0 0.0
        %5661 = vmatpush1.msra.mxu0 0.0
        %5662 = vmatprep.subr.mxu0 0.0
        %5663 = vmatpush1.msra.mxu0 0.0
        %5664 = vmatprep.subr.mxu0 0.0
        %5665 = vmatpush1.msra.mxu0 0.0
        %5666 = vmatprep.subr.mxu0 0.0
        %5667 = vmatpush1.msra.mxu0 0.0
        %5668 = vmatprep.subr.mxu0 0.0
        %5669 = vmatpush1.msra.mxu0 0.0
        %5670 = vmatprep.subr.mxu0 0.0
        %5671 = vmatpush1.msra.mxu0 0.0
        %5672 = vmatprep.subr.mxu0 0.0
        %5673 = vmatpush1.msra.mxu0 0.0
        %5674 = vmatprep.subr.mxu0 0.0
        %5675 = vmatpush1.msra.mxu0 0.0
        %5676 = vmatprep.subr.mxu0 0.0
        %5677 = vmatpush1.msra.mxu0 0.0
        %5678 = vmatprep.subr.mxu0 0.0
        %5679 = vmatpush1.msra.mxu0 0.0
        %5680 = vmatprep.subr.mxu0 0.0
        %5681 = vmatpush1.msra.mxu0 0.0
        %5682 = vmatprep.mubr.f32.mxu0 0.0
        %5683 = vmatmul.mubr.f32.gmra.mrb[0].mxu0 %v5533
        %v5684 = vpop.f32.mrb[0].mxu0
        %v5685 = vadd.f32 %v5616, %v5684
        %v5686 = vpop.f32.mrb[0].mxu0
        %5687 = vdwg.mxu0
        %s5688 = scalar_lea.vmem %s6, 256
        %v5689 = vld [vmem:[%s5688] sm:$0xff]
        %v5690 = vld [vmem:[%s5688 + $0x8] sm:$0xff]
        %v5691 = vld [vmem:[%s5688 + $0x10] sm:$0xff]
        %v5692 = vld [vmem:[%s5688 + $0x18] sm:$0xff]
        %s5693 = scalar_lea.vmem %s8, 26
        %v5694 = vld [vmem:[%s5693] sm:$0x1]
        %v5696 = vlaneseq
        %v5697 = vshrl.u32 %v5696, 7
        %v5698 = vsub.s32 0, %v5697
        %v5699 = vrot.slane %v5694, %v5698
        %5701 = vmatprep.subr.mxu0 0.0
        %5702 = vmatpush1.msra.mxu0 %v5689
        %5703 = vmatprep.subr.mxu0 0.0
        %5704 = vmatpush1.msra.mxu0 %v5690
        %5705 = vmatprep.subr.mxu0 0.0
        %5706 = vmatpush1.msra.mxu0 %v5691
        %5707 = vmatprep.subr.mxu0 0.0
        %5708 = vmatpush1.msra.mxu0 %v5692
        %5709 = vmatprep.subr.mxu0 0.0
        %5710 = vmatpush1.msra.mxu0 0.0
        %5711 = vmatprep.subr.mxu0 0.0
        %5712 = vmatpush1.msra.mxu0 0.0
        %5713 = vmatprep.subr.mxu0 0.0
        %5714 = vmatpush1.msra.mxu0 0.0
        %5715 = vmatprep.subr.mxu0 0.0
        %5716 = vmatpush1.msra.mxu0 0.0
        %5717 = vmatprep.subr.mxu0 0.0
        %5718 = vmatpush1.msra.mxu0 0.0
        %5719 = vmatprep.subr.mxu0 0.0
        %5720 = vmatpush1.msra.mxu0 0.0
        %5721 = vmatprep.subr.mxu0 0.0
        %5722 = vmatpush1.msra.mxu0 0.0
        %5723 = vmatprep.subr.mxu0 0.0
        %5724 = vmatpush1.msra.mxu0 0.0
        %5725 = vmatprep.subr.mxu0 0.0
        %5726 = vmatpush1.msra.mxu0 0.0
        %5727 = vmatprep.subr.mxu0 0.0
        %5728 = vmatpush1.msra.mxu0 0.0
        %5729 = vmatprep.subr.mxu0 0.0
        %5730 = vmatpush1.msra.mxu0 0.0
        %5731 = vmatprep.subr.mxu0 0.0
        %5732 = vmatpush1.msra.mxu0 0.0
        %5733 = vmatprep.subr.mxu0 0.0
        %5734 = vmatpush1.msra.mxu0 0.0
        %5735 = vmatprep.subr.mxu0 0.0
        %5736 = vmatpush1.msra.mxu0 0.0
        %5737 = vmatprep.subr.mxu0 0.0
        %5738 = vmatpush1.msra.mxu0 0.0
        %5739 = vmatprep.subr.mxu0 0.0
        %5740 = vmatpush1.msra.mxu0 0.0
        %5741 = vmatprep.subr.mxu0 0.0
        %5742 = vmatpush1.msra.mxu0 0.0
        %5743 = vmatprep.subr.mxu0 0.0
        %5744 = vmatpush1.msra.mxu0 0.0
        %5745 = vmatprep.subr.mxu0 0.0
        %5746 = vmatpush1.msra.mxu0 0.0
        %5747 = vmatprep.subr.mxu0 0.0
        %5748 = vmatpush1.msra.mxu0 0.0
        %5749 = vmatprep.subr.mxu0 0.0
        %5750 = vmatpush1.msra.mxu0 0.0
        %5751 = vmatprep.subr.mxu0 0.0
        %5752 = vmatpush1.msra.mxu0 0.0
        %5753 = vmatprep.subr.mxu0 0.0
        %5754 = vmatpush1.msra.mxu0 0.0
        %5755 = vmatprep.subr.mxu0 0.0
        %5756 = vmatpush1.msra.mxu0 0.0
        %5757 = vmatprep.subr.mxu0 0.0
        %5758 = vmatpush1.msra.mxu0 0.0
        %5759 = vmatprep.subr.mxu0 0.0
        %5760 = vmatpush1.msra.mxu0 0.0
        %5761 = vmatprep.subr.mxu0 0.0
        %5762 = vmatpush1.msra.mxu0 0.0
        %5763 = vmatprep.subr.mxu0 0.0
        %5764 = vmatpush1.msra.mxu0 0.0
        %5765 = vmatprep.mubr.f32.mxu0 0.0
        %5766 = vmatmul.mubr.f32.gmra.mrb[0].mxu0 %v5533
        %v5767 = vpop.f32.mrb[0].mxu0
        %v5768 = vadd.f32 %v5699, %v5767
        %v5769 = vpop.f32.mrb[0].mxu0
        %5770 = vdwg.mxu0
        %v5772 = vsel %vm860, %v5602, 0
        %v5775 = vsel %vm860, %v5685, 0
        %5777 = vmatprep.subr.mxu0 0.0
        %5778 = vmatpush1.xpose.msra.mxu0 %v5775
        %5779 = vmatprep.subr.mxu0 0.0
        %5780 = vmatpush1.xpose.msra.mxu0 0.0
        %5781 = vmatprep.subr.mxu0 0.0
        %5782 = vmatpush1.xpose.msra.mxu0 0.0
        %5783 = vmatprep.subr.mxu0 0.0
        %5784 = vmatpush1.xpose.msra.mxu0 0.0
        %5785 = vmatprep.subr.mxu0 0.0
        %5786 = vmatpush1.xpose.msra.mxu0 0.0
        %5787 = vmatprep.subr.mxu0 0.0
        %5788 = vmatpush1.xpose.msra.mxu0 0.0
        %5789 = vmatprep.subr.mxu0 0.0
        %5790 = vmatpush1.xpose.msra.mxu0 0.0
        %5791 = vmatprep.subr.mxu0 0.0
        %5792 = vmatpush1.xpose.msra.mxu0 0.0
        %5793 = vmatprep.subr.mxu0 0.0
        %5794 = vmatpush1.xpose.msra.mxu0 0.0
        %5795 = vmatprep.subr.mxu0 0.0
        %5796 = vmatpush1.xpose.msra.mxu0 0.0
        %5797 = vmatprep.subr.mxu0 0.0
        %5798 = vmatpush1.xpose.msra.mxu0 0.0
        %5799 = vmatprep.subr.mxu0 0.0
        %5800 = vmatpush1.xpose.msra.mxu0 0.0
        %5801 = vmatprep.subr.mxu0 0.0
        %5802 = vmatpush1.xpose.msra.mxu0 0.0
        %5803 = vmatprep.subr.mxu0 0.0
        %5804 = vmatpush1.xpose.msra.mxu0 0.0
        %5805 = vmatprep.subr.mxu0 0.0
        %5806 = vmatpush1.xpose.msra.mxu0 0.0
        %5807 = vmatprep.subr.mxu0 0.0
        %5808 = vmatpush1.xpose.msra.mxu0 0.0
        %5809 = vmatprep.subr.mxu0 0.0
        %5810 = vmatpush1.xpose.msra.mxu0 0.0
        %5811 = vmatprep.subr.mxu0 0.0
        %5812 = vmatpush1.xpose.msra.mxu0 0.0
        %5813 = vmatprep.subr.mxu0 0.0
        %5814 = vmatpush1.xpose.msra.mxu0 0.0
        %5815 = vmatprep.subr.mxu0 0.0
        %5816 = vmatpush1.xpose.msra.mxu0 0.0
        %5817 = vmatprep.subr.mxu0 0.0
        %5818 = vmatpush1.xpose.msra.mxu0 0.0
        %5819 = vmatprep.subr.mxu0 0.0
        %5820 = vmatpush1.xpose.msra.mxu0 0.0
        %5821 = vmatprep.subr.mxu0 0.0
        %5822 = vmatpush1.xpose.msra.mxu0 0.0
        %5823 = vmatprep.subr.mxu0 0.0
        %5824 = vmatpush1.xpose.msra.mxu0 0.0
        %5825 = vmatprep.subr.mxu0 0.0
        %5826 = vmatpush1.xpose.msra.mxu0 0.0
        %5827 = vmatprep.subr.mxu0 0.0
        %5828 = vmatpush1.xpose.msra.mxu0 0.0
        %5829 = vmatprep.subr.mxu0 0.0
        %5830 = vmatpush1.xpose.msra.mxu0 0.0
        %5831 = vmatprep.subr.mxu0 0.0
        %5832 = vmatpush1.xpose.msra.mxu0 0.0
        %5833 = vmatprep.subr.mxu0 0.0
        %5834 = vmatpush1.xpose.msra.mxu0 0.0
        %5835 = vmatprep.subr.mxu0 0.0
        %5836 = vmatpush1.xpose.msra.mxu0 0.0
        %5837 = vmatprep.subr.mxu0 0.0
        %5838 = vmatpush1.xpose.msra.mxu0 0.0
        %5839 = vmatprep.subr.mxu0 0.0
        %5840 = vmatpush1.xpose.msra.mxu0 0.0
        %5841 = vmatprep.mubr.f32.mxu0 0.0
        %5842 = vmatmul.mubr.f32.gmra.mrb[0].mxu0 %v5772
        %v5843 = vpop.f32.mrb[0].mxu0
        %v5844 = vadd.f32 0.0, %v5843
        %v5845 = vpop.f32.mrb[0].mxu0
        %5846 = vdwg.mxu0
        %v5847 = vmul.f32 %v5844, 0.25
        %v5848 = vadd.f32 %v5847, %v610
        %v5849 = vsel %vm939, %v5848, -inf
        %5850 = vmax.xlane.f32.xlu0 %v5849
        %v5851 = vpop.xlane.xlu0 %5850
        %v5852 = vsub.f32 %v5848, %v5851
        %v5853 = vmul.f32 %v5852, 1.442695
        %v5854 = vpow.pop %v5853
        %v5855 = vsel %vm939, %v5854, 0.0
        %5856 = vadd.xlane.f32.xlu0 %v5855
        %v5857 = vpop.xlane.xlu0 %5856
        %v5858 = vrcp.pop %v5857
        %v5859 = vmul.f32 %v5854, %v5858
        %v5861 = vsel %vm939, %v5859, 0
        %5863 = vmatprep.subr.mxu0 0.0
        %5864 = vmatpush1.msra.mxu0 %v5768
        %5865 = vmatprep.subr.mxu0 0.0
        %5866 = vmatpush1.msra.mxu0 0.0
        %5867 = vmatprep.subr.mxu0 0.0
        %5868 = vmatpush1.msra.mxu0 0.0
        %5869 = vmatprep.subr.mxu0 0.0
        %5870 = vmatpush1.msra.mxu0 0.0
        %5871 = vmatprep.subr.mxu0 0.0
        %5872 = vmatpush1.msra.mxu0 0.0
        %5873 = vmatprep.subr.mxu0 0.0
        %5874 = vmatpush1.msra.mxu0 0.0
        %5875 = vmatprep.subr.mxu0 0.0
        %5876 = vmatpush1.msra.mxu0 0.0
        %5877 = vmatprep.subr.mxu0 0.0
        %5878 = vmatpush1.msra.mxu0 0.0
        %5879 = vmatprep.subr.mxu0 0.0
        %5880 = vmatpush1.msra.mxu0 0.0
        %5881 = vmatprep.subr.mxu0 0.0
        %5882 = vmatpush1.msra.mxu0 0.0
        %5883 = vmatprep.subr.mxu0 0.0
        %5884 = vmatpush1.msra.mxu0 0.0
        %5885 = vmatprep.subr.mxu0 0.0
        %5886 = vmatpush1.msra.mxu0 0.0
        %5887 = vmatprep.subr.mxu0 0.0
        %5888 = vmatpush1.msra.mxu0 0.0
        %5889 = vmatprep.subr.mxu0 0.0
        %5890 = vmatpush1.msra.mxu0 0.0
        %5891 = vmatprep.subr.mxu0 0.0
        %5892 = vmatpush1.msra.mxu0 0.0
        %5893 = vmatprep.subr.mxu0 0.0
        %5894 = vmatpush1.msra.mxu0 0.0
        %5895 = vmatprep.subr.mxu0 0.0
        %5896 = vmatpush1.msra.mxu0 0.0
        %5897 = vmatprep.subr.mxu0 0.0
        %5898 = vmatpush1.msra.mxu0 0.0
        %5899 = vmatprep.subr.mxu0 0.0
        %5900 = vmatpush1.msra.mxu0 0.0
        %5901 = vmatprep.subr.mxu0 0.0
        %5902 = vmatpush1.msra.mxu0 0.0
        %5903 = vmatprep.subr.mxu0 0.0
        %5904 = vmatpush1.msra.mxu0 0.0
        %5905 = vmatprep.subr.mxu0 0.0
        %5906 = vmatpush1.msra.mxu0 0.0
        %5907 = vmatprep.subr.mxu0 0.0
        %5908 = vmatpush1.msra.mxu0 0.0
        %5909 = vmatprep.subr.mxu0 0.0
        %5910 = vmatpush1.msra.mxu0 0.0
        %5911 = vmatprep.subr.mxu0 0.0
        %5912 = vmatpush1.msra.mxu0 0.0
        %5913 = vmatprep.subr.mxu0 0.0
        %5914 = vmatpush1.msra.mxu0 0.0
        %5915 = vmatprep.subr.mxu0 0.0
        %5916 = vmatpush1.msra.mxu0 0.0
        %5917 = vmatprep.subr.mxu0 0.0
        %5918 = vmatpush1.msra.mxu0 0.0
        %5919 = vmatprep.subr.mxu0 0.0
        %5920 = vmatpush1.msra.mxu0 0.0
        %5921 = vmatprep.subr.mxu0 0.0
        %5922 = vmatpush1.msra.mxu0 0.0
        %5923 = vmatprep.subr.mxu0 0.0
        %5924 = vmatpush1.msra.mxu0 0.0
        %5925 = vmatprep.subr.mxu0 0.0
        %5926 = vmatpush1.msra.mxu0 0.0
        %5927 = vmatprep.mubr.f32.mxu0 0.0
        %5928 = vmatmul.mubr.f32.gmra.mrb[0].mxu0 %v5861
        %v5929 = vpop.f32.mrb[0].mxu0
        %v5930 = vadd.f32 0.0, %v5929
        %v5931 = vpop.f32.mrb[0].mxu0
        %5932 = vdwg.mxu0
        %s5933 = scalar_lea.vmem %s7, 128
        %v5934 = vld [vmem:[%s5933] sm:$0xff]
        %v5935 = vld [vmem:[%s5933 + $0x8] sm:$0xff]
        %s5936 = scalar_lea.vmem %s4, 288
        %v5937 = vld [vmem:[%s5936] sm:$0xff]
        %v5938 = vld [vmem:[%s5936 + $0x8] sm:$0xff]
        %v5939 = vld [vmem:[%s5936 + $0x10] sm:$0xff]
        %v5940 = vld [vmem:[%s5936 + $0x18] sm:$0xff]
        %s5941 = scalar_lea.vmem %s8, 27
        %v5942 = vld [vmem:[%s5941] sm:$0x1]
        %v5944 = vlaneseq
        %v5945 = vshrl.u32 %v5944, 7
        %v5946 = vsub.s32 0, %v5945
        %v5947 = vrot.slane %v5942, %v5946
        %5949 = vmatprep.subr.mxu0 0.0
        %5950 = vmatpush1.msra.mxu0 %v5937
        %5951 = vmatprep.subr.mxu0 0.0
        %5952 = vmatpush1.msra.mxu0 %v5938
        %5953 = vmatprep.subr.mxu0 0.0
        %5954 = vmatpush1.msra.mxu0 %v5939
        %5955 = vmatprep.subr.mxu0 0.0
        %5956 = vmatpush1.msra.mxu0 %v5940
        %5957 = vmatprep.subr.mxu0 0.0
        %5958 = vmatpush1.msra.mxu0 0.0
        %5959 = vmatprep.subr.mxu0 0.0
        %5960 = vmatpush1.msra.mxu0 0.0
        %5961 = vmatprep.subr.mxu0 0.0
        %5962 = vmatpush1.msra.mxu0 0.0
        %5963 = vmatprep.subr.mxu0 0.0
        %5964 = vmatpush1.msra.mxu0 0.0
        %5965 = vmatprep.subr.mxu0 0.0
        %5966 = vmatpush1.msra.mxu0 0.0
        %5967 = vmatprep.subr.mxu0 0.0
        %5968 = vmatpush1.msra.mxu0 0.0
        %5969 = vmatprep.subr.mxu0 0.0
        %5970 = vmatpush1.msra.mxu0 0.0
        %5971 = vmatprep.subr.mxu0 0.0
        %5972 = vmatpush1.msra.mxu0 0.0
        %5973 = vmatprep.subr.mxu0 0.0
        %5974 = vmatpush1.msra.mxu0 0.0
        %5975 = vmatprep.subr.mxu0 0.0
        %5976 = vmatpush1.msra.mxu0 0.0
        %5977 = vmatprep.subr.mxu0 0.0
        %5978 = vmatpush1.msra.mxu0 0.0
        %5979 = vmatprep.subr.mxu0 0.0
        %5980 = vmatpush1.msra.mxu0 0.0
        %5981 = vmatprep.subr.mxu0 0.0
        %5982 = vmatpush1.msra.mxu0 0.0
        %5983 = vmatprep.subr.mxu0 0.0
        %5984 = vmatpush1.msra.mxu0 0.0
        %5985 = vmatprep.subr.mxu0 0.0
        %5986 = vmatpush1.msra.mxu0 0.0
        %5987 = vmatprep.subr.mxu0 0.0
        %5988 = vmatpush1.msra.mxu0 0.0
        %5989 = vmatprep.subr.mxu0 0.0
        %5990 = vmatpush1.msra.mxu0 0.0
        %5991 = vmatprep.subr.mxu0 0.0
        %5992 = vmatpush1.msra.mxu0 0.0
        %5993 = vmatprep.subr.mxu0 0.0
        %5994 = vmatpush1.msra.mxu0 0.0
        %5995 = vmatprep.subr.mxu0 0.0
        %5996 = vmatpush1.msra.mxu0 0.0
        %5997 = vmatprep.subr.mxu0 0.0
        %5998 = vmatpush1.msra.mxu0 0.0
        %5999 = vmatprep.subr.mxu0 0.0
        %6000 = vmatpush1.msra.mxu0 0.0
        %6001 = vmatprep.subr.mxu0 0.0
        %6002 = vmatpush1.msra.mxu0 0.0
        %6003 = vmatprep.subr.mxu0 0.0
        %6004 = vmatpush1.msra.mxu0 0.0
        %6005 = vmatprep.subr.mxu0 0.0
        %6006 = vmatpush1.msra.mxu0 0.0
        %6007 = vmatprep.subr.mxu0 0.0
        %6008 = vmatpush1.msra.mxu0 0.0
        %6009 = vmatprep.subr.mxu0 0.0
        %6010 = vmatpush1.msra.mxu0 0.0
        %6011 = vmatprep.subr.mxu0 0.0
        %6012 = vmatpush1.msra.mxu0 0.0
        %6013 = vmatprep.mubr.f32.mxu0 0.0
        %6014 = vmatmul.mubr.f32.gmra.mrb[0].mxu0 %v5533
        %v6015 = vpop.f32.mrb[0].mxu0
        %v6016 = vadd.f32 %v5947, %v6015
        %v6017 = vpop.f32.mrb[0].mxu0
        %6018 = vdwg.mxu0
        %s6019 = scalar_lea.vmem %s5, 288
        %v6020 = vld [vmem:[%s6019] sm:$0xff]
        %v6021 = vld [vmem:[%s6019 + $0x8] sm:$0xff]
        %v6022 = vld [vmem:[%s6019 + $0x10] sm:$0xff]
        %v6023 = vld [vmem:[%s6019 + $0x18] sm:$0xff]
        %s6024 = scalar_lea.vmem %s8, 28
        %v6025 = vld [vmem:[%s6024] sm:$0x1]
        %v6027 = vlaneseq
        %v6028 = vshrl.u32 %v6027, 7
        %v6029 = vsub.s32 0, %v6028
        %v6030 = vrot.slane %v6025, %v6029
        %6032 = vmatprep.subr.mxu0 0.0
        %6033 = vmatpush1.msra.mxu0 %v6020
        %6034 = vmatprep.subr.mxu0 0.0
        %6035 = vmatpush1.msra.mxu0 %v6021
        %6036 = vmatprep.subr.mxu0 0.0
        %6037 = vmatpush1.msra.mxu0 %v6022
        %6038 = vmatprep.subr.mxu0 0.0
        %6039 = vmatpush1.msra.mxu0 %v6023
        %6040 = vmatprep.subr.mxu0 0.0
        %6041 = vmatpush1.msra.mxu0 0.0
        %6042 = vmatprep.subr.mxu0 0.0
        %6043 = vmatpush1.msra.mxu0 0.0
        %6044 = vmatprep.subr.mxu0 0.0
        %6045 = vmatpush1.msra.mxu0 0.0
        %6046 = vmatprep.subr.mxu0 0.0
        %6047 = vmatpush1.msra.mxu0 0.0
        %6048 = vmatprep.subr.mxu0 0.0
        %6049 = vmatpush1.msra.mxu0 0.0
        %6050 = vmatprep.subr.mxu0 0.0
        %6051 = vmatpush1.msra.mxu0 0.0
        %6052 = vmatprep.subr.mxu0 0.0
        %6053 = vmatpush1.msra.mxu0 0.0
        %6054 = vmatprep.subr.mxu0 0.0
        %6055 = vmatpush1.msra.mxu0 0.0
        %6056 = vmatprep.subr.mxu0 0.0
        %6057 = vmatpush1.msra.mxu0 0.0
        %6058 = vmatprep.subr.mxu0 0.0
        %6059 = vmatpush1.msra.mxu0 0.0
        %6060 = vmatprep.subr.mxu0 0.0
        %6061 = vmatpush1.msra.mxu0 0.0
        %6062 = vmatprep.subr.mxu0 0.0
        %6063 = vmatpush1.msra.mxu0 0.0
        %6064 = vmatprep.subr.mxu0 0.0
        %6065 = vmatpush1.msra.mxu0 0.0
        %6066 = vmatprep.subr.mxu0 0.0
        %6067 = vmatpush1.msra.mxu0 0.0
        %6068 = vmatprep.subr.mxu0 0.0
        %6069 = vmatpush1.msra.mxu0 0.0
        %6070 = vmatprep.subr.mxu0 0.0
        %6071 = vmatpush1.msra.mxu0 0.0
        %6072 = vmatprep.subr.mxu0 0.0
        %6073 = vmatpush1.msra.mxu0 0.0
        %6074 = vmatprep.subr.mxu0 0.0
        %6075 = vmatpush1.msra.mxu0 0.0
        %6076 = vmatprep.subr.mxu0 0.0
        %6077 = vmatpush1.msra.mxu0 0.0
        %6078 = vmatprep.subr.mxu0 0.0
        %6079 = vmatpush1.msra.mxu0 0.0
        %6080 = vmatprep.subr.mxu0 0.0
        %6081 = vmatpush1.msra.mxu0 0.0
        %6082 = vmatprep.subr.mxu0 0.0
        %6083 = vmatpush1.msra.mxu0 0.0
        %6084 = vmatprep.subr.mxu0 0.0
        %6085 = vmatpush1.msra.mxu0 0.0
        %6086 = vmatprep.subr.mxu0 0.0
        %6087 = vmatpush1.msra.mxu0 0.0
        %6088 = vmatprep.subr.mxu0 0.0
        %6089 = vmatpush1.msra.mxu0 0.0
        %6090 = vmatprep.subr.mxu0 0.0
        %6091 = vmatpush1.msra.mxu0 0.0
        %6092 = vmatprep.subr.mxu0 0.0
        %6093 = vmatpush1.msra.mxu0 0.0
        %6094 = vmatprep.subr.mxu0 0.0
        %6095 = vmatpush1.msra.mxu0 0.0
        %6096 = vmatprep.mubr.f32.mxu0 0.0
        %6097 = vmatmul.mubr.f32.gmra.mrb[0].mxu0 %v5533
        %v6098 = vpop.f32.mrb[0].mxu0
        %v6099 = vadd.f32 %v6030, %v6098
        %v6100 = vpop.f32.mrb[0].mxu0
        %6101 = vdwg.mxu0
        %s6102 = scalar_lea.vmem %s6, 288
        %v6103 = vld [vmem:[%s6102] sm:$0xff]
        %v6104 = vld [vmem:[%s6102 + $0x8] sm:$0xff]
        %v6105 = vld [vmem:[%s6102 + $0x10] sm:$0xff]
        %v6106 = vld [vmem:[%s6102 + $0x18] sm:$0xff]
        %s6107 = scalar_lea.vmem %s8, 29
        %v6108 = vld [vmem:[%s6107] sm:$0x1]
        %v6110 = vlaneseq
        %v6111 = vshrl.u32 %v6110, 7
        %v6112 = vsub.s32 0, %v6111
        %v6113 = vrot.slane %v6108, %v6112
        %6115 = vmatprep.subr.mxu0 0.0
        %6116 = vmatpush1.msra.mxu0 %v6103
        %6117 = vmatprep.subr.mxu0 0.0
        %6118 = vmatpush1.msra.mxu0 %v6104
        %6119 = vmatprep.subr.mxu0 0.0
        %6120 = vmatpush1.msra.mxu0 %v6105
        %6121 = vmatprep.subr.mxu0 0.0
        %6122 = vmatpush1.msra.mxu0 %v6106
        %6123 = vmatprep.subr.mxu0 0.0
        %6124 = vmatpush1.msra.mxu0 0.0
        %6125 = vmatprep.subr.mxu0 0.0
        %6126 = vmatpush1.msra.mxu0 0.0
        %6127 = vmatprep.subr.mxu0 0.0
        %6128 = vmatpush1.msra.mxu0 0.0
        %6129 = vmatprep.subr.mxu0 0.0
        %6130 = vmatpush1.msra.mxu0 0.0
        %6131 = vmatprep.subr.mxu0 0.0
        %6132 = vmatpush1.msra.mxu0 0.0
        %6133 = vmatprep.subr.mxu0 0.0
        %6134 = vmatpush1.msra.mxu0 0.0
        %6135 = vmatprep.subr.mxu0 0.0
        %6136 = vmatpush1.msra.mxu0 0.0
        %6137 = vmatprep.subr.mxu0 0.0
        %6138 = vmatpush1.msra.mxu0 0.0
        %6139 = vmatprep.subr.mxu0 0.0
        %6140 = vmatpush1.msra.mxu0 0.0
        %6141 = vmatprep.subr.mxu0 0.0
        %6142 = vmatpush1.msra.mxu0 0.0
        %6143 = vmatprep.subr.mxu0 0.0
        %6144 = vmatpush1.msra.mxu0 0.0
        %6145 = vmatprep.subr.mxu0 0.0
        %6146 = vmatpush1.msra.mxu0 0.0
        %6147 = vmatprep.subr.mxu0 0.0
        %6148 = vmatpush1.msra.mxu0 0.0
        %6149 = vmatprep.subr.mxu0 0.0
        %6150 = vmatpush1.msra.mxu0 0.0
        %6151 = vmatprep.subr.mxu0 0.0
        %6152 = vmatpush1.msra.mxu0 0.0
        %6153 = vmatprep.subr.mxu0 0.0
        %6154 = vmatpush1.msra.mxu0 0.0
        %6155 = vmatprep.subr.mxu0 0.0
        %6156 = vmatpush1.msra.mxu0 0.0
        %6157 = vmatprep.subr.mxu0 0.0
        %6158 = vmatpush1.msra.mxu0 0.0
        %6159 = vmatprep.subr.mxu0 0.0
        %6160 = vmatpush1.msra.mxu0 0.0
        %6161 = vmatprep.subr.mxu0 0.0
        %6162 = vmatpush1.msra.mxu0 0.0
        %6163 = vmatprep.subr.mxu0 0.0
        %6164 = vmatpush1.msra.mxu0 0.0
        %6165 = vmatprep.subr.mxu0 0.0
        %6166 = vmatpush1.msra.mxu0 0.0
        %6167 = vmatprep.subr.mxu0 0.0
        %6168 = vmatpush1.msra.mxu0 0.0
        %6169 = vmatprep.subr.mxu0 0.0
        %6170 = vmatpush1.msra.mxu0 0.0
        %6171 = vmatprep.subr.mxu0 0.0
        %6172 = vmatpush1.msra.mxu0 0.0
        %6173 = vmatprep.subr.mxu0 0.0
        %6174 = vmatpush1.msra.mxu0 0.0
        %6175 = vmatprep.subr.mxu0 0.0
        %6176 = vmatpush1.msra.mxu0 0.0
        %6177 = vmatprep.subr.mxu0 0.0
        %6178 = vmatpush1.msra.mxu0 0.0
        %6179 = vmatprep.mubr.f32.mxu0 0.0
        %6180 = vmatmul.mubr.f32.gmra.mrb[0].mxu0 %v5533
        %v6181 = vpop.f32.mrb[0].mxu0
        %v6182 = vadd.f32 %v6113, %v6181
        %v6183 = vpop.f32.mrb[0].mxu0
        %6184 = vdwg.mxu0
        %v6186 = vsel %vm860, %v6016, 0
        %v6189 = vsel %vm860, %v6099, 0
        %6191 = vmatprep.subr.mxu0 0.0
        %6192 = vmatpush1.xpose.msra.mxu0 %v6189
        %6193 = vmatprep.subr.mxu0 0.0
        %6194 = vmatpush1.xpose.msra.mxu0 0.0
        %6195 = vmatprep.subr.mxu0 0.0
        %6196 = vmatpush1.xpose.msra.mxu0 0.0
        %6197 = vmatprep.subr.mxu0 0.0
        %6198 = vmatpush1.xpose.msra.mxu0 0.0
        %6199 = vmatprep.subr.mxu0 0.0
        %6200 = vmatpush1.xpose.msra.mxu0 0.0
        %6201 = vmatprep.subr.mxu0 0.0
        %6202 = vmatpush1.xpose.msra.mxu0 0.0
        %6203 = vmatprep.subr.mxu0 0.0
        %6204 = vmatpush1.xpose.msra.mxu0 0.0
        %6205 = vmatprep.subr.mxu0 0.0
        %6206 = vmatpush1.xpose.msra.mxu0 0.0
        %6207 = vmatprep.subr.mxu0 0.0
        %6208 = vmatpush1.xpose.msra.mxu0 0.0
        %6209 = vmatprep.subr.mxu0 0.0
        %6210 = vmatpush1.xpose.msra.mxu0 0.0
        %6211 = vmatprep.subr.mxu0 0.0
        %6212 = vmatpush1.xpose.msra.mxu0 0.0
        %6213 = vmatprep.subr.mxu0 0.0
        %6214 = vmatpush1.xpose.msra.mxu0 0.0
        %6215 = vmatprep.subr.mxu0 0.0
        %6216 = vmatpush1.xpose.msra.mxu0 0.0
        %6217 = vmatprep.subr.mxu0 0.0
        %6218 = vmatpush1.xpose.msra.mxu0 0.0
        %6219 = vmatprep.subr.mxu0 0.0
        %6220 = vmatpush1.xpose.msra.mxu0 0.0
        %6221 = vmatprep.subr.mxu0 0.0
        %6222 = vmatpush1.xpose.msra.mxu0 0.0
        %6223 = vmatprep.subr.mxu0 0.0
        %6224 = vmatpush1.xpose.msra.mxu0 0.0
        %6225 = vmatprep.subr.mxu0 0.0
        %6226 = vmatpush1.xpose.msra.mxu0 0.0
        %6227 = vmatprep.subr.mxu0 0.0
        %6228 = vmatpush1.xpose.msra.mxu0 0.0
        %6229 = vmatprep.subr.mxu0 0.0
        %6230 = vmatpush1.xpose.msra.mxu0 0.0
        %6231 = vmatprep.subr.mxu0 0.0
        %6232 = vmatpush1.xpose.msra.mxu0 0.0
        %6233 = vmatprep.subr.mxu0 0.0
        %6234 = vmatpush1.xpose.msra.mxu0 0.0
        %6235 = vmatprep.subr.mxu0 0.0
        %6236 = vmatpush1.xpose.msra.mxu0 0.0
        %6237 = vmatprep.subr.mxu0 0.0
        %6238 = vmatpush1.xpose.msra.mxu0 0.0
        %6239 = vmatprep.subr.mxu0 0.0
        %6240 = vmatpush1.xpose.msra.mxu0 0.0
        %6241 = vmatprep.subr.mxu0 0.0
        %6242 = vmatpush1.xpose.msra.mxu0 0.0
        %6243 = vmatprep.subr.mxu0 0.0
        %6244 = vmatpush1.xpose.msra.mxu0 0.0
        %6245 = vmatprep.subr.mxu0 0.0
        %6246 = vmatpush1.xpose.msra.mxu0 0.0
        %6247 = vmatprep.subr.mxu0 0.0
        %6248 = vmatpush1.xpose.msra.mxu0 0.0
        %6249 = vmatprep.subr.mxu0 0.0
        %6250 = vmatpush1.xpose.msra.mxu0 0.0
        %6251 = vmatprep.subr.mxu0 0.0
        %6252 = vmatpush1.xpose.msra.mxu0 0.0
        %6253 = vmatprep.subr.mxu0 0.0
        %6254 = vmatpush1.xpose.msra.mxu0 0.0
        %6255 = vmatprep.mubr.f32.mxu0 0.0
        %6256 = vmatmul.mubr.f32.gmra.mrb[0].mxu0 %v6186
        %v6257 = vpop.f32.mrb[0].mxu0
        %v6258 = vadd.f32 0.0, %v6257
        %v6259 = vpop.f32.mrb[0].mxu0
        %6260 = vdwg.mxu0
        %v6261 = vmul.f32 %v6258, 0.25
        %v6262 = vadd.f32 %v6261, %v610
        %v6263 = vsel %vm939, %v6262, -inf
        %6264 = vmax.xlane.f32.xlu0 %v6263
        %v6265 = vpop.xlane.xlu0 %6264
        %v6266 = vsub.f32 %v6262, %v6265
        %v6267 = vmul.f32 %v6266, 1.442695
        %v6268 = vpow.pop %v6267
        %v6269 = vsel %vm939, %v6268, 0.0
        %6270 = vadd.xlane.f32.xlu0 %v6269
        %v6271 = vpop.xlane.xlu0 %6270
        %v6272 = vrcp.pop %v6271
        %v6273 = vmul.f32 %v6268, %v6272
        %v6275 = vsel %vm939, %v6273, 0
        %6277 = vmatprep.subr.mxu0 0.0
        %6278 = vmatpush1.msra.mxu0 %v6182
        %6279 = vmatprep.subr.mxu0 0.0
        %6280 = vmatpush1.msra.mxu0 0.0
        %6281 = vmatprep.subr.mxu0 0.0
        %6282 = vmatpush1.msra.mxu0 0.0
        %6283 = vmatprep.subr.mxu0 0.0
        %6284 = vmatpush1.msra.mxu0 0.0
        %6285 = vmatprep.subr.mxu0 0.0
        %6286 = vmatpush1.msra.mxu0 0.0
        %6287 = vmatprep.subr.mxu0 0.0
        %6288 = vmatpush1.msra.mxu0 0.0
        %6289 = vmatprep.subr.mxu0 0.0
        %6290 = vmatpush1.msra.mxu0 0.0
        %6291 = vmatprep.subr.mxu0 0.0
        %6292 = vmatpush1.msra.mxu0 0.0
        %6293 = vmatprep.subr.mxu0 0.0
        %6294 = vmatpush1.msra.mxu0 0.0
        %6295 = vmatprep.subr.mxu0 0.0
        %6296 = vmatpush1.msra.mxu0 0.0
        %6297 = vmatprep.subr.mxu0 0.0
        %6298 = vmatpush1.msra.mxu0 0.0
        %6299 = vmatprep.subr.mxu0 0.0
        %6300 = vmatpush1.msra.mxu0 0.0
        %6301 = vmatprep.subr.mxu0 0.0
        %6302 = vmatpush1.msra.mxu0 0.0
        %6303 = vmatprep.subr.mxu0 0.0
        %6304 = vmatpush1.msra.mxu0 0.0
        %6305 = vmatprep.subr.mxu0 0.0
        %6306 = vmatpush1.msra.mxu0 0.0
        %6307 = vmatprep.subr.mxu0 0.0
        %6308 = vmatpush1.msra.mxu0 0.0
        %6309 = vmatprep.subr.mxu0 0.0
        %6310 = vmatpush1.msra.mxu0 0.0
        %6311 = vmatprep.subr.mxu0 0.0
        %6312 = vmatpush1.msra.mxu0 0.0
        %6313 = vmatprep.subr.mxu0 0.0
        %6314 = vmatpush1.msra.mxu0 0.0
        %6315 = vmatprep.subr.mxu0 0.0
        %6316 = vmatpush1.msra.mxu0 0.0
        %6317 = vmatprep.subr.mxu0 0.0
        %6318 = vmatpush1.msra.mxu0 0.0
        %6319 = vmatprep.subr.mxu0 0.0
        %6320 = vmatpush1.msra.mxu0 0.0
        %6321 = vmatprep.subr.mxu0 0.0
        %6322 = vmatpush1.msra.mxu0 0.0
        %6323 = vmatprep.subr.mxu0 0.0
        %6324 = vmatpush1.msra.mxu0 0.0
        %6325 = vmatprep.subr.mxu0 0.0
        %6326 = vmatpush1.msra.mxu0 0.0
        %6327 = vmatprep.subr.mxu0 0.0
        %6328 = vmatpush1.msra.mxu0 0.0
        %6329 = vmatprep.subr.mxu0 0.0
        %6330 = vmatpush1.msra.mxu0 0.0
        %6331 = vmatprep.subr.mxu0 0.0
        %6332 = vmatpush1.msra.mxu0 0.0
        %6333 = vmatprep.subr.mxu0 0.0
        %6334 = vmatpush1.msra.mxu0 0.0
        %6335 = vmatprep.subr.mxu0 0.0
        %6336 = vmatpush1.msra.mxu0 0.0
        %6337 = vmatprep.subr.mxu0 0.0
        %6338 = vmatpush1.msra.mxu0 0.0
        %6339 = vmatprep.subr.mxu0 0.0
        %6340 = vmatpush1.msra.mxu0 0.0
        %6341 = vmatprep.mubr.f32.mxu0 0.0
        %6342 = vmatmul.mubr.f32.gmra.mrb[0].mxu0 %v6275
        %v6343 = vpop.f32.mrb[0].mxu0
        %v6344 = vadd.f32 0.0, %v6343
        %v6345 = vpop.f32.mrb[0].mxu0
        %6346 = vdwg.mxu0
        %s6347 = scalar_lea.vmem %s7, 144
        %v6348 = vld [vmem:[%s6347] sm:$0xff]
        %v6349 = vld [vmem:[%s6347 + $0x8] sm:$0xff]
        %v6351 = vsel %vm860, %v6344, 0
        %6353 = vmatprep.subr.mxu0 0.0
        %6354 = vmatpush1.msra.mxu0 %v6348
        %6355 = vmatprep.subr.mxu0 0.0
        %6356 = vmatpush1.msra.mxu0 %v6349
        %6357 = vmatprep.subr.mxu0 0.0
        %6358 = vmatpush1.msra.mxu0 0.0
        %6359 = vmatprep.subr.mxu0 0.0
        %6360 = vmatpush1.msra.mxu0 0.0
        %6361 = vmatprep.subr.mxu0 0.0
        %6362 = vmatpush1.msra.mxu0 0.0
        %6363 = vmatprep.subr.mxu0 0.0
        %6364 = vmatpush1.msra.mxu0 0.0
        %6365 = vmatprep.subr.mxu0 0.0
        %6366 = vmatpush1.msra.mxu0 0.0
        %6367 = vmatprep.subr.mxu0 0.0
        %6368 = vmatpush1.msra.mxu0 0.0
        %6369 = vmatprep.subr.mxu0 0.0
        %6370 = vmatpush1.msra.mxu0 0.0
        %6371 = vmatprep.subr.mxu0 0.0
        %6372 = vmatpush1.msra.mxu0 0.0
        %6373 = vmatprep.subr.mxu0 0.0
        %6374 = vmatpush1.msra.mxu0 0.0
        %6375 = vmatprep.subr.mxu0 0.0
        %6376 = vmatpush1.msra.mxu0 0.0
        %6377 = vmatprep.subr.mxu0 0.0
        %6378 = vmatpush1.msra.mxu0 0.0
        %6379 = vmatprep.subr.mxu0 0.0
        %6380 = vmatpush1.msra.mxu0 0.0
        %6381 = vmatprep.subr.mxu0 0.0
        %6382 = vmatpush1.msra.mxu0 0.0
        %6383 = vmatprep.subr.mxu0 0.0
        %6384 = vmatpush1.msra.mxu0 0.0
        %6385 = vmatprep.subr.mxu0 0.0
        %6386 = vmatpush1.msra.mxu0 0.0
        %6387 = vmatprep.subr.mxu0 0.0
        %6388 = vmatpush1.msra.mxu0 0.0
        %6389 = vmatprep.subr.mxu0 0.0
        %6390 = vmatpush1.msra.mxu0 0.0
        %6391 = vmatprep.subr.mxu0 0.0
        %6392 = vmatpush1.msra.mxu0 0.0
        %6393 = vmatprep.subr.mxu0 0.0
        %6394 = vmatpush1.msra.mxu0 0.0
        %6395 = vmatprep.subr.mxu0 0.0
        %6396 = vmatpush1.msra.mxu0 0.0
        %6397 = vmatprep.subr.mxu0 0.0
        %6398 = vmatpush1.msra.mxu0 0.0
        %6399 = vmatprep.subr.mxu0 0.0
        %6400 = vmatpush1.msra.mxu0 0.0
        %6401 = vmatprep.subr.mxu0 0.0
        %6402 = vmatpush1.msra.mxu0 0.0
        %6403 = vmatprep.subr.mxu0 0.0
        %6404 = vmatpush1.msra.mxu0 0.0
        %6405 = vmatprep.subr.mxu0 0.0
        %6406 = vmatpush1.msra.mxu0 0.0
        %6407 = vmatprep.subr.mxu0 0.0
        %6408 = vmatpush1.msra.mxu0 0.0
        %6409 = vmatprep.subr.mxu0 0.0
        %6410 = vmatpush1.msra.mxu0 0.0
        %6411 = vmatprep.subr.mxu0 0.0
        %6412 = vmatpush1.msra.mxu0 0.0
        %6413 = vmatprep.subr.mxu0 0.0
        %6414 = vmatpush1.msra.mxu0 0.0
        %6415 = vmatprep.subr.mxu0 0.0
        %6416 = vmatpush1.msra.mxu0 0.0
        %6417 = vmatprep.mubr.f32.mxu0 0.0
        %6418 = vmatmul.mubr.f32.gmra.mrb[0].mxu0 %v6351
        %v6419 = vpop.f32.mrb[0].mxu0
        %v6420 = vadd.f32 0.0, %v6419
        %v6421 = vpop.f32.mrb[0].mxu0
        %6422 = vdwg.mxu0
        %v6424 = vsel %vm860, %v5930, 0
        %6426 = vmatprep.subr.mxu0 0.0
        %6427 = vmatpush1.msra.mxu0 %v5934
        %6428 = vmatprep.subr.mxu0 0.0
        %6429 = vmatpush1.msra.mxu0 %v5935
        %6430 = vmatprep.subr.mxu0 0.0
        %6431 = vmatpush1.msra.mxu0 0.0
        %6432 = vmatprep.subr.mxu0 0.0
        %6433 = vmatpush1.msra.mxu0 0.0
        %6434 = vmatprep.subr.mxu0 0.0
        %6435 = vmatpush1.msra.mxu0 0.0
        %6436 = vmatprep.subr.mxu0 0.0
        %6437 = vmatpush1.msra.mxu0 0.0
        %6438 = vmatprep.subr.mxu0 0.0
        %6439 = vmatpush1.msra.mxu0 0.0
        %6440 = vmatprep.subr.mxu0 0.0
        %6441 = vmatpush1.msra.mxu0 0.0
        %6442 = vmatprep.subr.mxu0 0.0
        %6443 = vmatpush1.msra.mxu0 0.0
        %6444 = vmatprep.subr.mxu0 0.0
        %6445 = vmatpush1.msra.mxu0 0.0
        %6446 = vmatprep.subr.mxu0 0.0
        %6447 = vmatpush1.msra.mxu0 0.0
        %6448 = vmatprep.subr.mxu0 0.0
        %6449 = vmatpush1.msra.mxu0 0.0
        %6450 = vmatprep.subr.mxu0 0.0
        %6451 = vmatpush1.msra.mxu0 0.0
        %6452 = vmatprep.subr.mxu0 0.0
        %6453 = vmatpush1.msra.mxu0 0.0
        %6454 = vmatprep.subr.mxu0 0.0
        %6455 = vmatpush1.msra.mxu0 0.0
        %6456 = vmatprep.subr.mxu0 0.0
        %6457 = vmatpush1.msra.mxu0 0.0
        %6458 = vmatprep.subr.mxu0 0.0
        %6459 = vmatpush1.msra.mxu0 0.0
        %6460 = vmatprep.subr.mxu0 0.0
        %6461 = vmatpush1.msra.mxu0 0.0
        %6462 = vmatprep.subr.mxu0 0.0
        %6463 = vmatpush1.msra.mxu0 0.0
        %6464 = vmatprep.subr.mxu0 0.0
        %6465 = vmatpush1.msra.mxu0 0.0
        %6466 = vmatprep.subr.mxu0 0.0
        %6467 = vmatpush1.msra.mxu0 0.0
        %6468 = vmatprep.subr.mxu0 0.0
        %6469 = vmatpush1.msra.mxu0 0.0
        %6470 = vmatprep.subr.mxu0 0.0
        %6471 = vmatpush1.msra.mxu0 0.0
        %6472 = vmatprep.subr.mxu0 0.0
        %6473 = vmatpush1.msra.mxu0 0.0
        %6474 = vmatprep.subr.mxu0 0.0
        %6475 = vmatpush1.msra.mxu0 0.0
        %6476 = vmatprep.subr.mxu0 0.0
        %6477 = vmatpush1.msra.mxu0 0.0
        %6478 = vmatprep.subr.mxu0 0.0
        %6479 = vmatpush1.msra.mxu0 0.0
        %6480 = vmatprep.subr.mxu0 0.0
        %6481 = vmatpush1.msra.mxu0 0.0
        %6482 = vmatprep.subr.mxu0 0.0
        %6483 = vmatpush1.msra.mxu0 0.0
        %6484 = vmatprep.subr.mxu0 0.0
        %6485 = vmatpush1.msra.mxu0 0.0
        %6486 = vmatprep.subr.mxu0 0.0
        %6487 = vmatpush1.msra.mxu0 0.0
        %6488 = vmatprep.subr.mxu0 0.0
        %6489 = vmatpush1.msra.mxu0 0.0
        %6490 = vmatprep.mubr.f32.mxu0 0.0
        %6491 = vmatmul.mubr.f32.gmra.mrb[0].mxu0 %v6424
        %v6492 = vpop.f32.mrb[0].mxu0
        %v6493 = vadd.f32 %v6420, %v6492
        %v6494 = vpop.f32.mrb[0].mxu0
        %6495 = vdwg.mxu0
        %v6496 = vlaneseq
        %v6497 = vshrl.u32 %v6496, 7
        %v6498 = vsub.s32 0, %v6497
        %v6499 = vrot.slane %v5518, %v6498
        %v6500 = vadd.f32 %v6493, %v6499
        %v6501 = vadd.f32 %v6500, %v5516
        %v6502 = vsel %vm564, %v6501, 0.0
        %6503 = vadd.xlane.f32.xlu0 %v6502
        %v6504 = vpop.xlane.xlu0 %6503
        %v6505 = vmul.f32 %v6504, %v568
        %v6506 = vsub.f32 %v6501, %v6505
        %v6507 = vmul.f32 %v6506, %v6506
        %v6508 = vsel %vm564, %v6507, 0.0
        %6509 = vadd.xlane.f32.xlu0 %v6508
        %v6510 = vpop.xlane.xlu0 %6509
        %v6511 = vmul.f32 %v6510, %v568
        %v6512 = vadd.f32 %v6511, 1e-12
        %v6513 = vrsqrt.pop %v6512
        %v6514 = vmul.f32 %v6512, %v6513
        %vm6515 = vcmp.eq.f32.partialorder %v6512, inf
        %v6516 = vsel %vm6515, %v6512, %v6514
        %vm6517 = vcmp.eq.f32.partialorder %v6512, 0.0
        %v6518 = vand.u32 %v6512, 2147483648
        %v6519 = vsel %vm6517, %v6518, %v6516
        %v6520 = vrcp.pop %v6519
        %v6521 = vmul.f32 %v6506, %v6520
        %v6522 = vlaneseq
        %v6523 = vshrl.u32 %v6522, 7
        %v6524 = vsub.s32 2, %v6523
        %v6525 = vrot.slane %v5518, %v6524
        %v6526 = vmul.f32 %v6521, %v6525
        %v6527 = vlaneseq
        %v6528 = vshrl.u32 %v6527, 7
        %v6529 = vsub.s32 3, %v6528
        %v6530 = vrot.slane %v5518, %v6529
        %v6531 = vadd.f32 %v6526, %v6530
        %s6532 = scalar_lea.vmem %s9, 128
        %v6533 = vld [vmem:[%s6532] sm:$0xff]
        %v6534 = vld [vmem:[%s6532 + $0x8] sm:$0xff]
        %v6535 = vld [vmem:[%s6532 + $0x10] sm:$0xff]
        %v6536 = vld [vmem:[%s6532 + $0x18] sm:$0xff]
        %s6537 = scalar_lea.vmem %s11, 4
        %v6538 = vld [vmem:[%s6537] sm:$0x1]
        %v6540 = vlaneseq
        %v6541 = vshrl.u32 %v6540, 7
        %v6542 = vsub.s32 0, %v6541
        %v6543 = vrot.slane %v6538, %v6542
        %v6546 = vsel %vm564, %v6531, 0
        %6548 = vmatprep.subr.mxu0 0.0
        %6549 = vmatpush1.msra.mxu0 %v6533
        %6550 = vmatprep.subr.mxu0 0.0
        %6551 = vmatpush1.msra.mxu0 %v6534
        %6552 = vmatprep.subr.mxu0 0.0
        %6553 = vmatpush1.msra.mxu0 %v6535
        %6554 = vmatprep.subr.mxu0 0.0
        %6555 = vmatpush1.msra.mxu0 %v6536
        %6556 = vmatprep.subr.mxu0 0.0
        %6557 = vmatpush1.msra.mxu0 0.0
        %6558 = vmatprep.subr.mxu0 0.0
        %6559 = vmatpush1.msra.mxu0 0.0
        %6560 = vmatprep.subr.mxu0 0.0
        %6561 = vmatpush1.msra.mxu0 0.0
        %6562 = vmatprep.subr.mxu0 0.0
        %6563 = vmatpush1.msra.mxu0 0.0
        %6564 = vmatprep.subr.mxu0 0.0
        %6565 = vmatpush1.msra.mxu0 0.0
        %6566 = vmatprep.subr.mxu0 0.0
        %6567 = vmatpush1.msra.mxu0 0.0
        %6568 = vmatprep.subr.mxu0 0.0
        %6569 = vmatpush1.msra.mxu0 0.0
        %6570 = vmatprep.subr.mxu0 0.0
        %6571 = vmatpush1.msra.mxu0 0.0
        %6572 = vmatprep.subr.mxu0 0.0
        %6573 = vmatpush1.msra.mxu0 0.0
        %6574 = vmatprep.subr.mxu0 0.0
        %6575 = vmatpush1.msra.mxu0 0.0
        %6576 = vmatprep.subr.mxu0 0.0
        %6577 = vmatpush1.msra.mxu0 0.0
        %6578 = vmatprep.subr.mxu0 0.0
        %6579 = vmatpush1.msra.mxu0 0.0
        %6580 = vmatprep.subr.mxu0 0.0
        %6581 = vmatpush1.msra.mxu0 0.0
        %6582 = vmatprep.subr.mxu0 0.0
        %6583 = vmatpush1.msra.mxu0 0.0
        %6584 = vmatprep.subr.mxu0 0.0
        %6585 = vmatpush1.msra.mxu0 0.0
        %6586 = vmatprep.subr.mxu0 0.0
        %6587 = vmatpush1.msra.mxu0 0.0
        %6588 = vmatprep.subr.mxu0 0.0
        %6589 = vmatpush1.msra.mxu0 0.0
        %6590 = vmatprep.subr.mxu0 0.0
        %6591 = vmatpush1.msra.mxu0 0.0
        %6592 = vmatprep.subr.mxu0 0.0
        %6593 = vmatpush1.msra.mxu0 0.0
        %6594 = vmatprep.subr.mxu0 0.0
        %6595 = vmatpush1.msra.mxu0 0.0
        %6596 = vmatprep.subr.mxu0 0.0
        %6597 = vmatpush1.msra.mxu0 0.0
        %6598 = vmatprep.subr.mxu0 0.0
        %6599 = vmatpush1.msra.mxu0 0.0
        %6600 = vmatprep.subr.mxu0 0.0
        %6601 = vmatpush1.msra.mxu0 0.0
        %6602 = vmatprep.subr.mxu0 0.0
        %6603 = vmatpush1.msra.mxu0 0.0
        %6604 = vmatprep.subr.mxu0 0.0
        %6605 = vmatpush1.msra.mxu0 0.0
        %6606 = vmatprep.subr.mxu0 0.0
        %6607 = vmatpush1.msra.mxu0 0.0
        %6608 = vmatprep.subr.mxu0 0.0
        %6609 = vmatpush1.msra.mxu0 0.0
        %6610 = vmatprep.subr.mxu0 0.0
        %6611 = vmatpush1.msra.mxu0 0.0
        %6612 = vmatprep.mubr.f32.mxu0 0.0
        %6613 = vmatmul.mubr.f32.gmra.mrb[0].mxu0 %v6546
        %v6614 = vpop.f32.mrb[0].mxu0
        %v6615 = vadd.f32 %v6543, %v6614
        %v6616 = vpop.f32.mrb[0].mxu0
        %6617 = vdwg.mxu0
        %v6618 = vmul.f32 %v6615, 0.5
        %v6619 = vmul.f32 %v6615, 0.70710677
        %v6620 = verf.f32.pop %v6619
        %v6621 = vadd.f32 %v6620, 1.0
        %v6622 = vmul.f32 %v6618, %v6621
        %s6623 = scalar_lea.vmem %s10, 512
        %v6624 = vld [vmem:[%s6623] sm:$0xff]
        %v6625 = vld [vmem:[%s6623 + $0x8] sm:$0xff]
        %v6626 = vld [vmem:[%s6623 + $0x10] sm:$0xff]
        %v6627 = vld [vmem:[%s6623 + $0x18] sm:$0xff]
        %v6628 = vld [vmem:[%s6623 + $0x20] sm:$0xff]
        %v6629 = vld [vmem:[%s6623 + $0x28] sm:$0xff]
        %v6630 = vld [vmem:[%s6623 + $0x30] sm:$0xff]
        %v6631 = vld [vmem:[%s6623 + $0x38] sm:$0xff]
        %v6632 = vld [vmem:[%s6623 + $0x40] sm:$0xff]
        %v6633 = vld [vmem:[%s6623 + $0x48] sm:$0xff]
        %v6634 = vld [vmem:[%s6623 + $0x50] sm:$0xff]
        %v6635 = vld [vmem:[%s6623 + $0x58] sm:$0xff]
        %v6636 = vld [vmem:[%s6623 + $0x60] sm:$0xff]
        %v6637 = vld [vmem:[%s6623 + $0x68] sm:$0xff]
        %v6638 = vld [vmem:[%s6623 + $0x70] sm:$0xff]
        %v6639 = vld [vmem:[%s6623 + $0x78] sm:$0xff]
        %v6640 = vlaneseq
        %v6641 = vshrl.u32 %v6640, 7
        %v6642 = vsub.s32 1, %v6641
        %v6643 = vrot.slane %v5518, %v6642
        %6644 = vmatprep.subr.mxu0 0.0
        %6645 = vmatpush1.msra.mxu0 %v6624
        %6646 = vmatprep.subr.mxu0 0.0
        %6647 = vmatpush1.msra.mxu0 %v6625
        %6648 = vmatprep.subr.mxu0 0.0
        %6649 = vmatpush1.msra.mxu0 %v6626
        %6650 = vmatprep.subr.mxu0 0.0
        %6651 = vmatpush1.msra.mxu0 %v6627
        %6652 = vmatprep.subr.mxu0 0.0
        %6653 = vmatpush1.msra.mxu0 %v6628
        %6654 = vmatprep.subr.mxu0 0.0
        %6655 = vmatpush1.msra.mxu0 %v6629
        %6656 = vmatprep.subr.mxu0 0.0
        %6657 = vmatpush1.msra.mxu0 %v6630
        %6658 = vmatprep.subr.mxu0 0.0
        %6659 = vmatpush1.msra.mxu0 %v6631
        %6660 = vmatprep.subr.mxu0 0.0
        %6661 = vmatpush1.msra.mxu0 %v6632
        %6662 = vmatprep.subr.mxu0 0.0
        %6663 = vmatpush1.msra.mxu0 %v6633
        %6664 = vmatprep.subr.mxu0 0.0
        %6665 = vmatpush1.msra.mxu0 %v6634
        %6666 = vmatprep.subr.mxu0 0.0
        %6667 = vmatpush1.msra.mxu0 %v6635
        %6668 = vmatprep.subr.mxu0 0.0
        %6669 = vmatpush1.msra.mxu0 %v6636
        %6670 = vmatprep.subr.mxu0 0.0
        %6671 = vmatpush1.msra.mxu0 %v6637
        %6672 = vmatprep.subr.mxu0 0.0
        %6673 = vmatpush1.msra.mxu0 %v6638
        %6674 = vmatprep.subr.mxu0 0.0
        %6675 = vmatpush1.msra.mxu0 %v6639
        %6676 = vmatprep.subr.mxu0 0.0
        %6677 = vmatpush1.msra.mxu0 0.0
        %6678 = vmatprep.subr.mxu0 0.0
        %6679 = vmatpush1.msra.mxu0 0.0
        %6680 = vmatprep.subr.mxu0 0.0
        %6681 = vmatpush1.msra.mxu0 0.0
        %6682 = vmatprep.subr.mxu0 0.0
        %6683 = vmatpush1.msra.mxu0 0.0
        %6684 = vmatprep.subr.mxu0 0.0
        %6685 = vmatpush1.msra.mxu0 0.0
        %6686 = vmatprep.subr.mxu0 0.0
        %6687 = vmatpush1.msra.mxu0 0.0
        %6688 = vmatprep.subr.mxu0 0.0
        %6689 = vmatpush1.msra.mxu0 0.0
        %6690 = vmatprep.subr.mxu0 0.0
        %6691 = vmatpush1.msra.mxu0 0.0
        %6692 = vmatprep.subr.mxu0 0.0
        %6693 = vmatpush1.msra.mxu0 0.0
        %6694 = vmatprep.subr.mxu0 0.0
        %6695 = vmatpush1.msra.mxu0 0.0
        %6696 = vmatprep.subr.mxu0 0.0
        %6697 = vmatpush1.msra.mxu0 0.0
        %6698 = vmatprep.subr.mxu0 0.0
        %6699 = vmatpush1.msra.mxu0 0.0
        %6700 = vmatprep.subr.mxu0 0.0
        %6701 = vmatpush1.msra.mxu0 0.0
        %6702 = vmatprep.subr.mxu0 0.0
        %6703 = vmatpush1.msra.mxu0 0.0
        %6704 = vmatprep.subr.mxu0 0.0
        %6705 = vmatpush1.msra.mxu0 0.0
        %6706 = vmatprep.subr.mxu0 0.0
        %6707 = vmatpush1.msra.mxu0 0.0
        %6708 = vmatprep.mubr.f32.mxu0 0.0
        %6709 = vmatmul.mubr.f32.gmra.mrb[0].mxu0 %v6622
        %v6710 = vpop.f32.mrb[0].mxu0
        %v6711 = vadd.f32 %v6643, %v6710
        %v6712 = vpop.f32.mrb[0].mxu0
        %6713 = vdwg.mxu0
        %v6714 = vadd.f32 %v6711, %v6531
        %v6715 = vsel %vm564, %v6714, 0.0
        %6716 = vadd.xlane.f32.xlu0 %v6715
        %v6717 = vpop.xlane.xlu0 %6716
        %v6718 = vmul.f32 %v6717, %v568
        %v6719 = vsub.f32 %v6714, %v6718
        %v6720 = vmul.f32 %v6719, %v6719
        %v6721 = vsel %vm564, %v6720, 0.0
        %6722 = vadd.xlane.f32.xlu0 %v6721
        %v6723 = vpop.xlane.xlu0 %6722
        %v6724 = vmul.f32 %v6723, %v568
        %v6725 = vadd.f32 %v6724, 1e-12
        %v6726 = vrsqrt.pop %v6725
        %v6727 = vmul.f32 %v6725, %v6726
        %vm6728 = vcmp.eq.f32.partialorder %v6725, inf
        %v6729 = vsel %vm6728, %v6725, %v6727
        %vm6730 = vcmp.eq.f32.partialorder %v6725, 0.0
        %v6731 = vand.u32 %v6725, 2147483648
        %v6732 = vsel %vm6730, %v6731, %v6729
        %v6733 = vrcp.pop %v6732
        %v6734 = vmul.f32 %v6719, %v6733
        %v6735 = vlaneseq
        %v6736 = vshrl.u32 %v6735, 7
        %v6737 = vsub.s32 4, %v6736
        %v6738 = vrot.slane %v5518, %v6737
        %v6739 = vmul.f32 %v6734, %v6738
        %v6740 = vlaneseq
        %v6741 = vshrl.u32 %v6740, 7
        %v6742 = vsub.s32 5, %v6741
        %v6743 = vrot.slane %v5518, %v6742
        %v6744 = vadd.f32 %v6739, %v6743
        %s6745 = scalar_lea.vmem %s12, 40
        %v6746 = vld [vmem:[%s6745] sm:$0xff]
        %s6747 = scalar_lea.vmem %s4, 320
        %v6748 = vld [vmem:[%s6747] sm:$0xff]
        %v6749 = vld [vmem:[%s6747 + $0x8] sm:$0xff]
        %v6750 = vld [vmem:[%s6747 + $0x10] sm:$0xff]
        %v6751 = vld [vmem:[%s6747 + $0x18] sm:$0xff]
        %s6752 = scalar_lea.vmem %s8, 30
        %v6753 = vld [vmem:[%s6752] sm:$0x1]
        %v6755 = vlaneseq
        %v6756 = vshrl.u32 %v6755, 7
        %v6757 = vsub.s32 0, %v6756
        %v6758 = vrot.slane %v6753, %v6757
        %v6761 = vsel %vm564, %v6744, 0
        %6763 = vmatprep.subr.mxu0 0.0
        %6764 = vmatpush1.msra.mxu0 %v6748
        %6765 = vmatprep.subr.mxu0 0.0
        %6766 = vmatpush1.msra.mxu0 %v6749
        %6767 = vmatprep.subr.mxu0 0.0
        %6768 = vmatpush1.msra.mxu0 %v6750
        %6769 = vmatprep.subr.mxu0 0.0
        %6770 = vmatpush1.msra.mxu0 %v6751
        %6771 = vmatprep.subr.mxu0 0.0
        %6772 = vmatpush1.msra.mxu0 0.0
        %6773 = vmatprep.subr.mxu0 0.0
        %6774 = vmatpush1.msra.mxu0 0.0
        %6775 = vmatprep.subr.mxu0 0.0
        %6776 = vmatpush1.msra.mxu0 0.0
        %6777 = vmatprep.subr.mxu0 0.0
        %6778 = vmatpush1.msra.mxu0 0.0
        %6779 = vmatprep.subr.mxu0 0.0
        %6780 = vmatpush1.msra.mxu0 0.0
        %6781 = vmatprep.subr.mxu0 0.0
        %6782 = vmatpush1.msra.mxu0 0.0
        %6783 = vmatprep.subr.mxu0 0.0
        %6784 = vmatpush1.msra.mxu0 0.0
        %6785 = vmatprep.subr.mxu0 0.0
        %6786 = vmatpush1.msra.mxu0 0.0
        %6787 = vmatprep.subr.mxu0 0.0
        %6788 = vmatpush1.msra.mxu0 0.0
        %6789 = vmatprep.subr.mxu0 0.0
        %6790 = vmatpush1.msra.mxu0 0.0
        %6791 = vmatprep.subr.mxu0 0.0
        %6792 = vmatpush1.msra.mxu0 0.0
        %6793 = vmatprep.subr.mxu0 0.0
        %6794 = vmatpush1.msra.mxu0 0.0
        %6795 = vmatprep.subr.mxu0 0.0
        %6796 = vmatpush1.msra.mxu0 0.0
        %6797 = vmatprep.subr.mxu0 0.0
        %6798 = vmatpush1.msra.mxu0 0.0
        %6799 = vmatprep.subr.mxu0 0.0
        %6800 = vmatpush1.msra.mxu0 0.0
        %6801 = vmatprep.subr.mxu0 0.0
        %6802 = vmatpush1.msra.mxu0 0.0
        %6803 = vmatprep.subr.mxu0 0.0
        %6804 = vmatpush1.msra.mxu0 0.0
        %6805 = vmatprep.subr.mxu0 0.0
        %6806 = vmatpush1.msra.mxu0 0.0
        %6807 = vmatprep.subr.mxu0 0.0
        %6808 = vmatpush1.msra.mxu0 0.0
        %6809 = vmatprep.subr.mxu0 0.0
        %6810 = vmatpush1.msra.mxu0 0.0
        %6811 = vmatprep.subr.mxu0 0.0
        %6812 = vmatpush1.msra.mxu0 0.0
        %6813 = vmatprep.subr.mxu0 0.0
        %6814 = vmatpush1.msra.mxu0 0.0
        %6815 = vmatprep.subr.mxu0 0.0
        %6816 = vmatpush1.msra.mxu0 0.0
        %6817 = vmatprep.subr.mxu0 0.0
        %6818 = vmatpush1.msra.mxu0 0.0
        %6819 = vmatprep.subr.mxu0 0.0
        %6820 = vmatpush1.msra.mxu0 0.0
        %6821 = vmatprep.subr.mxu0 0.0
        %6822 = vmatpush1.msra.mxu0 0.0
        %6823 = vmatprep.subr.mxu0 0.0
        %6824 = vmatpush1.msra.mxu0 0.0
        %6825 = vmatprep.subr.mxu0 0.0
        %6826 = vmatpush1.msra.mxu0 0.0
        %6827 = vmatprep.mubr.f32.mxu0 0.0
        %6828 = vmatmul.mubr.f32.gmra.mrb[0].mxu0 %v6761
        %v6829 = vpop.f32.mrb[0].mxu0
        %v6830 = vadd.f32 %v6758, %v6829
        %v6831 = vpop.f32.mrb[0].mxu0
        %6832 = vdwg.mxu0
        %s6833 = scalar_lea.vmem %s5, 320
        %v6834 = vld [vmem:[%s6833] sm:$0xff]
        %v6835 = vld [vmem:[%s6833 + $0x8] sm:$0xff]
        %v6836 = vld [vmem:[%s6833 + $0x10] sm:$0xff]
        %v6837 = vld [vmem:[%s6833 + $0x18] sm:$0xff]
        %s6838 = scalar_lea.vmem %s8, 31
        %v6839 = vld [vmem:[%s6838] sm:$0x1]
        %v6841 = vlaneseq
        %v6842 = vshrl.u32 %v6841, 7
        %v6843 = vsub.s32 0, %v6842
        %v6844 = vrot.slane %v6839, %v6843
        %6846 = vmatprep.subr.mxu0 0.0
        %6847 = vmatpush1.msra.mxu0 %v6834
        %6848 = vmatprep.subr.mxu0 0.0
        %6849 = vmatpush1.msra.mxu0 %v6835
        %6850 = vmatprep.subr.mxu0 0.0
        %6851 = vmatpush1.msra.mxu0 %v6836
        %6852 = vmatprep.subr.mxu0 0.0
        %6853 = vmatpush1.msra.mxu0 %v6837
        %6854 = vmatprep.subr.mxu0 0.0
        %6855 = vmatpush1.msra.mxu0 0.0
        %6856 = vmatprep.subr.mxu0 0.0
        %6857 = vmatpush1.msra.mxu0 0.0
        %6858 = vmatprep.subr.mxu0 0.0
        %6859 = vmatpush1.msra.mxu0 0.0
        %6860 = vmatprep.subr.mxu0 0.0
        %6861 = vmatpush1.msra.mxu0 0.0
        %6862 = vmatprep.subr.mxu0 0.0
        %6863 = vmatpush1.msra.mxu0 0.0
        %6864 = vmatprep.subr.mxu0 0.0
        %6865 = vmatpush1.msra.mxu0 0.0
        %6866 = vmatprep.subr.mxu0 0.0
        %6867 = vmatpush1.msra.mxu0 0.0
        %6868 = vmatprep.subr.mxu0 0.0
        %6869 = vmatpush1.msra.mxu0 0.0
        %6870 = vmatprep.subr.mxu0 0.0
        %6871 = vmatpush1.msra.mxu0 0.0
        %6872 = vmatprep.subr.mxu0 0.0
        %6873 = vmatpush1.msra.mxu0 0.0
        %6874 = vmatprep.subr.mxu0 0.0
        %6875 = vmatpush1.msra.mxu0 0.0
        %6876 = vmatprep.subr.mxu0 0.0
        %6877 = vmatpush1.msra.mxu0 0.0
        %6878 = vmatprep.subr.mxu0 0.0
        %6879 = vmatpush1.msra.mxu0 0.0
        %6880 = vmatprep.subr.mxu0 0.0
        %6881 = vmatpush1.msra.mxu0 0.0
        %6882 = vmatprep.subr.mxu0 0.0
        %6883 = vmatpush1.msra.mxu0 0.0
        %6884 = vmatprep.subr.mxu0 0.0
        %6885 = vmatpush1.msra.mxu0 0.0
        %6886 = vmatprep.subr.mxu0 0.0
        %6887 = vmatpush1.msra.mxu0 0.0
        %6888 = vmatprep.subr.mxu0 0.0
        %6889 = vmatpush1.msra.mxu0 0.0
        %6890 = vmatprep.subr.mxu0 0.0
        %6891 = vmatpush1.msra.mxu0 0.0
        %6892 = vmatprep.subr.mxu0 0.0
        %6893 = vmatpush1.msra.mxu0 0.0
        %6894 = vmatprep.subr.mxu0 0.0
        %6895 = vmatpush1.msra.mxu0 0.0
        %6896 = vmatprep.subr.mxu0 0.0
        %6897 = vmatpush1.msra.mxu0 0.0
        %6898 = vmatprep.subr.mxu0 0.0
        %6899 = vmatpush1.msra.mxu0 0.0
        %6900 = vmatprep.subr.mxu0 0.0
        %6901 = vmatpush1.msra.mxu0 0.0
        %6902 = vmatprep.subr.mxu0 0.0
        %6903 = vmatpush1.msra.mxu0 0.0
        %6904 = vmatprep.subr.mxu0 0.0
        %6905 = vmatpush1.msra.mxu0 0.0
        %6906 = vmatprep.subr.mxu0 0.0
        %6907 = vmatpush1.msra.mxu0 0.0
        %6908 = vmatprep.subr.mxu0 0.0
        %6909 = vmatpush1.msra.mxu0 0.0
        %6910 = vmatprep.mubr.f32.mxu0 0.0
        %6911 = vmatmul.mubr.f32.gmra.mrb[0].mxu0 %v6761
        %v6912 = vpop.f32.mrb[0].mxu0
        %v6913 = vadd.f32 %v6844, %v6912
        %v6914 = vpop.f32.mrb[0].mxu0
        %6915 = vdwg.mxu0
        %s6916 = scalar_lea.vmem %s6, 320
        %v6917 = vld [vmem:[%s6916] sm:$0xff]
        %v6918 = vld [vmem:[%s6916 + $0x8] sm:$0xff]
        %v6919 = vld [vmem:[%s6916 + $0x10] sm:$0xff]
        %v6920 = vld [vmem:[%s6916 + $0x18] sm:$0xff]
        %s6921 = scalar_lea.vmem %s8, 32
        %v6922 = vld [vmem:[%s6921] sm:$0x1]
        %v6924 = vlaneseq
        %v6925 = vshrl.u32 %v6924, 7
        %v6926 = vsub.s32 0, %v6925
        %v6927 = vrot.slane %v6922, %v6926
        %6929 = vmatprep.subr.mxu0 0.0
        %6930 = vmatpush1.msra.mxu0 %v6917
        %6931 = vmatprep.subr.mxu0 0.0
        %6932 = vmatpush1.msra.mxu0 %v6918
        %6933 = vmatprep.subr.mxu0 0.0
        %6934 = vmatpush1.msra.mxu0 %v6919
        %6935 = vmatprep.subr.mxu0 0.0
        %6936 = vmatpush1.msra.mxu0 %v6920
        %6937 = vmatprep.subr.mxu0 0.0
        %6938 = vmatpush1.msra.mxu0 0.0
        %6939 = vmatprep.subr.mxu0 0.0
        %6940 = vmatpush1.msra.mxu0 0.0
        %6941 = vmatprep.subr.mxu0 0.0
        %6942 = vmatpush1.msra.mxu0 0.0
        %6943 = vmatprep.subr.mxu0 0.0
        %6944 = vmatpush1.msra.mxu0 0.0
        %6945 = vmatprep.subr.mxu0 0.0
        %6946 = vmatpush1.msra.mxu0 0.0
        %6947 = vmatprep.subr.mxu0 0.0
        %6948 = vmatpush1.msra.mxu0 0.0
        %6949 = vmatprep.subr.mxu0 0.0
        %6950 = vmatpush1.msra.mxu0 0.0
        %6951 = vmatprep.subr.mxu0 0.0
        %6952 = vmatpush1.msra.mxu0 0.0
        %6953 = vmatprep.subr.mxu0 0.0
        %6954 = vmatpush1.msra.mxu0 0.0
        %6955 = vmatprep.subr.mxu0 0.0
        %6956 = vmatpush1.msra.mxu0 0.0
        %6957 = vmatprep.subr.mxu0 0.0
        %6958 = vmatpush1.msra.mxu0 0.0
        %6959 = vmatprep.subr.mxu0 0.0
        %6960 = vmatpush1.msra.mxu0 0.0
        %6961 = vmatprep.subr.mxu0 0.0
        %6962 = vmatpush1.msra.mxu0 0.0
        %6963 = vmatprep.subr.mxu0 0.0
        %6964 = vmatpush1.msra.mxu0 0.0
        %6965 = vmatprep.subr.mxu0 0.0
        %6966 = vmatpush1.msra.mxu0 0.0
        %6967 = vmatprep.subr.mxu0 0.0
        %6968 = vmatpush1.msra.mxu0 0.0
        %6969 = vmatprep.subr.mxu0 0.0
        %6970 = vmatpush1.msra.mxu0 0.0
        %6971 = vmatprep.subr.mxu0 0.0
        %6972 = vmatpush1.msra.mxu0 0.0
        %6973 = vmatprep.subr.mxu0 0.0
        %6974 = vmatpush1.msra.mxu0 0.0
        %6975 = vmatprep.subr.mxu0 0.0
        %6976 = vmatpush1.msra.mxu0 0.0
        %6977 = vmatprep.subr.mxu0 0.0
        %6978 = vmatpush1.msra.mxu0 0.0
        %6979 = vmatprep.subr.mxu0 0.0
        %6980 = vmatpush1.msra.mxu0 0.0
        %6981 = vmatprep.subr.mxu0 0.0
        %6982 = vmatpush1.msra.mxu0 0.0
        %6983 = vmatprep.subr.mxu0 0.0
        %6984 = vmatpush1.msra.mxu0 0.0
        %6985 = vmatprep.subr.mxu0 0.0
        %6986 = vmatpush1.msra.mxu0 0.0
        %6987 = vmatprep.subr.mxu0 0.0
        %6988 = vmatpush1.msra.mxu0 0.0
        %6989 = vmatprep.subr.mxu0 0.0
        %6990 = vmatpush1.msra.mxu0 0.0
        %6991 = vmatprep.subr.mxu0 0.0
        %6992 = vmatpush1.msra.mxu0 0.0
        %6993 = vmatprep.mubr.f32.mxu0 0.0
        %6994 = vmatmul.mubr.f32.gmra.mrb[0].mxu0 %v6761
        %v6995 = vpop.f32.mrb[0].mxu0
        %v6996 = vadd.f32 %v6927, %v6995
        %v6997 = vpop.f32.mrb[0].mxu0
        %6998 = vdwg.mxu0
        %v7000 = vsel %vm860, %v6830, 0
        %v7003 = vsel %vm860, %v6913, 0
        %7005 = vmatprep.subr.mxu0 0.0
        %7006 = vmatpush1.xpose.msra.mxu0 %v7003
        %7007 = vmatprep.subr.mxu0 0.0
        %7008 = vmatpush1.xpose.msra.mxu0 0.0
        %7009 = vmatprep.subr.mxu0 0.0
        %7010 = vmatpush1.xpose.msra.mxu0 0.0
        %7011 = vmatprep.subr.mxu0 0.0
        %7012 = vmatpush1.xpose.msra.mxu0 0.0
        %7013 = vmatprep.subr.mxu0 0.0
        %7014 = vmatpush1.xpose.msra.mxu0 0.0
        %7015 = vmatprep.subr.mxu0 0.0
        %7016 = vmatpush1.xpose.msra.mxu0 0.0
        %7017 = vmatprep.subr.mxu0 0.0
        %7018 = vmatpush1.xpose.msra.mxu0 0.0
        %7019 = vmatprep.subr.mxu0 0.0
        %7020 = vmatpush1.xpose.msra.mxu0 0.0
        %7021 = vmatprep.subr.mxu0 0.0
        %7022 = vmatpush1.xpose.msra.mxu0 0.0
        %7023 = vmatprep.subr.mxu0 0.0
        %7024 = vmatpush1.xpose.msra.mxu0 0.0
        %7025 = vmatprep.subr.mxu0 0.0
        %7026 = vmatpush1.xpose.msra.mxu0 0.0
        %7027 = vmatprep.subr.mxu0 0.0
        %7028 = vmatpush1.xpose.msra.mxu0 0.0
        %7029 = vmatprep.subr.mxu0 0.0
        %7030 = vmatpush1.xpose.msra.mxu0 0.0
        %7031 = vmatprep.subr.mxu0 0.0
        %7032 = vmatpush1.xpose.msra.mxu0 0.0
        %7033 = vmatprep.subr.mxu0 0.0
        %7034 = vmatpush1.xpose.msra.mxu0 0.0
        %7035 = vmatprep.subr.mxu0 0.0
        %7036 = vmatpush1.xpose.msra.mxu0 0.0
        %7037 = vmatprep.subr.mxu0 0.0
        %7038 = vmatpush1.xpose.msra.mxu0 0.0
        %7039 = vmatprep.subr.mxu0 0.0
        %7040 = vmatpush1.xpose.msra.mxu0 0.0
        %7041 = vmatprep.subr.mxu0 0.0
        %7042 = vmatpush1.xpose.msra.mxu0 0.0
        %7043 = vmatprep.subr.mxu0 0.0
        %7044 = vmatpush1.xpose.msra.mxu0 0.0
        %7045 = vmatprep.subr.mxu0 0.0
        %7046 = vmatpush1.xpose.msra.mxu0 0.0
        %7047 = vmatprep.subr.mxu0 0.0
        %7048 = vmatpush1.xpose.msra.mxu0 0.0
        %7049 = vmatprep.subr.mxu0 0.0
        %7050 = vmatpush1.xpose.msra.mxu0 0.0
        %7051 = vmatprep.subr.mxu0 0.0
        %7052 = vmatpush1.xpose.msra.mxu0 0.0
        %7053 = vmatprep.subr.mxu0 0.0
        %7054 = vmatpush1.xpose.msra.mxu0 0.0
        %7055 = vmatprep.subr.mxu0 0.0
        %7056 = vmatpush1.xpose.msra.mxu0 0.0
        %7057 = vmatprep.subr.mxu0 0.0
        %7058 = vmatpush1.xpose.msra.mxu0 0.0
        %7059 = vmatprep.subr.mxu0 0.0
        %7060 = vmatpush1.xpose.msra.mxu0 0.0
        %7061 = vmatprep.subr.mxu0 0.0
        %7062 = vmatpush1.xpose.msra.mxu0 0.0
        %7063 = vmatprep.subr.mxu0 0.0
        %7064 = vmatpush1.xpose.msra.mxu0 0.0
        %7065 = vmatprep.subr.mxu0 0.0
        %7066 = vmatpush1.xpose.msra.mxu0 0.0
        %7067 = vmatprep.subr.mxu0 0.0
        %7068 = vmatpush1.xpose.msra.mxu0 0.0
        %7069 = vmatprep.mubr.f32.mxu0 0.0
        %7070 = vmatmul.mubr.f32.gmra.mrb[0].mxu0 %v7000
        %v7071 = vpop.f32.mrb[0].mxu0
        %v7072 = vadd.f32 0.0, %v7071
        %v7073 = vpop.f32.mrb[0].mxu0
        %7074 = vdwg.mxu0
        %v7075 = vmul.f32 %v7072, 0.25
        %v7076 = vadd.f32 %v7075, %v610
        %v7077 = vsel %vm939, %v7076, -inf
        %7078 = vmax.xlane.f32.xlu0 %v7077
        %v7079 = vpop.xlane.xlu0 %7078
        %v7080 = vsub.f32 %v7076, %v7079
        %v7081 = vmul.f32 %v7080, 1.442695
        %v7082 = vpow.pop %v7081
        %v7083 = vsel %vm939, %v7082, 0.0
        %7084 = vadd.xlane.f32.xlu0 %v7083
        %v7085 = vpop.xlane.xlu0 %7084
        %v7086 = vrcp.pop %v7085
        %v7087 = vmul.f32 %v7082, %v7086
        %v7089 = vsel %vm939, %v7087, 0
        %7091 = vmatprep.subr.mxu0 0.0
        %7092 = vmatpush1.msra.mxu0 %v6996
        %7093 = vmatprep.subr.mxu0 0.0
        %7094 = vmatpush1.msra.mxu0 0.0
        %7095 = vmatprep.subr.mxu0 0.0
        %7096 = vmatpush1.msra.mxu0 0.0
        %7097 = vmatprep.subr.mxu0 0.0
        %7098 = vmatpush1.msra.mxu0 0.0
        %7099 = vmatprep.subr.mxu0 0.0
        %7100 = vmatpush1.msra.mxu0 0.0
        %7101 = vmatprep.subr.mxu0 0.0
        %7102 = vmatpush1.msra.mxu0 0.0
        %7103 = vmatprep.subr.mxu0 0.0
        %7104 = vmatpush1.msra.mxu0 0.0
        %7105 = vmatprep.subr.mxu0 0.0
        %7106 = vmatpush1.msra.mxu0 0.0
        %7107 = vmatprep.subr.mxu0 0.0
        %7108 = vmatpush1.msra.mxu0 0.0
        %7109 = vmatprep.subr.mxu0 0.0
        %7110 = vmatpush1.msra.mxu0 0.0
        %7111 = vmatprep.subr.mxu0 0.0
        %7112 = vmatpush1.msra.mxu0 0.0
        %7113 = vmatprep.subr.mxu0 0.0
        %7114 = vmatpush1.msra.mxu0 0.0
        %7115 = vmatprep.subr.mxu0 0.0
        %7116 = vmatpush1.msra.mxu0 0.0
        %7117 = vmatprep.subr.mxu0 0.0
        %7118 = vmatpush1.msra.mxu0 0.0
        %7119 = vmatprep.subr.mxu0 0.0
        %7120 = vmatpush1.msra.mxu0 0.0
        %7121 = vmatprep.subr.mxu0 0.0
        %7122 = vmatpush1.msra.mxu0 0.0
        %7123 = vmatprep.subr.mxu0 0.0
        %7124 = vmatpush1.msra.mxu0 0.0
        %7125 = vmatprep.subr.mxu0 0.0
        %7126 = vmatpush1.msra.mxu0 0.0
        %7127 = vmatprep.subr.mxu0 0.0
        %7128 = vmatpush1.msra.mxu0 0.0
        %7129 = vmatprep.subr.mxu0 0.0
        %7130 = vmatpush1.msra.mxu0 0.0
        %7131 = vmatprep.subr.mxu0 0.0
        %7132 = vmatpush1.msra.mxu0 0.0
        %7133 = vmatprep.subr.mxu0 0.0
        %7134 = vmatpush1.msra.mxu0 0.0
        %7135 = vmatprep.subr.mxu0 0.0
        %7136 = vmatpush1.msra.mxu0 0.0
        %7137 = vmatprep.subr.mxu0 0.0
        %7138 = vmatpush1.msra.mxu0 0.0
        %7139 = vmatprep.subr.mxu0 0.0
        %7140 = vmatpush1.msra.mxu0 0.0
        %7141 = vmatprep.subr.mxu0 0.0
        %7142 = vmatpush1.msra.mxu0 0.0
        %7143 = vmatprep.subr.mxu0 0.0
        %7144 = vmatpush1.msra.mxu0 0.0
        %7145 = vmatprep.subr.mxu0 0.0
        %7146 = vmatpush1.msra.mxu0 0.0
        %7147 = vmatprep.subr.mxu0 0.0
        %7148 = vmatpush1.msra.mxu0 0.0
        %7149 = vmatprep.subr.mxu0 0.0
        %7150 = vmatpush1.msra.mxu0 0.0
        %7151 = vmatprep.subr.mxu0 0.0
        %7152 = vmatpush1.msra.mxu0 0.0
        %7153 = vmatprep.subr.mxu0 0.0
        %7154 = vmatpush1.msra.mxu0 0.0
        %7155 = vmatprep.mubr.f32.mxu0 0.0
        %7156 = vmatmul.mubr.f32.gmra.mrb[0].mxu0 %v7089
        %v7157 = vpop.f32.mrb[0].mxu0
        %v7158 = vadd.f32 0.0, %v7157
        %v7159 = vpop.f32.mrb[0].mxu0
        %7160 = vdwg.mxu0
        %s7161 = scalar_lea.vmem %s7, 160
        %v7162 = vld [vmem:[%s7161] sm:$0xff]
        %v7163 = vld [vmem:[%s7161 + $0x8] sm:$0xff]
        %s7164 = scalar_lea.vmem %s4, 352
        %v7165 = vld [vmem:[%s7164] sm:$0xff]
        %v7166 = vld [vmem:[%s7164 + $0x8] sm:$0xff]
        %v7167 = vld [vmem:[%s7164 + $0x10] sm:$0xff]
        %v7168 = vld [vmem:[%s7164 + $0x18] sm:$0xff]
        %s7169 = scalar_lea.vmem %s8, 33
        %v7170 = vld [vmem:[%s7169] sm:$0x1]
        %v7172 = vlaneseq
        %v7173 = vshrl.u32 %v7172, 7
        %v7174 = vsub.s32 0, %v7173
        %v7175 = vrot.slane %v7170, %v7174
        %7177 = vmatprep.subr.mxu0 0.0
        %7178 = vmatpush1.msra.mxu0 %v7165
        %7179 = vmatprep.subr.mxu0 0.0
        %7180 = vmatpush1.msra.mxu0 %v7166
        %7181 = vmatprep.subr.mxu0 0.0
        %7182 = vmatpush1.msra.mxu0 %v7167
        %7183 = vmatprep.subr.mxu0 0.0
        %7184 = vmatpush1.msra.mxu0 %v7168
        %7185 = vmatprep.subr.mxu0 0.0
        %7186 = vmatpush1.msra.mxu0 0.0
        %7187 = vmatprep.subr.mxu0 0.0
        %7188 = vmatpush1.msra.mxu0 0.0
        %7189 = vmatprep.subr.mxu0 0.0
        %7190 = vmatpush1.msra.mxu0 0.0
        %7191 = vmatprep.subr.mxu0 0.0
        %7192 = vmatpush1.msra.mxu0 0.0
        %7193 = vmatprep.subr.mxu0 0.0
        %7194 = vmatpush1.msra.mxu0 0.0
        %7195 = vmatprep.subr.mxu0 0.0
        %7196 = vmatpush1.msra.mxu0 0.0
        %7197 = vmatprep.subr.mxu0 0.0
        %7198 = vmatpush1.msra.mxu0 0.0
        %7199 = vmatprep.subr.mxu0 0.0
        %7200 = vmatpush1.msra.mxu0 0.0
        %7201 = vmatprep.subr.mxu0 0.0
        %7202 = vmatpush1.msra.mxu0 0.0
        %7203 = vmatprep.subr.mxu0 0.0
        %7204 = vmatpush1.msra.mxu0 0.0
        %7205 = vmatprep.subr.mxu0 0.0
        %7206 = vmatpush1.msra.mxu0 0.0
        %7207 = vmatprep.subr.mxu0 0.0
        %7208 = vmatpush1.msra.mxu0 0.0
        %7209 = vmatprep.subr.mxu0 0.0
        %7210 = vmatpush1.msra.mxu0 0.0
        %7211 = vmatprep.subr.mxu0 0.0
        %7212 = vmatpush1.msra.mxu0 0.0
        %7213 = vmatprep.subr.mxu0 0.0
        %7214 = vmatpush1.msra.mxu0 0.0
        %7215 = vmatprep.subr.mxu0 0.0
        %7216 = vmatpush1.msra.mxu0 0.0
        %7217 = vmatprep.subr.mxu0 0.0
        %7218 = vmatpush1.msra.mxu0 0.0
        %7219 = vmatprep.subr.mxu0 0.0
        %7220 = vmatpush1.msra.mxu0 0.0
        %7221 = vmatprep.subr.mxu0 0.0
        %7222 = vmatpush1.msra.mxu0 0.0
        %7223 = vmatprep.subr.mxu0 0.0
        %7224 = vmatpush1.msra.mxu0 0.0
        %7225 = vmatprep.subr.mxu0 0.0
        %7226 = vmatpush1.msra.mxu0 0.0
        %7227 = vmatprep.subr.mxu0 0.0
        %7228 = vmatpush1.msra.mxu0 0.0
        %7229 = vmatprep.subr.mxu0 0.0
        %7230 = vmatpush1.msra.mxu0 0.0
        %7231 = vmatprep.subr.mxu0 0.0
        %7232 = vmatpush1.msra.mxu0 0.0
        %7233 = vmatprep.subr.mxu0 0.0
        %7234 = vmatpush1.msra.mxu0 0.0
        %7235 = vmatprep.subr.mxu0 0.0
        %7236 = vmatpush1.msra.mxu0 0.0
        %7237 = vmatprep.subr.mxu0 0.0
        %7238 = vmatpush1.msra.mxu0 0.0
        %7239 = vmatprep.subr.mxu0 0.0
        %7240 = vmatpush1.msra.mxu0 0.0
        %7241 = vmatprep.mubr.f32.mxu0 0.0
        %7242 = vmatmul.mubr.f32.gmra.mrb[0].mxu0 %v6761
        %v7243 = vpop.f32.mrb[0].mxu0
        %v7244 = vadd.f32 %v7175, %v7243
        %v7245 = vpop.f32.mrb[0].mxu0
        %7246 = vdwg.mxu0
        %s7247 = scalar_lea.vmem %s5, 352
        %v7248 = vld [vmem:[%s7247] sm:$0xff]
        %v7249 = vld [vmem:[%s7247 + $0x8] sm:$0xff]
        %v7250 = vld [vmem:[%s7247 + $0x10] sm:$0xff]
        %v7251 = vld [vmem:[%s7247 + $0x18] sm:$0xff]
        %s7252 = scalar_lea.vmem %s8, 34
        %v7253 = vld [vmem:[%s7252] sm:$0x1]
        %v7255 = vlaneseq
        %v7256 = vshrl.u32 %v7255, 7
        %v7257 = vsub.s32 0, %v7256
        %v7258 = vrot.slane %v7253, %v7257
        %7260 = vmatprep.subr.mxu0 0.0
        %7261 = vmatpush1.msra.mxu0 %v7248
        %7262 = vmatprep.subr.mxu0 0.0
        %7263 = vmatpush1.msra.mxu0 %v7249
        %7264 = vmatprep.subr.mxu0 0.0
        %7265 = vmatpush1.msra.mxu0 %v7250
        %7266 = vmatprep.subr.mxu0 0.0
        %7267 = vmatpush1.msra.mxu0 %v7251
        %7268 = vmatprep.subr.mxu0 0.0
        %7269 = vmatpush1.msra.mxu0 0.0
        %7270 = vmatprep.subr.mxu0 0.0
        %7271 = vmatpush1.msra.mxu0 0.0
        %7272 = vmatprep.subr.mxu0 0.0
        %7273 = vmatpush1.msra.mxu0 0.0
        %7274 = vmatprep.subr.mxu0 0.0
        %7275 = vmatpush1.msra.mxu0 0.0
        %7276 = vmatprep.subr.mxu0 0.0
        %7277 = vmatpush1.msra.mxu0 0.0
        %7278 = vmatprep.subr.mxu0 0.0
        %7279 = vmatpush1.msra.mxu0 0.0
        %7280 = vmatprep.subr.mxu0 0.0
        %7281 = vmatpush1.msra.mxu0 0.0
        %7282 = vmatprep.subr.mxu0 0.0
        %7283 = vmatpush1.msra.mxu0 0.0
        %7284 = vmatprep.subr.mxu0 0.0
        %7285 = vmatpush1.msra.mxu0 0.0
        %7286 = vmatprep.subr.mxu0 0.0
        %7287 = vmatpush1.msra.mxu0 0.0
        %7288 = vmatprep.subr.mxu0 0.0
        %7289 = vmatpush1.msra.mxu0 0.0
        %7290 = vmatprep.subr.mxu0 0.0
        %7291 = vmatpush1.msra.mxu0 0.0
        %7292 = vmatprep.subr.mxu0 0.0
        %7293 = vmatpush1.msra.mxu0 0.0
        %7294 = vmatprep.subr.mxu0 0.0
        %7295 = vmatpush1.msra.mxu0 0.0
        %7296 = vmatprep.subr.mxu0 0.0
        %7297 = vmatpush1.msra.mxu0 0.0
        %7298 = vmatprep.subr.mxu0 0.0
        %7299 = vmatpush1.msra.mxu0 0.0
        %7300 = vmatprep.subr.mxu0 0.0
        %7301 = vmatpush1.msra.mxu0 0.0
        %7302 = vmatprep.subr.mxu0 0.0
        %7303 = vmatpush1.msra.mxu0 0.0
        %7304 = vmatprep.subr.mxu0 0.0
        %7305 = vmatpush1.msra.mxu0 0.0
        %7306 = vmatprep.subr.mxu0 0.0
        %7307 = vmatpush1.msra.mxu0 0.0
        %7308 = vmatprep.subr.mxu0 0.0
        %7309 = vmatpush1.msra.mxu0 0.0
        %7310 = vmatprep.subr.mxu0 0.0
        %7311 = vmatpush1.msra.mxu0 0.0
        %7312 = vmatprep.subr.mxu0 0.0
        %7313 = vmatpush1.msra.mxu0 0.0
        %7314 = vmatprep.subr.mxu0 0.0
        %7315 = vmatpush1.msra.mxu0 0.0
        %7316 = vmatprep.subr.mxu0 0.0
        %7317 = vmatpush1.msra.mxu0 0.0
        %7318 = vmatprep.subr.mxu0 0.0
        %7319 = vmatpush1.msra.mxu0 0.0
        %7320 = vmatprep.subr.mxu0 0.0
        %7321 = vmatpush1.msra.mxu0 0.0
        %7322 = vmatprep.subr.mxu0 0.0
        %7323 = vmatpush1.msra.mxu0 0.0
        %7324 = vmatprep.mubr.f32.mxu0 0.0
        %7325 = vmatmul.mubr.f32.gmra.mrb[0].mxu0 %v6761
        %v7326 = vpop.f32.mrb[0].mxu0
        %v7327 = vadd.f32 %v7258, %v7326
        %v7328 = vpop.f32.mrb[0].mxu0
        %7329 = vdwg.mxu0
        %s7330 = scalar_lea.vmem %s6, 352
        %v7331 = vld [vmem:[%s7330] sm:$0xff]
        %v7332 = vld [vmem:[%s7330 + $0x8] sm:$0xff]
        %v7333 = vld [vmem:[%s7330 + $0x10] sm:$0xff]
        %v7334 = vld [vmem:[%s7330 + $0x18] sm:$0xff]
        %s7335 = scalar_lea.vmem %s8, 35
        %v7336 = vld [vmem:[%s7335] sm:$0x1]
        %v7338 = vlaneseq
        %v7339 = vshrl.u32 %v7338, 7
        %v7340 = vsub.s32 0, %v7339
        %v7341 = vrot.slane %v7336, %v7340
        %7343 = vmatprep.subr.mxu0 0.0
        %7344 = vmatpush1.msra.mxu0 %v7331
        %7345 = vmatprep.subr.mxu0 0.0
        %7346 = vmatpush1.msra.mxu0 %v7332
        %7347 = vmatprep.subr.mxu0 0.0
        %7348 = vmatpush1.msra.mxu0 %v7333
        %7349 = vmatprep.subr.mxu0 0.0
        %7350 = vmatpush1.msra.mxu0 %v7334
        %7351 = vmatprep.subr.mxu0 0.0
        %7352 = vmatpush1.msra.mxu0 0.0
        %7353 = vmatprep.subr.mxu0 0.0
        %7354 = vmatpush1.msra.mxu0 0.0
        %7355 = vmatprep.subr.mxu0 0.0
        %7356 = vmatpush1.msra.mxu0 0.0
        %7357 = vmatprep.subr.mxu0 0.0
        %7358 = vmatpush1.msra.mxu0 0.0
        %7359 = vmatprep.subr.mxu0 0.0
        %7360 = vmatpush1.msra.mxu0 0.0
        %7361 = vmatprep.subr.mxu0 0.0
        %7362 = vmatpush1.msra.mxu0 0.0
        %7363 = vmatprep.subr.mxu0 0.0
        %7364 = vmatpush1.msra.mxu0 0.0
        %7365 = vmatprep.subr.mxu0 0.0
        %7366 = vmatpush1.msra.mxu0 0.0
        %7367 = vmatprep.subr.mxu0 0.0
        %7368 = vmatpush1.msra.mxu0 0.0
        %7369 = vmatprep.subr.mxu0 0.0
        %7370 = vmatpush1.msra.mxu0 0.0
        %7371 = vmatprep.subr.mxu0 0.0
        %7372 = vmatpush1.msra.mxu0 0.0
        %7373 = vmatprep.subr.mxu0 0.0
        %7374 = vmatpush1.msra.mxu0 0.0
        %7375 = vmatprep.subr.mxu0 0.0
        %7376 = vmatpush1.msra.mxu0 0.0
        %7377 = vmatprep.subr.mxu0 0.0
        %7378 = vmatpush1.msra.mxu0 0.0
        %7379 = vmatprep.subr.mxu0 0.0
        %7380 = vmatpush1.msra.mxu0 0.0
        %7381 = vmatprep.subr.mxu0 0.0
        %7382 = vmatpush1.msra.mxu0 0.0
        %7383 = vmatprep.subr.mxu0 0.0
        %7384 = vmatpush1.msra.mxu0 0.0
        %7385 = vmatprep.subr.mxu0 0.0
        %7386 = vmatpush1.msra.mxu0 0.0
        %7387 = vmatprep.subr.mxu0 0.0
        %7388 = vmatpush1.msra.mxu0 0.0
        %7389 = vmatprep.subr.mxu0 0.0
        %7390 = vmatpush1.msra.mxu0 0.0
        %7391 = vmatprep.subr.mxu0 0.0
        %7392 = vmatpush1.msra.mxu0 0.0
        %7393 = vmatprep.subr.mxu0 0.0
        %7394 = vmatpush1.msra.mxu0 0.0
        %7395 = vmatprep.subr.mxu0 0.0
        %7396 = vmatpush1.msra.mxu0 0.0
        %7397 = vmatprep.subr.mxu0 0.0
        %7398 = vmatpush1.msra.mxu0 0.0
        %7399 = vmatprep.subr.mxu0 0.0
        %7400 = vmatpush1.msra.mxu0 0.0
        %7401 = vmatprep.subr.mxu0 0.0
        %7402 = vmatpush1.msra.mxu0 0.0
        %7403 = vmatprep.subr.mxu0 0.0
        %7404 = vmatpush1.msra.mxu0 0.0
        %7405 = vmatprep.subr.mxu0 0.0
        %7406 = vmatpush1.msra.mxu0 0.0
        %7407 = vmatprep.mubr.f32.mxu0 0.0
        %7408 = vmatmul.mubr.f32.gmra.mrb[0].mxu0 %v6761
        %v7409 = vpop.f32.mrb[0].mxu0
        %v7410 = vadd.f32 %v7341, %v7409
        %v7411 = vpop.f32.mrb[0].mxu0
        %7412 = vdwg.mxu0
        %v7414 = vsel %vm860, %v7244, 0
        %v7417 = vsel %vm860, %v7327, 0
        %7419 = vmatprep.subr.mxu0 0.0
        %7420 = vmatpush1.xpose.msra.mxu0 %v7417
        %7421 = vmatprep.subr.mxu0 0.0
        %7422 = vmatpush1.xpose.msra.mxu0 0.0
        %7423 = vmatprep.subr.mxu0 0.0
        %7424 = vmatpush1.xpose.msra.mxu0 0.0
        %7425 = vmatprep.subr.mxu0 0.0
        %7426 = vmatpush1.xpose.msra.mxu0 0.0
        %7427 = vmatprep.subr.mxu0 0.0
        %7428 = vmatpush1.xpose.msra.mxu0 0.0
        %7429 = vmatprep.subr.mxu0 0.0
        %7430 = vmatpush1.xpose.msra.mxu0 0.0
        %7431 = vmatprep.subr.mxu0 0.0
        %7432 = vmatpush1.xpose.msra.mxu0 0.0
        %7433 = vmatprep.subr.mxu0 0.0
        %7434 = vmatpush1.xpose.msra.mxu0 0.0
        %7435 = vmatprep.subr.mxu0 0.0
        %7436 = vmatpush1.xpose.msra.mxu0 0.0
        %7437 = vmatprep.subr.mxu0 0.0
        %7438 = vmatpush1.xpose.msra.mxu0 0.0
        %7439 = vmatprep.subr.mxu0 0.0
        %7440 = vmatpush1.xpose.msra.mxu0 0.0
        %7441 = vmatprep.subr.mxu0 0.0
        %7442 = vmatpush1.xpose.msra.mxu0 0.0
        %7443 = vmatprep.subr.mxu0 0.0
        %7444 = vmatpush1.xpose.msra.mxu0 0.0
        %7445 = vmatprep.subr.mxu0 0.0
        %7446 = vmatpush1.xpose.msra.mxu0 0.0
        %7447 = vmatprep.subr.mxu0 0.0
        %7448 = vmatpush1.xpose.msra.mxu0 0.0
        %7449 = vmatprep.subr.mxu0 0.0
        %7450 = vmatpush1.xpose.msra.mxu0 0.0
        %7451 = vmatprep.subr.mxu0 0.0
        %7452 = vmatpush1.xpose.msra.mxu0 0.0
        %7453 = vmatprep.subr.mxu0 0.0
        %7454 = vmatpush1.xpose.msra.mxu0 0.0
        %7455 = vmatprep.subr.mxu0 0.0
        %7456 = vmatpush1.xpose.msra.mxu0 0.0
        %7457 = vmatprep.subr.mxu0 0.0
        %7458 = vmatpush1.xpose.msra.mxu0 0.0
        %7459 = vmatprep.subr.mxu0 0.0
        %7460 = vmatpush1.xpose.msra.mxu0 0.0
        %7461 = vmatprep.subr.mxu0 0.0
        %7462 = vmatpush1.xpose.msra.mxu0 0.0
        %7463 = vmatprep.subr.mxu0 0.0
        %7464 = vmatpush1.xpose.msra.mxu0 0.0
        %7465 = vmatprep.subr.mxu0 0.0
        %7466 = vmatpush1.xpose.msra.mxu0 0.0
        %7467 = vmatprep.subr.mxu0 0.0
        %7468 = vmatpush1.xpose.msra.mxu0 0.0
        %7469 = vmatprep.subr.mxu0 0.0
        %7470 = vmatpush1.xpose.msra.mxu0 0.0
        %7471 = vmatprep.subr.mxu0 0.0
        %7472 = vmatpush1.xpose.msra.mxu0 0.0
        %7473 = vmatprep.subr.mxu0 0.0
        %7474 = vmatpush1.xpose.msra.mxu0 0.0
        %7475 = vmatprep.subr.mxu0 0.0
        %7476 = vmatpush1.xpose.msra.mxu0 0.0
        %7477 = vmatprep.subr.mxu0 0.0
        %7478 = vmatpush1.xpose.msra.mxu0 0.0
        %7479 = vmatprep.subr.mxu0 0.0
        %7480 = vmatpush1.xpose.msra.mxu0 0.0
        %7481 = vmatprep.subr.mxu0 0.0
        %7482 = vmatpush1.xpose.msra.mxu0 0.0
        %7483 = vmatprep.mubr.f32.mxu0 0.0
        %7484 = vmatmul.mubr.f32.gmra.mrb[0].mxu0 %v7414
        %v7485 = vpop.f32.mrb[0].mxu0
        %v7486 = vadd.f32 0.0, %v7485
        %v7487 = vpop.f32.mrb[0].mxu0
        %7488 = vdwg.mxu0
        %v7489 = vmul.f32 %v7486, 0.25
        %v7490 = vadd.f32 %v7489, %v610
        %v7491 = vsel %vm939, %v7490, -inf
        %7492 = vmax.xlane.f32.xlu0 %v7491
        %v7493 = vpop.xlane.xlu0 %7492
        %v7494 = vsub.f32 %v7490, %v7493
        %v7495 = vmul.f32 %v7494, 1.442695
        %v7496 = vpow.pop %v7495
        %v7497 = vsel %vm939, %v7496, 0.0
        %7498 = vadd.xlane.f32.xlu0 %v7497
        %v7499 = vpop.xlane.xlu0 %7498
        %v7500 = vrcp.pop %v7499
        %v7501 = vmul.f32 %v7496, %v7500
        %v7503 = vsel %vm939, %v7501, 0
        %7505 = vmatprep.subr.mxu0 0.0
        %7506 = vmatpush1.msra.mxu0 %v7410
        %7507 = vmatprep.subr.mxu0 0.0
        %7508 = vmatpush1.msra.mxu0 0.0
        %7509 = vmatprep.subr.mxu0 0.0
        %7510 = vmatpush1.msra.mxu0 0.0
        %7511 = vmatprep.subr.mxu0 0.0
        %7512 = vmatpush1.msra.mxu0 0.0
        %7513 = vmatprep.subr.mxu0 0.0
        %7514 = vmatpush1.msra.mxu0 0.0
        %7515 = vmatprep.subr.mxu0 0.0
        %7516 = vmatpush1.msra.mxu0 0.0
        %7517 = vmatprep.subr.mxu0 0.0
        %7518 = vmatpush1.msra.mxu0 0.0
        %7519 = vmatprep.subr.mxu0 0.0
        %7520 = vmatpush1.msra.mxu0 0.0
        %7521 = vmatprep.subr.mxu0 0.0
        %7522 = vmatpush1.msra.mxu0 0.0
        %7523 = vmatprep.subr.mxu0 0.0
        %7524 = vmatpush1.msra.mxu0 0.0
        %7525 = vmatprep.subr.mxu0 0.0
        %7526 = vmatpush1.msra.mxu0 0.0
        %7527 = vmatprep.subr.mxu0 0.0
        %7528 = vmatpush1.msra.mxu0 0.0
        %7529 = vmatprep.subr.mxu0 0.0
        %7530 = vmatpush1.msra.mxu0 0.0
        %7531 = vmatprep.subr.mxu0 0.0
        %7532 = vmatpush1.msra.mxu0 0.0
        %7533 = vmatprep.subr.mxu0 0.0
        %7534 = vmatpush1.msra.mxu0 0.0
        %7535 = vmatprep.subr.mxu0 0.0
        %7536 = vmatpush1.msra.mxu0 0.0
        %7537 = vmatprep.subr.mxu0 0.0
        %7538 = vmatpush1.msra.mxu0 0.0
        %7539 = vmatprep.subr.mxu0 0.0
        %7540 = vmatpush1.msra.mxu0 0.0
        %7541 = vmatprep.subr.mxu0 0.0
        %7542 = vmatpush1.msra.mxu0 0.0
        %7543 = vmatprep.subr.mxu0 0.0
        %7544 = vmatpush1.msra.mxu0 0.0
        %7545 = vmatprep.subr.mxu0 0.0
        %7546 = vmatpush1.msra.mxu0 0.0
        %7547 = vmatprep.subr.mxu0 0.0
        %7548 = vmatpush1.msra.mxu0 0.0
        %7549 = vmatprep.subr.mxu0 0.0
        %7550 = vmatpush1.msra.mxu0 0.0
        %7551 = vmatprep.subr.mxu0 0.0
        %7552 = vmatpush1.msra.mxu0 0.0
        %7553 = vmatprep.subr.mxu0 0.0
        %7554 = vmatpush1.msra.mxu0 0.0
        %7555 = vmatprep.subr.mxu0 0.0
        %7556 = vmatpush1.msra.mxu0 0.0
        %7557 = vmatprep.subr.mxu0 0.0
        %7558 = vmatpush1.msra.mxu0 0.0
        %7559 = vmatprep.subr.mxu0 0.0
        %7560 = vmatpush1.msra.mxu0 0.0
        %7561 = vmatprep.subr.mxu0 0.0
        %7562 = vmatpush1.msra.mxu0 0.0
        %7563 = vmatprep.subr.mxu0 0.0
        %7564 = vmatpush1.msra.mxu0 0.0
        %7565 = vmatprep.subr.mxu0 0.0
        %7566 = vmatpush1.msra.mxu0 0.0
        %7567 = vmatprep.subr.mxu0 0.0
        %7568 = vmatpush1.msra.mxu0 0.0
        %7569 = vmatprep.mubr.f32.mxu0 0.0
        %7570 = vmatmul.mubr.f32.gmra.mrb[0].mxu0 %v7503
        %v7571 = vpop.f32.mrb[0].mxu0
        %v7572 = vadd.f32 0.0, %v7571
        %v7573 = vpop.f32.mrb[0].mxu0
        %7574 = vdwg.mxu0
        %s7575 = scalar_lea.vmem %s7, 176
        %v7576 = vld [vmem:[%s7575] sm:$0xff]
        %v7577 = vld [vmem:[%s7575 + $0x8] sm:$0xff]
        %v7579 = vsel %vm860, %v7572, 0
        %7581 = vmatprep.subr.mxu0 0.0
        %7582 = vmatpush1.msra.mxu0 %v7576
        %7583 = vmatprep.subr.mxu0 0.0
        %7584 = vmatpush1.msra.mxu0 %v7577
        %7585 = vmatprep.subr.mxu0 0.0
        %7586 = vmatpush1.msra.mxu0 0.0
        %7587 = vmatprep.subr.mxu0 0.0
        %7588 = vmatpush1.msra.mxu0 0.0
        %7589 = vmatprep.subr.mxu0 0.0
        %7590 = vmatpush1.msra.mxu0 0.0
        %7591 = vmatprep.subr.mxu0 0.0
        %7592 = vmatpush1.msra.mxu0 0.0
        %7593 = vmatprep.subr.mxu0 0.0
        %7594 = vmatpush1.msra.mxu0 0.0
        %7595 = vmatprep.subr.mxu0 0.0
        %7596 = vmatpush1.msra.mxu0 0.0
        %7597 = vmatprep.subr.mxu0 0.0
        %7598 = vmatpush1.msra.mxu0 0.0
        %7599 = vmatprep.subr.mxu0 0.0
        %7600 = vmatpush1.msra.mxu0 0.0
        %7601 = vmatprep.subr.mxu0 0.0
        %7602 = vmatpush1.msra.mxu0 0.0
        %7603 = vmatprep.subr.mxu0 0.0
        %7604 = vmatpush1.msra.mxu0 0.0
        %7605 = vmatprep.subr.mxu0 0.0
        %7606 = vmatpush1.msra.mxu0 0.0
        %7607 = vmatprep.subr.mxu0 0.0
        %7608 = vmatpush1.msra.mxu0 0.0
        %7609 = vmatprep.subr.mxu0 0.0
        %7610 = vmatpush1.msra.mxu0 0.0
        %7611 = vmatprep.subr.mxu0 0.0
        %7612 = vmatpush1.msra.mxu0 0.0
        %7613 = vmatprep.subr.mxu0 0.0
        %7614 = vmatpush1.msra.mxu0 0.0
        %7615 = vmatprep.subr.mxu0 0.0
        %7616 = vmatpush1.msra.mxu0 0.0
        %7617 = vmatprep.subr.mxu0 0.0
        %7618 = vmatpush1.msra.mxu0 0.0
        %7619 = vmatprep.subr.mxu0 0.0
        %7620 = vmatpush1.msra.mxu0 0.0
        %7621 = vmatprep.subr.mxu0 0.0
        %7622 = vmatpush1.msra.mxu0 0.0
        %7623 = vmatprep.subr.mxu0 0.0
        %7624 = vmatpush1.msra.mxu0 0.0
        %7625 = vmatprep.subr.mxu0 0.0
        %7626 = vmatpush1.msra.mxu0 0.0
        %7627 = vmatprep.subr.mxu0 0.0
        %7628 = vmatpush1.msra.mxu0 0.0
        %7629 = vmatprep.subr.mxu0 0.0
        %7630 = vmatpush1.msra.mxu0 0.0
        %7631 = vmatprep.subr.mxu0 0.0
        %7632 = vmatpush1.msra.mxu0 0.0
        %7633 = vmatprep.subr.mxu0 0.0
        %7634 = vmatpush1.msra.mxu0 0.0
        %7635 = vmatprep.subr.mxu0 0.0
        %7636 = vmatpush1.msra.mxu0 0.0
        %7637 = vmatprep.subr.mxu0 0.0
        %7638 = vmatpush1.msra.mxu0 0.0
        %7639 = vmatprep.subr.mxu0 0.0
        %7640 = vmatpush1.msra.mxu0 0.0
        %7641 = vmatprep.subr.mxu0 0.0
        %7642 = vmatpush1.msra.mxu0 0.0
        %7643 = vmatprep.subr.mxu0 0.0
        %7644 = vmatpush1.msra.mxu0 0.0
        %7645 = vmatprep.mubr.f32.mxu0 0.0
        %7646 = vmatmul.mubr.f32.gmra.mrb[0].mxu0 %v7579
        %v7647 = vpop.f32.mrb[0].mxu0
        %v7648 = vadd.f32 0.0, %v7647
        %v7649 = vpop.f32.mrb[0].mxu0
        %7650 = vdwg.mxu0
        %v7652 = vsel %vm860, %v7158, 0
        %7654 = vmatprep.subr.mxu0 0.0
        %7655 = vmatpush1.msra.mxu0 %v7162
        %7656 = vmatprep.subr.mxu0 0.0
        %7657 = vmatpush1.msra.mxu0 %v7163
        %7658 = vmatprep.subr.mxu0 0.0
        %7659 = vmatpush1.msra.mxu0 0.0
        %7660 = vmatprep.subr.mxu0 0.0
        %7661 = vmatpush1.msra.mxu0 0.0
        %7662 = vmatprep.subr.mxu0 0.0
        %7663 = vmatpush1.msra.mxu0 0.0
        %7664 = vmatprep.subr.mxu0 0.0
        %7665 = vmatpush1.msra.mxu0 0.0
        %7666 = vmatprep.subr.mxu0 0.0
        %7667 = vmatpush1.msra.mxu0 0.0
        %7668 = vmatprep.subr.mxu0 0.0
        %7669 = vmatpush1.msra.mxu0 0.0
        %7670 = vmatprep.subr.mxu0 0.0
        %7671 = vmatpush1.msra.mxu0 0.0
        %7672 = vmatprep.subr.mxu0 0.0
        %7673 = vmatpush1.msra.mxu0 0.0
        %7674 = vmatprep.subr.mxu0 0.0
        %7675 = vmatpush1.msra.mxu0 0.0
        %7676 = vmatprep.subr.mxu0 0.0
        %7677 = vmatpush1.msra.mxu0 0.0
        %7678 = vmatprep.subr.mxu0 0.0
        %7679 = vmatpush1.msra.mxu0 0.0
        %7680 = vmatprep.subr.mxu0 0.0
        %7681 = vmatpush1.msra.mxu0 0.0
        %7682 = vmatprep.subr.mxu0 0.0
        %7683 = vmatpush1.msra.mxu0 0.0
        %7684 = vmatprep.subr.mxu0 0.0
        %7685 = vmatpush1.msra.mxu0 0.0
        %7686 = vmatprep.subr.mxu0 0.0
        %7687 = vmatpush1.msra.mxu0 0.0
        %7688 = vmatprep.subr.mxu0 0.0
        %7689 = vmatpush1.msra.mxu0 0.0
        %7690 = vmatprep.subr.mxu0 0.0
        %7691 = vmatpush1.msra.mxu0 0.0
        %7692 = vmatprep.subr.mxu0 0.0
        %7693 = vmatpush1.msra.mxu0 0.0
        %7694 = vmatprep.subr.mxu0 0.0
        %7695 = vmatpush1.msra.mxu0 0.0
        %7696 = vmatprep.subr.mxu0 0.0
        %7697 = vmatpush1.msra.mxu0 0.0
        %7698 = vmatprep.subr.mxu0 0.0
        %7699 = vmatpush1.msra.mxu0 0.0
        %7700 = vmatprep.subr.mxu0 0.0
        %7701 = vmatpush1.msra.mxu0 0.0
        %7702 = vmatprep.subr.mxu0 0.0
        %7703 = vmatpush1.msra.mxu0 0.0
        %7704 = vmatprep.subr.mxu0 0.0
        %7705 = vmatpush1.msra.mxu0 0.0
        %7706 = vmatprep.subr.mxu0 0.0
        %7707 = vmatpush1.msra.mxu0 0.0
        %7708 = vmatprep.subr.mxu0 0.0
        %7709 = vmatpush1.msra.mxu0 0.0
        %7710 = vmatprep.subr.mxu0 0.0
        %7711 = vmatpush1.msra.mxu0 0.0
        %7712 = vmatprep.subr.mxu0 0.0
        %7713 = vmatpush1.msra.mxu0 0.0
        %7714 = vmatprep.subr.mxu0 0.0
        %7715 = vmatpush1.msra.mxu0 0.0
        %7716 = vmatprep.subr.mxu0 0.0
        %7717 = vmatpush1.msra.mxu0 0.0
        %7718 = vmatprep.mubr.f32.mxu0 0.0
        %7719 = vmatmul.mubr.f32.gmra.mrb[0].mxu0 %v7652
        %v7720 = vpop.f32.mrb[0].mxu0
        %v7721 = vadd.f32 %v7648, %v7720
        %v7722 = vpop.f32.mrb[0].mxu0
        %7723 = vdwg.mxu0
        %v7724 = vlaneseq
        %v7725 = vshrl.u32 %v7724, 7
        %v7726 = vsub.s32 0, %v7725
        %v7727 = vrot.slane %v6746, %v7726
        %v7728 = vadd.f32 %v7721, %v7727
        %v7729 = vadd.f32 %v7728, %v6744
        %v7730 = vsel %vm564, %v7729, 0.0
        %7731 = vadd.xlane.f32.xlu0 %v7730
        %v7732 = vpop.xlane.xlu0 %7731
        %v7733 = vmul.f32 %v7732, %v568
        %v7734 = vsub.f32 %v7729, %v7733
        %v7735 = vmul.f32 %v7734, %v7734
        %v7736 = vsel %vm564, %v7735, 0.0
        %7737 = vadd.xlane.f32.xlu0 %v7736
        %v7738 = vpop.xlane.xlu0 %7737
        %v7739 = vmul.f32 %v7738, %v568
        %v7740 = vadd.f32 %v7739, 1e-12
        %v7741 = vrsqrt.pop %v7740
        %v7742 = vmul.f32 %v7740, %v7741
        %vm7743 = vcmp.eq.f32.partialorder %v7740, inf
        %v7744 = vsel %vm7743, %v7740, %v7742
        %vm7745 = vcmp.eq.f32.partialorder %v7740, 0.0
        %v7746 = vand.u32 %v7740, 2147483648
        %v7747 = vsel %vm7745, %v7746, %v7744
        %v7748 = vrcp.pop %v7747
        %v7749 = vmul.f32 %v7734, %v7748
        %v7750 = vlaneseq
        %v7751 = vshrl.u32 %v7750, 7
        %v7752 = vsub.s32 2, %v7751
        %v7753 = vrot.slane %v6746, %v7752
        %v7754 = vmul.f32 %v7749, %v7753
        %v7755 = vlaneseq
        %v7756 = vshrl.u32 %v7755, 7
        %v7757 = vsub.s32 3, %v7756
        %v7758 = vrot.slane %v6746, %v7757
        %v7759 = vadd.f32 %v7754, %v7758
        %s7760 = scalar_lea.vmem %s9, 160
        %v7761 = vld [vmem:[%s7760] sm:$0xff]
        %v7762 = vld [vmem:[%s7760 + $0x8] sm:$0xff]
        %v7763 = vld [vmem:[%s7760 + $0x10] sm:$0xff]
        %v7764 = vld [vmem:[%s7760 + $0x18] sm:$0xff]
        %s7765 = scalar_lea.vmem %s11, 5
        %v7766 = vld [vmem:[%s7765] sm:$0x1]
        %v7768 = vlaneseq
        %v7769 = vshrl.u32 %v7768, 7
        %v7770 = vsub.s32 0, %v7769
        %v7771 = vrot.slane %v7766, %v7770
        %v7774 = vsel %vm564, %v7759, 0
        %7776 = vmatprep.subr.mxu0 0.0
        %7777 = vmatpush1.msra.mxu0 %v7761
        %7778 = vmatprep.subr.mxu0 0.0
        %7779 = vmatpush1.msra.mxu0 %v7762
        %7780 = vmatprep.subr.mxu0 0.0
        %7781 = vmatpush1.msra.mxu0 %v7763
        %7782 = vmatprep.subr.mxu0 0.0
        %7783 = vmatpush1.msra.mxu0 %v7764
        %7784 = vmatprep.subr.mxu0 0.0
        %7785 = vmatpush1.msra.mxu0 0.0
        %7786 = vmatprep.subr.mxu0 0.0
        %7787 = vmatpush1.msra.mxu0 0.0
        %7788 = vmatprep.subr.mxu0 0.0
        %7789 = vmatpush1.msra.mxu0 0.0
        %7790 = vmatprep.subr.mxu0 0.0
        %7791 = vmatpush1.msra.mxu0 0.0
        %7792 = vmatprep.subr.mxu0 0.0
        %7793 = vmatpush1.msra.mxu0 0.0
        %7794 = vmatprep.subr.mxu0 0.0
        %7795 = vmatpush1.msra.mxu0 0.0
        %7796 = vmatprep.subr.mxu0 0.0
        %7797 = vmatpush1.msra.mxu0 0.0
        %7798 = vmatprep.subr.mxu0 0.0
        %7799 = vmatpush1.msra.mxu0 0.0
        %7800 = vmatprep.subr.mxu0 0.0
        %7801 = vmatpush1.msra.mxu0 0.0
        %7802 = vmatprep.subr.mxu0 0.0
        %7803 = vmatpush1.msra.mxu0 0.0
        %7804 = vmatprep.subr.mxu0 0.0
        %7805 = vmatpush1.msra.mxu0 0.0
        %7806 = vmatprep.subr.mxu0 0.0
        %7807 = vmatpush1.msra.mxu0 0.0
        %7808 = vmatprep.subr.mxu0 0.0
        %7809 = vmatpush1.msra.mxu0 0.0
        %7810 = vmatprep.subr.mxu0 0.0
        %7811 = vmatpush1.msra.mxu0 0.0
        %7812 = vmatprep.subr.mxu0 0.0
        %7813 = vmatpush1.msra.mxu0 0.0
        %7814 = vmatprep.subr.mxu0 0.0
        %7815 = vmatpush1.msra.mxu0 0.0
        %7816 = vmatprep.subr.mxu0 0.0
        %7817 = vmatpush1.msra.mxu0 0.0
        %7818 = vmatprep.subr.mxu0 0.0
        %7819 = vmatpush1.msra.mxu0 0.0
        %7820 = vmatprep.subr.mxu0 0.0
        %7821 = vmatpush1.msra.mxu0 0.0
        %7822 = vmatprep.subr.mxu0 0.0
        %7823 = vmatpush1.msra.mxu0 0.0
        %7824 = vmatprep.subr.mxu0 0.0
        %7825 = vmatpush1.msra.mxu0 0.0
        %7826 = vmatprep.subr.mxu0 0.0
        %7827 = vmatpush1.msra.mxu0 0.0
        %7828 = vmatprep.subr.mxu0 0.0
        %7829 = vmatpush1.msra.mxu0 0.0
        %7830 = vmatprep.subr.mxu0 0.0
        %7831 = vmatpush1.msra.mxu0 0.0
        %7832 = vmatprep.subr.mxu0 0.0
        %7833 = vmatpush1.msra.mxu0 0.0
        %7834 = vmatprep.subr.mxu0 0.0
        %7835 = vmatpush1.msra.mxu0 0.0
        %7836 = vmatprep.subr.mxu0 0.0
        %7837 = vmatpush1.msra.mxu0 0.0
        %7838 = vmatprep.subr.mxu0 0.0
        %7839 = vmatpush1.msra.mxu0 0.0
        %7840 = vmatprep.mubr.f32.mxu0 0.0
        %7841 = vmatmul.mubr.f32.gmra.mrb[0].mxu0 %v7774
        %v7842 = vpop.f32.mrb[0].mxu0
        %v7843 = vadd.f32 %v7771, %v7842
        %v7844 = vpop.f32.mrb[0].mxu0
        %7845 = vdwg.mxu0
        %v7846 = vmul.f32 %v7843, 0.5
        %v7847 = vmul.f32 %v7843, 0.70710677
        %v7848 = verf.f32.pop %v7847
        %v7849 = vadd.f32 %v7848, 1.0
        %v7850 = vmul.f32 %v7846, %v7849
        %s7851 = scalar_lea.vmem %s10, 640
        %v7852 = vld [vmem:[%s7851] sm:$0xff]
        %v7853 = vld [vmem:[%s7851 + $0x8] sm:$0xff]
        %v7854 = vld [vmem:[%s7851 + $0x10] sm:$0xff]
        %v7855 = vld [vmem:[%s7851 + $0x18] sm:$0xff]
        %v7856 = vld [vmem:[%s7851 + $0x20] sm:$0xff]
        %v7857 = vld [vmem:[%s7851 + $0x28] sm:$0xff]
        %v7858 = vld [vmem:[%s7851 + $0x30] sm:$0xff]
        %v7859 = vld [vmem:[%s7851 + $0x38] sm:$0xff]
        %v7860 = vld [vmem:[%s7851 + $0x40] sm:$0xff]
        %v7861 = vld [vmem:[%s7851 + $0x48] sm:$0xff]
        %v7862 = vld [vmem:[%s7851 + $0x50] sm:$0xff]
        %v7863 = vld [vmem:[%s7851 + $0x58] sm:$0xff]
        %v7864 = vld [vmem:[%s7851 + $0x60] sm:$0xff]
        %v7865 = vld [vmem:[%s7851 + $0x68] sm:$0xff]
        %v7866 = vld [vmem:[%s7851 + $0x70] sm:$0xff]
        %v7867 = vld [vmem:[%s7851 + $0x78] sm:$0xff]
        %v7868 = vlaneseq
        %v7869 = vshrl.u32 %v7868, 7
        %v7870 = vsub.s32 1, %v7869
        %v7871 = vrot.slane %v6746, %v7870
        %7872 = vmatprep.subr.mxu0 0.0
        %7873 = vmatpush1.msra.mxu0 %v7852
        %7874 = vmatprep.subr.mxu0 0.0
        %7875 = vmatpush1.msra.mxu0 %v7853
        %7876 = vmatprep.subr.mxu0 0.0
        %7877 = vmatpush1.msra.mxu0 %v7854
        %7878 = vmatprep.subr.mxu0 0.0
        %7879 = vmatpush1.msra.mxu0 %v7855
        %7880 = vmatprep.subr.mxu0 0.0
        %7881 = vmatpush1.msra.mxu0 %v7856
        %7882 = vmatprep.subr.mxu0 0.0
        %7883 = vmatpush1.msra.mxu0 %v7857
        %7884 = vmatprep.subr.mxu0 0.0
        %7885 = vmatpush1.msra.mxu0 %v7858
        %7886 = vmatprep.subr.mxu0 0.0
        %7887 = vmatpush1.msra.mxu0 %v7859
        %7888 = vmatprep.subr.mxu0 0.0
        %7889 = vmatpush1.msra.mxu0 %v7860
        %7890 = vmatprep.subr.mxu0 0.0
        %7891 = vmatpush1.msra.mxu0 %v7861
        %7892 = vmatprep.subr.mxu0 0.0
        %7893 = vmatpush1.msra.mxu0 %v7862
        %7894 = vmatprep.subr.mxu0 0.0
        %7895 = vmatpush1.msra.mxu0 %v7863
        %7896 = vmatprep.subr.mxu0 0.0
        %7897 = vmatpush1.msra.mxu0 %v7864
        %7898 = vmatprep.subr.mxu0 0.0
        %7899 = vmatpush1.msra.mxu0 %v7865
        %7900 = vmatprep.subr.mxu0 0.0
        %7901 = vmatpush1.msra.mxu0 %v7866
        %7902 = vmatprep.subr.mxu0 0.0
        %7903 = vmatpush1.msra.mxu0 %v7867
        %7904 = vmatprep.subr.mxu0 0.0
        %7905 = vmatpush1.msra.mxu0 0.0
        %7906 = vmatprep.subr.mxu0 0.0
        %7907 = vmatpush1.msra.mxu0 0.0
        %7908 = vmatprep.subr.mxu0 0.0
        %7909 = vmatpush1.msra.mxu0 0.0
        %7910 = vmatprep.subr.mxu0 0.0
        %7911 = vmatpush1.msra.mxu0 0.0
        %7912 = vmatprep.subr.mxu0 0.0
        %7913 = vmatpush1.msra.mxu0 0.0
        %7914 = vmatprep.subr.mxu0 0.0
        %7915 = vmatpush1.msra.mxu0 0.0
        %7916 = vmatprep.subr.mxu0 0.0
        %7917 = vmatpush1.msra.mxu0 0.0
        %7918 = vmatprep.subr.mxu0 0.0
        %7919 = vmatpush1.msra.mxu0 0.0
        %7920 = vmatprep.subr.mxu0 0.0
        %7921 = vmatpush1.msra.mxu0 0.0
        %7922 = vmatprep.subr.mxu0 0.0
        %7923 = vmatpush1.msra.mxu0 0.0
        %7924 = vmatprep.subr.mxu0 0.0
        %7925 = vmatpush1.msra.mxu0 0.0
        %7926 = vmatprep.subr.mxu0 0.0
        %7927 = vmatpush1.msra.mxu0 0.0
        %7928 = vmatprep.subr.mxu0 0.0
        %7929 = vmatpush1.msra.mxu0 0.0
        %7930 = vmatprep.subr.mxu0 0.0
        %7931 = vmatpush1.msra.mxu0 0.0
        %7932 = vmatprep.subr.mxu0 0.0
        %7933 = vmatpush1.msra.mxu0 0.0
        %7934 = vmatprep.subr.mxu0 0.0
        %7935 = vmatpush1.msra.mxu0 0.0
        %7936 = vmatprep.mubr.f32.mxu0 0.0
        %7937 = vmatmul.mubr.f32.gmra.mrb[0].mxu0 %v7850
        %v7938 = vpop.f32.mrb[0].mxu0
        %v7939 = vadd.f32 %v7871, %v7938
        %v7940 = vpop.f32.mrb[0].mxu0
        %7941 = vdwg.mxu0
        %v7942 = vadd.f32 %v7939, %v7759
        %v7943 = vsel %vm564, %v7942, 0.0
        %7944 = vadd.xlane.f32.xlu0 %v7943
        %v7945 = vpop.xlane.xlu0 %7944
        %v7946 = vmul.f32 %v7945, %v568
        %v7947 = vsub.f32 %v7942, %v7946
        %v7948 = vmul.f32 %v7947, %v7947
        %v7949 = vsel %vm564, %v7948, 0.0
        %7950 = vadd.xlane.f32.xlu0 %v7949
        %v7951 = vpop.xlane.xlu0 %7950
        %v7952 = vmul.f32 %v7951, %v568
        %v7953 = vadd.f32 %v7952, 1e-12
        %v7954 = vrsqrt.pop %v7953
        %v7955 = vmul.f32 %v7953, %v7954
        %vm7956 = vcmp.eq.f32.partialorder %v7953, inf
        %v7957 = vsel %vm7956, %v7953, %v7955
        %vm7958 = vcmp.eq.f32.partialorder %v7953, 0.0
        %v7959 = vand.u32 %v7953, 2147483648
        %v7960 = vsel %vm7958, %v7959, %v7957
        %v7961 = vrcp.pop %v7960
        %v7962 = vmul.f32 %v7947, %v7961
        %v7963 = vlaneseq
        %v7964 = vshrl.u32 %v7963, 7
        %v7965 = vsub.s32 4, %v7964
        %v7966 = vrot.slane %v6746, %v7965
        %v7967 = vmul.f32 %v7962, %v7966
        %v7968 = vlaneseq
        %v7969 = vshrl.u32 %v7968, 7
        %v7970 = vsub.s32 5, %v7969
        %v7971 = vrot.slane %v6746, %v7970
        %v7972 = vadd.f32 %v7967, %v7971
        %7973 = vst.msk [vmem:[%s530] sm:$0xff] %vm564, %v7972
        %7974 = vst.msk [vmem:[%s537] sm:$0xff] %vm564, %v3059
        %7975 = vst.msk [vmem:[%s544] sm:$0xff] %vm564, %v5512
        %7976 = vst.msk [vmem:[%s551] sm:$0xff] %vm564, %v5516
        %s7977 = sand.u32 %s328, 1
        %s7978 = scalar_lea.sflag [#allocation3], %s7977
        %s7979 = sand.u32 %s328, 1
        %s7980 = smul.addr %s7979, 8
        %s7981 = scalar_lea.vmem [#allocation2], %s7980
        %s7982 = sand.u32 %s37, 1
        %s7983 = scalar_lea.sflag [#allocation5], %s7982
        %s7984 = sand.u32 %s354, 1
        %s7985 = smul.addr %s7984, 8
        %s7986 = scalar_lea.vmem [#allocation4], %s7985
        %s7987 = sand.u32 %s37, 1
        %s7988 = scalar_lea.sflag [#allocation5], %s7987
        %s7989 = sand.u32 %s380, 1
        %s7990 = smul.addr %s7989, 8
        %s7991 = scalar_lea.vmem [#allocation6], %s7990
        %s7992 = sand.u32 %s406, 1
        %s7993 = scalar_lea.sflag [#allocation8], %s7992
        %s7994 = sand.u32 %s406, 1
        %s7995 = smul.addr %s7994, 8
        %s7996 = scalar_lea.vmem [#allocation7], %s7995
        // Predicated region
        $region73: #{tpu_custom_call.1} parent=71 // pred_check
          %p7997 = pneg %p338
        $region74: #{tpu_custom_call.1} parent=71 // pred_check_branch
          %7999 = sbr.rel (%p7997) target = $region76
        $region75: #{tpu_custom_call.1} parent=71 // pred_region
          %s8001 = ssub.s32 128, 128
          %8002 = vsyncadd %s7978, %s8001
          %s8003 = smul.addr %s37, 128
          %s8004 = scalar_lea.hbm %s13, %s8003
          %s8006 = sshll.u32 %s7981, 4
          %s8007 = int_to_ptr.vmem [resolvable:$true] %s8006
          %8009 = dma.vmem_to_hbm [thread:$0]  %s8007, 128, %s8004, %s7978
        $region76: #{tpu_custom_call.1} parent=71 // pred_fallthru
          _
        // Predicated region
        $region77: #{tpu_custom_call.1} parent=71 // pred_check
          %p8010 = pneg %p364
        $region78: #{tpu_custom_call.1} parent=71 // pred_check_branch
          %8012 = sbr.rel (%p8010) target = $region80
        $region79: #{tpu_custom_call.1} parent=71 // pred_region
          %s8014 = ssub.s32 128, 128
          %8015 = vsyncadd %s7983, %s8014
          %s8016 = smul.addr %s37, 128
          %s8017 = scalar_lea.hbm %s14, %s8016
          %s8019 = sshll.u32 %s7986, 4
          %s8020 = int_to_ptr.vmem [resolvable:$true] %s8019
          %8022 = dma.vmem_to_hbm [thread:$0]  %s8020, 128, %s8017, %s7983
        $region80: #{tpu_custom_call.1} parent=71 // pred_fallthru
          _
        // Predicated region
        $region81: #{tpu_custom_call.1} parent=71 // pred_check
          %p8023 = pneg %p390
        $region82: #{tpu_custom_call.1} parent=71 // pred_check_branch
          %8025 = sbr.rel (%p8023) target = $region84
        $region83: #{tpu_custom_call.1} parent=71 // pred_region
          %s8027 = ssub.s32 128, 128
          %8028 = vsyncadd %s7988, %s8027
          %s8029 = smul.addr %s37, 128
          %s8030 = scalar_lea.hbm %s15, %s8029
          %s8032 = sshll.u32 %s7991, 4
          %s8033 = int_to_ptr.vmem [resolvable:$true] %s8032
          %8035 = dma.vmem_to_hbm [thread:$0]  %s8033, 128, %s8030, %s7988
        $region84: #{tpu_custom_call.1} parent=71 // pred_fallthru
          _
        // Predicated region
        $region85: #{tpu_custom_call.1} parent=71 // pred_check
          %p8036 = pneg %p416
        $region86: #{tpu_custom_call.1} parent=71 // pred_check_branch
          %8038 = sbr.rel (%p8036) target = $region88
        $region87: #{tpu_custom_call.1} parent=71 // pred_region
          %s8040 = ssub.s32 128, 128
          %8041 = vsyncadd %s7993, %s8040
          %s8042 = smul.addr %s37, 128
          %s8043 = scalar_lea.hbm %s16, %s8042
          %s8045 = sshll.u32 %s7996, 4
          %s8046 = int_to_ptr.vmem [resolvable:$true] %s8045
          %8048 = dma.vmem_to_hbm [thread:$0]  %s8046, 128, %s8043, %s7993
        $region88: #{tpu_custom_call.1} parent=71 // pred_fallthru
          _
      $region72: #{tpu_custom_call.1} parent=5 // pred_fallthru
        _
      %p8049 = scmp.le.s32.totalorder 2, %s32
      // Predicated region
      $region89: #{tpu_custom_call.1} parent=5 // pred_check
        %p8050 = pneg %p8049
      $region90: #{tpu_custom_call.1} parent=5 // pred_check_branch
        %8052 = sbr.rel (%p8050) target = $region92
      $region91: #{tpu_custom_call.1} parent=5 // pred_region
        %s8053 = ssub.s32 %s32, 2
        // Predicated region
        $region93: #{tpu_custom_call.1} parent=91 // pred_check
          %p8054 = pneg %p344
        $region94: #{tpu_custom_call.1} parent=91 // pred_check_branch
          %8056 = sbr.rel (%p8054) target = $region96
        $region95: #{tpu_custom_call.1} parent=91 // pred_region
          %s8057 = sand.u32 %s329, 1
          %s8058 = scalar_lea.sflag [#allocation3], %s8057
          %s8059 = sand.u32 %s329, 1
          %s8060 = smul.addr %s8059, 8
          %s8061 = scalar_lea.vmem [#allocation2], %s8060
          %8062 = dma.done %s8058, 128
        $region96: #{tpu_custom_call.1} parent=91 // pred_fallthru
          _
        // Predicated region
        $region97: #{tpu_custom_call.1} parent=91 // pred_check
          %p8063 = pneg %p370
        $region98: #{tpu_custom_call.1} parent=91 // pred_check_branch
          %8065 = sbr.rel (%p8063) target = $region100
        $region99: #{tpu_custom_call.1} parent=91 // pred_region
          %s8066 = sand.u32 %s38, 1
          %s8067 = scalar_lea.sflag [#allocation5], %s8066
          %s8068 = sand.u32 %s355, 1
          %s8069 = smul.addr %s8068, 8
          %s8070 = scalar_lea.vmem [#allocation4], %s8069
          %8071 = dma.done %s8067, 128
        $region100: #{tpu_custom_call.1} parent=91 // pred_fallthru
          _
        // Predicated region
        $region101: #{tpu_custom_call.1} parent=91 // pred_check
          %p8072 = pneg %p396
        $region102: #{tpu_custom_call.1} parent=91 // pred_check_branch
          %8074 = sbr.rel (%p8072) target = $region104
        $region103: #{tpu_custom_call.1} parent=91 // pred_region
          %s8075 = sand.u32 %s38, 1
          %s8076 = scalar_lea.sflag [#allocation5], %s8075
          %s8077 = sand.u32 %s381, 1
          %s8078 = smul.addr %s8077, 8
          %s8079 = scalar_lea.vmem [#allocation6], %s8078
          %8080 = dma.done %s8076, 128
        $region104: #{tpu_custom_call.1} parent=91 // pred_fallthru
          _
        // Predicated region
        $region105: #{tpu_custom_call.1} parent=91 // pred_check
          %p8081 = pneg %p422
        $region106: #{tpu_custom_call.1} parent=91 // pred_check_branch
          %8083 = sbr.rel (%p8081) target = $region108
        $region107: #{tpu_custom_call.1} parent=91 // pred_region
          %s8084 = sand.u32 %s407, 1
          %s8085 = scalar_lea.sflag [#allocation8], %s8084
          %s8086 = sand.u32 %s407, 1
          %s8087 = smul.addr %s8086, 8
          %s8088 = scalar_lea.vmem [#allocation7], %s8087
          %8089 = dma.done %s8085, 128
        $region108: #{tpu_custom_call.1} parent=91 // pred_fallthru
          _
      $region92: #{tpu_custom_call.1} parent=5 // pred_fallthru
        _
    $region6: #{tpu_custom_call.1} parent=1 // loop_footer
      %s36 = sadd.s32 1, %s32
    $region7: #{tpu_custom_call.1} parent=1 // loop_footer_branch
      %31 = sbr.rel target = $region3
    $region8: #{tpu_custom_call.1} parent=1 // loop_exit
      _
    %8090 = vsyncpa [#allocation3], 1
    %s8091 = scalar_lea.sflag [#allocation3], 1
    %8092 = vsyncpa %s8091, 1
    %8093 = vsyncpa [#allocation5], 1
    %s8094 = scalar_lea.sflag [#allocation5], 1
    %8095 = vsyncpa %s8094, 1
    %8096 = vsyncpa [#allocation8], 1
    %s8097 = scalar_lea.sflag [#allocation8], 1
    %8098 = vsyncpa %s8097, 1

</llo_original>
